<compile_context>
chip_gen: v5e
topology: v5e:2x2
jax: 0.10.0
libtpu: 0.0.40
codegen_flags: <defaults>
</compile_context>

<pallas_src>
import functools

import jax
import jax.numpy as jnp
from jax import lax
from jax.experimental import pallas as pl
from jax.experimental.pallas import tpu as pltpu

COUT_PAD = 128  # lane-dense head output (sliced back to out_channels in wrapper)


# ---------------------------------------------------------------------------
# Wrapper-side (XLA, once per forward) structured-weight builders.
# ---------------------------------------------------------------------------
def _band_conv_weight(w_hwio, out_w, in_stride, in_lanes):
    """Block-Toeplitz weight for a KHxKW SAME conv applied along a lane-dense
    width axis.  Input pixel xin occupies lanes [xin*in_stride*Ci, +Ci); output
    pixel x occupies lanes [x*Co, +Co).  Returns (KH, in_lanes, out_w*Co): one
    weight slab per vertical tap kh.  Horizontal SAME padding = dropped taps."""
    KH, KW, Ci, Co = w_hwio.shape
    pad = (KW - 1) // 2
    out = jnp.zeros((KH, in_lanes, out_w * Co), w_hwio.dtype)
    for kw in range(KW):
        for x in range(out_w):
            xin = x + kw - pad
            if 0 <= xin < out_w:
                r0 = xin * in_stride * Ci
                out = out.at[:, r0:r0 + Ci, x * Co:(x + 1) * Co].set(w_hwio[:, kw])
    return out


def _head_weight(wh_hwio, chunk_lanes, in_stride, cout_pad):
    """Dense head weight reading the flattened, un-compacted pooled feature:
    feature column r*chunk_lanes + (in_stride*x)*Ci + ci  <->  wh[r, x, ci, :]."""
    KH, KW, Ci, Co = wh_hwio.shape
    out = jnp.zeros((KH * chunk_lanes, cout_pad), wh_hwio.dtype)
    for r in range(KH):
        for x in range(KW):
            r0 = r * chunk_lanes + x * in_stride * Ci
            out = out.at[r0:r0 + Ci, :Co].set(wh_hwio[r, x])
    return out


# ---------------------------------------------------------------------------
# Fused kernel: one grid step == B images, everything stays in VMEM.
# ---------------------------------------------------------------------------
def _convnet_vi_kernel(x_ref, wk1_ref, b1_ref, wk2_ref, b2_ref, wh_ref, bh_ref,
                       o_ref,
                       acc1_ref, pad2_ref, acc2_ref, feat_ref,
                       *, B, H, W, Chid):
    H2, W2 = H // 2, W // 2
    H4 = H2 // 2
    Hp, H2p = H + 2, H2 + 2
    R1 = B * Hp - 2              # conv1 output rows over the stacked tile
    R2 = B * H2p - 2             # conv2 output rows
    L1 = W * Chid                # conv1 output lanes (x-major, channel-minor)
    L1p = (W - 1) * Chid         # after horizontal 2-max (un-compacted)
    L2 = W2 * Chid               # conv2 output lanes
    L2p = (W2 - 1) * Chid

    # ---- conv1: one matmul per vertical tap over the whole row-stacked tile ----
    acc1_ref[...] = jnp.dot(x_ref[0:R1, :], wk1_ref[0],
                            preferred_element_type=jnp.float32)
    for kh in (1, 2):
        acc1_ref[...] += jnp.dot(x_ref[kh:kh + R1, :], wk1_ref[kh],
                                 preferred_element_type=jnp.float32)

    # ---- 2x2 maxpool then bias+relu (pool commutes with the per-channel
    # monotone map relu(.+b)); build the layer-2 row stack with zero pad rows ----
    zrow = jnp.zeros((1, L1p), jnp.float32)
    for b in range(B):
        s0 = b * Hp
        wmax = jnp.maximum(acc1_ref[s0:s0 + H, 0:L1p],
                           acc1_ref[s0:s0 + H, Chid:L1])          # (H, L1p)
        hmax = wmax.reshape(H2, 2, L1p).max(axis=1)               # (H2, L1p)
        act = jnp.maximum(hmax + b1_ref[...], 0.0)
        d0 = b * H2p
        pad2_ref[d0:d0 + 1, :] = zrow                             # top zero row
        pad2_ref[d0 + H2 + 1:d0 + H2 + 2, :] = zrow               # bottom zero row
        pad2_ref[d0 + 1:d0 + 1 + H2, :] = act                     # interior rows

    # ---- conv2 -----------------------------------------------------------------
    acc2_ref[...] = jnp.dot(pad2_ref[0:R2, :], wk2_ref[0],
                            preferred_element_type=jnp.float32)
    for kh in (1, 2):
        acc2_ref[...] += jnp.dot(pad2_ref[kh:kh + R2, :], wk2_ref[kh],
                                 preferred_element_type=jnp.float32)

    # ---- 2x2 maxpool + bias + relu, flatten into the head feature matrix --------
    for b in range(B):
        s0 = b * H2p
        wmax = jnp.maximum(acc2_ref[s0:s0 + H2, 0:L2p],
                           acc2_ref[s0:s0 + H2, Chid:L2])         # (H2, L2p)
        hmax = wmax.reshape(H4, 2, L2p).max(axis=1)               # (H4, L2p)
        act = jnp.maximum(hmax + b2_ref[...], 0.0)
        for r in range(H4):
            feat_ref[b:b + 1, r * L2p:(r + 1) * L2p] = act[r:r + 1, :]

    # ---- head: ONE (B, H4*L2p) x (H4*L2p, 128) matmul, lane-dense store ----------
    out = jnp.dot(feat_ref[...], wh_ref[...],
                  preferred_element_type=jnp.float32) + bh_ref[...]
    o_ref[...] = out.astype(o_ref.dtype)


def convnet_vi_pallas(x_nhwc, w1_hwio, b1, w2_hwio, b2, wh_hwio, bh, *,
                      batch_tile=8):
    """Fused ConvNet_VI forward. Inputs: NHWC activations, HWIO weights."""
    N, H, W, Cin = x_nhwc.shape
    Chid = w1_hwio.shape[-1]
    Cout = wh_hwio.shape[-1]
    assert H % 4 == 0 and W % 4 == 0
    H2, W2, H4, W4 = H // 2, W // 2, H // 4, W // 4
    assert wh_hwio.shape[:2] == (H4, W4), "head kernel must cover the pooled map"
    B = batch_tile
    assert B % 8 == 0 and B > 0
    Np = -(-N // B) * B
    G = Np // B

    # Lane-dense, vertically zero-padded row stack: (Np*(H+2), W*Cin).
    xp = jnp.pad(x_nhwc, ((0, Np - N), (1, 1), (0, 0), (0, 0)))
    x_rows = xp.reshape(Np * (H + 2), W * Cin)

    # Structured weights (built once per forward from the noise-folded weights).
    wk1 = _band_conv_weight(w1_hwio, W, 1, W * Cin)                  # (3, W*Cin, W*Chid)
    wk2 = _band_conv_weight(w2_hwio, W2, 2, (W - 1) * Chid)          # (3, (W-1)*Chid, W2*Chid)
    whf = _head_weight(wh_hwio, (W2 - 1) * Chid, 2, COUT_PAD)        # (H4*(W2-1)*Chid, 128)
    b1r = jnp.tile(b1, W - 1).reshape(1, (W - 1) * Chid)
    b2r = jnp.tile(b2, W2 - 1).reshape(1, (W2 - 1) * Chid)
    bhr = jnp.pad(bh, (0, COUT_PAD - Cout)).reshape(1, COUT_PAD)

    kern = functools.partial(_convnet_vi_kernel, B=B, H=H, W=W, Chid=Chid)
    out = pl.pallas_call(
        kern,
        out_shape=jax.ShapeDtypeStruct((Np, COUT_PAD), jnp.float32),
        grid=(G,),
        in_specs=[
            pl.BlockSpec((B * (H + 2), W * Cin), lambda n: (n, 0)),
            pl.BlockSpec((3, W * Cin, W * Chid), lambda n: (0, 0, 0)),
            pl.BlockSpec((1, (W - 1) * Chid), lambda n: (0, 0)),
            pl.BlockSpec((3, (W - 1) * Chid, W2 * Chid), lambda n: (0, 0, 0)),
            pl.BlockSpec((1, (W2 - 1) * Chid), lambda n: (0, 0)),
            pl.BlockSpec((H4 * (W2 - 1) * Chid, COUT_PAD), lambda n: (0, 0)),
            pl.BlockSpec((1, COUT_PAD), lambda n: (0, 0)),
        ],
        out_specs=pl.BlockSpec((B, COUT_PAD), lambda n: (n, 0)),
        scratch_shapes=[
            pltpu.VMEM((B * (H + 2) - 2, W * Chid), jnp.float32),     # conv1 rows
            pltpu.VMEM((B * (H2 + 2), (W - 1) * Chid), jnp.float32),  # layer-2 padded stack
            pltpu.VMEM((B * (H2 + 2) - 2, W2 * Chid), jnp.float32),   # conv2 rows
            pltpu.VMEM((B, H4 * (W2 - 1) * Chid), jnp.float32),       # head features
        ],
        compiler_params=pltpu.CompilerParams(
            dimension_semantics=("parallel",),     # v7x: 2 TCs split the grid
            vmem_limit_bytes=32 * 1024 * 1024),
    )(x_rows, wk1, b1r, wk2, b2r, whf, bhr)
    return out[:N, :Cout]


# ---------------------------------------------------------------------------
# Parameters (deterministic; mirrors ConvNet_VI.__init__ shapes, log_var layers
# initialized to sigma_0 = -6 as in initialize_weights_biases).
# ---------------------------------------------------------------------------
def make_params(key, in_channels, hidden, out_channels, sigma_0=-6.0):
    ks = jax.random.split(key, 6)
    cw = lambda k, co, ci, kh, kw: 0.1 * jax.random.normal(
        k, (co, ci, kh, kw), jnp.float32)                     # OIHW (PyTorch layout)
    return {
        "mu1_w": cw(ks[0], hidden, in_channels, 3, 3),
        "mu1_b": 0.1 * jax.random.normal(ks[1], (hidden,), jnp.float32),
        "mu2_w": cw(ks[2], hidden, hidden, 3, 3),
        "mu2_b": 0.1 * jax.random.normal(ks[3], (hidden,), jnp.float32),
        "muh_w": cw(ks[4], out_channels, hidden, 7, 7),
        "muh_b": 0.1 * jax.random.normal(ks[5], (out_channels,), jnp.float32),
        "lv1_w": jnp.full((hidden, in_channels, 3, 3), sigma_0, jnp.float32),
        "lv1_b": jnp.full((hidden,), sigma_0, jnp.float32),
        "lv2_w": jnp.full((hidden, hidden, 3, 3), sigma_0, jnp.float32),
        "lv2_b": jnp.full((hidden,), sigma_0, jnp.float32),
        "lvh_w": jnp.full((out_channels, hidden, 7, 7), sigma_0, jnp.float32),
        "lvh_b": jnp.full((out_channels,), sigma_0, jnp.float32),
    }


def forward(params, x_nchw, noise_key):
    """ConvNet_VI.forward. Returns logits (N, out_channels) and the effective
    (noise-folded) parameters used, for reference checking."""
    nk = jax.random.split(noise_key, 6)

    # mu(x) + Exponentiated_Noised_Conv2d(x) == conv(x, mu_W + exp(0.5*lv_W)*eps_W)
    #                                            + (mu_b + exp(0.5*lv_b)*eps_b)
    def eff(mu_w, mu_b, lv_w, lv_b, kw_, kb_):
        Wn = mu_w + jnp.exp(0.5 * lv_w) * jax.random.normal(kw_, lv_w.shape, lv_w.dtype)
        bn = mu_b + jnp.exp(0.5 * lv_b) * jax.random.normal(kb_, lv_b.shape, lv_b.dtype)
        return Wn, bn

    W1, b1 = eff(params["mu1_w"], params["mu1_b"], params["lv1_w"], params["lv1_b"], nk[0], nk[1])
    W2, b2 = eff(params["mu2_w"], params["mu2_b"], params["lv2_w"], params["lv2_b"], nk[2], nk[3])
    Wh, bh = eff(params["muh_w"], params["muh_b"], params["lvh_w"], params["lvh_b"], nk[4], nk[5])

    to_hwio = lambda w: jnp.transpose(w, (2, 3, 1, 0))        # OIHW -> HWIO
    W1h, W2h, Whh = to_hwio(W1), to_hwio(W2), to_hwio(Wh)

    x = jnp.transpose(x_nchw, (0, 2, 3, 1))                   # NCHW -> NHWC
    logits = convnet_vi_pallas(x, W1h, b1, W2h, b2, Whh, bh)
    return logits, (W1h, b1, W2h, b2, Whh, bh)


def ref_forward(x_nchw, W1h, b1, W2h, b2, Whh, bh):
    dn = ('NHWC', 'HWIO', 'NHWC')
    x = jnp.transpose(x_nchw, (0, 2, 3, 1))
    y = lax.conv_general_dilated(x, W1h, (1, 1), 'SAME', dimension_numbers=dn) + b1
    y = jnp.maximum(y, 0.0)
    y = lax.reduce_window(y, -jnp.inf, lax.max, (1, 2, 2, 1), (1, 2, 2, 1), 'VALID')
    y = lax.conv_general_dilated(y, W2h, (1, 1), 'SAME', dimension_numbers=dn) + b2
    y = jnp.maximum(y, 0.0)
    y = lax.reduce_window(y, -jnp.inf, lax.max, (1, 2, 2, 1), (1, 2, 2, 1), 'VALID')
    y = lax.conv_general_dilated(y, Whh, (1, 1), 'VALID', dimension_numbers=dn) + bh
    return y.reshape(y.shape[0], -1)


if __name__ == "__main__":
    key = jax.random.PRNGKey(0)
    pkey, xkey, nkey = jax.random.split(key, 3)

    # Spatial size must be 28 so that two 2x2 pools + the 7x7 VALID head give a
    # 1x1 output (permuted-MNIST geometry); channels kept small.  N=16 with a
    # batch tile of 8 -> grid of 2 (keeps both v7x TensorCores busy).
    N, in_channels, hidden, out_channels, H, W = 16, 4, 8, 10, 28, 28

    params = make_params(pkey, in_channels, hidden, out_channels)
    x = jax.random.normal(xkey, (N, in_channels, H, W), jnp.float32)

    fwd = jax.jit(forward)
    out, eff_params = fwd(params, x, nkey)
    out = jax.block_until_ready(out)

    assert out.shape == (N, out_channels), out.shape
    ref = ref_forward(x, *eff_params)
    if not bool(jnp.allclose(out, ref, atol=2e-3, rtol=2e-3)):
        raise AssertionError("Pallas output does not match JAX reference")
    print("KERNEL_OK")
</pallas_src>

<mosaic_0001>
module attributes {stable_mosaic.version = 11 : i64} {
  func.func @_convnet_vi_kernel(%arg0: i32, %arg1: memref<240x112xf32, #tpu.memory_space<vmem>>, %arg2: memref<3x112x224xf32, #tpu.memory_space<vmem>>, %arg3: memref<1x216xf32, #tpu.memory_space<vmem>>, %arg4: memref<3x216x112xf32, #tpu.memory_space<vmem>>, %arg5: memref<1x104xf32, #tpu.memory_space<vmem>>, %arg6: memref<728x128xf32, #tpu.memory_space<vmem>>, %arg7: memref<1x128xf32, #tpu.memory_space<vmem>>, %arg8: memref<8x128xf32, #tpu.memory_space<vmem>>, %arg9: memref<238x224xf32, #tpu.memory_space<vmem>>, %arg10: memref<128x216xf32, #tpu.memory_space<vmem>>, %arg11: memref<126x112xf32, #tpu.memory_space<vmem>>, %arg12: memref<8x728xf32, #tpu.memory_space<vmem>>) attributes {dimension_semantics = [#tpu.dimension_semantics<parallel>], iteration_bounds = array<i64: 2>, scalar_prefetch = 0 : i64, scratch_operands = 4 : i64, tpu.core_type = #tpu.core_type<tc>, window_params = [{transform_indices = @transform_0, window_bounds = array<i64: 240, 112>}, {pipeline_mode = #tpu.pipeline_mode<synchronous>, transform_indices = @transform_1, window_bounds = array<i64: 3, 112, 224>}, {pipeline_mode = #tpu.pipeline_mode<synchronous>, transform_indices = @transform_2, window_bounds = array<i64: 1, 216>}, {pipeline_mode = #tpu.pipeline_mode<synchronous>, transform_indices = @transform_3, window_bounds = array<i64: 3, 216, 112>}, {pipeline_mode = #tpu.pipeline_mode<synchronous>, transform_indices = @transform_4, window_bounds = array<i64: 1, 104>}, {pipeline_mode = #tpu.pipeline_mode<synchronous>, transform_indices = @transform_5, window_bounds = array<i64: 728, 128>}, {pipeline_mode = #tpu.pipeline_mode<synchronous>, transform_indices = @transform_6, window_bounds = array<i64: 1, 128>}, {transform_indices = @transform_7, window_bounds = array<i64: 8, 128>}]} {
    %c0 = arith.constant 0 : index
    %c0_0 = arith.constant 0 : index
    %0 = vector.load %arg1[%c0, %c0_0] : memref<240x112xf32, #tpu.memory_space<vmem>>, vector<238x112xf32>
    %c0_1 = arith.constant 0 : index
    %c0_2 = arith.constant 0 : index
    %c0_3 = arith.constant 0 : index
    %1 = vector.load %arg2[%c0_1, %c0_2, %c0_3] : memref<3x112x224xf32, #tpu.memory_space<vmem>>, vector<1x112x224xf32>
    %2 = vector.shape_cast %1 : vector<1x112x224xf32> to vector<112x224xf32>
    %cst = arith.constant dense<0.000000e+00> : vector<238x224xf32>
    %3 = tpu.matmul %0, %2, %cst {dimension_numbers = #tpu.dot_dimension_numbers<[1], [0], [0], [1], [0, 0, 1, 1], [], []>} : vector<238x112xf32>, vector<112x224xf32>, vector<238x224xf32> -> vector<238x224xf32>
    %c0_4 = arith.constant 0 : index
    %c0_5 = arith.constant 0 : index
    %4 = vector.load %arg9[%c0_4, %c0_5] : memref<238x224xf32, #tpu.memory_space<vmem>>, vector<238x224xf32>
    tpu.vector_store %arg9[%c0_4, %c0_5], %3 {strides = array<i32>} : memref<238x224xf32, #tpu.memory_space<vmem>>, vector<238x224xf32>,
    %c0_6 = arith.constant 0 : index
    %c0_7 = arith.constant 0 : index
    %5 = vector.load %arg9[%c0_6, %c0_7] : memref<238x224xf32, #tpu.memory_space<vmem>>, vector<238x224xf32>
    %c1 = arith.constant 1 : index
    %c0_8 = arith.constant 0 : index
    %6 = vector.load %arg1[%c1, %c0_8] : memref<240x112xf32, #tpu.memory_space<vmem>>, vector<238x112xf32>
    %c1_9 = arith.constant 1 : index
    %c0_10 = arith.constant 0 : index
    %c0_11 = arith.constant 0 : index
    %7 = vector.load %arg2[%c1_9, %c0_10, %c0_11] : memref<3x112x224xf32, #tpu.memory_space<vmem>>, vector<1x112x224xf32>
    %8 = vector.shape_cast %7 : vector<1x112x224xf32> to vector<112x224xf32>
    %cst_12 = arith.constant dense<0.000000e+00> : vector<238x224xf32>
    %9 = tpu.matmul %6, %8, %cst_12 {dimension_numbers = #tpu.dot_dimension_numbers<[1], [0], [0], [1], [0, 0, 1, 1], [], []>} : vector<238x112xf32>, vector<112x224xf32>, vector<238x224xf32> -> vector<238x224xf32>
    %10 = arith.addf %5, %9 : vector<238x224xf32>
    %c0_13 = arith.constant 0 : index
    %c0_14 = arith.constant 0 : index
    %11 = vector.load %arg9[%c0_13, %c0_14] : memref<238x224xf32, #tpu.memory_space<vmem>>, vector<238x224xf32>
    tpu.vector_store %arg9[%c0_13, %c0_14], %10 {strides = array<i32>} : memref<238x224xf32, #tpu.memory_space<vmem>>, vector<238x224xf32>,
    %c0_15 = arith.constant 0 : index
    %c0_16 = arith.constant 0 : index
    %12 = vector.load %arg9[%c0_15, %c0_16] : memref<238x224xf32, #tpu.memory_space<vmem>>, vector<238x224xf32>
    %c2 = arith.constant 2 : index
    %c0_17 = arith.constant 0 : index
    %13 = vector.load %arg1[%c2, %c0_17] : memref<240x112xf32, #tpu.memory_space<vmem>>, vector<238x112xf32>
    %c2_18 = arith.constant 2 : index
    %c0_19 = arith.constant 0 : index
    %c0_20 = arith.constant 0 : index
    %14 = vector.load %arg2[%c2_18, %c0_19, %c0_20] : memref<3x112x224xf32, #tpu.memory_space<vmem>>, vector<1x112x224xf32>
    %15 = vector.shape_cast %14 : vector<1x112x224xf32> to vector<112x224xf32>
    %cst_21 = arith.constant dense<0.000000e+00> : vector<238x224xf32>
    %16 = tpu.matmul %13, %15, %cst_21 {dimension_numbers = #tpu.dot_dimension_numbers<[1], [0], [0], [1], [0, 0, 1, 1], [], []>} : vector<238x112xf32>, vector<112x224xf32>, vector<238x224xf32> -> vector<238x224xf32>
    %17 = arith.addf %12, %16 : vector<238x224xf32>
    %c0_22 = arith.constant 0 : index
    %c0_23 = arith.constant 0 : index
    %18 = vector.load %arg9[%c0_22, %c0_23] : memref<238x224xf32, #tpu.memory_space<vmem>>, vector<238x224xf32>
    tpu.vector_store %arg9[%c0_22, %c0_23], %17 {strides = array<i32>} : memref<238x224xf32, #tpu.memory_space<vmem>>, vector<238x224xf32>,
    %cst_24 = arith.constant 0.000000e+00 : f32
    %19 = vector.broadcast %cst_24 : f32 to vector<1x216xf32>
    %c0_25 = arith.constant 0 : index
    %c0_26 = arith.constant 0 : index
    %20 = vector.load %arg9[%c0_25, %c0_26] : memref<238x224xf32, #tpu.memory_space<vmem>>, vector<28x216xf32>
    %c0_27 = arith.constant 0 : index
    %c8 = arith.constant 8 : index
    %21 = vector.load %arg9[%c0_27, %c8] : memref<238x224xf32, #tpu.memory_space<vmem>>, vector<28x216xf32>
    %22 = arith.maximumf %20, %21 : vector<28x216xf32>
    %23 = vector.shape_cast %22 : vector<28x216xf32> to vector<14x2x216xf32>
    %cst_28 = arith.constant dense<0xFF800000> : vector<14x216xf32>
    %24 = vector.multi_reduction <maximumf>, %23, %cst_28 [1] : vector<14x2x216xf32> to vector<14x216xf32>
    %c0_29 = arith.constant 0 : index
    %c0_30 = arith.constant 0 : index
    %25 = vector.load %arg3[%c0_29, %c0_30] : memref<1x216xf32, #tpu.memory_space<vmem>>, vector<1x216xf32>
    %26 = vector.broadcast %25 : vector<1x216xf32> to vector<14x216xf32>
    %27 = arith.addf %24, %26 : vector<14x216xf32>
    %cst_31 = arith.constant 0.000000e+00 : f32
    %28 = vector.broadcast %cst_31 : f32 to vector<14x216xf32>
    %29 = arith.maximumf %27, %28 : vector<14x216xf32>
    %c0_32 = arith.constant 0 : index
    %c0_33 = arith.constant 0 : index
    %30 = vector.load %arg10[%c0_32, %c0_33] : memref<128x216xf32, #tpu.memory_space<vmem>>, vector<1x216xf32>
    tpu.vector_store %arg10[%c0_32, %c0_33], %19 {strides = array<i32>} : memref<128x216xf32, #tpu.memory_space<vmem>>, vector<1x216xf32>,
    %c15 = arith.constant 15 : index
    %c0_34 = arith.constant 0 : index
    %31 = vector.load %arg10[%c15, %c0_34] : memref<128x216xf32, #tpu.memory_space<vmem>>, vector<1x216xf32>
    tpu.vector_store %arg10[%c15, %c0_34], %19 {strides = array<i32>} : memref<128x216xf32, #tpu.memory_space<vmem>>, vector<1x216xf32>,
    %c1_35 = arith.constant 1 : index
    %c0_36 = arith.constant 0 : index
    %32 = vector.load %arg10[%c1_35, %c0_36] : memref<128x216xf32, #tpu.memory_space<vmem>>, vector<14x216xf32>
    tpu.vector_store %arg10[%c1_35, %c0_36], %29 {strides = array<i32>} : memref<128x216xf32, #tpu.memory_space<vmem>>, vector<14x216xf32>,
    %c30 = arith.constant 30 : index
    %c0_37 = arith.constant 0 : index
    %33 = vector.load %arg9[%c30, %c0_37] : memref<238x224xf32, #tpu.memory_space<vmem>>, vector<28x216xf32>
    %c30_38 = arith.constant 30 : index
    %c8_39 = arith.constant 8 : index
    %34 = vector.load %arg9[%c30_38, %c8_39] : memref<238x224xf32, #tpu.memory_space<vmem>>, vector<28x216xf32>
    %35 = arith.maximumf %33, %34 : vector<28x216xf32>
    %36 = vector.shape_cast %35 : vector<28x216xf32> to vector<14x2x216xf32>
    %cst_40 = arith.constant dense<0xFF800000> : vector<14x216xf32>
    %37 = vector.multi_reduction <maximumf>, %36, %cst_40 [1] : vector<14x2x216xf32> to vector<14x216xf32>
    %c0_41 = arith.constant 0 : index
    %c0_42 = arith.constant 0 : index
    %38 = vector.load %arg3[%c0_41, %c0_42] : memref<1x216xf32, #tpu.memory_space<vmem>>, vector<1x216xf32>
    %39 = vector.broadcast %38 : vector<1x216xf32> to vector<14x216xf32>
    %40 = arith.addf %37, %39 : vector<14x216xf32>
    %cst_43 = arith.constant 0.000000e+00 : f32
    %41 = vector.broadcast %cst_43 : f32 to vector<14x216xf32>
    %42 = arith.maximumf %40, %41 : vector<14x216xf32>
    %c16 = arith.constant 16 : index
    %c0_44 = arith.constant 0 : index
    %43 = vector.load %arg10[%c16, %c0_44] : memref<128x216xf32, #tpu.memory_space<vmem>>, vector<1x216xf32>
    tpu.vector_store %arg10[%c16, %c0_44], %19 {strides = array<i32>} : memref<128x216xf32, #tpu.memory_space<vmem>>, vector<1x216xf32>,
    %c31 = arith.constant 31 : index
    %c0_45 = arith.constant 0 : index
    %44 = vector.load %arg10[%c31, %c0_45] : memref<128x216xf32, #tpu.memory_space<vmem>>, vector<1x216xf32>
    tpu.vector_store %arg10[%c31, %c0_45], %19 {strides = array<i32>} : memref<128x216xf32, #tpu.memory_space<vmem>>, vector<1x216xf32>,
    %c17 = arith.constant 17 : index
    %c0_46 = arith.constant 0 : index
    %45 = vector.load %arg10[%c17, %c0_46] : memref<128x216xf32, #tpu.memory_space<vmem>>, vector<14x216xf32>
    tpu.vector_store %arg10[%c17, %c0_46], %42 {strides = array<i32>} : memref<128x216xf32, #tpu.memory_space<vmem>>, vector<14x216xf32>,
    %c60 = arith.constant 60 : index
    %c0_47 = arith.constant 0 : index
    %46 = vector.load %arg9[%c60, %c0_47] : memref<238x224xf32, #tpu.memory_space<vmem>>, vector<28x216xf32>
    %c60_48 = arith.constant 60 : index
    %c8_49 = arith.constant 8 : index
    %47 = vector.load %arg9[%c60_48, %c8_49] : memref<238x224xf32, #tpu.memory_space<vmem>>, vector<28x216xf32>
    %48 = arith.maximumf %46, %47 : vector<28x216xf32>
    %49 = vector.shape_cast %48 : vector<28x216xf32> to vector<14x2x216xf32>
    %cst_50 = arith.constant dense<0xFF800000> : vector<14x216xf32>
    %50 = vector.multi_reduction <maximumf>, %49, %cst_50 [1] : vector<14x2x216xf32> to vector<14x216xf32>
    %c0_51 = arith.constant 0 : index
    %c0_52 = arith.constant 0 : index
    %51 = vector.load %arg3[%c0_51, %c0_52] : memref<1x216xf32, #tpu.memory_space<vmem>>, vector<1x216xf32>
    %52 = vector.broadcast %51 : vector<1x216xf32> to vector<14x216xf32>
    %53 = arith.addf %50, %52 : vector<14x216xf32>
    %cst_53 = arith.constant 0.000000e+00 : f32
    %54 = vector.broadcast %cst_53 : f32 to vector<14x216xf32>
    %55 = arith.maximumf %53, %54 : vector<14x216xf32>
    %c32 = arith.constant 32 : index
    %c0_54 = arith.constant 0 : index
    %56 = vector.load %arg10[%c32, %c0_54] : memref<128x216xf32, #tpu.memory_space<vmem>>, vector<1x216xf32>
    tpu.vector_store %arg10[%c32, %c0_54], %19 {strides = array<i32>} : memref<128x216xf32, #tpu.memory_space<vmem>>, vector<1x216xf32>,
    %c47 = arith.constant 47 : index
    %c0_55 = arith.constant 0 : index
    %57 = vector.load %arg10[%c47, %c0_55] : memref<128x216xf32, #tpu.memory_space<vmem>>, vector<1x216xf32>
    tpu.vector_store %arg10[%c47, %c0_55], %19 {strides = array<i32>} : memref<128x216xf32, #tpu.memory_space<vmem>>, vector<1x216xf32>,
    %c33 = arith.constant 33 : index
    %c0_56 = arith.constant 0 : index
    %58 = vector.load %arg10[%c33, %c0_56] : memref<128x216xf32, #tpu.memory_space<vmem>>, vector<14x216xf32>
    tpu.vector_store %arg10[%c33, %c0_56], %55 {strides = array<i32>} : memref<128x216xf32, #tpu.memory_space<vmem>>, vector<14x216xf32>,
    %c90 = arith.constant 90 : index
    %c0_57 = arith.constant 0 : index
    %59 = vector.load %arg9[%c90, %c0_57] : memref<238x224xf32, #tpu.memory_space<vmem>>, vector<28x216xf32>
    %c90_58 = arith.constant 90 : index
    %c8_59 = arith.constant 8 : index
    %60 = vector.load %arg9[%c90_58, %c8_59] : memref<238x224xf32, #tpu.memory_space<vmem>>, vector<28x216xf32>
    %61 = arith.maximumf %59, %60 : vector<28x216xf32>
    %62 = vector.shape_cast %61 : vector<28x216xf32> to vector<14x2x216xf32>
    %cst_60 = arith.constant dense<0xFF800000> : vector<14x216xf32>
    %63 = vector.multi_reduction <maximumf>, %62, %cst_60 [1] : vector<14x2x216xf32> to vector<14x216xf32>
    %c0_61 = arith.constant 0 : index
    %c0_62 = arith.constant 0 : index
    %64 = vector.load %arg3[%c0_61, %c0_62] : memref<1x216xf32, #tpu.memory_space<vmem>>, vector<1x216xf32>
    %65 = vector.broadcast %64 : vector<1x216xf32> to vector<14x216xf32>
    %66 = arith.addf %63, %65 : vector<14x216xf32>
    %cst_63 = arith.constant 0.000000e+00 : f32
    %67 = vector.broadcast %cst_63 : f32 to vector<14x216xf32>
    %68 = arith.maximumf %66, %67 : vector<14x216xf32>
    %c48 = arith.constant 48 : index
    %c0_64 = arith.constant 0 : index
    %69 = vector.load %arg10[%c48, %c0_64] : memref<128x216xf32, #tpu.memory_space<vmem>>, vector<1x216xf32>
    tpu.vector_store %arg10[%c48, %c0_64], %19 {strides = array<i32>} : memref<128x216xf32, #tpu.memory_space<vmem>>, vector<1x216xf32>,
    %c63 = arith.constant 63 : index
    %c0_65 = arith.constant 0 : index
    %70 = vector.load %arg10[%c63, %c0_65] : memref<128x216xf32, #tpu.memory_space<vmem>>, vector<1x216xf32>
    tpu.vector_store %arg10[%c63, %c0_65], %19 {strides = array<i32>} : memref<128x216xf32, #tpu.memory_space<vmem>>, vector<1x216xf32>,
    %c49 = arith.constant 49 : index
    %c0_66 = arith.constant 0 : index
    %71 = vector.load %arg10[%c49, %c0_66] : memref<128x216xf32, #tpu.memory_space<vmem>>, vector<14x216xf32>
    tpu.vector_store %arg10[%c49, %c0_66], %68 {strides = array<i32>} : memref<128x216xf32, #tpu.memory_space<vmem>>, vector<14x216xf32>,
    %c120 = arith.constant 120 : index
    %c0_67 = arith.constant 0 : index
    %72 = vector.load %arg9[%c120, %c0_67] : memref<238x224xf32, #tpu.memory_space<vmem>>, vector<28x216xf32>
    %c120_68 = arith.constant 120 : index
    %c8_69 = arith.constant 8 : index
    %73 = vector.load %arg9[%c120_68, %c8_69] : memref<238x224xf32, #tpu.memory_space<vmem>>, vector<28x216xf32>
    %74 = arith.maximumf %72, %73 : vector<28x216xf32>
    %75 = vector.shape_cast %74 : vector<28x216xf32> to vector<14x2x216xf32>
    %cst_70 = arith.constant dense<0xFF800000> : vector<14x216xf32>
    %76 = vector.multi_reduction <maximumf>, %75, %cst_70 [1] : vector<14x2x216xf32> to vector<14x216xf32>
    %c0_71 = arith.constant 0 : index
    %c0_72 = arith.constant 0 : index
    %77 = vector.load %arg3[%c0_71, %c0_72] : memref<1x216xf32, #tpu.memory_space<vmem>>, vector<1x216xf32>
    %78 = vector.broadcast %77 : vector<1x216xf32> to vector<14x216xf32>
    %79 = arith.addf %76, %78 : vector<14x216xf32>
    %cst_73 = arith.constant 0.000000e+00 : f32
    %80 = vector.broadcast %cst_73 : f32 to vector<14x216xf32>
    %81 = arith.maximumf %79, %80 : vector<14x216xf32>
    %c64 = arith.constant 64 : index
    %c0_74 = arith.constant 0 : index
    %82 = vector.load %arg10[%c64, %c0_74] : memref<128x216xf32, #tpu.memory_space<vmem>>, vector<1x216xf32>
    tpu.vector_store %arg10[%c64, %c0_74], %19 {strides = array<i32>} : memref<128x216xf32, #tpu.memory_space<vmem>>, vector<1x216xf32>,
    %c79 = arith.constant 79 : index
    %c0_75 = arith.constant 0 : index
    %83 = vector.load %arg10[%c79, %c0_75] : memref<128x216xf32, #tpu.memory_space<vmem>>, vector<1x216xf32>
    tpu.vector_store %arg10[%c79, %c0_75], %19 {strides = array<i32>} : memref<128x216xf32, #tpu.memory_space<vmem>>, vector<1x216xf32>,
    %c65 = arith.constant 65 : index
    %c0_76 = arith.constant 0 : index
    %84 = vector.load %arg10[%c65, %c0_76] : memref<128x216xf32, #tpu.memory_space<vmem>>, vector<14x216xf32>
    tpu.vector_store %arg10[%c65, %c0_76], %81 {strides = array<i32>} : memref<128x216xf32, #tpu.memory_space<vmem>>, vector<14x216xf32>,
    %c150 = arith.constant 150 : index
    %c0_77 = arith.constant 0 : index
    %85 = vector.load %arg9[%c150, %c0_77] : memref<238x224xf32, #tpu.memory_space<vmem>>, vector<28x216xf32>
    %c150_78 = arith.constant 150 : index
    %c8_79 = arith.constant 8 : index
    %86 = vector.load %arg9[%c150_78, %c8_79] : memref<238x224xf32, #tpu.memory_space<vmem>>, vector<28x216xf32>
    %87 = arith.maximumf %85, %86 : vector<28x216xf32>
    %88 = vector.shape_cast %87 : vector<28x216xf32> to vector<14x2x216xf32>
    %cst_80 = arith.constant dense<0xFF800000> : vector<14x216xf32>
    %89 = vector.multi_reduction <maximumf>, %88, %cst_80 [1] : vector<14x2x216xf32> to vector<14x216xf32>
    %c0_81 = arith.constant 0 : index
    %c0_82 = arith.constant 0 : index
    %90 = vector.load %arg3[%c0_81, %c0_82] : memref<1x216xf32, #tpu.memory_space<vmem>>, vector<1x216xf32>
    %91 = vector.broadcast %90 : vector<1x216xf32> to vector<14x216xf32>
    %92 = arith.addf %89, %91 : vector<14x216xf32>
    %cst_83 = arith.constant 0.000000e+00 : f32
    %93 = vector.broadcast %cst_83 : f32 to vector<14x216xf32>
    %94 = arith.maximumf %92, %93 : vector<14x216xf32>
    %c80 = arith.constant 80 : index
    %c0_84 = arith.constant 0 : index
    %95 = vector.load %arg10[%c80, %c0_84] : memref<128x216xf32, #tpu.memory_space<vmem>>, vector<1x216xf32>
    tpu.vector_store %arg10[%c80, %c0_84], %19 {strides = array<i32>} : memref<128x216xf32, #tpu.memory_space<vmem>>, vector<1x216xf32>,
    %c95 = arith.constant 95 : index
    %c0_85 = arith.constant 0 : index
    %96 = vector.load %arg10[%c95, %c0_85] : memref<128x216xf32, #tpu.memory_space<vmem>>, vector<1x216xf32>
    tpu.vector_store %arg10[%c95, %c0_85], %19 {strides = array<i32>} : memref<128x216xf32, #tpu.memory_space<vmem>>, vector<1x216xf32>,
    %c81 = arith.constant 81 : index
    %c0_86 = arith.constant 0 : index
    %97 = vector.load %arg10[%c81, %c0_86] : memref<128x216xf32, #tpu.memory_space<vmem>>, vector<14x216xf32>
    tpu.vector_store %arg10[%c81, %c0_86], %94 {strides = array<i32>} : memref<128x216xf32, #tpu.memory_space<vmem>>, vector<14x216xf32>,
    %c180 = arith.constant 180 : index
    %c0_87 = arith.constant 0 : index
    %98 = vector.load %arg9[%c180, %c0_87] : memref<238x224xf32, #tpu.memory_space<vmem>>, vector<28x216xf32>
    %c180_88 = arith.constant 180 : index
    %c8_89 = arith.constant 8 : index
    %99 = vector.load %arg9[%c180_88, %c8_89] : memref<238x224xf32, #tpu.memory_space<vmem>>, vector<28x216xf32>
    %100 = arith.maximumf %98, %99 : vector<28x216xf32>
    %101 = vector.shape_cast %100 : vector<28x216xf32> to vector<14x2x216xf32>
    %cst_90 = arith.constant dense<0xFF800000> : vector<14x216xf32>
    %102 = vector.multi_reduction <maximumf>, %101, %cst_90 [1] : vector<14x2x216xf32> to vector<14x216xf32>
    %c0_91 = arith.constant 0 : index
    %c0_92 = arith.constant 0 : index
    %103 = vector.load %arg3[%c0_91, %c0_92] : memref<1x216xf32, #tpu.memory_space<vmem>>, vector<1x216xf32>
    %104 = vector.broadcast %103 : vector<1x216xf32> to vector<14x216xf32>
    %105 = arith.addf %102, %104 : vector<14x216xf32>
    %cst_93 = arith.constant 0.000000e+00 : f32
    %106 = vector.broadcast %cst_93 : f32 to vector<14x216xf32>
    %107 = arith.maximumf %105, %106 : vector<14x216xf32>
    %c96 = arith.constant 96 : index
    %c0_94 = arith.constant 0 : index
    %108 = vector.load %arg10[%c96, %c0_94] : memref<128x216xf32, #tpu.memory_space<vmem>>, vector<1x216xf32>
    tpu.vector_store %arg10[%c96, %c0_94], %19 {strides = array<i32>} : memref<128x216xf32, #tpu.memory_space<vmem>>, vector<1x216xf32>,
    %c111 = arith.constant 111 : index
    %c0_95 = arith.constant 0 : index
    %109 = vector.load %arg10[%c111, %c0_95] : memref<128x216xf32, #tpu.memory_space<vmem>>, vector<1x216xf32>
    tpu.vector_store %arg10[%c111, %c0_95], %19 {strides = array<i32>} : memref<128x216xf32, #tpu.memory_space<vmem>>, vector<1x216xf32>,
    %c97 = arith.constant 97 : index
    %c0_96 = arith.constant 0 : index
    %110 = vector.load %arg10[%c97, %c0_96] : memref<128x216xf32, #tpu.memory_space<vmem>>, vector<14x216xf32>
    tpu.vector_store %arg10[%c97, %c0_96], %107 {strides = array<i32>} : memref<128x216xf32, #tpu.memory_space<vmem>>, vector<14x216xf32>,
    %c210 = arith.constant 210 : index
    %c0_97 = arith.constant 0 : index
    %111 = vector.load %arg9[%c210, %c0_97] : memref<238x224xf32, #tpu.memory_space<vmem>>, vector<28x216xf32>
    %c210_98 = arith.constant 210 : index
    %c8_99 = arith.constant 8 : index
    %112 = vector.load %arg9[%c210_98, %c8_99] : memref<238x224xf32, #tpu.memory_space<vmem>>, vector<28x216xf32>
    %113 = arith.maximumf %111, %112 : vector<28x216xf32>
    %114 = vector.shape_cast %113 : vector<28x216xf32> to vector<14x2x216xf32>
    %cst_100 = arith.constant dense<0xFF800000> : vector<14x216xf32>
    %115 = vector.multi_reduction <maximumf>, %114, %cst_100 [1] : vector<14x2x216xf32> to vector<14x216xf32>
    %c0_101 = arith.constant 0 : index
    %c0_102 = arith.constant 0 : index
    %116 = vector.load %arg3[%c0_101, %c0_102] : memref<1x216xf32, #tpu.memory_space<vmem>>, vector<1x216xf32>
    %117 = vector.broadcast %116 : vector<1x216xf32> to vector<14x216xf32>
    %118 = arith.addf %115, %117 : vector<14x216xf32>
    %cst_103 = arith.constant 0.000000e+00 : f32
    %119 = vector.broadcast %cst_103 : f32 to vector<14x216xf32>
    %120 = arith.maximumf %118, %119 : vector<14x216xf32>
    %c112 = arith.constant 112 : index
    %c0_104 = arith.constant 0 : index
    %121 = vector.load %arg10[%c112, %c0_104] : memref<128x216xf32, #tpu.memory_space<vmem>>, vector<1x216xf32>
    tpu.vector_store %arg10[%c112, %c0_104], %19 {strides = array<i32>} : memref<128x216xf32, #tpu.memory_space<vmem>>, vector<1x216xf32>,
    %c127 = arith.constant 127 : index
    %c0_105 = arith.constant 0 : index
    %122 = vector.load %arg10[%c127, %c0_105] : memref<128x216xf32, #tpu.memory_space<vmem>>, vector<1x216xf32>
    tpu.vector_store %arg10[%c127, %c0_105], %19 {strides = array<i32>} : memref<128x216xf32, #tpu.memory_space<vmem>>, vector<1x216xf32>,
    %c113 = arith.constant 113 : index
    %c0_106 = arith.constant 0 : index
    %123 = vector.load %arg10[%c113, %c0_106] : memref<128x216xf32, #tpu.memory_space<vmem>>, vector<14x216xf32>
    tpu.vector_store %arg10[%c113, %c0_106], %120 {strides = array<i32>} : memref<128x216xf32, #tpu.memory_space<vmem>>, vector<14x216xf32>,
    %c0_107 = arith.constant 0 : index
    %c0_108 = arith.constant 0 : index
    %124 = vector.load %arg10[%c0_107, %c0_108] : memref<128x216xf32, #tpu.memory_space<vmem>>, vector<126x216xf32>
    %c0_109 = arith.constant 0 : index
    %c0_110 = arith.constant 0 : index
    %c0_111 = arith.constant 0 : index
    %125 = vector.load %arg4[%c0_109, %c0_110, %c0_111] : memref<3x216x112xf32, #tpu.memory_space<vmem>>, vector<1x216x112xf32>
    %126 = vector.shape_cast %125 : vector<1x216x112xf32> to vector<216x112xf32>
    %cst_112 = arith.constant dense<0.000000e+00> : vector<126x112xf32>
    %127 = tpu.matmul %124, %126, %cst_112 {dimension_numbers = #tpu.dot_dimension_numbers<[1], [0], [0], [1], [0, 0, 1, 1], [], []>} : vector<126x216xf32>, vector<216x112xf32>, vector<126x112xf32> -> vector<126x112xf32>
    %c0_113 = arith.constant 0 : index
    %c0_114 = arith.constant 0 : index
    %128 = vector.load %arg11[%c0_113, %c0_114] : memref<126x112xf32, #tpu.memory_space<vmem>>, vector<126x112xf32>
    tpu.vector_store %arg11[%c0_113, %c0_114], %127 {strides = array<i32>} : memref<126x112xf32, #tpu.memory_space<vmem>>, vector<126x112xf32>,
    %c0_115 = arith.constant 0 : index
    %c0_116 = arith.constant 0 : index
    %129 = vector.load %arg11[%c0_115, %c0_116] : memref<126x112xf32, #tpu.memory_space<vmem>>, vector<126x112xf32>
    %c1_117 = arith.constant 1 : index
    %c0_118 = arith.constant 0 : index
    %130 = vector.load %arg10[%c1_117, %c0_118] : memref<128x216xf32, #tpu.memory_space<vmem>>, vector<126x216xf32>
    %c1_119 = arith.constant 1 : index
    %c0_120 = arith.constant 0 : index
    %c0_121 = arith.constant 0 : index
    %131 = vector.load %arg4[%c1_119, %c0_120, %c0_121] : memref<3x216x112xf32, #tpu.memory_space<vmem>>, vector<1x216x112xf32>
    %132 = vector.shape_cast %131 : vector<1x216x112xf32> to vector<216x112xf32>
    %cst_122 = arith.constant dense<0.000000e+00> : vector<126x112xf32>
    %133 = tpu.matmul %130, %132, %cst_122 {dimension_numbers = #tpu.dot_dimension_numbers<[1], [0], [0], [1], [0, 0, 1, 1], [], []>} : vector<126x216xf32>, vector<216x112xf32>, vector<126x112xf32> -> vector<126x112xf32>
    %134 = arith.addf %129, %133 : vector<126x112xf32>
    %c0_123 = arith.constant 0 : index
    %c0_124 = arith.constant 0 : index
    %135 = vector.load %arg11[%c0_123, %c0_124] : memref<126x112xf32, #tpu.memory_space<vmem>>, vector<126x112xf32>
    tpu.vector_store %arg11[%c0_123, %c0_124], %134 {strides = array<i32>} : memref<126x112xf32, #tpu.memory_space<vmem>>, vector<126x112xf32>,
    %c0_125 = arith.constant 0 : index
    %c0_126 = arith.constant 0 : index
    %136 = vector.load %arg11[%c0_125, %c0_126] : memref<126x112xf32, #tpu.memory_space<vmem>>, vector<126x112xf32>
    %c2_127 = arith.constant 2 : index
    %c0_128 = arith.constant 0 : index
    %137 = vector.load %arg10[%c2_127, %c0_128] : memref<128x216xf32, #tpu.memory_space<vmem>>, vector<126x216xf32>
    %c2_129 = arith.constant 2 : index
    %c0_130 = arith.constant 0 : index
    %c0_131 = arith.constant 0 : index
    %138 = vector.load %arg4[%c2_129, %c0_130, %c0_131] : memref<3x216x112xf32, #tpu.memory_space<vmem>>, vector<1x216x112xf32>
    %139 = vector.shape_cast %138 : vector<1x216x112xf32> to vector<216x112xf32>
    %cst_132 = arith.constant dense<0.000000e+00> : vector<126x112xf32>
    %140 = tpu.matmul %137, %139, %cst_132 {dimension_numbers = #tpu.dot_dimension_numbers<[1], [0], [0], [1], [0, 0, 1, 1], [], []>} : vector<126x216xf32>, vector<216x112xf32>, vector<126x112xf32> -> vector<126x112xf32>
    %141 = arith.addf %136, %140 : vector<126x112xf32>
    %c0_133 = arith.constant 0 : index
    %c0_134 = arith.constant 0 : index
    %142 = vector.load %arg11[%c0_133, %c0_134] : memref<126x112xf32, #tpu.memory_space<vmem>>, vector<126x112xf32>
    tpu.vector_store %arg11[%c0_133, %c0_134], %141 {strides = array<i32>} : memref<126x112xf32, #tpu.memory_space<vmem>>, vector<126x112xf32>,
    %c0_135 = arith.constant 0 : index
    %c0_136 = arith.constant 0 : index
    %143 = vector.load %arg11[%c0_135, %c0_136] : memref<126x112xf32, #tpu.memory_space<vmem>>, vector<14x104xf32>
    %c0_137 = arith.constant 0 : index
    %c8_138 = arith.constant 8 : index
    %144 = vector.load %arg11[%c0_137, %c8_138] : memref<126x112xf32, #tpu.memory_space<vmem>>, vector<14x104xf32>
    %145 = arith.maximumf %143, %144 : vector<14x104xf32>
    %146 = vector.shape_cast %145 : vector<14x104xf32> to vector<7x2x104xf32>
    %cst_139 = arith.constant dense<0xFF800000> : vector<7x104xf32>
    %147 = vector.multi_reduction <maximumf>, %146, %cst_139 [1] : vector<7x2x104xf32> to vector<7x104xf32>
    %c0_140 = arith.constant 0 : index
    %c0_141 = arith.constant 0 : index
    %148 = vector.load %arg5[%c0_140, %c0_141] : memref<1x104xf32, #tpu.memory_space<vmem>>, vector<1x104xf32>
    %149 = vector.broadcast %148 : vector<1x104xf32> to vector<7x104xf32>
    %150 = arith.addf %147, %149 : vector<7x104xf32>
    %cst_142 = arith.constant 0.000000e+00 : f32
    %151 = vector.broadcast %cst_142 : f32 to vector<7x104xf32>
    %152 = arith.maximumf %150, %151 : vector<7x104xf32>
    %153 = vector.extract_strided_slice %152 {offsets = [0, 0], sizes = [1, 104], strides = [1, 1]} : vector<7x104xf32> to vector<1x104xf32>
    %c0_143 = arith.constant 0 : index
    %c0_144 = arith.constant 0 : index
    %154 = vector.load %arg12[%c0_143, %c0_144] : memref<8x728xf32, #tpu.memory_space<vmem>>, vector<1x104xf32>
    tpu.vector_store %arg12[%c0_143, %c0_144], %153 {strides = array<i32>} : memref<8x728xf32, #tpu.memory_space<vmem>>, vector<1x104xf32>,
    %155 = vector.extract_strided_slice %152 {offsets = [1, 0], sizes = [1, 104], strides = [1, 1]} : vector<7x104xf32> to vector<1x104xf32>
    %c0_145 = arith.constant 0 : index
    %c104 = arith.constant 104 : index
    %156 = vector.load %arg12[%c0_145, %c104] : memref<8x728xf32, #tpu.memory_space<vmem>>, vector<1x104xf32>
    tpu.vector_store %arg12[%c0_145, %c104], %155 {strides = array<i32>} : memref<8x728xf32, #tpu.memory_space<vmem>>, vector<1x104xf32>,
    %157 = vector.extract_strided_slice %152 {offsets = [2, 0], sizes = [1, 104], strides = [1, 1]} : vector<7x104xf32> to vector<1x104xf32>
    %c0_146 = arith.constant 0 : index
    %c208 = arith.constant 208 : index
    %158 = vector.load %arg12[%c0_146, %c208] : memref<8x728xf32, #tpu.memory_space<vmem>>, vector<1x104xf32>
    tpu.vector_store %arg12[%c0_146, %c208], %157 {strides = array<i32>} : memref<8x728xf32, #tpu.memory_space<vmem>>, vector<1x104xf32>,
    %159 = vector.extract_strided_slice %152 {offsets = [3, 0], sizes = [1, 104], strides = [1, 1]} : vector<7x104xf32> to vector<1x104xf32>
    %c0_147 = arith.constant 0 : index
    %c312 = arith.constant 312 : index
    %160 = vector.load %arg12[%c0_147, %c312] : memref<8x728xf32, #tpu.memory_space<vmem>>, vector<1x104xf32>
    tpu.vector_store %arg12[%c0_147, %c312], %159 {strides = array<i32>} : memref<8x728xf32, #tpu.memory_space<vmem>>, vector<1x104xf32>,
    %161 = vector.extract_strided_slice %152 {offsets = [4, 0], sizes = [1, 104], strides = [1, 1]} : vector<7x104xf32> to vector<1x104xf32>
    %c0_148 = arith.constant 0 : index
    %c416 = arith.constant 416 : index
    %162 = vector.load %arg12[%c0_148, %c416] : memref<8x728xf32, #tpu.memory_space<vmem>>, vector<1x104xf32>
    tpu.vector_store %arg12[%c0_148, %c416], %161 {strides = array<i32>} : memref<8x728xf32, #tpu.memory_space<vmem>>, vector<1x104xf32>,
    %163 = vector.extract_strided_slice %152 {offsets = [5, 0], sizes = [1, 104], strides = [1, 1]} : vector<7x104xf32> to vector<1x104xf32>
    %c0_149 = arith.constant 0 : index
    %c520 = arith.constant 520 : index
    %164 = vector.load %arg12[%c0_149, %c520] : memref<8x728xf32, #tpu.memory_space<vmem>>, vector<1x104xf32>
    tpu.vector_store %arg12[%c0_149, %c520], %163 {strides = array<i32>} : memref<8x728xf32, #tpu.memory_space<vmem>>, vector<1x104xf32>,
    %165 = vector.extract_strided_slice %152 {offsets = [6, 0], sizes = [1, 104], strides = [1, 1]} : vector<7x104xf32> to vector<1x104xf32>
    %c0_150 = arith.constant 0 : index
    %c624 = arith.constant 624 : index
    %166 = vector.load %arg12[%c0_150, %c624] : memref<8x728xf32, #tpu.memory_space<vmem>>, vector<1x104xf32>
    tpu.vector_store %arg12[%c0_150, %c624], %165 {strides = array<i32>} : memref<8x728xf32, #tpu.memory_space<vmem>>, vector<1x104xf32>,
    %c16_151 = arith.constant 16 : index
    %c0_152 = arith.constant 0 : index
    %167 = vector.load %arg11[%c16_151, %c0_152] : memref<126x112xf32, #tpu.memory_space<vmem>>, vector<14x104xf32>
    %c16_153 = arith.constant 16 : index
    %c8_154 = arith.constant 8 : index
    %168 = vector.load %arg11[%c16_153, %c8_154] : memref<126x112xf32, #tpu.memory_space<vmem>>, vector<14x104xf32>
    %169 = arith.maximumf %167, %168 : vector<14x104xf32>
    %170 = vector.shape_cast %169 : vector<14x104xf32> to vector<7x2x104xf32>
    %cst_155 = arith.constant dense<0xFF800000> : vector<7x104xf32>
    %171 = vector.multi_reduction <maximumf>, %170, %cst_155 [1] : vector<7x2x104xf32> to vector<7x104xf32>
    %c0_156 = arith.constant 0 : index
    %c0_157 = arith.constant 0 : index
    %172 = vector.load %arg5[%c0_156, %c0_157] : memref<1x104xf32, #tpu.memory_space<vmem>>, vector<1x104xf32>
    %173 = vector.broadcast %172 : vector<1x104xf32> to vector<7x104xf32>
    %174 = arith.addf %171, %173 : vector<7x104xf32>
    %cst_158 = arith.constant 0.000000e+00 : f32
    %175 = vector.broadcast %cst_158 : f32 to vector<7x104xf32>
    %176 = arith.maximumf %174, %175 : vector<7x104xf32>
    %177 = vector.extract_strided_slice %176 {offsets = [0, 0], sizes = [1, 104], strides = [1, 1]} : vector<7x104xf32> to vector<1x104xf32>
    %c1_159 = arith.constant 1 : index
    %c0_160 = arith.constant 0 : index
    %178 = vector.load %arg12[%c1_159, %c0_160] : memref<8x728xf32, #tpu.memory_space<vmem>>, vector<1x104xf32>
    tpu.vector_store %arg12[%c1_159, %c0_160], %177 {strides = array<i32>} : memref<8x728xf32, #tpu.memory_space<vmem>>, vector<1x104xf32>,
    %179 = vector.extract_strided_slice %176 {offsets = [1, 0], sizes = [1, 104], strides = [1, 1]} : vector<7x104xf32> to vector<1x104xf32>
    %c1_161 = arith.constant 1 : index
    %c104_162 = arith.constant 104 : index
    %180 = vector.load %arg12[%c1_161, %c104_162] : memref<8x728xf32, #tpu.memory_space<vmem>>, vector<1x104xf32>
    tpu.vector_store %arg12[%c1_161, %c104_162], %179 {strides = array<i32>} : memref<8x728xf32, #tpu.memory_space<vmem>>, vector<1x104xf32>,
    %181 = vector.extract_strided_slice %176 {offsets = [2, 0], sizes = [1, 104], strides = [1, 1]} : vector<7x104xf32> to vector<1x104xf32>
    %c1_163 = arith.constant 1 : index
    %c208_164 = arith.constant 208 : index
    %182 = vector.load %arg12[%c1_163, %c208_164] : memref<8x728xf32, #tpu.memory_space<vmem>>, vector<1x104xf32>
    tpu.vector_store %arg12[%c1_163, %c208_164], %181 {strides = array<i32>} : memref<8x728xf32, #tpu.memory_space<vmem>>, vector<1x104xf32>,
    %183 = vector.extract_strided_slice %176 {offsets = [3, 0], sizes = [1, 104], strides = [1, 1]} : vector<7x104xf32> to vector<1x104xf32>
    %c1_165 = arith.constant 1 : index
    %c312_166 = arith.constant 312 : index
    %184 = vector.load %arg12[%c1_165, %c312_166] : memref<8x728xf32, #tpu.memory_space<vmem>>, vector<1x104xf32>
    tpu.vector_store %arg12[%c1_165, %c312_166], %183 {strides = array<i32>} : memref<8x728xf32, #tpu.memory_space<vmem>>, vector<1x104xf32>,
    %185 = vector.extract_strided_slice %176 {offsets = [4, 0], sizes = [1, 104], strides = [1, 1]} : vector<7x104xf32> to vector<1x104xf32>
    %c1_167 = arith.constant 1 : index
    %c416_168 = arith.constant 416 : index
    %186 = vector.load %arg12[%c1_167, %c416_168] : memref<8x728xf32, #tpu.memory_space<vmem>>, vector<1x104xf32>
    tpu.vector_store %arg12[%c1_167, %c416_168], %185 {strides = array<i32>} : memref<8x728xf32, #tpu.memory_space<vmem>>, vector<1x104xf32>,
    %187 = vector.extract_strided_slice %176 {offsets = [5, 0], sizes = [1, 104], strides = [1, 1]} : vector<7x104xf32> to vector<1x104xf32>
    %c1_169 = arith.constant 1 : index
    %c520_170 = arith.constant 520 : index
    %188 = vector.load %arg12[%c1_169, %c520_170] : memref<8x728xf32, #tpu.memory_space<vmem>>, vector<1x104xf32>
    tpu.vector_store %arg12[%c1_169, %c520_170], %187 {strides = array<i32>} : memref<8x728xf32, #tpu.memory_space<vmem>>, vector<1x104xf32>,
    %189 = vector.extract_strided_slice %176 {offsets = [6, 0], sizes = [1, 104], strides = [1, 1]} : vector<7x104xf32> to vector<1x104xf32>
    %c1_171 = arith.constant 1 : index
    %c624_172 = arith.constant 624 : index
    %190 = vector.load %arg12[%c1_171, %c624_172] : memref<8x728xf32, #tpu.memory_space<vmem>>, vector<1x104xf32>
    tpu.vector_store %arg12[%c1_171, %c624_172], %189 {strides = array<i32>} : memref<8x728xf32, #tpu.memory_space<vmem>>, vector<1x104xf32>,
    %c32_173 = arith.constant 32 : index
    %c0_174 = arith.constant 0 : index
    %191 = vector.load %arg11[%c32_173, %c0_174] : memref<126x112xf32, #tpu.memory_space<vmem>>, vector<14x104xf32>
    %c32_175 = arith.constant 32 : index
    %c8_176 = arith.constant 8 : index
    %192 = vector.load %arg11[%c32_175, %c8_176] : memref<126x112xf32, #tpu.memory_space<vmem>>, vector<14x104xf32>
    %193 = arith.maximumf %191, %192 : vector<14x104xf32>
    %194 = vector.shape_cast %193 : vector<14x104xf32> to vector<7x2x104xf32>
    %cst_177 = arith.constant dense<0xFF800000> : vector<7x104xf32>
    %195 = vector.multi_reduction <maximumf>, %194, %cst_177 [1] : vector<7x2x104xf32> to vector<7x104xf32>
    %c0_178 = arith.constant 0 : index
    %c0_179 = arith.constant 0 : index
    %196 = vector.load %arg5[%c0_178, %c0_179] : memref<1x104xf32, #tpu.memory_space<vmem>>, vector<1x104xf32>
    %197 = vector.broadcast %196 : vector<1x104xf32> to vector<7x104xf32>
    %198 = arith.addf %195, %197 : vector<7x104xf32>
    %cst_180 = arith.constant 0.000000e+00 : f32
    %199 = vector.broadcast %cst_180 : f32 to vector<7x104xf32>
    %200 = arith.maximumf %198, %199 : vector<7x104xf32>
    %201 = vector.extract_strided_slice %200 {offsets = [0, 0], sizes = [1, 104], strides = [1, 1]} : vector<7x104xf32> to vector<1x104xf32>
    %c2_181 = arith.constant 2 : index
    %c0_182 = arith.constant 0 : index
    %202 = vector.load %arg12[%c2_181, %c0_182] : memref<8x728xf32, #tpu.memory_space<vmem>>, vector<1x104xf32>
    tpu.vector_store %arg12[%c2_181, %c0_182], %201 {strides = array<i32>} : memref<8x728xf32, #tpu.memory_space<vmem>>, vector<1x104xf32>,
    %203 = vector.extract_strided_slice %200 {offsets = [1, 0], sizes = [1, 104], strides = [1, 1]} : vector<7x104xf32> to vector<1x104xf32>
    %c2_183 = arith.constant 2 : index
    %c104_184 = arith.constant 104 : index
    %204 = vector.load %arg12[%c2_183, %c104_184] : memref<8x728xf32, #tpu.memory_space<vmem>>, vector<1x104xf32>
    tpu.vector_store %arg12[%c2_183, %c104_184], %203 {strides = array<i32>} : memref<8x728xf32, #tpu.memory_space<vmem>>, vector<1x104xf32>,
    %205 = vector.extract_strided_slice %200 {offsets = [2, 0], sizes = [1, 104], strides = [1, 1]} : vector<7x104xf32> to vector<1x104xf32>
    %c2_185 = arith.constant 2 : index
    %c208_186 = arith.constant 208 : index
    %206 = vector.load %arg12[%c2_185, %c208_186] : memref<8x728xf32, #tpu.memory_space<vmem>>, vector<1x104xf32>
    tpu.vector_store %arg12[%c2_185, %c208_186], %205 {strides = array<i32>} : memref<8x728xf32, #tpu.memory_space<vmem>>, vector<1x104xf32>,
    %207 = vector.extract_strided_slice %200 {offsets = [3, 0], sizes = [1, 104], strides = [1, 1]} : vector<7x104xf32> to vector<1x104xf32>
    %c2_187 = arith.constant 2 : index
    %c312_188 = arith.constant 312 : index
    %208 = vector.load %arg12[%c2_187, %c312_188] : memref<8x728xf32, #tpu.memory_space<vmem>>, vector<1x104xf32>
    tpu.vector_store %arg12[%c2_187, %c312_188], %207 {strides = array<i32>} : memref<8x728xf32, #tpu.memory_space<vmem>>, vector<1x104xf32>,
    %209 = vector.extract_strided_slice %200 {offsets = [4, 0], sizes = [1, 104], strides = [1, 1]} : vector<7x104xf32> to vector<1x104xf32>
    %c2_189 = arith.constant 2 : index
    %c416_190 = arith.constant 416 : index
    %210 = vector.load %arg12[%c2_189, %c416_190] : memref<8x728xf32, #tpu.memory_space<vmem>>, vector<1x104xf32>
    tpu.vector_store %arg12[%c2_189, %c416_190], %209 {strides = array<i32>} : memref<8x728xf32, #tpu.memory_space<vmem>>, vector<1x104xf32>,
    %211 = vector.extract_strided_slice %200 {offsets = [5, 0], sizes = [1, 104], strides = [1, 1]} : vector<7x104xf32> to vector<1x104xf32>
    %c2_191 = arith.constant 2 : index
    %c520_192 = arith.constant 520 : index
    %212 = vector.load %arg12[%c2_191, %c520_192] : memref<8x728xf32, #tpu.memory_space<vmem>>, vector<1x104xf32>
    tpu.vector_store %arg12[%c2_191, %c520_192], %211 {strides = array<i32>} : memref<8x728xf32, #tpu.memory_space<vmem>>, vector<1x104xf32>,
    %213 = vector.extract_strided_slice %200 {offsets = [6, 0], sizes = [1, 104], strides = [1, 1]} : vector<7x104xf32> to vector<1x104xf32>
    %c2_193 = arith.constant 2 : index
    %c624_194 = arith.constant 624 : index
    %214 = vector.load %arg12[%c2_193, %c624_194] : memref<8x728xf32, #tpu.memory_space<vmem>>, vector<1x104xf32>
    tpu.vector_store %arg12[%c2_193, %c624_194], %213 {strides = array<i32>} : memref<8x728xf32, #tpu.memory_space<vmem>>, vector<1x104xf32>,
    %c48_195 = arith.constant 48 : index
    %c0_196 = arith.constant 0 : index
    %215 = vector.load %arg11[%c48_195, %c0_196] : memref<126x112xf32, #tpu.memory_space<vmem>>, vector<14x104xf32>
    %c48_197 = arith.constant 48 : index
    %c8_198 = arith.constant 8 : index
    %216 = vector.load %arg11[%c48_197, %c8_198] : memref<126x112xf32, #tpu.memory_space<vmem>>, vector<14x104xf32>
    %217 = arith.maximumf %215, %216 : vector<14x104xf32>
    %218 = vector.shape_cast %217 : vector<14x104xf32> to vector<7x2x104xf32>
    %cst_199 = arith.constant dense<0xFF800000> : vector<7x104xf32>
    %219 = vector.multi_reduction <maximumf>, %218, %cst_199 [1] : vector<7x2x104xf32> to vector<7x104xf32>
    %c0_200 = arith.constant 0 : index
    %c0_201 = arith.constant 0 : index
    %220 = vector.load %arg5[%c0_200, %c0_201] : memref<1x104xf32, #tpu.memory_space<vmem>>, vector<1x104xf32>
    %221 = vector.broadcast %220 : vector<1x104xf32> to vector<7x104xf32>
    %222 = arith.addf %219, %221 : vector<7x104xf32>
    %cst_202 = arith.constant 0.000000e+00 : f32
    %223 = vector.broadcast %cst_202 : f32 to vector<7x104xf32>
    %224 = arith.maximumf %222, %223 : vector<7x104xf32>
    %225 = vector.extract_strided_slice %224 {offsets = [0, 0], sizes = [1, 104], strides = [1, 1]} : vector<7x104xf32> to vector<1x104xf32>
    %c3 = arith.constant 3 : index
    %c0_203 = arith.constant 0 : index
    %226 = vector.load %arg12[%c3, %c0_203] : memref<8x728xf32, #tpu.memory_space<vmem>>, vector<1x104xf32>
    tpu.vector_store %arg12[%c3, %c0_203], %225 {strides = array<i32>} : memref<8x728xf32, #tpu.memory_space<vmem>>, vector<1x104xf32>,
    %227 = vector.extract_strided_slice %224 {offsets = [1, 0], sizes = [1, 104], strides = [1, 1]} : vector<7x104xf32> to vector<1x104xf32>
    %c3_204 = arith.constant 3 : index
    %c104_205 = arith.constant 104 : index
    %228 = vector.load %arg12[%c3_204, %c104_205] : memref<8x728xf32, #tpu.memory_space<vmem>>, vector<1x104xf32>
    tpu.vector_store %arg12[%c3_204, %c104_205], %227 {strides = array<i32>} : memref<8x728xf32, #tpu.memory_space<vmem>>, vector<1x104xf32>,
    %229 = vector.extract_strided_slice %224 {offsets = [2, 0], sizes = [1, 104], strides = [1, 1]} : vector<7x104xf32> to vector<1x104xf32>
    %c3_206 = arith.constant 3 : index
    %c208_207 = arith.constant 208 : index
    %230 = vector.load %arg12[%c3_206, %c208_207] : memref<8x728xf32, #tpu.memory_space<vmem>>, vector<1x104xf32>
    tpu.vector_store %arg12[%c3_206, %c208_207], %229 {strides = array<i32>} : memref<8x728xf32, #tpu.memory_space<vmem>>, vector<1x104xf32>,
    %231 = vector.extract_strided_slice %224 {offsets = [3, 0], sizes = [1, 104], strides = [1, 1]} : vector<7x104xf32> to vector<1x104xf32>
    %c3_208 = arith.constant 3 : index
    %c312_209 = arith.constant 312 : index
    %232 = vector.load %arg12[%c3_208, %c312_209] : memref<8x728xf32, #tpu.memory_space<vmem>>, vector<1x104xf32>
    tpu.vector_store %arg12[%c3_208, %c312_209], %231 {strides = array<i32>} : memref<8x728xf32, #tpu.memory_space<vmem>>, vector<1x104xf32>,
    %233 = vector.extract_strided_slice %224 {offsets = [4, 0], sizes = [1, 104], strides = [1, 1]} : vector<7x104xf32> to vector<1x104xf32>
    %c3_210 = arith.constant 3 : index
    %c416_211 = arith.constant 416 : index
    %234 = vector.load %arg12[%c3_210, %c416_211] : memref<8x728xf32, #tpu.memory_space<vmem>>, vector<1x104xf32>
    tpu.vector_store %arg12[%c3_210, %c416_211], %233 {strides = array<i32>} : memref<8x728xf32, #tpu.memory_space<vmem>>, vector<1x104xf32>,
    %235 = vector.extract_strided_slice %224 {offsets = [5, 0], sizes = [1, 104], strides = [1, 1]} : vector<7x104xf32> to vector<1x104xf32>
    %c3_212 = arith.constant 3 : index
    %c520_213 = arith.constant 520 : index
    %236 = vector.load %arg12[%c3_212, %c520_213] : memref<8x728xf32, #tpu.memory_space<vmem>>, vector<1x104xf32>
    tpu.vector_store %arg12[%c3_212, %c520_213], %235 {strides = array<i32>} : memref<8x728xf32, #tpu.memory_space<vmem>>, vector<1x104xf32>,
    %237 = vector.extract_strided_slice %224 {offsets = [6, 0], sizes = [1, 104], strides = [1, 1]} : vector<7x104xf32> to vector<1x104xf32>
    %c3_214 = arith.constant 3 : index
    %c624_215 = arith.constant 624 : index
    %238 = vector.load %arg12[%c3_214, %c624_215] : memref<8x728xf32, #tpu.memory_space<vmem>>, vector<1x104xf32>
    tpu.vector_store %arg12[%c3_214, %c624_215], %237 {strides = array<i32>} : memref<8x728xf32, #tpu.memory_space<vmem>>, vector<1x104xf32>,
    %c64_216 = arith.constant 64 : index
    %c0_217 = arith.constant 0 : index
    %239 = vector.load %arg11[%c64_216, %c0_217] : memref<126x112xf32, #tpu.memory_space<vmem>>, vector<14x104xf32>
    %c64_218 = arith.constant 64 : index
    %c8_219 = arith.constant 8 : index
    %240 = vector.load %arg11[%c64_218, %c8_219] : memref<126x112xf32, #tpu.memory_space<vmem>>, vector<14x104xf32>
    %241 = arith.maximumf %239, %240 : vector<14x104xf32>
    %242 = vector.shape_cast %241 : vector<14x104xf32> to vector<7x2x104xf32>
    %cst_220 = arith.constant dense<0xFF800000> : vector<7x104xf32>
    %243 = vector.multi_reduction <maximumf>, %242, %cst_220 [1] : vector<7x2x104xf32> to vector<7x104xf32>
    %c0_221 = arith.constant 0 : index
    %c0_222 = arith.constant 0 : index
    %244 = vector.load %arg5[%c0_221, %c0_222] : memref<1x104xf32, #tpu.memory_space<vmem>>, vector<1x104xf32>
    %245 = vector.broadcast %244 : vector<1x104xf32> to vector<7x104xf32>
    %246 = arith.addf %243, %245 : vector<7x104xf32>
    %cst_223 = arith.constant 0.000000e+00 : f32
    %247 = vector.broadcast %cst_223 : f32 to vector<7x104xf32>
    %248 = arith.maximumf %246, %247 : vector<7x104xf32>
    %249 = vector.extract_strided_slice %248 {offsets = [0, 0], sizes = [1, 104], strides = [1, 1]} : vector<7x104xf32> to vector<1x104xf32>
    %c4 = arith.constant 4 : index
    %c0_224 = arith.constant 0 : index
    %250 = vector.load %arg12[%c4, %c0_224] : memref<8x728xf32, #tpu.memory_space<vmem>>, vector<1x104xf32>
    tpu.vector_store %arg12[%c4, %c0_224], %249 {strides = array<i32>} : memref<8x728xf32, #tpu.memory_space<vmem>>, vector<1x104xf32>,
    %251 = vector.extract_strided_slice %248 {offsets = [1, 0], sizes = [1, 104], strides = [1, 1]} : vector<7x104xf32> to vector<1x104xf32>
    %c4_225 = arith.constant 4 : index
    %c104_226 = arith.constant 104 : index
    %252 = vector.load %arg12[%c4_225, %c104_226] : memref<8x728xf32, #tpu.memory_space<vmem>>, vector<1x104xf32>
    tpu.vector_store %arg12[%c4_225, %c104_226], %251 {strides = array<i32>} : memref<8x728xf32, #tpu.memory_space<vmem>>, vector<1x104xf32>,
    %253 = vector.extract_strided_slice %248 {offsets = [2, 0], sizes = [1, 104], strides = [1, 1]} : vector<7x104xf32> to vector<1x104xf32>
    %c4_227 = arith.constant 4 : index
    %c208_228 = arith.constant 208 : index
    %254 = vector.load %arg12[%c4_227, %c208_228] : memref<8x728xf32, #tpu.memory_space<vmem>>, vector<1x104xf32>
    tpu.vector_store %arg12[%c4_227, %c208_228], %253 {strides = array<i32>} : memref<8x728xf32, #tpu.memory_space<vmem>>, vector<1x104xf32>,
    %255 = vector.extract_strided_slice %248 {offsets = [3, 0], sizes = [1, 104], strides = [1, 1]} : vector<7x104xf32> to vector<1x104xf32>
    %c4_229 = arith.constant 4 : index
    %c312_230 = arith.constant 312 : index
    %256 = vector.load %arg12[%c4_229, %c312_230] : memref<8x728xf32, #tpu.memory_space<vmem>>, vector<1x104xf32>
    tpu.vector_store %arg12[%c4_229, %c312_230], %255 {strides = array<i32>} : memref<8x728xf32, #tpu.memory_space<vmem>>, vector<1x104xf32>,
    %257 = vector.extract_strided_slice %248 {offsets = [4, 0], sizes = [1, 104], strides = [1, 1]} : vector<7x104xf32> to vector<1x104xf32>
    %c4_231 = arith.constant 4 : index
    %c416_232 = arith.constant 416 : index
    %258 = vector.load %arg12[%c4_231, %c416_232] : memref<8x728xf32, #tpu.memory_space<vmem>>, vector<1x104xf32>
    tpu.vector_store %arg12[%c4_231, %c416_232], %257 {strides = array<i32>} : memref<8x728xf32, #tpu.memory_space<vmem>>, vector<1x104xf32>,
    %259 = vector.extract_strided_slice %248 {offsets = [5, 0], sizes = [1, 104], strides = [1, 1]} : vector<7x104xf32> to vector<1x104xf32>
    %c4_233 = arith.constant 4 : index
    %c520_234 = arith.constant 520 : index
    %260 = vector.load %arg12[%c4_233, %c520_234] : memref<8x728xf32, #tpu.memory_space<vmem>>, vector<1x104xf32>
    tpu.vector_store %arg12[%c4_233, %c520_234], %259 {strides = array<i32>} : memref<8x728xf32, #tpu.memory_space<vmem>>, vector<1x104xf32>,
    %261 = vector.extract_strided_slice %248 {offsets = [6, 0], sizes = [1, 104], strides = [1, 1]} : vector<7x104xf32> to vector<1x104xf32>
    %c4_235 = arith.constant 4 : index
    %c624_236 = arith.constant 624 : index
    %262 = vector.load %arg12[%c4_235, %c624_236] : memref<8x728xf32, #tpu.memory_space<vmem>>, vector<1x104xf32>
    tpu.vector_store %arg12[%c4_235, %c624_236], %261 {strides = array<i32>} : memref<8x728xf32, #tpu.memory_space<vmem>>, vector<1x104xf32>,
    %c80_237 = arith.constant 80 : index
    %c0_238 = arith.constant 0 : index
    %263 = vector.load %arg11[%c80_237, %c0_238] : memref<126x112xf32, #tpu.memory_space<vmem>>, vector<14x104xf32>
    %c80_239 = arith.constant 80 : index
    %c8_240 = arith.constant 8 : index
    %264 = vector.load %arg11[%c80_239, %c8_240] : memref<126x112xf32, #tpu.memory_space<vmem>>, vector<14x104xf32>
    %265 = arith.maximumf %263, %264 : vector<14x104xf32>
    %266 = vector.shape_cast %265 : vector<14x104xf32> to vector<7x2x104xf32>
    %cst_241 = arith.constant dense<0xFF800000> : vector<7x104xf32>
    %267 = vector.multi_reduction <maximumf>, %266, %cst_241 [1] : vector<7x2x104xf32> to vector<7x104xf32>
    %c0_242 = arith.constant 0 : index
    %c0_243 = arith.constant 0 : index
    %268 = vector.load %arg5[%c0_242, %c0_243] : memref<1x104xf32, #tpu.memory_space<vmem>>, vector<1x104xf32>
    %269 = vector.broadcast %268 : vector<1x104xf32> to vector<7x104xf32>
    %270 = arith.addf %267, %269 : vector<7x104xf32>
    %cst_244 = arith.constant 0.000000e+00 : f32
    %271 = vector.broadcast %cst_244 : f32 to vector<7x104xf32>
    %272 = arith.maximumf %270, %271 : vector<7x104xf32>
    %273 = vector.extract_strided_slice %272 {offsets = [0, 0], sizes = [1, 104], strides = [1, 1]} : vector<7x104xf32> to vector<1x104xf32>
    %c5 = arith.constant 5 : index
    %c0_245 = arith.constant 0 : index
    %274 = vector.load %arg12[%c5, %c0_245] : memref<8x728xf32, #tpu.memory_space<vmem>>, vector<1x104xf32>
    tpu.vector_store %arg12[%c5, %c0_245], %273 {strides = array<i32>} : memref<8x728xf32, #tpu.memory_space<vmem>>, vector<1x104xf32>,
    %275 = vector.extract_strided_slice %272 {offsets = [1, 0], sizes = [1, 104], strides = [1, 1]} : vector<7x104xf32> to vector<1x104xf32>
    %c5_246 = arith.constant 5 : index
    %c104_247 = arith.constant 104 : index
    %276 = vector.load %arg12[%c5_246, %c104_247] : memref<8x728xf32, #tpu.memory_space<vmem>>, vector<1x104xf32>
    tpu.vector_store %arg12[%c5_246, %c104_247], %275 {strides = array<i32>} : memref<8x728xf32, #tpu.memory_space<vmem>>, vector<1x104xf32>,
    %277 = vector.extract_strided_slice %272 {offsets = [2, 0], sizes = [1, 104], strides = [1, 1]} : vector<7x104xf32> to vector<1x104xf32>
    %c5_248 = arith.constant 5 : index
    %c208_249 = arith.constant 208 : index
    %278 = vector.load %arg12[%c5_248, %c208_249] : memref<8x728xf32, #tpu.memory_space<vmem>>, vector<1x104xf32>
    tpu.vector_store %arg12[%c5_248, %c208_249], %277 {strides = array<i32>} : memref<8x728xf32, #tpu.memory_space<vmem>>, vector<1x104xf32>,
    %279 = vector.extract_strided_slice %272 {offsets = [3, 0], sizes = [1, 104], strides = [1, 1]} : vector<7x104xf32> to vector<1x104xf32>
    %c5_250 = arith.constant 5 : index
    %c312_251 = arith.constant 312 : index
    %280 = vector.load %arg12[%c5_250, %c312_251] : memref<8x728xf32, #tpu.memory_space<vmem>>, vector<1x104xf32>
    tpu.vector_store %arg12[%c5_250, %c312_251], %279 {strides = array<i32>} : memref<8x728xf32, #tpu.memory_space<vmem>>, vector<1x104xf32>,
    %281 = vector.extract_strided_slice %272 {offsets = [4, 0], sizes = [1, 104], strides = [1, 1]} : vector<7x104xf32> to vector<1x104xf32>
    %c5_252 = arith.constant 5 : index
    %c416_253 = arith.constant 416 : index
    %282 = vector.load %arg12[%c5_252, %c416_253] : memref<8x728xf32, #tpu.memory_space<vmem>>, vector<1x104xf32>
    tpu.vector_store %arg12[%c5_252, %c416_253], %281 {strides = array<i32>} : memref<8x728xf32, #tpu.memory_space<vmem>>, vector<1x104xf32>,
    %283 = vector.extract_strided_slice %272 {offsets = [5, 0], sizes = [1, 104], strides = [1, 1]} : vector<7x104xf32> to vector<1x104xf32>
    %c5_254 = arith.constant 5 : index
    %c520_255 = arith.constant 520 : index
    %284 = vector.load %arg12[%c5_254, %c520_255] : memref<8x728xf32, #tpu.memory_space<vmem>>, vector<1x104xf32>
    tpu.vector_store %arg12[%c5_254, %c520_255], %283 {strides = array<i32>} : memref<8x728xf32, #tpu.memory_space<vmem>>, vector<1x104xf32>,
    %285 = vector.extract_strided_slice %272 {offsets = [6, 0], sizes = [1, 104], strides = [1, 1]} : vector<7x104xf32> to vector<1x104xf32>
    %c5_256 = arith.constant 5 : index
    %c624_257 = arith.constant 624 : index
    %286 = vector.load %arg12[%c5_256, %c624_257] : memref<8x728xf32, #tpu.memory_space<vmem>>, vector<1x104xf32>
    tpu.vector_store %arg12[%c5_256, %c624_257], %285 {strides = array<i32>} : memref<8x728xf32, #tpu.memory_space<vmem>>, vector<1x104xf32>,
    %c96_258 = arith.constant 96 : index
    %c0_259 = arith.constant 0 : index
    %287 = vector.load %arg11[%c96_258, %c0_259] : memref<126x112xf32, #tpu.memory_space<vmem>>, vector<14x104xf32>
    %c96_260 = arith.constant 96 : index
    %c8_261 = arith.constant 8 : index
    %288 = vector.load %arg11[%c96_260, %c8_261] : memref<126x112xf32, #tpu.memory_space<vmem>>, vector<14x104xf32>
    %289 = arith.maximumf %287, %288 : vector<14x104xf32>
    %290 = vector.shape_cast %289 : vector<14x104xf32> to vector<7x2x104xf32>
    %cst_262 = arith.constant dense<0xFF800000> : vector<7x104xf32>
    %291 = vector.multi_reduction <maximumf>, %290, %cst_262 [1] : vector<7x2x104xf32> to vector<7x104xf32>
    %c0_263 = arith.constant 0 : index
    %c0_264 = arith.constant 0 : index
    %292 = vector.load %arg5[%c0_263, %c0_264] : memref<1x104xf32, #tpu.memory_space<vmem>>, vector<1x104xf32>
    %293 = vector.broadcast %292 : vector<1x104xf32> to vector<7x104xf32>
    %294 = arith.addf %291, %293 : vector<7x104xf32>
    %cst_265 = arith.constant 0.000000e+00 : f32
    %295 = vector.broadcast %cst_265 : f32 to vector<7x104xf32>
    %296 = arith.maximumf %294, %295 : vector<7x104xf32>
    %297 = vector.extract_strided_slice %296 {offsets = [0, 0], sizes = [1, 104], strides = [1, 1]} : vector<7x104xf32> to vector<1x104xf32>
    %c6 = arith.constant 6 : index
    %c0_266 = arith.constant 0 : index
    %298 = vector.load %arg12[%c6, %c0_266] : memref<8x728xf32, #tpu.memory_space<vmem>>, vector<1x104xf32>
    tpu.vector_store %arg12[%c6, %c0_266], %297 {strides = array<i32>} : memref<8x728xf32, #tpu.memory_space<vmem>>, vector<1x104xf32>,
    %299 = vector.extract_strided_slice %296 {offsets = [1, 0], sizes = [1, 104], strides = [1, 1]} : vector<7x104xf32> to vector<1x104xf32>
    %c6_267 = arith.constant 6 : index
    %c104_268 = arith.constant 104 : index
    %300 = vector.load %arg12[%c6_267, %c104_268] : memref<8x728xf32, #tpu.memory_space<vmem>>, vector<1x104xf32>
    tpu.vector_store %arg12[%c6_267, %c104_268], %299 {strides = array<i32>} : memref<8x728xf32, #tpu.memory_space<vmem>>, vector<1x104xf32>,
    %301 = vector.extract_strided_slice %296 {offsets = [2, 0], sizes = [1, 104], strides = [1, 1]} : vector<7x104xf32> to vector<1x104xf32>
    %c6_269 = arith.constant 6 : index
    %c208_270 = arith.constant 208 : index
    %302 = vector.load %arg12[%c6_269, %c208_270] : memref<8x728xf32, #tpu.memory_space<vmem>>, vector<1x104xf32>
    tpu.vector_store %arg12[%c6_269, %c208_270], %301 {strides = array<i32>} : memref<8x728xf32, #tpu.memory_space<vmem>>, vector<1x104xf32>,
    %303 = vector.extract_strided_slice %296 {offsets = [3, 0], sizes = [1, 104], strides = [1, 1]} : vector<7x104xf32> to vector<1x104xf32>
    %c6_271 = arith.constant 6 : index
    %c312_272 = arith.constant 312 : index
    %304 = vector.load %arg12[%c6_271, %c312_272] : memref<8x728xf32, #tpu.memory_space<vmem>>, vector<1x104xf32>
    tpu.vector_store %arg12[%c6_271, %c312_272], %303 {strides = array<i32>} : memref<8x728xf32, #tpu.memory_space<vmem>>, vector<1x104xf32>,
    %305 = vector.extract_strided_slice %296 {offsets = [4, 0], sizes = [1, 104], strides = [1, 1]} : vector<7x104xf32> to vector<1x104xf32>
    %c6_273 = arith.constant 6 : index
    %c416_274 = arith.constant 416 : index
    %306 = vector.load %arg12[%c6_273, %c416_274] : memref<8x728xf32, #tpu.memory_space<vmem>>, vector<1x104xf32>
    tpu.vector_store %arg12[%c6_273, %c416_274], %305 {strides = array<i32>} : memref<8x728xf32, #tpu.memory_space<vmem>>, vector<1x104xf32>,
    %307 = vector.extract_strided_slice %296 {offsets = [5, 0], sizes = [1, 104], strides = [1, 1]} : vector<7x104xf32> to vector<1x104xf32>
    %c6_275 = arith.constant 6 : index
    %c520_276 = arith.constant 520 : index
    %308 = vector.load %arg12[%c6_275, %c520_276] : memref<8x728xf32, #tpu.memory_space<vmem>>, vector<1x104xf32>
    tpu.vector_store %arg12[%c6_275, %c520_276], %307 {strides = array<i32>} : memref<8x728xf32, #tpu.memory_space<vmem>>, vector<1x104xf32>,
    %309 = vector.extract_strided_slice %296 {offsets = [6, 0], sizes = [1, 104], strides = [1, 1]} : vector<7x104xf32> to vector<1x104xf32>
    %c6_277 = arith.constant 6 : index
    %c624_278 = arith.constant 624 : index
    %310 = vector.load %arg12[%c6_277, %c624_278] : memref<8x728xf32, #tpu.memory_space<vmem>>, vector<1x104xf32>
    tpu.vector_store %arg12[%c6_277, %c624_278], %309 {strides = array<i32>} : memref<8x728xf32, #tpu.memory_space<vmem>>, vector<1x104xf32>,
    %c112_279 = arith.constant 112 : index
    %c0_280 = arith.constant 0 : index
    %311 = vector.load %arg11[%c112_279, %c0_280] : memref<126x112xf32, #tpu.memory_space<vmem>>, vector<14x104xf32>
    %c112_281 = arith.constant 112 : index
    %c8_282 = arith.constant 8 : index
    %312 = vector.load %arg11[%c112_281, %c8_282] : memref<126x112xf32, #tpu.memory_space<vmem>>, vector<14x104xf32>
    %313 = arith.maximumf %311, %312 : vector<14x104xf32>
    %314 = vector.shape_cast %313 : vector<14x104xf32> to vector<7x2x104xf32>
    %cst_283 = arith.constant dense<0xFF800000> : vector<7x104xf32>
    %315 = vector.multi_reduction <maximumf>, %314, %cst_283 [1] : vector<7x2x104xf32> to vector<7x104xf32>
    %c0_284 = arith.constant 0 : index
    %c0_285 = arith.constant 0 : index
    %316 = vector.load %arg5[%c0_284, %c0_285] : memref<1x104xf32, #tpu.memory_space<vmem>>, vector<1x104xf32>
    %317 = vector.broadcast %316 : vector<1x104xf32> to vector<7x104xf32>
    %318 = arith.addf %315, %317 : vector<7x104xf32>
    %cst_286 = arith.constant 0.000000e+00 : f32
    %319 = vector.broadcast %cst_286 : f32 to vector<7x104xf32>
    %320 = arith.maximumf %318, %319 : vector<7x104xf32>
    %321 = vector.extract_strided_slice %320 {offsets = [0, 0], sizes = [1, 104], strides = [1, 1]} : vector<7x104xf32> to vector<1x104xf32>
    %c7 = arith.constant 7 : index
    %c0_287 = arith.constant 0 : index
    %322 = vector.load %arg12[%c7, %c0_287] : memref<8x728xf32, #tpu.memory_space<vmem>>, vector<1x104xf32>
    tpu.vector_store %arg12[%c7, %c0_287], %321 {strides = array<i32>} : memref<8x728xf32, #tpu.memory_space<vmem>>, vector<1x104xf32>,
    %323 = vector.extract_strided_slice %320 {offsets = [1, 0], sizes = [1, 104], strides = [1, 1]} : vector<7x104xf32> to vector<1x104xf32>
    %c7_288 = arith.constant 7 : index
    %c104_289 = arith.constant 104 : index
    %324 = vector.load %arg12[%c7_288, %c104_289] : memref<8x728xf32, #tpu.memory_space<vmem>>, vector<1x104xf32>
    tpu.vector_store %arg12[%c7_288, %c104_289], %323 {strides = array<i32>} : memref<8x728xf32, #tpu.memory_space<vmem>>, vector<1x104xf32>,
    %325 = vector.extract_strided_slice %320 {offsets = [2, 0], sizes = [1, 104], strides = [1, 1]} : vector<7x104xf32> to vector<1x104xf32>
    %c7_290 = arith.constant 7 : index
    %c208_291 = arith.constant 208 : index
    %326 = vector.load %arg12[%c7_290, %c208_291] : memref<8x728xf32, #tpu.memory_space<vmem>>, vector<1x104xf32>
    tpu.vector_store %arg12[%c7_290, %c208_291], %325 {strides = array<i32>} : memref<8x728xf32, #tpu.memory_space<vmem>>, vector<1x104xf32>,
    %327 = vector.extract_strided_slice %320 {offsets = [3, 0], sizes = [1, 104], strides = [1, 1]} : vector<7x104xf32> to vector<1x104xf32>
    %c7_292 = arith.constant 7 : index
    %c312_293 = arith.constant 312 : index
    %328 = vector.load %arg12[%c7_292, %c312_293] : memref<8x728xf32, #tpu.memory_space<vmem>>, vector<1x104xf32>
    tpu.vector_store %arg12[%c7_292, %c312_293], %327 {strides = array<i32>} : memref<8x728xf32, #tpu.memory_space<vmem>>, vector<1x104xf32>,
    %329 = vector.extract_strided_slice %320 {offsets = [4, 0], sizes = [1, 104], strides = [1, 1]} : vector<7x104xf32> to vector<1x104xf32>
    %c7_294 = arith.constant 7 : index
    %c416_295 = arith.constant 416 : index
    %330 = vector.load %arg12[%c7_294, %c416_295] : memref<8x728xf32, #tpu.memory_space<vmem>>, vector<1x104xf32>
    tpu.vector_store %arg12[%c7_294, %c416_295], %329 {strides = array<i32>} : memref<8x728xf32, #tpu.memory_space<vmem>>, vector<1x104xf32>,
    %331 = vector.extract_strided_slice %320 {offsets = [5, 0], sizes = [1, 104], strides = [1, 1]} : vector<7x104xf32> to vector<1x104xf32>
    %c7_296 = arith.constant 7 : index
    %c520_297 = arith.constant 520 : index
    %332 = vector.load %arg12[%c7_296, %c520_297] : memref<8x728xf32, #tpu.memory_space<vmem>>, vector<1x104xf32>
    tpu.vector_store %arg12[%c7_296, %c520_297], %331 {strides = array<i32>} : memref<8x728xf32, #tpu.memory_space<vmem>>, vector<1x104xf32>,
    %333 = vector.extract_strided_slice %320 {offsets = [6, 0], sizes = [1, 104], strides = [1, 1]} : vector<7x104xf32> to vector<1x104xf32>
    %c7_298 = arith.constant 7 : index
    %c624_299 = arith.constant 624 : index
    %334 = vector.load %arg12[%c7_298, %c624_299] : memref<8x728xf32, #tpu.memory_space<vmem>>, vector<1x104xf32>
    tpu.vector_store %arg12[%c7_298, %c624_299], %333 {strides = array<i32>} : memref<8x728xf32, #tpu.memory_space<vmem>>, vector<1x104xf32>,
    %c0_300 = arith.constant 0 : index
    %c0_301 = arith.constant 0 : index
    %335 = vector.load %arg12[%c0_300, %c0_301] : memref<8x728xf32, #tpu.memory_space<vmem>>, vector<8x728xf32>
    %c0_302 = arith.constant 0 : index
    %c0_303 = arith.constant 0 : index
    %336 = vector.load %arg6[%c0_302, %c0_303] : memref<728x128xf32, #tpu.memory_space<vmem>>, vector<728x128xf32>
    %cst_304 = arith.constant dense<0.000000e+00> : vector<8x128xf32>
    %337 = tpu.matmul %335, %336, %cst_304 {dimension_numbers = #tpu.dot_dimension_numbers<[1], [0], [0], [1], [0, 0, 1, 1], [], []>} : vector<8x728xf32>, vector<728x128xf32>, vector<8x128xf32> -> vector<8x128xf32>
    %c0_305 = arith.constant 0 : index
    %c0_306 = arith.constant 0 : index
    %338 = vector.load %arg7[%c0_305, %c0_306] : memref<1x128xf32, #tpu.memory_space<vmem>>, vector<1x128xf32>
    %339 = vector.broadcast %338 : vector<1x128xf32> to vector<8x128xf32>
    %340 = arith.addf %337, %339 : vector<8x128xf32>
    %c0_307 = arith.constant 0 : index
    %c0_308 = arith.constant 0 : index
    %341 = vector.load %arg8[%c0_307, %c0_308] : memref<8x128xf32, #tpu.memory_space<vmem>>, vector<8x128xf32>
    tpu.vector_store %arg8[%c0_307, %c0_308], %340 {strides = array<i32>} : memref<8x128xf32, #tpu.memory_space<vmem>>, vector<8x128xf32>,
    return
  }
  func.func @transform_0(%arg0: i32) -> (i32, i32) {
    %c0_i32 = arith.constant 0 : i32
    %c0_i32_0 = arith.constant 0 : i32
    return %arg0, %c0_i32 : i32, i32
  }
  func.func @transform_1(%arg0: i32) -> (i32, i32, i32) {
    %c0_i32 = arith.constant 0 : i32
    %c0_i32_0 = arith.constant 0 : i32
    %c0_i32_1 = arith.constant 0 : i32
    %c0_i32_2 = arith.constant 0 : i32
    return %c0_i32, %c0_i32_0, %c0_i32_1 : i32, i32, i32
  }
  func.func @transform_2(%arg0: i32) -> (i32, i32) {
    %c0_i32 = arith.constant 0 : i32
    %c0_i32_0 = arith.constant 0 : i32
    %c0_i32_1 = arith.constant 0 : i32
    return %c0_i32, %c0_i32_0 : i32, i32
  }
  func.func @transform_3(%arg0: i32) -> (i32, i32, i32) {
    %c0_i32 = arith.constant 0 : i32
    %c0_i32_0 = arith.constant 0 : i32
    %c0_i32_1 = arith.constant 0 : i32
    %c0_i32_2 = arith.constant 0 : i32
    return %c0_i32, %c0_i32_0, %c0_i32_1 : i32, i32, i32
  }
  func.func @transform_4(%arg0: i32) -> (i32, i32) {
    %c0_i32 = arith.constant 0 : i32
    %c0_i32_0 = arith.constant 0 : i32
    %c0_i32_1 = arith.constant 0 : i32
    return %c0_i32, %c0_i32_0 : i32, i32
  }
  func.func @transform_5(%arg0: i32) -> (i32, i32) {
    %c0_i32 = arith.constant 0 : i32
    %c0_i32_0 = arith.constant 0 : i32
    %c0_i32_1 = arith.constant 0 : i32
    return %c0_i32, %c0_i32_0 : i32, i32
  }
  func.func @transform_6(%arg0: i32) -> (i32, i32) {
    %c0_i32 = arith.constant 0 : i32
    %c0_i32_0 = arith.constant 0 : i32
    %c0_i32_1 = arith.constant 0 : i32
    return %c0_i32, %c0_i32_0 : i32, i32
  }
  func.func @transform_7(%arg0: i32) -> (i32, i32) {
    %c0_i32 = arith.constant 0 : i32
    %c0_i32_0 = arith.constant 0 : i32
    return %arg0, %c0_i32 : i32, i32
  }
}

</mosaic_0001>

<llo_original>
// kernel: tile.13
$region0: #{tile.13}
  #allocation0 [shape = 's32[1]{0}', space=sflag, size = 0x4, scoped, tag = 'scoped memory for tile.13']
  %s0 = inlined_call_operand.vmem [shape: f32[8], index: 0, kind: input, shape index: {}]
  %s1 = inlined_call_operand.vmem [shape: f32[27,8], index: 1, kind: output, shape index: {}]
  // Predicated region
  $region2: #{tile.13} parent=0 // pred_check
    _
  $region3: #{tile.13} parent=0 // pred_check_branch
    %3 = sbr.rel (0) target = $region5
  $region4: #{tile.13} parent=0 // pred_region
    _
  $region5: #{tile.13} parent=0 // pred_fallthru
    _
  %v4 = vld [vmem:[%s0] ss:$0 sm:$0xff]
  %5 = vst [vmem:[%s1] sm:$0xff] %v4
  %s6 = scalar_lea.vmem %s1, 8
  %7 = vst [vmem:[%s6] sm:$0xff] %v4
  %s8 = scalar_lea.vmem %s1, 16
  %9 = vst [vmem:[%s8] sm:$0xff] %v4
  %s10 = scalar_lea.vmem %s1, 24
  %11 = vst [vmem:[%s10] sm:$0xff] %v4

// kernel: tile.14
$region0: #{tile.14}
  %s0 = inlined_call_operand.vmem [shape: f32[27,8], index: 0, kind: input, shape index: {}]
  %s1 = inlined_call_operand.vmem [shape: f32[1,216], index: 1, kind: output, shape index: {}]
  $region1: #{tile.14} parent=0
    #allocation0 [shape = 'u8[8192]{0}', space=vmem, size = 0x2000, scoped, tag = 'scoped mem for output reshape']
    %s2 = smov 3
    %v3 = vld [vmem:[%s0] ss:$16 sm:%s2]
    %vm4 = vcmask 64512
    %5 = vst.msk [vmem:[#allocation0] ss:$8 sm:$0x3] %vm4, %v3
    %s6 = scalar_lea.vmem %s0, 15
    %v7 = vld [vmem:[%s6] sm:$0x1]
    %8 = vrot.lane.b32.xlu0 %v7, 120
    %v9 = vpop.permute.xlu0 %8
    %vm10 = vcmask 1048512
    %11 = vst.msk [vmem:[#allocation0] sm:$0x1] %vm10, %v9
    %s12 = scalar_lea.vmem %s0, 14
    %v13 = vld [vmem:[%s12] sm:$0x1]
    %14 = vrot.lane.b32.xlu0 %v13, 112
    %v15 = vpop.permute.xlu0 %14
    %vm16 = vcmask 982912
    %17 = vst.msk [vmem:[#allocation0] sm:$0x1] %vm16, %v15
    %s18 = scalar_lea.vmem %s0, 13
    %v19 = vld [vmem:[%s18] sm:$0x1]
    %20 = vrot.lane.b32.xlu0 %v19, 104
    %v21 = vpop.permute.xlu0 %20
    %vm22 = vcmask 917312
    %23 = vst.msk [vmem:[#allocation0] sm:$0x1] %vm22, %v21
    %s24 = scalar_lea.vmem %s0, 12
    %v25 = vld [vmem:[%s24] sm:$0x1]
    %26 = vrot.lane.b32.xlu0 %v25, 96
    %v27 = vpop.permute.xlu0 %26
    %vm28 = vcmask 851712
    %29 = vst.msk [vmem:[#allocation0] sm:$0x1] %vm28, %v27
    %s30 = scalar_lea.vmem %s0, 11
    %v31 = vld [vmem:[%s30] sm:$0x1]
    %32 = vrot.lane.b32.xlu0 %v31, 88
    %v33 = vpop.permute.xlu0 %32
    %vm34 = vcmask 786112
    %35 = vst.msk [vmem:[#allocation0] sm:$0x1] %vm34, %v33
    %s36 = scalar_lea.vmem %s0, 10
    %s37 = smov 3
    %v38 = vld [vmem:[%s36] ss:$16 sm:%s37]
    %39 = vrot.lane.b32.xlu0 %v38, 80
    %v40 = vpop.permute.xlu0 %39
    %vm41 = vcmask 720512
    %42 = vst.msk [vmem:[#allocation0] ss:$8 sm:$0x3] %vm41, %v40
    %s43 = scalar_lea.vmem %s0, 9
    %s44 = smov 3
    %v45 = vld [vmem:[%s43] ss:$16 sm:%s44]
    %46 = vrot.lane.b32.xlu0 %v45, 72
    %v47 = vpop.permute.xlu0 %46
    %vm48 = vcmask 654912
    %49 = vst.msk [vmem:[#allocation0] ss:$8 sm:$0x3] %vm48, %v47
    %s50 = scalar_lea.vmem %s0, 8
    %s51 = smov 3
    %v52 = vld [vmem:[%s50] ss:$16 sm:%s51]
    %53 = vrot.lane.b32.xlu0 %v52, 64
    %v54 = vpop.permute.xlu0 %53
    %vm55 = vcmask 589312
    %56 = vst.msk [vmem:[#allocation0] ss:$8 sm:$0x3] %vm55, %v54
    %s57 = scalar_lea.vmem %s0, 7
    %s58 = smov 3
    %v59 = vld [vmem:[%s57] ss:$16 sm:%s58]
    %60 = vrot.lane.b32.xlu0 %v59, 56
    %v61 = vpop.permute.xlu0 %60
    %vm62 = vcmask 523712
    %63 = vst.msk [vmem:[#allocation0] ss:$8 sm:$0x3] %vm62, %v61
    %s64 = scalar_lea.vmem %s0, 6
    %s65 = smov 3
    %v66 = vld [vmem:[%s64] ss:$16 sm:%s65]
    %67 = vrot.lane.b32.xlu0 %v66, 48
    %v68 = vpop.permute.xlu0 %67
    %vm69 = vcmask 458112
    %70 = vst.msk [vmem:[#allocation0] ss:$8 sm:$0x3] %vm69, %v68
    %s71 = scalar_lea.vmem %s0, 5
    %s72 = smov 3
    %v73 = vld [vmem:[%s71] ss:$16 sm:%s72]
    %74 = vrot.lane.b32.xlu0 %v73, 40
    %v75 = vpop.permute.xlu0 %74
    %vm76 = vcmask 392512
    %77 = vst.msk [vmem:[#allocation0] ss:$8 sm:$0x3] %vm76, %v75
    %s78 = scalar_lea.vmem %s0, 4
    %s79 = smov 3
    %v80 = vld [vmem:[%s78] ss:$16 sm:%s79]
    %81 = vrot.lane.b32.xlu0 %v80, 32
    %v82 = vpop.permute.xlu0 %81
    %vm83 = vcmask 326912
    %84 = vst.msk [vmem:[#allocation0] ss:$8 sm:$0x3] %vm83, %v82
    %s85 = scalar_lea.vmem %s0, 3
    %s86 = smov 3
    %v87 = vld [vmem:[%s85] ss:$16 sm:%s86]
    %88 = vrot.lane.b32.xlu0 %v87, 24
    %v89 = vpop.permute.xlu0 %88
    %vm90 = vcmask 261312
    %91 = vst.msk [vmem:[#allocation0] ss:$8 sm:$0x3] %vm90, %v89
    %s92 = scalar_lea.vmem %s0, 2
    %s93 = smov 3
    %v94 = vld [vmem:[%s92] ss:$16 sm:%s93]
    %95 = vrot.lane.b32.xlu0 %v94, 16
    %v96 = vpop.permute.xlu0 %95
    %vm97 = vcmask 195712
    %98 = vst.msk [vmem:[#allocation0] ss:$8 sm:$0x3] %vm97, %v96
    %s99 = scalar_lea.vmem %s0, 1
    %s100 = smov 3
    %v101 = vld [vmem:[%s99] ss:$16 sm:%s100]
    %102 = vrot.lane.b32.xlu0 %v101, 8
    %v103 = vpop.permute.xlu0 %102
    %vm104 = vcmask 130112
    %105 = vst.msk [vmem:[#allocation0] ss:$8 sm:$0x3] %vm104, %v103
    %s107 = ssub.s32 2, 1
    %v108 = vld [vmem:[#allocation0] sm:%s107]
    %s110 = ssub.s32 2, 1
    %111 = vst [vmem:[%s1] sm:%s110] %v108
    %s112 = scalar_lea.vmem [#allocation0], 8
    %v113 = vld [vmem:[%s112] sm:%s107]
    %s115 = ssub.s32 2, 1
    %s116 = scalar_lea.vmem %s1, 1
    %117 = vst [vmem:[%s116] sm:%s115] %v113

// kernel: tile.18
$region0: #{tile.18}
  #allocation0 [shape = 's32[1]{0}', space=sflag, size = 0x4, scoped, tag = 'scoped memory for tile.18']
  %s0 = inlined_call_operand.vmem [shape: f32[8], index: 0, kind: input, shape index: {}]
  %s1 = inlined_call_operand.vmem [shape: f32[13,8], index: 1, kind: output, shape index: {}]
  // Predicated region
  $region2: #{tile.18} parent=0 // pred_check
    _
  $region3: #{tile.18} parent=0 // pred_check_branch
    %3 = sbr.rel (0) target = $region5
  $region4: #{tile.18} parent=0 // pred_region
    _
  $region5: #{tile.18} parent=0 // pred_fallthru
    _
  %v4 = vld [vmem:[%s0] ss:$0 sm:$0xff]
  %5 = vst [vmem:[%s1] sm:$0xff] %v4
  %s6 = scalar_lea.vmem %s1, 8
  %7 = vst [vmem:[%s6] sm:$0xff] %v4

// kernel: tile.19
$region0: #{tile.19}
  %s0 = inlined_call_operand.vmem [shape: f32[13,8], index: 0, kind: input, shape index: {}]
  %s1 = inlined_call_operand.vmem [shape: f32[1,104], index: 1, kind: output, shape index: {}]
  $region1: #{tile.19} parent=0
    #allocation0 [shape = 'u8[4096]{0}', space=vmem, size = 0x1000, scoped, tag = 'scoped mem for output reshape']
    %v2 = vld [vmem:[%s0] sm:$0x1]
    %vm3 = vcmask 64512
    %4 = vst.msk [vmem:[#allocation0] sm:$0x1] %vm3, %v2
    %s5 = scalar_lea.vmem %s0, 12
    %v6 = vld [vmem:[%s5] sm:$0x1]
    %7 = vrot.lane.b32.xlu0 %v6, 96
    %v8 = vpop.permute.xlu0 %7
    %vm9 = vcmask 851712
    %10 = vst.msk [vmem:[#allocation0] sm:$0x1] %vm9, %v8
    %s11 = scalar_lea.vmem %s0, 11
    %v12 = vld [vmem:[%s11] sm:$0x1]
    %13 = vrot.lane.b32.xlu0 %v12, 88
    %v14 = vpop.permute.xlu0 %13
    %vm15 = vcmask 786112
    %16 = vst.msk [vmem:[#allocation0] sm:$0x1] %vm15, %v14
    %s17 = scalar_lea.vmem %s0, 10
    %v18 = vld [vmem:[%s17] sm:$0x1]
    %19 = vrot.lane.b32.xlu0 %v18, 80
    %v20 = vpop.permute.xlu0 %19
    %vm21 = vcmask 720512
    %22 = vst.msk [vmem:[#allocation0] sm:$0x1] %vm21, %v20
    %s23 = scalar_lea.vmem %s0, 9
    %v24 = vld [vmem:[%s23] sm:$0x1]
    %25 = vrot.lane.b32.xlu0 %v24, 72
    %v26 = vpop.permute.xlu0 %25
    %vm27 = vcmask 654912
    %28 = vst.msk [vmem:[#allocation0] sm:$0x1] %vm27, %v26
    %s29 = scalar_lea.vmem %s0, 8
    %v30 = vld [vmem:[%s29] sm:$0x1]
    %31 = vrot.lane.b32.xlu0 %v30, 64
    %v32 = vpop.permute.xlu0 %31
    %vm33 = vcmask 589312
    %34 = vst.msk [vmem:[#allocation0] sm:$0x1] %vm33, %v32
    %s35 = scalar_lea.vmem %s0, 7
    %v36 = vld [vmem:[%s35] sm:$0x1]
    %37 = vrot.lane.b32.xlu0 %v36, 56
    %v38 = vpop.permute.xlu0 %37
    %vm39 = vcmask 523712
    %40 = vst.msk [vmem:[#allocation0] sm:$0x1] %vm39, %v38
    %s41 = scalar_lea.vmem %s0, 6
    %v42 = vld [vmem:[%s41] sm:$0x1]
    %43 = vrot.lane.b32.xlu0 %v42, 48
    %v44 = vpop.permute.xlu0 %43
    %vm45 = vcmask 458112
    %46 = vst.msk [vmem:[#allocation0] sm:$0x1] %vm45, %v44
    %s47 = scalar_lea.vmem %s0, 5
    %v48 = vld [vmem:[%s47] sm:$0x1]
    %49 = vrot.lane.b32.xlu0 %v48, 40
    %v50 = vpop.permute.xlu0 %49
    %vm51 = vcmask 392512
    %52 = vst.msk [vmem:[#allocation0] sm:$0x1] %vm51, %v50
    %s53 = scalar_lea.vmem %s0, 4
    %v54 = vld [vmem:[%s53] sm:$0x1]
    %55 = vrot.lane.b32.xlu0 %v54, 32
    %v56 = vpop.permute.xlu0 %55
    %vm57 = vcmask 326912
    %58 = vst.msk [vmem:[#allocation0] sm:$0x1] %vm57, %v56
    %s59 = scalar_lea.vmem %s0, 3
    %v60 = vld [vmem:[%s59] sm:$0x1]
    %61 = vrot.lane.b32.xlu0 %v60, 24
    %v62 = vpop.permute.xlu0 %61
    %vm63 = vcmask 261312
    %64 = vst.msk [vmem:[#allocation0] sm:$0x1] %vm63, %v62
    %s65 = scalar_lea.vmem %s0, 2
    %v66 = vld [vmem:[%s65] sm:$0x1]
    %67 = vrot.lane.b32.xlu0 %v66, 16
    %v68 = vpop.permute.xlu0 %67
    %vm69 = vcmask 195712
    %70 = vst.msk [vmem:[#allocation0] sm:$0x1] %vm69, %v68
    %s71 = scalar_lea.vmem %s0, 1
    %v72 = vld [vmem:[%s71] sm:$0x1]
    %73 = vrot.lane.b32.xlu0 %v72, 8
    %v74 = vpop.permute.xlu0 %73
    %vm75 = vcmask 130112
    %76 = vst.msk [vmem:[#allocation0] sm:$0x1] %vm75, %v74
    %s78 = ssub.s32 2, 1
    %v79 = vld [vmem:[#allocation0] sm:%s78]
    %s81 = ssub.s32 2, 1
    %82 = vst [vmem:[%s1] sm:%s81] %v79

// kernel: forward.3
$region0: #{forward.3}
  #allocation0 [shape = 'u32[]', space=smem, size = 0x4, offset = 0x4, fixed_abs, tag = 'smem constant byte address 0x4 - core index']
  #allocation1 [shape = 'u32[72,128]{1,0:T(1,128)}', space=vmem, size = 0x9000, scoped, tag = 'internal scratch']
  #allocation2 [shape = 'f32[238,224]{1,0:T(8,128)}', space=vmem, size = 0x3c000, scoped, tag = 'scratch operand']
  #allocation3 [shape = 'f32[128,216]{1,0:T(8,128)}', space=vmem, size = 0x20000, scoped, tag = 'scratch operand']
  #allocation4 [shape = 'f32[126,112]{1,0:T(8,128)}', space=vmem, size = 0x10000, scoped, tag = 'scratch operand']
  #allocation5 [shape = 'f32[8,728]{1,0:T(8,128)}', space=vmem, size = 0x6000, scoped, tag = 'scratch operand']
  %s0 = inlined_call_operand.vmem [shape: f32[480,112], index: 0, kind: input, shape index: {}]
  %s1 = inlined_call_operand.vmem [shape: f32[3,112,224], index: 1, kind: input, shape index: {}]
  %s2 = inlined_call_operand.vmem [shape: f32[1,216], index: 2, kind: input, shape index: {}]
  %s3 = inlined_call_operand.vmem [shape: f32[3,216,112], index: 3, kind: input, shape index: {}]
  %s4 = inlined_call_operand.vmem [shape: f32[1,104], index: 4, kind: input, shape index: {}]
  %s5 = inlined_call_operand.vmem [shape: f32[728,128], index: 5, kind: input, shape index: {}]
  %s6 = inlined_call_operand.vmem [shape: f32[1,128], index: 6, kind: input, shape index: {}]
  %s7 = inlined_call_operand.hbm [shape: f32[16,128], index: 7, kind: output, shape index: {}]
  %s8 = sld [smem:[#allocation0]]
  $region61: #{forward.3} parent=0
    _
  %s10 = ssub.s32 1, %s8
  %s11 = scalar_select 0, %s10, %s8
  $region1: #{forward.3} parent=0
    #allocation6 [shape = 'u8[8192]{0}', space=vmem, size = 0x2000, scoped, tag = 'output window, operand 0']
    #allocation7 [shape = 's32[2]{0}', space=sflag, size = 0x8, scoped, tag = 'scoped memory for forward.3']
    %12 = vsyncpa [#allocation7], 0
    %s13 = scalar_lea.sflag [#allocation7], 1
    %14 = vsyncpa %s13, 0
    loop: start=0, step=1, limit=4
    $region2: #{forward.3} parent=1 // loop_pre_header
      _
    $region3: #{forward.3} parent=1 // loop_header
      %s16 = sphi 0, %s20
      %p17 = scmp.ge.s32.totalorder %s16, 4
      %s26 = sphi 0, %s28
      %s29 = sphi 0, %s26
      %s30 = sphi 0, %s29
      %s46 = sphi 0, %s30
      %s50 = sphi 0, %s50
      %s52 = sphi 0, %s50
      %s53 = sphi 0, %s52
      %s67 = sphi 0, %s53
      %s71 = sphi 0, %s71
      %s73 = sphi 0, %s71
      %s74 = sphi 0, %s73
      %s88 = sphi 0, %s74
      %s92 = sphi 0, %s92
      %s94 = sphi 0, %s92
      %s95 = sphi 0, %s94
      %s109 = sphi 0, %s95
      %s113 = sphi 0, %s113
      %s115 = sphi 0, %s113
      %s116 = sphi 0, %s115
      %s130 = sphi 0, %s116
      %s134 = sphi 0, %s134
      %s136 = sphi 0, %s134
      %s137 = sphi 0, %s136
      %s151 = sphi 0, %s137
      %s155 = sphi 0, %s155
      %s157 = sphi 0, %s155
      %s158 = sphi 0, %s157
      %s172 = sphi 0, %s158
      %s178 = sphi 0, %s180
      %s181 = sphi 0, %s178
      %s182 = sphi 0, %s181
      %s198 = sphi 0, %s182
    $region4: #{forward.3} parent=1 // loop_header_branch
      %19 = sbr.rel (%p17) target = $region8
    $region5: #{forward.3} parent=1 // loop_body
      %s21 = ssub.s32 %s16, 1
      %s22 = ssub.s32 %s16, 2
      %s23 = sadd.s32 %s16, 1
      %s24 = ssub.s32 %s16, %s23
      %p25 = scmp.eq.s32.totalorder %s24, 0
      %s27 = sadd.s32 %s26, 1
      %s28 = scalar_select %p25, %s26, %s27
      %p31 = pneg %p25
      %p32 = scmp.eq.s32.totalorder %s16, 1
      %p33 = por %p31, %p32
      %p34 = scmp.ne.s32.totalorder %s26, %s29
      %p35 = scmp.eq.s32.totalorder %s16, 0
      %p36 = por %p34, %p35
      %p37 = scmp.ne.s32.totalorder %s26, %s29
      %p38 = scmp.eq.s32.totalorder %s21, 1
      %p39 = por %p37, %p38
      %p40 = scmp.ne.s32.totalorder %s29, %s30
      %p41 = scmp.eq.s32.totalorder %s21, 0
      %p42 = por %p40, %p41
      %p43 = scmp.ne.s32.totalorder %s29, %s30
      %p44 = scmp.eq.s32.totalorder %s22, 1
      %p45 = por %p43, %p44
      %p47 = scmp.ne.s32.totalorder %s30, %s46
      %p48 = scmp.eq.s32.totalorder %s22, 0
      %p49 = por %p47, %p48
      %s51 = sadd.s32 %s50, 1
      %p54 = scmp.eq.s32.totalorder %s16, 1
      %p55 = scmp.ne.s32.totalorder %s50, %s52
      %p56 = scmp.eq.s32.totalorder %s16, 0
      %p57 = por %p55, %p56
      %p58 = scmp.ne.s32.totalorder %s50, %s52
      %p59 = scmp.eq.s32.totalorder %s21, 1
      %p60 = por %p58, %p59
      %p61 = scmp.ne.s32.totalorder %s52, %s53
      %p62 = scmp.eq.s32.totalorder %s21, 0
      %p63 = por %p61, %p62
      %p64 = scmp.ne.s32.totalorder %s52, %s53
      %p65 = scmp.eq.s32.totalorder %s22, 1
      %p66 = por %p64, %p65
      %p68 = scmp.ne.s32.totalorder %s53, %s67
      %p69 = scmp.eq.s32.totalorder %s22, 0
      %p70 = por %p68, %p69
      %s72 = sadd.s32 %s71, 1
      %p75 = scmp.eq.s32.totalorder %s16, 1
      %p76 = scmp.ne.s32.totalorder %s71, %s73
      %p77 = scmp.eq.s32.totalorder %s16, 0
      %p78 = por %p76, %p77
      %p79 = scmp.ne.s32.totalorder %s71, %s73
      %p80 = scmp.eq.s32.totalorder %s21, 1
      %p81 = por %p79, %p80
      %p82 = scmp.ne.s32.totalorder %s73, %s74
      %p83 = scmp.eq.s32.totalorder %s21, 0
      %p84 = por %p82, %p83
      %p85 = scmp.ne.s32.totalorder %s73, %s74
      %p86 = scmp.eq.s32.totalorder %s22, 1
      %p87 = por %p85, %p86
      %p89 = scmp.ne.s32.totalorder %s74, %s88
      %p90 = scmp.eq.s32.totalorder %s22, 0
      %p91 = por %p89, %p90
      %s93 = sadd.s32 %s92, 1
      %p96 = scmp.eq.s32.totalorder %s16, 1
      %p97 = scmp.ne.s32.totalorder %s92, %s94
      %p98 = scmp.eq.s32.totalorder %s16, 0
      %p99 = por %p97, %p98
      %p100 = scmp.ne.s32.totalorder %s92, %s94
      %p101 = scmp.eq.s32.totalorder %s21, 1
      %p102 = por %p100, %p101
      %p103 = scmp.ne.s32.totalorder %s94, %s95
      %p104 = scmp.eq.s32.totalorder %s21, 0
      %p105 = por %p103, %p104
      %p106 = scmp.ne.s32.totalorder %s94, %s95
      %p107 = scmp.eq.s32.totalorder %s22, 1
      %p108 = por %p106, %p107
      %p110 = scmp.ne.s32.totalorder %s95, %s109
      %p111 = scmp.eq.s32.totalorder %s22, 0
      %p112 = por %p110, %p111
      %s114 = sadd.s32 %s113, 1
      %p117 = scmp.eq.s32.totalorder %s16, 1
      %p118 = scmp.ne.s32.totalorder %s113, %s115
      %p119 = scmp.eq.s32.totalorder %s16, 0
      %p120 = por %p118, %p119
      %p121 = scmp.ne.s32.totalorder %s113, %s115
      %p122 = scmp.eq.s32.totalorder %s21, 1
      %p123 = por %p121, %p122
      %p124 = scmp.ne.s32.totalorder %s115, %s116
      %p125 = scmp.eq.s32.totalorder %s21, 0
      %p126 = por %p124, %p125
      %p127 = scmp.ne.s32.totalorder %s115, %s116
      %p128 = scmp.eq.s32.totalorder %s22, 1
      %p129 = por %p127, %p128
      %p131 = scmp.ne.s32.totalorder %s116, %s130
      %p132 = scmp.eq.s32.totalorder %s22, 0
      %p133 = por %p131, %p132
      %s135 = sadd.s32 %s134, 1
      %p138 = scmp.eq.s32.totalorder %s16, 1
      %p139 = scmp.ne.s32.totalorder %s134, %s136
      %p140 = scmp.eq.s32.totalorder %s16, 0
      %p141 = por %p139, %p140
      %p142 = scmp.ne.s32.totalorder %s134, %s136
      %p143 = scmp.eq.s32.totalorder %s21, 1
      %p144 = por %p142, %p143
      %p145 = scmp.ne.s32.totalorder %s136, %s137
      %p146 = scmp.eq.s32.totalorder %s21, 0
      %p147 = por %p145, %p146
      %p148 = scmp.ne.s32.totalorder %s136, %s137
      %p149 = scmp.eq.s32.totalorder %s22, 1
      %p150 = por %p148, %p149
      %p152 = scmp.ne.s32.totalorder %s137, %s151
      %p153 = scmp.eq.s32.totalorder %s22, 0
      %p154 = por %p152, %p153
      %s156 = sadd.s32 %s155, 1
      %p159 = scmp.eq.s32.totalorder %s16, 1
      %p160 = scmp.ne.s32.totalorder %s155, %s157
      %p161 = scmp.eq.s32.totalorder %s16, 0
      %p162 = por %p160, %p161
      %p163 = scmp.ne.s32.totalorder %s155, %s157
      %p164 = scmp.eq.s32.totalorder %s21, 1
      %p165 = por %p163, %p164
      %p166 = scmp.ne.s32.totalorder %s157, %s158
      %p167 = scmp.eq.s32.totalorder %s21, 0
      %p168 = por %p166, %p167
      %p169 = scmp.ne.s32.totalorder %s157, %s158
      %p170 = scmp.eq.s32.totalorder %s22, 1
      %p171 = por %p169, %p170
      %p173 = scmp.ne.s32.totalorder %s158, %s172
      %p174 = scmp.eq.s32.totalorder %s22, 0
      %p175 = por %p173, %p174
      %s176 = ssub.s32 %s16, %s23
      %p177 = scmp.eq.s32.totalorder %s176, 0
      %s179 = sadd.s32 %s178, 1
      %s180 = scalar_select %p177, %s178, %s179
      %p183 = pneg %p177
      %p184 = scmp.eq.s32.totalorder %s16, 1
      %p185 = por %p183, %p184
      %p186 = scmp.ne.s32.totalorder %s178, %s181
      %p187 = scmp.eq.s32.totalorder %s16, 0
      %p188 = por %p186, %p187
      %p189 = scmp.ne.s32.totalorder %s178, %s181
      %p190 = scmp.eq.s32.totalorder %s21, 1
      %p191 = por %p189, %p190
      %p192 = scmp.ne.s32.totalorder %s181, %s182
      %p193 = scmp.eq.s32.totalorder %s21, 0
      %p194 = por %p192, %p193
      %p195 = scmp.ne.s32.totalorder %s181, %s182
      %p196 = scmp.eq.s32.totalorder %s22, 1
      %p197 = por %p195, %p196
      %p199 = scmp.ne.s32.totalorder %s182, %s198
      %p200 = scmp.eq.s32.totalorder %s22, 0
      %p201 = por %p199, %p200
      %p202 = scmp.le.s32.totalorder 1, %s16
      %p203 = scmp.lt.s32.totalorder %s16, 3
      %p204 = pnand %p202, %p203
      %p205 = pneg %p204
      // Predicated region
      $region9: #{forward.3} parent=5 // pred_check
        _
      $region10: #{forward.3} parent=5 // pred_check_branch
        %207 = sbr.rel (%p204) target = $region12
      $region11: #{forward.3} parent=5 // pred_region
        %s208 = ssub.s32 %s16, 1
        // Predicated region
        $region13: #{forward.3} parent=11 // pred_check
          %p209 = pneg %p63
        $region14: #{forward.3} parent=11 // pred_check_branch
          %211 = sbr.rel (%p209) target = $region16
        $region15: #{forward.3} parent=11 // pred_region
          _
        $region16: #{forward.3} parent=11 // pred_fallthru
          _
        // Predicated region
        $region17: #{forward.3} parent=11 // pred_check
          %p212 = pneg %p84
        $region18: #{forward.3} parent=11 // pred_check_branch
          %214 = sbr.rel (%p212) target = $region20
        $region19: #{forward.3} parent=11 // pred_region
          _
        $region20: #{forward.3} parent=11 // pred_fallthru
          _
        // Predicated region
        $region21: #{forward.3} parent=11 // pred_check
          %p215 = pneg %p105
        $region22: #{forward.3} parent=11 // pred_check_branch
          %217 = sbr.rel (%p215) target = $region24
        $region23: #{forward.3} parent=11 // pred_region
          _
        $region24: #{forward.3} parent=11 // pred_fallthru
          _
        // Predicated region
        $region25: #{forward.3} parent=11 // pred_check
          %p218 = pneg %p126
        $region26: #{forward.3} parent=11 // pred_check_branch
          %220 = sbr.rel (%p218) target = $region28
        $region27: #{forward.3} parent=11 // pred_region
          _
        $region28: #{forward.3} parent=11 // pred_fallthru
          _
        // Predicated region
        $region29: #{forward.3} parent=11 // pred_check
          %p221 = pneg %p147
        $region30: #{forward.3} parent=11 // pred_check_branch
          %223 = sbr.rel (%p221) target = $region32
        $region31: #{forward.3} parent=11 // pred_region
          _
        $region32: #{forward.3} parent=11 // pred_fallthru
          _
        // Predicated region
        $region33: #{forward.3} parent=11 // pred_check
          %p224 = pneg %p168
        $region34: #{forward.3} parent=11 // pred_check_branch
          %226 = sbr.rel (%p224) target = $region36
        $region35: #{forward.3} parent=11 // pred_region
          _
        $region36: #{forward.3} parent=11 // pred_fallthru
          _
      $region12: #{forward.3} parent=5 // pred_fallthru
        _
      %p227 = scmp.lt.s32.totalorder %s16, 2
      // Predicated region
      $region37: #{forward.3} parent=5 // pred_check
        %p228 = pneg %p227
      $region38: #{forward.3} parent=5 // pred_check_branch
        %230 = sbr.rel (%p228) target = $region40
      $region39: #{forward.3} parent=5 // pred_region
        // Predicated region
        $region41: #{forward.3} parent=39 // pred_check
          %p231 = pneg %p36
        $region42: #{forward.3} parent=39 // pred_check_branch
          %233 = sbr.rel (%p231) target = $region44
        $region43: #{forward.3} parent=39 // pred_region
          %s234 = smul.u32 30, %s16
          %p235 = scmp.lt.s32.totalorder %s234, 59
          %s236 = scalar_select %p235, %s234, 59
          %s237 = smul.addr %s236, 8
          %s238 = scalar_lea.vmem %s0, %s237
          %s239 = smul.u32 30, %s16
        $region44: #{forward.3} parent=39 // pred_fallthru
          _
      $region40: #{forward.3} parent=5 // pred_fallthru
        _
      %p240 = scmp.le.s32.totalorder 1, %s16
      %p241 = scmp.lt.s32.totalorder %s16, 3
      %p242 = pnand %p240, %p241
      %p243 = pneg %p242
      // Predicated region
      $region45: #{forward.3} parent=5 // pred_check
        _
      $region46: #{forward.3} parent=5 // pred_check_branch
        %245 = sbr.rel (%p242) target = $region48
      $region47: #{forward.3} parent=5 // pred_region
        %s246 = ssub.s32 %s16, 1
        %s247 = smul.u32 30, %s21
        %p248 = scmp.lt.s32.totalorder %s247, 59
        %s249 = scalar_select %p248, %s247, 59
        %s250 = smul.addr %s249, 8
        %s251 = scalar_lea.vmem %s0, %s250
        %p252 = pneg %p42
        %p253 = pneg %p39
        %p254 = pneg %p63
        %p255 = pneg %p60
        %p256 = pneg %p84
        %p257 = pneg %p81
        %p258 = pneg %p105
        %p259 = pneg %p102
        %p260 = pneg %p126
        %p261 = pneg %p123
        %p262 = pneg %p147
        %p263 = pneg %p144
        %p264 = pneg %p168
        %p265 = pneg %p165
        %p266 = pneg %p194
        %p267 = pneg %p191
        %s268 = sand.u32 %s181, 1
        %s269 = scalar_lea.sflag [#allocation7], %s268
        %s270 = sand.u32 %s181, 1
        %s271 = smul.addr %s270, 8
        %s272 = scalar_lea.vmem [#allocation6], %s271
        %s273 = smul.u32 30, %s21
        %p274 = scmp.lt.s32.totalorder %s273, 59
        %s275 = scalar_select %p274, %s273, 59
        %s276 = smul.addr %s275, 8
        %s277 = scalar_lea.vmem %s0, %s276
        %s278 = smul.u32 30, %s21
        %v279 = vld [vmem:[%s277] sm:$0xff]
        %v280 = vld [vmem:[%s277 + $0x8] sm:$0xff]
        %v281 = vld [vmem:[%s277 + $0x10] sm:$0xff]
        %v282 = vld [vmem:[%s277 + $0x18] sm:$0xff]
        %v283 = vld [vmem:[%s277 + $0x20] sm:$0xff]
        %v284 = vld [vmem:[%s277 + $0x28] sm:$0xff]
        %v285 = vld [vmem:[%s277 + $0x30] sm:$0xff]
        %v286 = vld [vmem:[%s277 + $0x38] sm:$0xff]
        %v287 = vld [vmem:[%s277 + $0x40] sm:$0xff]
        %v288 = vld [vmem:[%s277 + $0x48] sm:$0xff]
        %v289 = vld [vmem:[%s277 + $0x50] sm:$0xff]
        %v290 = vld [vmem:[%s277 + $0x58] sm:$0xff]
        %v291 = vld [vmem:[%s277 + $0x60] sm:$0xff]
        %v292 = vld [vmem:[%s277 + $0x68] sm:$0xff]
        %v293 = vld [vmem:[%s277 + $0x70] sm:$0xff]
        %v294 = vld [vmem:[%s277 + $0x78] sm:$0xff]
        %v295 = vld [vmem:[%s277 + $0x80] sm:$0xff]
        %v296 = vld [vmem:[%s277 + $0x88] sm:$0xff]
        %v297 = vld [vmem:[%s277 + $0x90] sm:$0xff]
        %v298 = vld [vmem:[%s277 + $0x98] sm:$0xff]
        %v299 = vld [vmem:[%s277 + $0xa0] sm:$0xff]
        %v300 = vld [vmem:[%s277 + $0xa8] sm:$0xff]
        %v301 = vld [vmem:[%s277 + $0xb0] sm:$0xff]
        %v302 = vld [vmem:[%s277 + $0xb8] sm:$0xff]
        %v303 = vld [vmem:[%s277 + $0xc0] sm:$0xff]
        %v304 = vld [vmem:[%s277 + $0xc8] sm:$0xff]
        %v305 = vld [vmem:[%s277 + $0xd0] sm:$0xff]
        %v306 = vld [vmem:[%s277 + $0xd8] sm:$0xff]
        %v307 = vld [vmem:[%s277 + $0xe0] sm:$0xff]
        %v308 = vld [vmem:[%s277 + $0xe8] sm:$0x3f]
        %v309 = vld [vmem:[%s1] sm:$0xff]
        %v310 = vld [vmem:[%s1 + $0x8] sm:$0xff]
        %v311 = vld [vmem:[%s1 + $0x10] sm:$0xff]
        %v312 = vld [vmem:[%s1 + $0x18] sm:$0xff]
        %v313 = vld [vmem:[%s1 + $0x20] sm:$0xff]
        %v314 = vld [vmem:[%s1 + $0x28] sm:$0xff]
        %v315 = vld [vmem:[%s1 + $0x30] sm:$0xff]
        %v316 = vld [vmem:[%s1 + $0x38] sm:$0xff]
        %v317 = vld [vmem:[%s1 + $0x40] sm:$0xff]
        %v318 = vld [vmem:[%s1 + $0x48] sm:$0xff]
        %v319 = vld [vmem:[%s1 + $0x50] sm:$0xff]
        %v320 = vld [vmem:[%s1 + $0x58] sm:$0xff]
        %v321 = vld [vmem:[%s1 + $0x60] sm:$0xff]
        %v322 = vld [vmem:[%s1 + $0x68] sm:$0xff]
        %v323 = vld [vmem:[%s1 + $0x70] sm:$0xff]
        %v324 = vld [vmem:[%s1 + $0x78] sm:$0xff]
        %v325 = vld [vmem:[%s1 + $0x80] sm:$0xff]
        %v326 = vld [vmem:[%s1 + $0x88] sm:$0xff]
        %v327 = vld [vmem:[%s1 + $0x90] sm:$0xff]
        %v328 = vld [vmem:[%s1 + $0x98] sm:$0xff]
        %v329 = vld [vmem:[%s1 + $0xa0] sm:$0xff]
        %v330 = vld [vmem:[%s1 + $0xa8] sm:$0xff]
        %v331 = vld [vmem:[%s1 + $0xb0] sm:$0xff]
        %v332 = vld [vmem:[%s1 + $0xb8] sm:$0xff]
        %v333 = vld [vmem:[%s1 + $0xc0] sm:$0xff]
        %v334 = vld [vmem:[%s1 + $0xc8] sm:$0xff]
        %v335 = vld [vmem:[%s1 + $0xd0] sm:$0xff]
        %v336 = vld [vmem:[%s1 + $0xd8] sm:$0xff]
        %vm337 = vcmask 916480
        %v339 = vsel %vm337, %v279, 0
        %v342 = vsel %vm337, %v280, 0
        %v345 = vsel %vm337, %v281, 0
        %v348 = vsel %vm337, %v282, 0
        %v351 = vsel %vm337, %v283, 0
        %v354 = vsel %vm337, %v284, 0
        %v357 = vsel %vm337, %v285, 0
        %v360 = vsel %vm337, %v286, 0
        %v363 = vsel %vm337, %v287, 0
        %v366 = vsel %vm337, %v288, 0
        %v369 = vsel %vm337, %v289, 0
        %v372 = vsel %vm337, %v290, 0
        %v375 = vsel %vm337, %v291, 0
        %v378 = vsel %vm337, %v292, 0
        %v381 = vsel %vm337, %v293, 0
        %v384 = vsel %vm337, %v294, 0
        %v387 = vsel %vm337, %v295, 0
        %v390 = vsel %vm337, %v296, 0
        %v393 = vsel %vm337, %v297, 0
        %v396 = vsel %vm337, %v298, 0
        %v399 = vsel %vm337, %v299, 0
        %v402 = vsel %vm337, %v300, 0
        %v405 = vsel %vm337, %v301, 0
        %v408 = vsel %vm337, %v302, 0
        %v411 = vsel %vm337, %v303, 0
        %v414 = vsel %vm337, %v304, 0
        %v417 = vsel %vm337, %v305, 0
        %v420 = vsel %vm337, %v306, 0
        %v423 = vsel %vm337, %v307, 0
        %v426 = vsel %vm337, %v308, 0
        %428 = vmatpush.msra.mxu0 0.0
        %429 = vmatpush.msra.mxu0 0.0
        %430 = vmatpush.msra.mxu0 %v335
        %431 = vmatpush.msra.mxu0 %v333
        %432 = vmatpush.msra.mxu0 %v331
        %433 = vmatpush.msra.mxu0 %v329
        %434 = vmatpush.msra.mxu0 %v327
        %435 = vmatpush.msra.mxu0 %v325
        %436 = vmatpush.msra.mxu0 %v323
        %437 = vmatpush.msra.mxu0 %v321
        %438 = vmatpush.msra.mxu0 %v319
        %439 = vmatpush.msra.mxu0 %v317
        %440 = vmatpush.msra.mxu0 %v315
        %441 = vmatpush.msra.mxu0 %v313
        %442 = vmatpush.msra.mxu0 %v311
        %443 = vmatpush.msra.mxu0 %v309
        %444 = vmatmul.f32.gmra.mxu0 %v339
        %v445 = vpop.f32.mrf.mxu0
        %v446 = vadd.f32 0.0, %v445
        %447 = vmatmul.f32.gmra.mxu0 %v342
        %v448 = vpop.f32.mrf.mxu0
        %v449 = vadd.f32 0.0, %v448
        %450 = vmatmul.f32.gmra.mxu0 %v345
        %v451 = vpop.f32.mrf.mxu0
        %v452 = vadd.f32 0.0, %v451
        %453 = vmatmul.f32.gmra.mxu0 %v348
        %v454 = vpop.f32.mrf.mxu0
        %v455 = vadd.f32 0.0, %v454
        %456 = vmatmul.f32.gmra.mxu0 %v351
        %v457 = vpop.f32.mrf.mxu0
        %v458 = vadd.f32 0.0, %v457
        %459 = vmatmul.f32.gmra.mxu0 %v354
        %v460 = vpop.f32.mrf.mxu0
        %v461 = vadd.f32 0.0, %v460
        %462 = vmatmul.f32.gmra.mxu0 %v357
        %v463 = vpop.f32.mrf.mxu0
        %v464 = vadd.f32 0.0, %v463
        %465 = vmatmul.f32.gmra.mxu0 %v360
        %v466 = vpop.f32.mrf.mxu0
        %v467 = vadd.f32 0.0, %v466
        %468 = vmatmul.f32.gmra.mxu0 %v363
        %v469 = vpop.f32.mrf.mxu0
        %v470 = vadd.f32 0.0, %v469
        %471 = vmatmul.f32.gmra.mxu0 %v366
        %v472 = vpop.f32.mrf.mxu0
        %v473 = vadd.f32 0.0, %v472
        %474 = vmatmul.f32.gmra.mxu0 %v369
        %v475 = vpop.f32.mrf.mxu0
        %v476 = vadd.f32 0.0, %v475
        %477 = vmatmul.f32.gmra.mxu0 %v372
        %v478 = vpop.f32.mrf.mxu0
        %v479 = vadd.f32 0.0, %v478
        %480 = vmatmul.f32.gmra.mxu0 %v375
        %v481 = vpop.f32.mrf.mxu0
        %v482 = vadd.f32 0.0, %v481
        %483 = vmatmul.f32.gmra.mxu0 %v378
        %v484 = vpop.f32.mrf.mxu0
        %v485 = vadd.f32 0.0, %v484
        %486 = vmatmul.f32.gmra.mxu0 %v381
        %v487 = vpop.f32.mrf.mxu0
        %v488 = vadd.f32 0.0, %v487
        %489 = vmatmul.f32.gmra.mxu0 %v384
        %v490 = vpop.f32.mrf.mxu0
        %v491 = vadd.f32 0.0, %v490
        %492 = vmatmul.f32.gmra.mxu0 %v387
        %v493 = vpop.f32.mrf.mxu0
        %v494 = vadd.f32 0.0, %v493
        %495 = vmatmul.f32.gmra.mxu0 %v390
        %v496 = vpop.f32.mrf.mxu0
        %v497 = vadd.f32 0.0, %v496
        %498 = vmatmul.f32.gmra.mxu0 %v393
        %v499 = vpop.f32.mrf.mxu0
        %v500 = vadd.f32 0.0, %v499
        %501 = vmatmul.f32.gmra.mxu0 %v396
        %v502 = vpop.f32.mrf.mxu0
        %v503 = vadd.f32 0.0, %v502
        %504 = vmatmul.f32.gmra.mxu0 %v399
        %v505 = vpop.f32.mrf.mxu0
        %v506 = vadd.f32 0.0, %v505
        %507 = vmatmul.f32.gmra.mxu0 %v402
        %v508 = vpop.f32.mrf.mxu0
        %v509 = vadd.f32 0.0, %v508
        %510 = vmatmul.f32.gmra.mxu0 %v405
        %v511 = vpop.f32.mrf.mxu0
        %v512 = vadd.f32 0.0, %v511
        %513 = vmatmul.f32.gmra.mxu0 %v408
        %v514 = vpop.f32.mrf.mxu0
        %v515 = vadd.f32 0.0, %v514
        %516 = vmatmul.f32.gmra.mxu0 %v411
        %v517 = vpop.f32.mrf.mxu0
        %v518 = vadd.f32 0.0, %v517
        %519 = vmatmul.f32.gmra.mxu0 %v414
        %v520 = vpop.f32.mrf.mxu0
        %v521 = vadd.f32 0.0, %v520
        %522 = vmatmul.f32.gmra.mxu0 %v417
        %v523 = vpop.f32.mrf.mxu0
        %v524 = vadd.f32 0.0, %v523
        %525 = vmatmul.f32.gmra.mxu0 %v420
        %v526 = vpop.f32.mrf.mxu0
        %v527 = vadd.f32 0.0, %v526
        %528 = vmatmul.f32.gmra.mxu0 %v423
        %v529 = vpop.f32.mrf.mxu0
        %v530 = vadd.f32 0.0, %v529
        %531 = vmatmul.f32.gmra.mxu0 %v426
        %v532 = vpop.f32.mrf.mxu0
        %v533 = vadd.f32 0.0, %v532
        %534 = vdwg.mxu0
        %535 = vmatpush.msra.mxu0 0.0
        %536 = vmatpush.msra.mxu0 0.0
        %537 = vmatpush.msra.mxu0 %v336
        %538 = vmatpush.msra.mxu0 %v334
        %539 = vmatpush.msra.mxu0 %v332
        %540 = vmatpush.msra.mxu0 %v330
        %541 = vmatpush.msra.mxu0 %v328
        %542 = vmatpush.msra.mxu0 %v326
        %543 = vmatpush.msra.mxu0 %v324
        %544 = vmatpush.msra.mxu0 %v322
        %545 = vmatpush.msra.mxu0 %v320
        %546 = vmatpush.msra.mxu0 %v318
        %547 = vmatpush.msra.mxu0 %v316
        %548 = vmatpush.msra.mxu0 %v314
        %549 = vmatpush.msra.mxu0 %v312
        %550 = vmatpush.msra.mxu0 %v310
        %551 = vmatmul.f32.gmra.mxu0 %v339
        %v552 = vpop.f32.mrf.mxu0
        %v553 = vadd.f32 0.0, %v552
        %554 = vmatmul.f32.gmra.mxu0 %v342
        %v555 = vpop.f32.mrf.mxu0
        %v556 = vadd.f32 0.0, %v555
        %557 = vmatmul.f32.gmra.mxu0 %v345
        %v558 = vpop.f32.mrf.mxu0
        %v559 = vadd.f32 0.0, %v558
        %560 = vmatmul.f32.gmra.mxu0 %v348
        %v561 = vpop.f32.mrf.mxu0
        %v562 = vadd.f32 0.0, %v561
        %563 = vmatmul.f32.gmra.mxu0 %v351
        %v564 = vpop.f32.mrf.mxu0
        %v565 = vadd.f32 0.0, %v564
        %566 = vmatmul.f32.gmra.mxu0 %v354
        %v567 = vpop.f32.mrf.mxu0
        %v568 = vadd.f32 0.0, %v567
        %569 = vmatmul.f32.gmra.mxu0 %v357
        %v570 = vpop.f32.mrf.mxu0
        %v571 = vadd.f32 0.0, %v570
        %572 = vmatmul.f32.gmra.mxu0 %v360
        %v573 = vpop.f32.mrf.mxu0
        %v574 = vadd.f32 0.0, %v573
        %575 = vmatmul.f32.gmra.mxu0 %v363
        %v576 = vpop.f32.mrf.mxu0
        %v577 = vadd.f32 0.0, %v576
        %578 = vmatmul.f32.gmra.mxu0 %v366
        %v579 = vpop.f32.mrf.mxu0
        %v580 = vadd.f32 0.0, %v579
        %581 = vmatmul.f32.gmra.mxu0 %v369
        %v582 = vpop.f32.mrf.mxu0
        %v583 = vadd.f32 0.0, %v582
        %584 = vmatmul.f32.gmra.mxu0 %v372
        %v585 = vpop.f32.mrf.mxu0
        %v586 = vadd.f32 0.0, %v585
        %587 = vmatmul.f32.gmra.mxu0 %v375
        %v588 = vpop.f32.mrf.mxu0
        %v589 = vadd.f32 0.0, %v588
        %590 = vmatmul.f32.gmra.mxu0 %v378
        %v591 = vpop.f32.mrf.mxu0
        %v592 = vadd.f32 0.0, %v591
        %593 = vmatmul.f32.gmra.mxu0 %v381
        %v594 = vpop.f32.mrf.mxu0
        %v595 = vadd.f32 0.0, %v594
        %596 = vmatmul.f32.gmra.mxu0 %v384
        %v597 = vpop.f32.mrf.mxu0
        %v598 = vadd.f32 0.0, %v597
        %599 = vmatmul.f32.gmra.mxu0 %v387
        %v600 = vpop.f32.mrf.mxu0
        %v601 = vadd.f32 0.0, %v600
        %602 = vmatmul.f32.gmra.mxu0 %v390
        %v603 = vpop.f32.mrf.mxu0
        %v604 = vadd.f32 0.0, %v603
        %605 = vmatmul.f32.gmra.mxu0 %v393
        %v606 = vpop.f32.mrf.mxu0
        %v607 = vadd.f32 0.0, %v606
        %608 = vmatmul.f32.gmra.mxu0 %v396
        %v609 = vpop.f32.mrf.mxu0
        %v610 = vadd.f32 0.0, %v609
        %611 = vmatmul.f32.gmra.mxu0 %v399
        %v612 = vpop.f32.mrf.mxu0
        %v613 = vadd.f32 0.0, %v612
        %614 = vmatmul.f32.gmra.mxu0 %v402
        %v615 = vpop.f32.mrf.mxu0
        %v616 = vadd.f32 0.0, %v615
        %617 = vmatmul.f32.gmra.mxu0 %v405
        %v618 = vpop.f32.mrf.mxu0
        %v619 = vadd.f32 0.0, %v618
        %620 = vmatmul.f32.gmra.mxu0 %v408
        %v621 = vpop.f32.mrf.mxu0
        %v622 = vadd.f32 0.0, %v621
        %623 = vmatmul.f32.gmra.mxu0 %v411
        %v624 = vpop.f32.mrf.mxu0
        %v625 = vadd.f32 0.0, %v624
        %626 = vmatmul.f32.gmra.mxu0 %v414
        %v627 = vpop.f32.mrf.mxu0
        %v628 = vadd.f32 0.0, %v627
        %629 = vmatmul.f32.gmra.mxu0 %v417
        %v630 = vpop.f32.mrf.mxu0
        %v631 = vadd.f32 0.0, %v630
        %632 = vmatmul.f32.gmra.mxu0 %v420
        %v633 = vpop.f32.mrf.mxu0
        %v634 = vadd.f32 0.0, %v633
        %635 = vmatmul.f32.gmra.mxu0 %v423
        %v636 = vpop.f32.mrf.mxu0
        %v637 = vadd.f32 0.0, %v636
        %638 = vmatmul.f32.gmra.mxu0 %v426
        %v639 = vpop.f32.mrf.mxu0
        %v640 = vadd.f32 0.0, %v639
        %641 = vdwg.mxu0
        %642 = vst [vmem:[#allocation2] sm:$0xff] %v446
        %vm643 = vcmask 785408
        %644 = vst.msk [vmem:[#allocation2 + $0x8] sm:$0xff] %vm643, %v553
        %645 = vst [vmem:[#allocation2 + $0x10] sm:$0xff] %v449
        %646 = vst.msk [vmem:[#allocation2 + $0x18] sm:$0xff] %vm643, %v556
        %647 = vst [vmem:[#allocation2 + $0x20] sm:$0xff] %v452
        %648 = vst.msk [vmem:[#allocation2 + $0x28] sm:$0xff] %vm643, %v559
        %649 = vst [vmem:[#allocation2 + $0x30] sm:$0xff] %v455
        %650 = vst.msk [vmem:[#allocation2 + $0x38] sm:$0xff] %vm643, %v562
        %651 = vst [vmem:[#allocation2 + $0x40] sm:$0xff] %v458
        %652 = vst.msk [vmem:[#allocation2 + $0x48] sm:$0xff] %vm643, %v565
        %653 = vst [vmem:[#allocation2 + $0x50] sm:$0xff] %v461
        %654 = vst.msk [vmem:[#allocation2 + $0x58] sm:$0xff] %vm643, %v568
        %655 = vst [vmem:[#allocation2 + $0x60] sm:$0xff] %v464
        %656 = vst.msk [vmem:[#allocation2 + $0x68] sm:$0xff] %vm643, %v571
        %657 = vst [vmem:[#allocation2 + $0x70] sm:$0xff] %v467
        %658 = vst.msk [vmem:[#allocation2 + $0x78] sm:$0xff] %vm643, %v574
        %659 = vst [vmem:[#allocation2 + $0x80] sm:$0xff] %v470
        %660 = vst.msk [vmem:[#allocation2 + $0x88] sm:$0xff] %vm643, %v577
        %661 = vst [vmem:[#allocation2 + $0x90] sm:$0xff] %v473
        %662 = vst.msk [vmem:[#allocation2 + $0x98] sm:$0xff] %vm643, %v580
        %663 = vst [vmem:[#allocation2 + $0xa0] sm:$0xff] %v476
        %664 = vst.msk [vmem:[#allocation2 + $0xa8] sm:$0xff] %vm643, %v583
        %665 = vst [vmem:[#allocation2 + $0xb0] sm:$0xff] %v479
        %666 = vst.msk [vmem:[#allocation2 + $0xb8] sm:$0xff] %vm643, %v586
        %667 = vst [vmem:[#allocation2 + $0xc0] sm:$0xff] %v482
        %668 = vst.msk [vmem:[#allocation2 + $0xc8] sm:$0xff] %vm643, %v589
        %669 = vst [vmem:[#allocation2 + $0xd0] sm:$0xff] %v485
        %670 = vst.msk [vmem:[#allocation2 + $0xd8] sm:$0xff] %vm643, %v592
        %671 = vst [vmem:[#allocation2 + $0xe0] sm:$0xff] %v488
        %672 = vst.msk [vmem:[#allocation2 + $0xe8] sm:$0xff] %vm643, %v595
        %673 = vst [vmem:[#allocation2 + $0xf0] sm:$0xff] %v491
        %674 = vst.msk [vmem:[#allocation2 + $0xf8] sm:$0xff] %vm643, %v598
        %675 = vst [vmem:[#allocation2 + $0x100] sm:$0xff] %v494
        %676 = vst.msk [vmem:[#allocation2 + $0x108] sm:$0xff] %vm643, %v601
        %677 = vst [vmem:[#allocation2 + $0x110] sm:$0xff] %v497
        %678 = vst.msk [vmem:[#allocation2 + $0x118] sm:$0xff] %vm643, %v604
        %679 = vst [vmem:[#allocation2 + $0x120] sm:$0xff] %v500
        %680 = vst.msk [vmem:[#allocation2 + $0x128] sm:$0xff] %vm643, %v607
        %681 = vst [vmem:[#allocation2 + $0x130] sm:$0xff] %v503
        %682 = vst.msk [vmem:[#allocation2 + $0x138] sm:$0xff] %vm643, %v610
        %683 = vst [vmem:[#allocation2 + $0x140] sm:$0xff] %v506
        %684 = vst.msk [vmem:[#allocation2 + $0x148] sm:$0xff] %vm643, %v613
        %685 = vst [vmem:[#allocation2 + $0x150] sm:$0xff] %v509
        %686 = vst.msk [vmem:[#allocation2 + $0x158] sm:$0xff] %vm643, %v616
        %687 = vst [vmem:[#allocation2 + $0x160] sm:$0xff] %v512
        %688 = vst.msk [vmem:[#allocation2 + $0x168] sm:$0xff] %vm643, %v619
        %689 = vst [vmem:[#allocation2 + $0x170] sm:$0xff] %v515
        %690 = vst.msk [vmem:[#allocation2 + $0x178] sm:$0xff] %vm643, %v622
        %691 = vst [vmem:[#allocation2 + $0x180] sm:$0xff] %v518
        %692 = vst.msk [vmem:[#allocation2 + $0x188] sm:$0xff] %vm643, %v625
        %693 = vst [vmem:[#allocation2 + $0x190] sm:$0xff] %v521
        %694 = vst.msk [vmem:[#allocation2 + $0x198] sm:$0xff] %vm643, %v628
        %695 = vst [vmem:[#allocation2 + $0x1a0] sm:$0xff] %v524
        %696 = vst.msk [vmem:[#allocation2 + $0x1a8] sm:$0xff] %vm643, %v631
        %697 = vst [vmem:[#allocation2 + $0x1b0] sm:$0xff] %v527
        %698 = vst.msk [vmem:[#allocation2 + $0x1b8] sm:$0xff] %vm643, %v634
        %699 = vst [vmem:[#allocation2 + $0x1c0] sm:$0xff] %v530
        %700 = vst.msk [vmem:[#allocation2 + $0x1c8] sm:$0xff] %vm643, %v637
        %701 = vst [vmem:[#allocation2 + $0x1d0] sm:$0x3f] %v533
        %vm702 = vcmask 783360
        %703 = vst.msk [vmem:[#allocation2 + $0x1d8] sm:$0x3f] %vm702, %v640
        %v704 = vld [vmem:[#allocation2] sm:$0xff]
        %v705 = vld [vmem:[#allocation2 + $0x8] sm:$0xff]
        %v706 = vld [vmem:[#allocation2 + $0x10] sm:$0xff]
        %v707 = vld [vmem:[#allocation2 + $0x18] sm:$0xff]
        %v708 = vld [vmem:[#allocation2 + $0x20] sm:$0xff]
        %v709 = vld [vmem:[#allocation2 + $0x28] sm:$0xff]
        %v710 = vld [vmem:[#allocation2 + $0x30] sm:$0xff]
        %v711 = vld [vmem:[#allocation2 + $0x38] sm:$0xff]
        %v712 = vld [vmem:[#allocation2 + $0x40] sm:$0xff]
        %v713 = vld [vmem:[#allocation2 + $0x48] sm:$0xff]
        %v714 = vld [vmem:[#allocation2 + $0x50] sm:$0xff]
        %v715 = vld [vmem:[#allocation2 + $0x58] sm:$0xff]
        %v716 = vld [vmem:[#allocation2 + $0x60] sm:$0xff]
        %v717 = vld [vmem:[#allocation2 + $0x68] sm:$0xff]
        %v718 = vld [vmem:[#allocation2 + $0x70] sm:$0xff]
        %v719 = vld [vmem:[#allocation2 + $0x78] sm:$0xff]
        %v720 = vld [vmem:[#allocation2 + $0x80] sm:$0xff]
        %v721 = vld [vmem:[#allocation2 + $0x88] sm:$0xff]
        %v722 = vld [vmem:[#allocation2 + $0x90] sm:$0xff]
        %v723 = vld [vmem:[#allocation2 + $0x98] sm:$0xff]
        %v724 = vld [vmem:[#allocation2 + $0xa0] sm:$0xff]
        %v725 = vld [vmem:[#allocation2 + $0xa8] sm:$0xff]
        %v726 = vld [vmem:[#allocation2 + $0xb0] sm:$0xff]
        %v727 = vld [vmem:[#allocation2 + $0xb8] sm:$0xff]
        %v728 = vld [vmem:[#allocation2 + $0xc0] sm:$0xff]
        %v729 = vld [vmem:[#allocation2 + $0xc8] sm:$0xff]
        %v730 = vld [vmem:[#allocation2 + $0xd0] sm:$0xff]
        %v731 = vld [vmem:[#allocation2 + $0xd8] sm:$0xff]
        %v732 = vld [vmem:[#allocation2 + $0xe0] sm:$0xff]
        %v733 = vld [vmem:[#allocation2 + $0xe8] sm:$0xff]
        %v734 = vld [vmem:[#allocation2 + $0xf0] sm:$0xff]
        %v735 = vld [vmem:[#allocation2 + $0xf8] sm:$0xff]
        %v736 = vld [vmem:[#allocation2 + $0x100] sm:$0xff]
        %v737 = vld [vmem:[#allocation2 + $0x108] sm:$0xff]
        %v738 = vld [vmem:[#allocation2 + $0x110] sm:$0xff]
        %v739 = vld [vmem:[#allocation2 + $0x118] sm:$0xff]
        %v740 = vld [vmem:[#allocation2 + $0x120] sm:$0xff]
        %v741 = vld [vmem:[#allocation2 + $0x128] sm:$0xff]
        %v742 = vld [vmem:[#allocation2 + $0x130] sm:$0xff]
        %v743 = vld [vmem:[#allocation2 + $0x138] sm:$0xff]
        %v744 = vld [vmem:[#allocation2 + $0x140] sm:$0xff]
        %v745 = vld [vmem:[#allocation2 + $0x148] sm:$0xff]
        %v746 = vld [vmem:[#allocation2 + $0x150] sm:$0xff]
        %v747 = vld [vmem:[#allocation2 + $0x158] sm:$0xff]
        %v748 = vld [vmem:[#allocation2 + $0x160] sm:$0xff]
        %v749 = vld [vmem:[#allocation2 + $0x168] sm:$0xff]
        %v750 = vld [vmem:[#allocation2 + $0x170] sm:$0xff]
        %v751 = vld [vmem:[#allocation2 + $0x178] sm:$0xff]
        %v752 = vld [vmem:[#allocation2 + $0x180] sm:$0xff]
        %v753 = vld [vmem:[#allocation2 + $0x188] sm:$0xff]
        %v754 = vld [vmem:[#allocation2 + $0x190] sm:$0xff]
        %v755 = vld [vmem:[#allocation2 + $0x198] sm:$0xff]
        %v756 = vld [vmem:[#allocation2 + $0x1a0] sm:$0xff]
        %v757 = vld [vmem:[#allocation2 + $0x1a8] sm:$0xff]
        %v758 = vld [vmem:[#allocation2 + $0x1b0] sm:$0xff]
        %v759 = vld [vmem:[#allocation2 + $0x1b8] sm:$0xff]
        %v760 = vld [vmem:[#allocation2 + $0x1c0] sm:$0xff]
        %v761 = vld [vmem:[#allocation2 + $0x1c8] sm:$0xff]
        %v762 = vld [vmem:[#allocation2 + $0x1d0] sm:$0x3f]
        %v763 = vld [vmem:[#allocation2 + $0x1d8] sm:$0x3f]
        %v764 = vld [vmem:[%s277 + $0x1] sm:$0xff]
        %v765 = vld [vmem:[%s277 + $0x9] sm:$0xff]
        %v766 = vld [vmem:[%s277 + $0x11] sm:$0xff]
        %v767 = vld [vmem:[%s277 + $0x19] sm:$0xff]
        %v768 = vld [vmem:[%s277 + $0x21] sm:$0xff]
        %v769 = vld [vmem:[%s277 + $0x29] sm:$0xff]
        %v770 = vld [vmem:[%s277 + $0x31] sm:$0xff]
        %v771 = vld [vmem:[%s277 + $0x39] sm:$0xff]
        %v772 = vld [vmem:[%s277 + $0x41] sm:$0xff]
        %v773 = vld [vmem:[%s277 + $0x49] sm:$0xff]
        %v774 = vld [vmem:[%s277 + $0x51] sm:$0xff]
        %v775 = vld [vmem:[%s277 + $0x59] sm:$0xff]
        %v776 = vld [vmem:[%s277 + $0x61] sm:$0xff]
        %v777 = vld [vmem:[%s277 + $0x69] sm:$0xff]
        %v778 = vld [vmem:[%s277 + $0x71] sm:$0xff]
        %v779 = vld [vmem:[%s277 + $0x79] sm:$0xff]
        %v780 = vld [vmem:[%s277 + $0x81] sm:$0xff]
        %v781 = vld [vmem:[%s277 + $0x89] sm:$0xff]
        %v782 = vld [vmem:[%s277 + $0x91] sm:$0xff]
        %v783 = vld [vmem:[%s277 + $0x99] sm:$0xff]
        %v784 = vld [vmem:[%s277 + $0xa1] sm:$0xff]
        %v785 = vld [vmem:[%s277 + $0xa9] sm:$0xff]
        %v786 = vld [vmem:[%s277 + $0xb1] sm:$0xff]
        %v787 = vld [vmem:[%s277 + $0xb9] sm:$0xff]
        %v788 = vld [vmem:[%s277 + $0xc1] sm:$0xff]
        %v789 = vld [vmem:[%s277 + $0xc9] sm:$0xff]
        %v790 = vld [vmem:[%s277 + $0xd1] sm:$0xff]
        %v791 = vld [vmem:[%s277 + $0xd9] sm:$0xff]
        %v792 = vld [vmem:[%s277 + $0xe1] sm:$0xff]
        %v793 = vld [vmem:[%s277 + $0xe9] sm:$0x3f]
        %s794 = scalar_lea.vmem %s1, 224
        %v795 = vld [vmem:[%s794] sm:$0xff]
        %v796 = vld [vmem:[%s794 + $0x8] sm:$0xff]
        %v797 = vld [vmem:[%s794 + $0x10] sm:$0xff]
        %v798 = vld [vmem:[%s794 + $0x18] sm:$0xff]
        %v799 = vld [vmem:[%s794 + $0x20] sm:$0xff]
        %v800 = vld [vmem:[%s794 + $0x28] sm:$0xff]
        %v801 = vld [vmem:[%s794 + $0x30] sm:$0xff]
        %v802 = vld [vmem:[%s794 + $0x38] sm:$0xff]
        %v803 = vld [vmem:[%s794 + $0x40] sm:$0xff]
        %v804 = vld [vmem:[%s794 + $0x48] sm:$0xff]
        %v805 = vld [vmem:[%s794 + $0x50] sm:$0xff]
        %v806 = vld [vmem:[%s794 + $0x58] sm:$0xff]
        %v807 = vld [vmem:[%s794 + $0x60] sm:$0xff]
        %v808 = vld [vmem:[%s794 + $0x68] sm:$0xff]
        %v809 = vld [vmem:[%s794 + $0x70] sm:$0xff]
        %v810 = vld [vmem:[%s794 + $0x78] sm:$0xff]
        %v811 = vld [vmem:[%s794 + $0x80] sm:$0xff]
        %v812 = vld [vmem:[%s794 + $0x88] sm:$0xff]
        %v813 = vld [vmem:[%s794 + $0x90] sm:$0xff]
        %v814 = vld [vmem:[%s794 + $0x98] sm:$0xff]
        %v815 = vld [vmem:[%s794 + $0xa0] sm:$0xff]
        %v816 = vld [vmem:[%s794 + $0xa8] sm:$0xff]
        %v817 = vld [vmem:[%s794 + $0xb0] sm:$0xff]
        %v818 = vld [vmem:[%s794 + $0xb8] sm:$0xff]
        %v819 = vld [vmem:[%s794 + $0xc0] sm:$0xff]
        %v820 = vld [vmem:[%s794 + $0xc8] sm:$0xff]
        %v821 = vld [vmem:[%s794 + $0xd0] sm:$0xff]
        %v822 = vld [vmem:[%s794 + $0xd8] sm:$0xff]
        %v824 = vsel %vm337, %v764, 0
        %v827 = vsel %vm337, %v765, 0
        %v830 = vsel %vm337, %v766, 0
        %v833 = vsel %vm337, %v767, 0
        %v836 = vsel %vm337, %v768, 0
        %v839 = vsel %vm337, %v769, 0
        %v842 = vsel %vm337, %v770, 0
        %v845 = vsel %vm337, %v771, 0
        %v848 = vsel %vm337, %v772, 0
        %v851 = vsel %vm337, %v773, 0
        %v854 = vsel %vm337, %v774, 0
        %v857 = vsel %vm337, %v775, 0
        %v860 = vsel %vm337, %v776, 0
        %v863 = vsel %vm337, %v777, 0
        %v866 = vsel %vm337, %v778, 0
        %v869 = vsel %vm337, %v779, 0
        %v872 = vsel %vm337, %v780, 0
        %v875 = vsel %vm337, %v781, 0
        %v878 = vsel %vm337, %v782, 0
        %v881 = vsel %vm337, %v783, 0
        %v884 = vsel %vm337, %v784, 0
        %v887 = vsel %vm337, %v785, 0
        %v890 = vsel %vm337, %v786, 0
        %v893 = vsel %vm337, %v787, 0
        %v896 = vsel %vm337, %v788, 0
        %v899 = vsel %vm337, %v789, 0
        %v902 = vsel %vm337, %v790, 0
        %v905 = vsel %vm337, %v791, 0
        %v908 = vsel %vm337, %v792, 0
        %v911 = vsel %vm337, %v793, 0
        %913 = vmatpush.msra.mxu0 0.0
        %914 = vmatpush.msra.mxu0 0.0
        %915 = vmatpush.msra.mxu0 %v821
        %916 = vmatpush.msra.mxu0 %v819
        %917 = vmatpush.msra.mxu0 %v817
        %918 = vmatpush.msra.mxu0 %v815
        %919 = vmatpush.msra.mxu0 %v813
        %920 = vmatpush.msra.mxu0 %v811
        %921 = vmatpush.msra.mxu0 %v809
        %922 = vmatpush.msra.mxu0 %v807
        %923 = vmatpush.msra.mxu0 %v805
        %924 = vmatpush.msra.mxu0 %v803
        %925 = vmatpush.msra.mxu0 %v801
        %926 = vmatpush.msra.mxu0 %v799
        %927 = vmatpush.msra.mxu0 %v797
        %928 = vmatpush.msra.mxu0 %v795
        %929 = vmatmul.f32.gmra.mxu0 %v824
        %v930 = vpop.f32.mrf.mxu0
        %v931 = vadd.f32 0.0, %v930
        %932 = vmatmul.f32.gmra.mxu0 %v827
        %v933 = vpop.f32.mrf.mxu0
        %v934 = vadd.f32 0.0, %v933
        %935 = vmatmul.f32.gmra.mxu0 %v830
        %v936 = vpop.f32.mrf.mxu0
        %v937 = vadd.f32 0.0, %v936
        %938 = vmatmul.f32.gmra.mxu0 %v833
        %v939 = vpop.f32.mrf.mxu0
        %v940 = vadd.f32 0.0, %v939
        %941 = vmatmul.f32.gmra.mxu0 %v836
        %v942 = vpop.f32.mrf.mxu0
        %v943 = vadd.f32 0.0, %v942
        %944 = vmatmul.f32.gmra.mxu0 %v839
        %v945 = vpop.f32.mrf.mxu0
        %v946 = vadd.f32 0.0, %v945
        %947 = vmatmul.f32.gmra.mxu0 %v842
        %v948 = vpop.f32.mrf.mxu0
        %v949 = vadd.f32 0.0, %v948
        %950 = vmatmul.f32.gmra.mxu0 %v845
        %v951 = vpop.f32.mrf.mxu0
        %v952 = vadd.f32 0.0, %v951
        %953 = vmatmul.f32.gmra.mxu0 %v848
        %v954 = vpop.f32.mrf.mxu0
        %v955 = vadd.f32 0.0, %v954
        %956 = vmatmul.f32.gmra.mxu0 %v851
        %v957 = vpop.f32.mrf.mxu0
        %v958 = vadd.f32 0.0, %v957
        %959 = vmatmul.f32.gmra.mxu0 %v854
        %v960 = vpop.f32.mrf.mxu0
        %v961 = vadd.f32 0.0, %v960
        %962 = vmatmul.f32.gmra.mxu0 %v857
        %v963 = vpop.f32.mrf.mxu0
        %v964 = vadd.f32 0.0, %v963
        %965 = vmatmul.f32.gmra.mxu0 %v860
        %v966 = vpop.f32.mrf.mxu0
        %v967 = vadd.f32 0.0, %v966
        %968 = vmatmul.f32.gmra.mxu0 %v863
        %v969 = vpop.f32.mrf.mxu0
        %v970 = vadd.f32 0.0, %v969
        %971 = vmatmul.f32.gmra.mxu0 %v866
        %v972 = vpop.f32.mrf.mxu0
        %v973 = vadd.f32 0.0, %v972
        %974 = vmatmul.f32.gmra.mxu0 %v869
        %v975 = vpop.f32.mrf.mxu0
        %v976 = vadd.f32 0.0, %v975
        %977 = vmatmul.f32.gmra.mxu0 %v872
        %v978 = vpop.f32.mrf.mxu0
        %v979 = vadd.f32 0.0, %v978
        %980 = vmatmul.f32.gmra.mxu0 %v875
        %v981 = vpop.f32.mrf.mxu0
        %v982 = vadd.f32 0.0, %v981
        %983 = vmatmul.f32.gmra.mxu0 %v878
        %v984 = vpop.f32.mrf.mxu0
        %v985 = vadd.f32 0.0, %v984
        %986 = vmatmul.f32.gmra.mxu0 %v881
        %v987 = vpop.f32.mrf.mxu0
        %v988 = vadd.f32 0.0, %v987
        %989 = vmatmul.f32.gmra.mxu0 %v884
        %v990 = vpop.f32.mrf.mxu0
        %v991 = vadd.f32 0.0, %v990
        %992 = vmatmul.f32.gmra.mxu0 %v887
        %v993 = vpop.f32.mrf.mxu0
        %v994 = vadd.f32 0.0, %v993
        %995 = vmatmul.f32.gmra.mxu0 %v890
        %v996 = vpop.f32.mrf.mxu0
        %v997 = vadd.f32 0.0, %v996
        %998 = vmatmul.f32.gmra.mxu0 %v893
        %v999 = vpop.f32.mrf.mxu0
        %v1000 = vadd.f32 0.0, %v999
        %1001 = vmatmul.f32.gmra.mxu0 %v896
        %v1002 = vpop.f32.mrf.mxu0
        %v1003 = vadd.f32 0.0, %v1002
        %1004 = vmatmul.f32.gmra.mxu0 %v899
        %v1005 = vpop.f32.mrf.mxu0
        %v1006 = vadd.f32 0.0, %v1005
        %1007 = vmatmul.f32.gmra.mxu0 %v902
        %v1008 = vpop.f32.mrf.mxu0
        %v1009 = vadd.f32 0.0, %v1008
        %1010 = vmatmul.f32.gmra.mxu0 %v905
        %v1011 = vpop.f32.mrf.mxu0
        %v1012 = vadd.f32 0.0, %v1011
        %1013 = vmatmul.f32.gmra.mxu0 %v908
        %v1014 = vpop.f32.mrf.mxu0
        %v1015 = vadd.f32 0.0, %v1014
        %1016 = vmatmul.f32.gmra.mxu0 %v911
        %v1017 = vpop.f32.mrf.mxu0
        %v1018 = vadd.f32 0.0, %v1017
        %1019 = vdwg.mxu0
        %1020 = vmatpush.msra.mxu0 0.0
        %1021 = vmatpush.msra.mxu0 0.0
        %1022 = vmatpush.msra.mxu0 %v822
        %1023 = vmatpush.msra.mxu0 %v820
        %1024 = vmatpush.msra.mxu0 %v818
        %1025 = vmatpush.msra.mxu0 %v816
        %1026 = vmatpush.msra.mxu0 %v814
        %1027 = vmatpush.msra.mxu0 %v812
        %1028 = vmatpush.msra.mxu0 %v810
        %1029 = vmatpush.msra.mxu0 %v808
        %1030 = vmatpush.msra.mxu0 %v806
        %1031 = vmatpush.msra.mxu0 %v804
        %1032 = vmatpush.msra.mxu0 %v802
        %1033 = vmatpush.msra.mxu0 %v800
        %1034 = vmatpush.msra.mxu0 %v798
        %1035 = vmatpush.msra.mxu0 %v796
        %1036 = vmatmul.f32.gmra.mxu0 %v824
        %v1037 = vpop.f32.mrf.mxu0
        %v1038 = vadd.f32 0.0, %v1037
        %1039 = vmatmul.f32.gmra.mxu0 %v827
        %v1040 = vpop.f32.mrf.mxu0
        %v1041 = vadd.f32 0.0, %v1040
        %1042 = vmatmul.f32.gmra.mxu0 %v830
        %v1043 = vpop.f32.mrf.mxu0
        %v1044 = vadd.f32 0.0, %v1043
        %1045 = vmatmul.f32.gmra.mxu0 %v833
        %v1046 = vpop.f32.mrf.mxu0
        %v1047 = vadd.f32 0.0, %v1046
        %1048 = vmatmul.f32.gmra.mxu0 %v836
        %v1049 = vpop.f32.mrf.mxu0
        %v1050 = vadd.f32 0.0, %v1049
        %1051 = vmatmul.f32.gmra.mxu0 %v839
        %v1052 = vpop.f32.mrf.mxu0
        %v1053 = vadd.f32 0.0, %v1052
        %1054 = vmatmul.f32.gmra.mxu0 %v842
        %v1055 = vpop.f32.mrf.mxu0
        %v1056 = vadd.f32 0.0, %v1055
        %1057 = vmatmul.f32.gmra.mxu0 %v845
        %v1058 = vpop.f32.mrf.mxu0
        %v1059 = vadd.f32 0.0, %v1058
        %1060 = vmatmul.f32.gmra.mxu0 %v848
        %v1061 = vpop.f32.mrf.mxu0
        %v1062 = vadd.f32 0.0, %v1061
        %1063 = vmatmul.f32.gmra.mxu0 %v851
        %v1064 = vpop.f32.mrf.mxu0
        %v1065 = vadd.f32 0.0, %v1064
        %1066 = vmatmul.f32.gmra.mxu0 %v854
        %v1067 = vpop.f32.mrf.mxu0
        %v1068 = vadd.f32 0.0, %v1067
        %1069 = vmatmul.f32.gmra.mxu0 %v857
        %v1070 = vpop.f32.mrf.mxu0
        %v1071 = vadd.f32 0.0, %v1070
        %1072 = vmatmul.f32.gmra.mxu0 %v860
        %v1073 = vpop.f32.mrf.mxu0
        %v1074 = vadd.f32 0.0, %v1073
        %1075 = vmatmul.f32.gmra.mxu0 %v863
        %v1076 = vpop.f32.mrf.mxu0
        %v1077 = vadd.f32 0.0, %v1076
        %1078 = vmatmul.f32.gmra.mxu0 %v866
        %v1079 = vpop.f32.mrf.mxu0
        %v1080 = vadd.f32 0.0, %v1079
        %1081 = vmatmul.f32.gmra.mxu0 %v869
        %v1082 = vpop.f32.mrf.mxu0
        %v1083 = vadd.f32 0.0, %v1082
        %1084 = vmatmul.f32.gmra.mxu0 %v872
        %v1085 = vpop.f32.mrf.mxu0
        %v1086 = vadd.f32 0.0, %v1085
        %1087 = vmatmul.f32.gmra.mxu0 %v875
        %v1088 = vpop.f32.mrf.mxu0
        %v1089 = vadd.f32 0.0, %v1088
        %1090 = vmatmul.f32.gmra.mxu0 %v878
        %v1091 = vpop.f32.mrf.mxu0
        %v1092 = vadd.f32 0.0, %v1091
        %1093 = vmatmul.f32.gmra.mxu0 %v881
        %v1094 = vpop.f32.mrf.mxu0
        %v1095 = vadd.f32 0.0, %v1094
        %1096 = vmatmul.f32.gmra.mxu0 %v884
        %v1097 = vpop.f32.mrf.mxu0
        %v1098 = vadd.f32 0.0, %v1097
        %1099 = vmatmul.f32.gmra.mxu0 %v887
        %v1100 = vpop.f32.mrf.mxu0
        %v1101 = vadd.f32 0.0, %v1100
        %1102 = vmatmul.f32.gmra.mxu0 %v890
        %v1103 = vpop.f32.mrf.mxu0
        %v1104 = vadd.f32 0.0, %v1103
        %1105 = vmatmul.f32.gmra.mxu0 %v893
        %v1106 = vpop.f32.mrf.mxu0
        %v1107 = vadd.f32 0.0, %v1106
        %1108 = vmatmul.f32.gmra.mxu0 %v896
        %v1109 = vpop.f32.mrf.mxu0
        %v1110 = vadd.f32 0.0, %v1109
        %1111 = vmatmul.f32.gmra.mxu0 %v899
        %v1112 = vpop.f32.mrf.mxu0
        %v1113 = vadd.f32 0.0, %v1112
        %1114 = vmatmul.f32.gmra.mxu0 %v902
        %v1115 = vpop.f32.mrf.mxu0
        %v1116 = vadd.f32 0.0, %v1115
        %1117 = vmatmul.f32.gmra.mxu0 %v905
        %v1118 = vpop.f32.mrf.mxu0
        %v1119 = vadd.f32 0.0, %v1118
        %1120 = vmatmul.f32.gmra.mxu0 %v908
        %v1121 = vpop.f32.mrf.mxu0
        %v1122 = vadd.f32 0.0, %v1121
        %1123 = vmatmul.f32.gmra.mxu0 %v911
        %v1124 = vpop.f32.mrf.mxu0
        %v1125 = vadd.f32 0.0, %v1124
        %1126 = vdwg.mxu0
        %v1127 = vadd.f32 %v704, %v931
        %v1128 = vadd.f32 %v705, %v1038
        %v1129 = vadd.f32 %v706, %v934
        %v1130 = vadd.f32 %v707, %v1041
        %v1131 = vadd.f32 %v708, %v937
        %v1132 = vadd.f32 %v709, %v1044
        %v1133 = vadd.f32 %v710, %v940
        %v1134 = vadd.f32 %v711, %v1047
        %v1135 = vadd.f32 %v712, %v943
        %v1136 = vadd.f32 %v713, %v1050
        %v1137 = vadd.f32 %v714, %v946
        %v1138 = vadd.f32 %v715, %v1053
        %v1139 = vadd.f32 %v716, %v949
        %v1140 = vadd.f32 %v717, %v1056
        %v1141 = vadd.f32 %v718, %v952
        %v1142 = vadd.f32 %v719, %v1059
        %v1143 = vadd.f32 %v720, %v955
        %v1144 = vadd.f32 %v721, %v1062
        %v1145 = vadd.f32 %v722, %v958
        %v1146 = vadd.f32 %v723, %v1065
        %v1147 = vadd.f32 %v724, %v961
        %v1148 = vadd.f32 %v725, %v1068
        %v1149 = vadd.f32 %v726, %v964
        %v1150 = vadd.f32 %v727, %v1071
        %v1151 = vadd.f32 %v728, %v967
        %v1152 = vadd.f32 %v729, %v1074
        %v1153 = vadd.f32 %v730, %v970
        %v1154 = vadd.f32 %v731, %v1077
        %v1155 = vadd.f32 %v732, %v973
        %v1156 = vadd.f32 %v733, %v1080
        %v1157 = vadd.f32 %v734, %v976
        %v1158 = vadd.f32 %v735, %v1083
        %v1159 = vadd.f32 %v736, %v979
        %v1160 = vadd.f32 %v737, %v1086
        %v1161 = vadd.f32 %v738, %v982
        %v1162 = vadd.f32 %v739, %v1089
        %v1163 = vadd.f32 %v740, %v985
        %v1164 = vadd.f32 %v741, %v1092
        %v1165 = vadd.f32 %v742, %v988
        %v1166 = vadd.f32 %v743, %v1095
        %v1167 = vadd.f32 %v744, %v991
        %v1168 = vadd.f32 %v745, %v1098
        %v1169 = vadd.f32 %v746, %v994
        %v1170 = vadd.f32 %v747, %v1101
        %v1171 = vadd.f32 %v748, %v997
        %v1172 = vadd.f32 %v749, %v1104
        %v1173 = vadd.f32 %v750, %v1000
        %v1174 = vadd.f32 %v751, %v1107
        %v1175 = vadd.f32 %v752, %v1003
        %v1176 = vadd.f32 %v753, %v1110
        %v1177 = vadd.f32 %v754, %v1006
        %v1178 = vadd.f32 %v755, %v1113
        %v1179 = vadd.f32 %v756, %v1009
        %v1180 = vadd.f32 %v757, %v1116
        %v1181 = vadd.f32 %v758, %v1012
        %v1182 = vadd.f32 %v759, %v1119
        %v1183 = vadd.f32 %v760, %v1015
        %v1184 = vadd.f32 %v761, %v1122
        %v1185 = vadd.f32 %v762, %v1018
        %v1186 = vadd.f32 %v763, %v1125
        %1187 = vst [vmem:[#allocation2] sm:$0xff] %v1127
        %1188 = vst.msk [vmem:[#allocation2 + $0x8] sm:$0xff] %vm643, %v1128
        %1189 = vst [vmem:[#allocation2 + $0x10] sm:$0xff] %v1129
        %1190 = vst.msk [vmem:[#allocation2 + $0x18] sm:$0xff] %vm643, %v1130
        %1191 = vst [vmem:[#allocation2 + $0x20] sm:$0xff] %v1131
        %1192 = vst.msk [vmem:[#allocation2 + $0x28] sm:$0xff] %vm643, %v1132
        %1193 = vst [vmem:[#allocation2 + $0x30] sm:$0xff] %v1133
        %1194 = vst.msk [vmem:[#allocation2 + $0x38] sm:$0xff] %vm643, %v1134
        %1195 = vst [vmem:[#allocation2 + $0x40] sm:$0xff] %v1135
        %1196 = vst.msk [vmem:[#allocation2 + $0x48] sm:$0xff] %vm643, %v1136
        %1197 = vst [vmem:[#allocation2 + $0x50] sm:$0xff] %v1137
        %1198 = vst.msk [vmem:[#allocation2 + $0x58] sm:$0xff] %vm643, %v1138
        %1199 = vst [vmem:[#allocation2 + $0x60] sm:$0xff] %v1139
        %1200 = vst.msk [vmem:[#allocation2 + $0x68] sm:$0xff] %vm643, %v1140
        %1201 = vst [vmem:[#allocation2 + $0x70] sm:$0xff] %v1141
        %1202 = vst.msk [vmem:[#allocation2 + $0x78] sm:$0xff] %vm643, %v1142
        %1203 = vst [vmem:[#allocation2 + $0x80] sm:$0xff] %v1143
        %1204 = vst.msk [vmem:[#allocation2 + $0x88] sm:$0xff] %vm643, %v1144
        %1205 = vst [vmem:[#allocation2 + $0x90] sm:$0xff] %v1145
        %1206 = vst.msk [vmem:[#allocation2 + $0x98] sm:$0xff] %vm643, %v1146
        %1207 = vst [vmem:[#allocation2 + $0xa0] sm:$0xff] %v1147
        %1208 = vst.msk [vmem:[#allocation2 + $0xa8] sm:$0xff] %vm643, %v1148
        %1209 = vst [vmem:[#allocation2 + $0xb0] sm:$0xff] %v1149
        %1210 = vst.msk [vmem:[#allocation2 + $0xb8] sm:$0xff] %vm643, %v1150
        %1211 = vst [vmem:[#allocation2 + $0xc0] sm:$0xff] %v1151
        %1212 = vst.msk [vmem:[#allocation2 + $0xc8] sm:$0xff] %vm643, %v1152
        %1213 = vst [vmem:[#allocation2 + $0xd0] sm:$0xff] %v1153
        %1214 = vst.msk [vmem:[#allocation2 + $0xd8] sm:$0xff] %vm643, %v1154
        %1215 = vst [vmem:[#allocation2 + $0xe0] sm:$0xff] %v1155
        %1216 = vst.msk [vmem:[#allocation2 + $0xe8] sm:$0xff] %vm643, %v1156
        %1217 = vst [vmem:[#allocation2 + $0xf0] sm:$0xff] %v1157
        %1218 = vst.msk [vmem:[#allocation2 + $0xf8] sm:$0xff] %vm643, %v1158
        %1219 = vst [vmem:[#allocation2 + $0x100] sm:$0xff] %v1159
        %1220 = vst.msk [vmem:[#allocation2 + $0x108] sm:$0xff] %vm643, %v1160
        %1221 = vst [vmem:[#allocation2 + $0x110] sm:$0xff] %v1161
        %1222 = vst.msk [vmem:[#allocation2 + $0x118] sm:$0xff] %vm643, %v1162
        %1223 = vst [vmem:[#allocation2 + $0x120] sm:$0xff] %v1163
        %1224 = vst.msk [vmem:[#allocation2 + $0x128] sm:$0xff] %vm643, %v1164
        %1225 = vst [vmem:[#allocation2 + $0x130] sm:$0xff] %v1165
        %1226 = vst.msk [vmem:[#allocation2 + $0x138] sm:$0xff] %vm643, %v1166
        %1227 = vst [vmem:[#allocation2 + $0x140] sm:$0xff] %v1167
        %1228 = vst.msk [vmem:[#allocation2 + $0x148] sm:$0xff] %vm643, %v1168
        %1229 = vst [vmem:[#allocation2 + $0x150] sm:$0xff] %v1169
        %1230 = vst.msk [vmem:[#allocation2 + $0x158] sm:$0xff] %vm643, %v1170
        %1231 = vst [vmem:[#allocation2 + $0x160] sm:$0xff] %v1171
        %1232 = vst.msk [vmem:[#allocation2 + $0x168] sm:$0xff] %vm643, %v1172
        %1233 = vst [vmem:[#allocation2 + $0x170] sm:$0xff] %v1173
        %1234 = vst.msk [vmem:[#allocation2 + $0x178] sm:$0xff] %vm643, %v1174
        %1235 = vst [vmem:[#allocation2 + $0x180] sm:$0xff] %v1175
        %1236 = vst.msk [vmem:[#allocation2 + $0x188] sm:$0xff] %vm643, %v1176
        %1237 = vst [vmem:[#allocation2 + $0x190] sm:$0xff] %v1177
        %1238 = vst.msk [vmem:[#allocation2 + $0x198] sm:$0xff] %vm643, %v1178
        %1239 = vst [vmem:[#allocation2 + $0x1a0] sm:$0xff] %v1179
        %1240 = vst.msk [vmem:[#allocation2 + $0x1a8] sm:$0xff] %vm643, %v1180
        %1241 = vst [vmem:[#allocation2 + $0x1b0] sm:$0xff] %v1181
        %1242 = vst.msk [vmem:[#allocation2 + $0x1b8] sm:$0xff] %vm643, %v1182
        %1243 = vst [vmem:[#allocation2 + $0x1c0] sm:$0xff] %v1183
        %1244 = vst.msk [vmem:[#allocation2 + $0x1c8] sm:$0xff] %vm643, %v1184
        %1245 = vst [vmem:[#allocation2 + $0x1d0] sm:$0x3f] %v1185
        %1246 = vst.msk [vmem:[#allocation2 + $0x1d8] sm:$0x3f] %vm702, %v1186
        %v1247 = vld [vmem:[#allocation2] sm:$0xff]
        %v1248 = vld [vmem:[#allocation2 + $0x8] sm:$0xff]
        %v1249 = vld [vmem:[#allocation2 + $0x10] sm:$0xff]
        %v1250 = vld [vmem:[#allocation2 + $0x18] sm:$0xff]
        %v1251 = vld [vmem:[#allocation2 + $0x20] sm:$0xff]
        %v1252 = vld [vmem:[#allocation2 + $0x28] sm:$0xff]
        %v1253 = vld [vmem:[#allocation2 + $0x30] sm:$0xff]
        %v1254 = vld [vmem:[#allocation2 + $0x38] sm:$0xff]
        %v1255 = vld [vmem:[#allocation2 + $0x40] sm:$0xff]
        %v1256 = vld [vmem:[#allocation2 + $0x48] sm:$0xff]
        %v1257 = vld [vmem:[#allocation2 + $0x50] sm:$0xff]
        %v1258 = vld [vmem:[#allocation2 + $0x58] sm:$0xff]
        %v1259 = vld [vmem:[#allocation2 + $0x60] sm:$0xff]
        %v1260 = vld [vmem:[#allocation2 + $0x68] sm:$0xff]
        %v1261 = vld [vmem:[#allocation2 + $0x70] sm:$0xff]
        %v1262 = vld [vmem:[#allocation2 + $0x78] sm:$0xff]
        %v1263 = vld [vmem:[#allocation2 + $0x80] sm:$0xff]
        %v1264 = vld [vmem:[#allocation2 + $0x88] sm:$0xff]
        %v1265 = vld [vmem:[#allocation2 + $0x90] sm:$0xff]
        %v1266 = vld [vmem:[#allocation2 + $0x98] sm:$0xff]
        %v1267 = vld [vmem:[#allocation2 + $0xa0] sm:$0xff]
        %v1268 = vld [vmem:[#allocation2 + $0xa8] sm:$0xff]
        %v1269 = vld [vmem:[#allocation2 + $0xb0] sm:$0xff]
        %v1270 = vld [vmem:[#allocation2 + $0xb8] sm:$0xff]
        %v1271 = vld [vmem:[#allocation2 + $0xc0] sm:$0xff]
        %v1272 = vld [vmem:[#allocation2 + $0xc8] sm:$0xff]
        %v1273 = vld [vmem:[#allocation2 + $0xd0] sm:$0xff]
        %v1274 = vld [vmem:[#allocation2 + $0xd8] sm:$0xff]
        %v1275 = vld [vmem:[#allocation2 + $0xe0] sm:$0xff]
        %v1276 = vld [vmem:[#allocation2 + $0xe8] sm:$0xff]
        %v1277 = vld [vmem:[#allocation2 + $0xf0] sm:$0xff]
        %v1278 = vld [vmem:[#allocation2 + $0xf8] sm:$0xff]
        %v1279 = vld [vmem:[#allocation2 + $0x100] sm:$0xff]
        %v1280 = vld [vmem:[#allocation2 + $0x108] sm:$0xff]
        %v1281 = vld [vmem:[#allocation2 + $0x110] sm:$0xff]
        %v1282 = vld [vmem:[#allocation2 + $0x118] sm:$0xff]
        %v1283 = vld [vmem:[#allocation2 + $0x120] sm:$0xff]
        %v1284 = vld [vmem:[#allocation2 + $0x128] sm:$0xff]
        %v1285 = vld [vmem:[#allocation2 + $0x130] sm:$0xff]
        %v1286 = vld [vmem:[#allocation2 + $0x138] sm:$0xff]
        %v1287 = vld [vmem:[#allocation2 + $0x140] sm:$0xff]
        %v1288 = vld [vmem:[#allocation2 + $0x148] sm:$0xff]
        %v1289 = vld [vmem:[#allocation2 + $0x150] sm:$0xff]
        %v1290 = vld [vmem:[#allocation2 + $0x158] sm:$0xff]
        %v1291 = vld [vmem:[#allocation2 + $0x160] sm:$0xff]
        %v1292 = vld [vmem:[#allocation2 + $0x168] sm:$0xff]
        %v1293 = vld [vmem:[#allocation2 + $0x170] sm:$0xff]
        %v1294 = vld [vmem:[#allocation2 + $0x178] sm:$0xff]
        %v1295 = vld [vmem:[#allocation2 + $0x180] sm:$0xff]
        %v1296 = vld [vmem:[#allocation2 + $0x188] sm:$0xff]
        %v1297 = vld [vmem:[#allocation2 + $0x190] sm:$0xff]
        %v1298 = vld [vmem:[#allocation2 + $0x198] sm:$0xff]
        %v1299 = vld [vmem:[#allocation2 + $0x1a0] sm:$0xff]
        %v1300 = vld [vmem:[#allocation2 + $0x1a8] sm:$0xff]
        %v1301 = vld [vmem:[#allocation2 + $0x1b0] sm:$0xff]
        %v1302 = vld [vmem:[#allocation2 + $0x1b8] sm:$0xff]
        %v1303 = vld [vmem:[#allocation2 + $0x1c0] sm:$0xff]
        %v1304 = vld [vmem:[#allocation2 + $0x1c8] sm:$0xff]
        %v1305 = vld [vmem:[#allocation2 + $0x1d0] sm:$0x3f]
        %v1306 = vld [vmem:[#allocation2 + $0x1d8] sm:$0x3f]
        %v1307 = vld [vmem:[%s277 + $0x2] sm:$0xff]
        %v1308 = vld [vmem:[%s277 + $0xa] sm:$0xff]
        %v1309 = vld [vmem:[%s277 + $0x12] sm:$0xff]
        %v1310 = vld [vmem:[%s277 + $0x1a] sm:$0xff]
        %v1311 = vld [vmem:[%s277 + $0x22] sm:$0xff]
        %v1312 = vld [vmem:[%s277 + $0x2a] sm:$0xff]
        %v1313 = vld [vmem:[%s277 + $0x32] sm:$0xff]
        %v1314 = vld [vmem:[%s277 + $0x3a] sm:$0xff]
        %v1315 = vld [vmem:[%s277 + $0x42] sm:$0xff]
        %v1316 = vld [vmem:[%s277 + $0x4a] sm:$0xff]
        %v1317 = vld [vmem:[%s277 + $0x52] sm:$0xff]
        %v1318 = vld [vmem:[%s277 + $0x5a] sm:$0xff]
        %v1319 = vld [vmem:[%s277 + $0x62] sm:$0xff]
        %v1320 = vld [vmem:[%s277 + $0x6a] sm:$0xff]
        %v1321 = vld [vmem:[%s277 + $0x72] sm:$0xff]
        %v1322 = vld [vmem:[%s277 + $0x7a] sm:$0xff]
        %v1323 = vld [vmem:[%s277 + $0x82] sm:$0xff]
        %v1324 = vld [vmem:[%s277 + $0x8a] sm:$0xff]
        %v1325 = vld [vmem:[%s277 + $0x92] sm:$0xff]
        %v1326 = vld [vmem:[%s277 + $0x9a] sm:$0xff]
        %v1327 = vld [vmem:[%s277 + $0xa2] sm:$0xff]
        %v1328 = vld [vmem:[%s277 + $0xaa] sm:$0xff]
        %v1329 = vld [vmem:[%s277 + $0xb2] sm:$0xff]
        %v1330 = vld [vmem:[%s277 + $0xba] sm:$0xff]
        %v1331 = vld [vmem:[%s277 + $0xc2] sm:$0xff]
        %v1332 = vld [vmem:[%s277 + $0xca] sm:$0xff]
        %v1333 = vld [vmem:[%s277 + $0xd2] sm:$0xff]
        %v1334 = vld [vmem:[%s277 + $0xda] sm:$0xff]
        %v1335 = vld [vmem:[%s277 + $0xe2] sm:$0xff]
        %v1336 = vld [vmem:[%s277 + $0xea] sm:$0x3f]
        %s1337 = scalar_lea.vmem %s1, 448
        %v1338 = vld [vmem:[%s1337] sm:$0xff]
        %v1339 = vld [vmem:[%s1337 + $0x8] sm:$0xff]
        %v1340 = vld [vmem:[%s1337 + $0x10] sm:$0xff]
        %v1341 = vld [vmem:[%s1337 + $0x18] sm:$0xff]
        %v1342 = vld [vmem:[%s1337 + $0x20] sm:$0xff]
        %v1343 = vld [vmem:[%s1337 + $0x28] sm:$0xff]
        %v1344 = vld [vmem:[%s1337 + $0x30] sm:$0xff]
        %v1345 = vld [vmem:[%s1337 + $0x38] sm:$0xff]
        %v1346 = vld [vmem:[%s1337 + $0x40] sm:$0xff]
        %v1347 = vld [vmem:[%s1337 + $0x48] sm:$0xff]
        %v1348 = vld [vmem:[%s1337 + $0x50] sm:$0xff]
        %v1349 = vld [vmem:[%s1337 + $0x58] sm:$0xff]
        %v1350 = vld [vmem:[%s1337 + $0x60] sm:$0xff]
        %v1351 = vld [vmem:[%s1337 + $0x68] sm:$0xff]
        %v1352 = vld [vmem:[%s1337 + $0x70] sm:$0xff]
        %v1353 = vld [vmem:[%s1337 + $0x78] sm:$0xff]
        %v1354 = vld [vmem:[%s1337 + $0x80] sm:$0xff]
        %v1355 = vld [vmem:[%s1337 + $0x88] sm:$0xff]
        %v1356 = vld [vmem:[%s1337 + $0x90] sm:$0xff]
        %v1357 = vld [vmem:[%s1337 + $0x98] sm:$0xff]
        %v1358 = vld [vmem:[%s1337 + $0xa0] sm:$0xff]
        %v1359 = vld [vmem:[%s1337 + $0xa8] sm:$0xff]
        %v1360 = vld [vmem:[%s1337 + $0xb0] sm:$0xff]
        %v1361 = vld [vmem:[%s1337 + $0xb8] sm:$0xff]
        %v1362 = vld [vmem:[%s1337 + $0xc0] sm:$0xff]
        %v1363 = vld [vmem:[%s1337 + $0xc8] sm:$0xff]
        %v1364 = vld [vmem:[%s1337 + $0xd0] sm:$0xff]
        %v1365 = vld [vmem:[%s1337 + $0xd8] sm:$0xff]
        %v1367 = vsel %vm337, %v1307, 0
        %v1370 = vsel %vm337, %v1308, 0
        %v1373 = vsel %vm337, %v1309, 0
        %v1376 = vsel %vm337, %v1310, 0
        %v1379 = vsel %vm337, %v1311, 0
        %v1382 = vsel %vm337, %v1312, 0
        %v1385 = vsel %vm337, %v1313, 0
        %v1388 = vsel %vm337, %v1314, 0
        %v1391 = vsel %vm337, %v1315, 0
        %v1394 = vsel %vm337, %v1316, 0
        %v1397 = vsel %vm337, %v1317, 0
        %v1400 = vsel %vm337, %v1318, 0
        %v1403 = vsel %vm337, %v1319, 0
        %v1406 = vsel %vm337, %v1320, 0
        %v1409 = vsel %vm337, %v1321, 0
        %v1412 = vsel %vm337, %v1322, 0
        %v1415 = vsel %vm337, %v1323, 0
        %v1418 = vsel %vm337, %v1324, 0
        %v1421 = vsel %vm337, %v1325, 0
        %v1424 = vsel %vm337, %v1326, 0
        %v1427 = vsel %vm337, %v1327, 0
        %v1430 = vsel %vm337, %v1328, 0
        %v1433 = vsel %vm337, %v1329, 0
        %v1436 = vsel %vm337, %v1330, 0
        %v1439 = vsel %vm337, %v1331, 0
        %v1442 = vsel %vm337, %v1332, 0
        %v1445 = vsel %vm337, %v1333, 0
        %v1448 = vsel %vm337, %v1334, 0
        %v1451 = vsel %vm337, %v1335, 0
        %v1454 = vsel %vm337, %v1336, 0
        %1456 = vmatpush.msra.mxu0 0.0
        %1457 = vmatpush.msra.mxu0 0.0
        %1458 = vmatpush.msra.mxu0 %v1364
        %1459 = vmatpush.msra.mxu0 %v1362
        %1460 = vmatpush.msra.mxu0 %v1360
        %1461 = vmatpush.msra.mxu0 %v1358
        %1462 = vmatpush.msra.mxu0 %v1356
        %1463 = vmatpush.msra.mxu0 %v1354
        %1464 = vmatpush.msra.mxu0 %v1352
        %1465 = vmatpush.msra.mxu0 %v1350
        %1466 = vmatpush.msra.mxu0 %v1348
        %1467 = vmatpush.msra.mxu0 %v1346
        %1468 = vmatpush.msra.mxu0 %v1344
        %1469 = vmatpush.msra.mxu0 %v1342
        %1470 = vmatpush.msra.mxu0 %v1340
        %1471 = vmatpush.msra.mxu0 %v1338
        %1472 = vmatmul.f32.gmra.mxu0 %v1367
        %v1473 = vpop.f32.mrf.mxu0
        %v1474 = vadd.f32 0.0, %v1473
        %1475 = vmatmul.f32.gmra.mxu0 %v1370
        %v1476 = vpop.f32.mrf.mxu0
        %v1477 = vadd.f32 0.0, %v1476
        %1478 = vmatmul.f32.gmra.mxu0 %v1373
        %v1479 = vpop.f32.mrf.mxu0
        %v1480 = vadd.f32 0.0, %v1479
        %1481 = vmatmul.f32.gmra.mxu0 %v1376
        %v1482 = vpop.f32.mrf.mxu0
        %v1483 = vadd.f32 0.0, %v1482
        %1484 = vmatmul.f32.gmra.mxu0 %v1379
        %v1485 = vpop.f32.mrf.mxu0
        %v1486 = vadd.f32 0.0, %v1485
        %1487 = vmatmul.f32.gmra.mxu0 %v1382
        %v1488 = vpop.f32.mrf.mxu0
        %v1489 = vadd.f32 0.0, %v1488
        %1490 = vmatmul.f32.gmra.mxu0 %v1385
        %v1491 = vpop.f32.mrf.mxu0
        %v1492 = vadd.f32 0.0, %v1491
        %1493 = vmatmul.f32.gmra.mxu0 %v1388
        %v1494 = vpop.f32.mrf.mxu0
        %v1495 = vadd.f32 0.0, %v1494
        %1496 = vmatmul.f32.gmra.mxu0 %v1391
        %v1497 = vpop.f32.mrf.mxu0
        %v1498 = vadd.f32 0.0, %v1497
        %1499 = vmatmul.f32.gmra.mxu0 %v1394
        %v1500 = vpop.f32.mrf.mxu0
        %v1501 = vadd.f32 0.0, %v1500
        %1502 = vmatmul.f32.gmra.mxu0 %v1397
        %v1503 = vpop.f32.mrf.mxu0
        %v1504 = vadd.f32 0.0, %v1503
        %1505 = vmatmul.f32.gmra.mxu0 %v1400
        %v1506 = vpop.f32.mrf.mxu0
        %v1507 = vadd.f32 0.0, %v1506
        %1508 = vmatmul.f32.gmra.mxu0 %v1403
        %v1509 = vpop.f32.mrf.mxu0
        %v1510 = vadd.f32 0.0, %v1509
        %1511 = vmatmul.f32.gmra.mxu0 %v1406
        %v1512 = vpop.f32.mrf.mxu0
        %v1513 = vadd.f32 0.0, %v1512
        %1514 = vmatmul.f32.gmra.mxu0 %v1409
        %v1515 = vpop.f32.mrf.mxu0
        %v1516 = vadd.f32 0.0, %v1515
        %1517 = vmatmul.f32.gmra.mxu0 %v1412
        %v1518 = vpop.f32.mrf.mxu0
        %v1519 = vadd.f32 0.0, %v1518
        %1520 = vmatmul.f32.gmra.mxu0 %v1415
        %v1521 = vpop.f32.mrf.mxu0
        %v1522 = vadd.f32 0.0, %v1521
        %1523 = vmatmul.f32.gmra.mxu0 %v1418
        %v1524 = vpop.f32.mrf.mxu0
        %v1525 = vadd.f32 0.0, %v1524
        %1526 = vmatmul.f32.gmra.mxu0 %v1421
        %v1527 = vpop.f32.mrf.mxu0
        %v1528 = vadd.f32 0.0, %v1527
        %1529 = vmatmul.f32.gmra.mxu0 %v1424
        %v1530 = vpop.f32.mrf.mxu0
        %v1531 = vadd.f32 0.0, %v1530
        %1532 = vmatmul.f32.gmra.mxu0 %v1427
        %v1533 = vpop.f32.mrf.mxu0
        %v1534 = vadd.f32 0.0, %v1533
        %1535 = vmatmul.f32.gmra.mxu0 %v1430
        %v1536 = vpop.f32.mrf.mxu0
        %v1537 = vadd.f32 0.0, %v1536
        %1538 = vmatmul.f32.gmra.mxu0 %v1433
        %v1539 = vpop.f32.mrf.mxu0
        %v1540 = vadd.f32 0.0, %v1539
        %1541 = vmatmul.f32.gmra.mxu0 %v1436
        %v1542 = vpop.f32.mrf.mxu0
        %v1543 = vadd.f32 0.0, %v1542
        %1544 = vmatmul.f32.gmra.mxu0 %v1439
        %v1545 = vpop.f32.mrf.mxu0
        %v1546 = vadd.f32 0.0, %v1545
        %1547 = vmatmul.f32.gmra.mxu0 %v1442
        %v1548 = vpop.f32.mrf.mxu0
        %v1549 = vadd.f32 0.0, %v1548
        %1550 = vmatmul.f32.gmra.mxu0 %v1445
        %v1551 = vpop.f32.mrf.mxu0
        %v1552 = vadd.f32 0.0, %v1551
        %1553 = vmatmul.f32.gmra.mxu0 %v1448
        %v1554 = vpop.f32.mrf.mxu0
        %v1555 = vadd.f32 0.0, %v1554
        %1556 = vmatmul.f32.gmra.mxu0 %v1451
        %v1557 = vpop.f32.mrf.mxu0
        %v1558 = vadd.f32 0.0, %v1557
        %1559 = vmatmul.f32.gmra.mxu0 %v1454
        %v1560 = vpop.f32.mrf.mxu0
        %v1561 = vadd.f32 0.0, %v1560
        %1562 = vdwg.mxu0
        %1563 = vmatpush.msra.mxu0 0.0
        %1564 = vmatpush.msra.mxu0 0.0
        %1565 = vmatpush.msra.mxu0 %v1365
        %1566 = vmatpush.msra.mxu0 %v1363
        %1567 = vmatpush.msra.mxu0 %v1361
        %1568 = vmatpush.msra.mxu0 %v1359
        %1569 = vmatpush.msra.mxu0 %v1357
        %1570 = vmatpush.msra.mxu0 %v1355
        %1571 = vmatpush.msra.mxu0 %v1353
        %1572 = vmatpush.msra.mxu0 %v1351
        %1573 = vmatpush.msra.mxu0 %v1349
        %1574 = vmatpush.msra.mxu0 %v1347
        %1575 = vmatpush.msra.mxu0 %v1345
        %1576 = vmatpush.msra.mxu0 %v1343
        %1577 = vmatpush.msra.mxu0 %v1341
        %1578 = vmatpush.msra.mxu0 %v1339
        %1579 = vmatmul.f32.gmra.mxu0 %v1367
        %v1580 = vpop.f32.mrf.mxu0
        %v1581 = vadd.f32 0.0, %v1580
        %1582 = vmatmul.f32.gmra.mxu0 %v1370
        %v1583 = vpop.f32.mrf.mxu0
        %v1584 = vadd.f32 0.0, %v1583
        %1585 = vmatmul.f32.gmra.mxu0 %v1373
        %v1586 = vpop.f32.mrf.mxu0
        %v1587 = vadd.f32 0.0, %v1586
        %1588 = vmatmul.f32.gmra.mxu0 %v1376
        %v1589 = vpop.f32.mrf.mxu0
        %v1590 = vadd.f32 0.0, %v1589
        %1591 = vmatmul.f32.gmra.mxu0 %v1379
        %v1592 = vpop.f32.mrf.mxu0
        %v1593 = vadd.f32 0.0, %v1592
        %1594 = vmatmul.f32.gmra.mxu0 %v1382
        %v1595 = vpop.f32.mrf.mxu0
        %v1596 = vadd.f32 0.0, %v1595
        %1597 = vmatmul.f32.gmra.mxu0 %v1385
        %v1598 = vpop.f32.mrf.mxu0
        %v1599 = vadd.f32 0.0, %v1598
        %1600 = vmatmul.f32.gmra.mxu0 %v1388
        %v1601 = vpop.f32.mrf.mxu0
        %v1602 = vadd.f32 0.0, %v1601
        %1603 = vmatmul.f32.gmra.mxu0 %v1391
        %v1604 = vpop.f32.mrf.mxu0
        %v1605 = vadd.f32 0.0, %v1604
        %1606 = vmatmul.f32.gmra.mxu0 %v1394
        %v1607 = vpop.f32.mrf.mxu0
        %v1608 = vadd.f32 0.0, %v1607
        %1609 = vmatmul.f32.gmra.mxu0 %v1397
        %v1610 = vpop.f32.mrf.mxu0
        %v1611 = vadd.f32 0.0, %v1610
        %1612 = vmatmul.f32.gmra.mxu0 %v1400
        %v1613 = vpop.f32.mrf.mxu0
        %v1614 = vadd.f32 0.0, %v1613
        %1615 = vmatmul.f32.gmra.mxu0 %v1403
        %v1616 = vpop.f32.mrf.mxu0
        %v1617 = vadd.f32 0.0, %v1616
        %1618 = vmatmul.f32.gmra.mxu0 %v1406
        %v1619 = vpop.f32.mrf.mxu0
        %v1620 = vadd.f32 0.0, %v1619
        %1621 = vmatmul.f32.gmra.mxu0 %v1409
        %v1622 = vpop.f32.mrf.mxu0
        %v1623 = vadd.f32 0.0, %v1622
        %1624 = vmatmul.f32.gmra.mxu0 %v1412
        %v1625 = vpop.f32.mrf.mxu0
        %v1626 = vadd.f32 0.0, %v1625
        %1627 = vmatmul.f32.gmra.mxu0 %v1415
        %v1628 = vpop.f32.mrf.mxu0
        %v1629 = vadd.f32 0.0, %v1628
        %1630 = vmatmul.f32.gmra.mxu0 %v1418
        %v1631 = vpop.f32.mrf.mxu0
        %v1632 = vadd.f32 0.0, %v1631
        %1633 = vmatmul.f32.gmra.mxu0 %v1421
        %v1634 = vpop.f32.mrf.mxu0
        %v1635 = vadd.f32 0.0, %v1634
        %1636 = vmatmul.f32.gmra.mxu0 %v1424
        %v1637 = vpop.f32.mrf.mxu0
        %v1638 = vadd.f32 0.0, %v1637
        %1639 = vmatmul.f32.gmra.mxu0 %v1427
        %v1640 = vpop.f32.mrf.mxu0
        %v1641 = vadd.f32 0.0, %v1640
        %1642 = vmatmul.f32.gmra.mxu0 %v1430
        %v1643 = vpop.f32.mrf.mxu0
        %v1644 = vadd.f32 0.0, %v1643
        %1645 = vmatmul.f32.gmra.mxu0 %v1433
        %v1646 = vpop.f32.mrf.mxu0
        %v1647 = vadd.f32 0.0, %v1646
        %1648 = vmatmul.f32.gmra.mxu0 %v1436
        %v1649 = vpop.f32.mrf.mxu0
        %v1650 = vadd.f32 0.0, %v1649
        %1651 = vmatmul.f32.gmra.mxu0 %v1439
        %v1652 = vpop.f32.mrf.mxu0
        %v1653 = vadd.f32 0.0, %v1652
        %1654 = vmatmul.f32.gmra.mxu0 %v1442
        %v1655 = vpop.f32.mrf.mxu0
        %v1656 = vadd.f32 0.0, %v1655
        %1657 = vmatmul.f32.gmra.mxu0 %v1445
        %v1658 = vpop.f32.mrf.mxu0
        %v1659 = vadd.f32 0.0, %v1658
        %1660 = vmatmul.f32.gmra.mxu0 %v1448
        %v1661 = vpop.f32.mrf.mxu0
        %v1662 = vadd.f32 0.0, %v1661
        %1663 = vmatmul.f32.gmra.mxu0 %v1451
        %v1664 = vpop.f32.mrf.mxu0
        %v1665 = vadd.f32 0.0, %v1664
        %1666 = vmatmul.f32.gmra.mxu0 %v1454
        %v1667 = vpop.f32.mrf.mxu0
        %v1668 = vadd.f32 0.0, %v1667
        %1669 = vdwg.mxu0
        %v1670 = vadd.f32 %v1247, %v1474
        %v1671 = vadd.f32 %v1248, %v1581
        %v1672 = vadd.f32 %v1249, %v1477
        %v1673 = vadd.f32 %v1250, %v1584
        %v1674 = vadd.f32 %v1251, %v1480
        %v1675 = vadd.f32 %v1252, %v1587
        %v1676 = vadd.f32 %v1253, %v1483
        %v1677 = vadd.f32 %v1254, %v1590
        %v1678 = vadd.f32 %v1255, %v1486
        %v1679 = vadd.f32 %v1256, %v1593
        %v1680 = vadd.f32 %v1257, %v1489
        %v1681 = vadd.f32 %v1258, %v1596
        %v1682 = vadd.f32 %v1259, %v1492
        %v1683 = vadd.f32 %v1260, %v1599
        %v1684 = vadd.f32 %v1261, %v1495
        %v1685 = vadd.f32 %v1262, %v1602
        %v1686 = vadd.f32 %v1263, %v1498
        %v1687 = vadd.f32 %v1264, %v1605
        %v1688 = vadd.f32 %v1265, %v1501
        %v1689 = vadd.f32 %v1266, %v1608
        %v1690 = vadd.f32 %v1267, %v1504
        %v1691 = vadd.f32 %v1268, %v1611
        %v1692 = vadd.f32 %v1269, %v1507
        %v1693 = vadd.f32 %v1270, %v1614
        %v1694 = vadd.f32 %v1271, %v1510
        %v1695 = vadd.f32 %v1272, %v1617
        %v1696 = vadd.f32 %v1273, %v1513
        %v1697 = vadd.f32 %v1274, %v1620
        %v1698 = vadd.f32 %v1275, %v1516
        %v1699 = vadd.f32 %v1276, %v1623
        %v1700 = vadd.f32 %v1277, %v1519
        %v1701 = vadd.f32 %v1278, %v1626
        %v1702 = vadd.f32 %v1279, %v1522
        %v1703 = vadd.f32 %v1280, %v1629
        %v1704 = vadd.f32 %v1281, %v1525
        %v1705 = vadd.f32 %v1282, %v1632
        %v1706 = vadd.f32 %v1283, %v1528
        %v1707 = vadd.f32 %v1284, %v1635
        %v1708 = vadd.f32 %v1285, %v1531
        %v1709 = vadd.f32 %v1286, %v1638
        %v1710 = vadd.f32 %v1287, %v1534
        %v1711 = vadd.f32 %v1288, %v1641
        %v1712 = vadd.f32 %v1289, %v1537
        %v1713 = vadd.f32 %v1290, %v1644
        %v1714 = vadd.f32 %v1291, %v1540
        %v1715 = vadd.f32 %v1292, %v1647
        %v1716 = vadd.f32 %v1293, %v1543
        %v1717 = vadd.f32 %v1294, %v1650
        %v1718 = vadd.f32 %v1295, %v1546
        %v1719 = vadd.f32 %v1296, %v1653
        %v1720 = vadd.f32 %v1297, %v1549
        %v1721 = vadd.f32 %v1298, %v1656
        %v1722 = vadd.f32 %v1299, %v1552
        %v1723 = vadd.f32 %v1300, %v1659
        %v1724 = vadd.f32 %v1301, %v1555
        %v1725 = vadd.f32 %v1302, %v1662
        %v1726 = vadd.f32 %v1303, %v1558
        %v1727 = vadd.f32 %v1304, %v1665
        %v1728 = vadd.f32 %v1305, %v1561
        %v1729 = vadd.f32 %v1306, %v1668
        %1730 = vst [vmem:[#allocation2] sm:$0xff] %v1670
        %1731 = vst.msk [vmem:[#allocation2 + $0x8] sm:$0xff] %vm643, %v1671
        %1732 = vst [vmem:[#allocation2 + $0x10] sm:$0xff] %v1672
        %1733 = vst.msk [vmem:[#allocation2 + $0x18] sm:$0xff] %vm643, %v1673
        %1734 = vst [vmem:[#allocation2 + $0x20] sm:$0xff] %v1674
        %1735 = vst.msk [vmem:[#allocation2 + $0x28] sm:$0xff] %vm643, %v1675
        %1736 = vst [vmem:[#allocation2 + $0x30] sm:$0xff] %v1676
        %1737 = vst.msk [vmem:[#allocation2 + $0x38] sm:$0xff] %vm643, %v1677
        %1738 = vst [vmem:[#allocation2 + $0x40] sm:$0xff] %v1678
        %1739 = vst.msk [vmem:[#allocation2 + $0x48] sm:$0xff] %vm643, %v1679
        %1740 = vst [vmem:[#allocation2 + $0x50] sm:$0xff] %v1680
        %1741 = vst.msk [vmem:[#allocation2 + $0x58] sm:$0xff] %vm643, %v1681
        %1742 = vst [vmem:[#allocation2 + $0x60] sm:$0xff] %v1682
        %1743 = vst.msk [vmem:[#allocation2 + $0x68] sm:$0xff] %vm643, %v1683
        %1744 = vst [vmem:[#allocation2 + $0x70] sm:$0xff] %v1684
        %1745 = vst.msk [vmem:[#allocation2 + $0x78] sm:$0xff] %vm643, %v1685
        %1746 = vst [vmem:[#allocation2 + $0x80] sm:$0xff] %v1686
        %1747 = vst.msk [vmem:[#allocation2 + $0x88] sm:$0xff] %vm643, %v1687
        %1748 = vst [vmem:[#allocation2 + $0x90] sm:$0xff] %v1688
        %1749 = vst.msk [vmem:[#allocation2 + $0x98] sm:$0xff] %vm643, %v1689
        %1750 = vst [vmem:[#allocation2 + $0xa0] sm:$0xff] %v1690
        %1751 = vst.msk [vmem:[#allocation2 + $0xa8] sm:$0xff] %vm643, %v1691
        %1752 = vst [vmem:[#allocation2 + $0xb0] sm:$0xff] %v1692
        %1753 = vst.msk [vmem:[#allocation2 + $0xb8] sm:$0xff] %vm643, %v1693
        %1754 = vst [vmem:[#allocation2 + $0xc0] sm:$0xff] %v1694
        %1755 = vst.msk [vmem:[#allocation2 + $0xc8] sm:$0xff] %vm643, %v1695
        %1756 = vst [vmem:[#allocation2 + $0xd0] sm:$0xff] %v1696
        %1757 = vst.msk [vmem:[#allocation2 + $0xd8] sm:$0xff] %vm643, %v1697
        %1758 = vst [vmem:[#allocation2 + $0xe0] sm:$0xff] %v1698
        %1759 = vst.msk [vmem:[#allocation2 + $0xe8] sm:$0xff] %vm643, %v1699
        %1760 = vst [vmem:[#allocation2 + $0xf0] sm:$0xff] %v1700
        %1761 = vst.msk [vmem:[#allocation2 + $0xf8] sm:$0xff] %vm643, %v1701
        %1762 = vst [vmem:[#allocation2 + $0x100] sm:$0xff] %v1702
        %1763 = vst.msk [vmem:[#allocation2 + $0x108] sm:$0xff] %vm643, %v1703
        %1764 = vst [vmem:[#allocation2 + $0x110] sm:$0xff] %v1704
        %1765 = vst.msk [vmem:[#allocation2 + $0x118] sm:$0xff] %vm643, %v1705
        %1766 = vst [vmem:[#allocation2 + $0x120] sm:$0xff] %v1706
        %1767 = vst.msk [vmem:[#allocation2 + $0x128] sm:$0xff] %vm643, %v1707
        %1768 = vst [vmem:[#allocation2 + $0x130] sm:$0xff] %v1708
        %1769 = vst.msk [vmem:[#allocation2 + $0x138] sm:$0xff] %vm643, %v1709
        %1770 = vst [vmem:[#allocation2 + $0x140] sm:$0xff] %v1710
        %1771 = vst.msk [vmem:[#allocation2 + $0x148] sm:$0xff] %vm643, %v1711
        %1772 = vst [vmem:[#allocation2 + $0x150] sm:$0xff] %v1712
        %1773 = vst.msk [vmem:[#allocation2 + $0x158] sm:$0xff] %vm643, %v1713
        %1774 = vst [vmem:[#allocation2 + $0x160] sm:$0xff] %v1714
        %1775 = vst.msk [vmem:[#allocation2 + $0x168] sm:$0xff] %vm643, %v1715
        %1776 = vst [vmem:[#allocation2 + $0x170] sm:$0xff] %v1716
        %1777 = vst.msk [vmem:[#allocation2 + $0x178] sm:$0xff] %vm643, %v1717
        %1778 = vst [vmem:[#allocation2 + $0x180] sm:$0xff] %v1718
        %1779 = vst.msk [vmem:[#allocation2 + $0x188] sm:$0xff] %vm643, %v1719
        %1780 = vst [vmem:[#allocation2 + $0x190] sm:$0xff] %v1720
        %1781 = vst.msk [vmem:[#allocation2 + $0x198] sm:$0xff] %vm643, %v1721
        %1782 = vst [vmem:[#allocation2 + $0x1a0] sm:$0xff] %v1722
        %1783 = vst.msk [vmem:[#allocation2 + $0x1a8] sm:$0xff] %vm643, %v1723
        %1784 = vst [vmem:[#allocation2 + $0x1b0] sm:$0xff] %v1724
        %1785 = vst.msk [vmem:[#allocation2 + $0x1b8] sm:$0xff] %vm643, %v1725
        %1786 = vst [vmem:[#allocation2 + $0x1c0] sm:$0xff] %v1726
        %1787 = vst.msk [vmem:[#allocation2 + $0x1c8] sm:$0xff] %vm643, %v1727
        %1788 = vst [vmem:[#allocation2 + $0x1d0] sm:$0x3f] %v1728
        %1789 = vst.msk [vmem:[#allocation2 + $0x1d8] sm:$0x3f] %vm702, %v1729
        %v1790 = vld [vmem:[#allocation2] sm:$0xff]
        %v1791 = vld [vmem:[#allocation2 + $0x8] sm:$0xff]
        %v1792 = vld [vmem:[#allocation2 + $0x10] sm:$0xff]
        %v1793 = vld [vmem:[#allocation2 + $0x18] sm:$0xff]
        %v1794 = vld [vmem:[#allocation2 + $0x20] sm:$0xff]
        %v1795 = vld [vmem:[#allocation2 + $0x28] sm:$0xff]
        %v1796 = vld [vmem:[#allocation2 + $0x30] sm:$0xf]
        %v1797 = vld [vmem:[#allocation2 + $0x38] sm:$0xf]
        %1806 = vrot.lane.b32.xlu0 %v1790, 120
        %v1807 = vpop.permute.xlu0 %1806
        %1808 = vrot.lane.b32.xlu0 %v1791, 120
        %v1809 = vpop.permute.xlu0 %1808
        %1810 = vrot.lane.b32.xlu0 %v1792, 120
        %v1811 = vpop.permute.xlu0 %1810
        %1812 = vrot.lane.b32.xlu0 %v1793, 120
        %v1813 = vpop.permute.xlu0 %1812
        %1814 = vrot.lane.b32.xlu0 %v1794, 120
        %v1815 = vpop.permute.xlu0 %1814
        %1816 = vrot.lane.b32.xlu0 %v1795, 120
        %v1817 = vpop.permute.xlu0 %1816
        %1818 = vrot.lane.b32.xlu0 %v1796, 120
        %v1819 = vpop.permute.xlu0 %1818
        %1820 = vrot.lane.b32.xlu0 %v1797, 120
        %v1821 = vpop.permute.xlu0 %1820
        %vm1822 = vcmask 982016
        %v1823 = vsel %vm1822, %v1807, %v1809
        %v1824 = vsel %vm1822, %v1811, %v1813
        %v1825 = vsel %vm1822, %v1815, %v1817
        %v1826 = vsel %vm1822, %v1819, %v1821
        %v1835 = vmax.f32 %v1790, %v1823
        %v1836 = vmax.f32 %v1791, %v1809
        %v1837 = vmax.f32 %v1792, %v1824
        %v1838 = vmax.f32 %v1793, %v1813
        %v1839 = vmax.f32 %v1794, %v1825
        %v1840 = vmax.f32 %v1795, %v1817
        %v1841 = vmax.f32 %v1796, %v1826
        %v1842 = vmax.f32 %v1797, %v1821
        %v1851 = vrot.slane %v1836, 6
        %v1852 = vrot.slane %v1838, 6
        %v1853 = vrot.slane %v1840, 6
        %v1854 = vrot.slane %v1842, 6
        %vm1855 = vcmask 1041408
        %v1856 = vsel %vm1855, %v1835, %v1851
        %vm1857 = vcmask 1043458
        %v1858 = vsel %vm1857, %v1835, %v1851
        %v1859 = vrot.slane %v1858, 2
        %vm1860 = vcmask 1045508
        %v1861 = vsel %vm1860, %v1835, %v1851
        %v1862 = vrot.slane %v1861, 4
        %vm1863 = vcmask 1045504
        %v1864 = vsel %vm1863, %v1851, %v1835
        %v1865 = vrot.slane %v1864, 6
        %v1866 = vsel %vm1855, %v1837, %v1852
        %v1867 = vsel %vm1857, %v1837, %v1852
        %v1868 = vrot.slane %v1867, 2
        %v1869 = vsel %vm1860, %v1837, %v1852
        %v1870 = vrot.slane %v1869, 4
        %v1871 = vsel %vm1863, %v1852, %v1837
        %v1872 = vrot.slane %v1871, 6
        %v1873 = vsel %vm1855, %v1839, %v1853
        %v1874 = vsel %vm1857, %v1839, %v1853
        %v1875 = vrot.slane %v1874, 2
        %v1876 = vsel %vm1860, %v1839, %v1853
        %v1877 = vrot.slane %v1876, 4
        %v1878 = vsel %vm1863, %v1853, %v1839
        %v1879 = vrot.slane %v1878, 6
        %v1880 = vsel %vm1855, %v1841, %v1854
        %v1881 = vsel %vm1857, %v1841, %v1854
        %v1882 = vrot.slane %v1881, 2
        %1883 = vst [vmem:[#allocation1] ss:$4 sm:$0xff] %v1856
        %v1884 = vld.sshfl [vmem:[#allocation1] sm:$0xff pattern:$0x73625140]
        %v1885 = vld.sshfl [vmem:[#allocation1 + $0x8] sm:$0xff pattern:$0x73625140]
        %s1886 = scalar_lea.vmem [#allocation1], 32
        %1887 = vst [vmem:[%s1886] ss:$4 sm:$0xff] %v1859
        %v1888 = vld.sshfl [vmem:[#allocation1 + $0x20] sm:$0xff pattern:$0x73625140]
        %v1889 = vld.sshfl [vmem:[#allocation1 + $0x28] sm:$0xff pattern:$0x73625140]
        %1890 = vst [vmem:[#allocation1] ss:$4 sm:$0xff] %v1862
        %v1891 = vld.sshfl [vmem:[#allocation1] sm:$0xff pattern:$0x73625140]
        %v1892 = vld.sshfl [vmem:[#allocation1 + $0x8] sm:$0xff pattern:$0x73625140]
        %1893 = vst [vmem:[%s1886] ss:$4 sm:$0xff] %v1865
        %v1894 = vld.sshfl [vmem:[#allocation1 + $0x20] sm:$0xff pattern:$0x73625140]
        %v1895 = vld.sshfl [vmem:[#allocation1 + $0x28] sm:$0xff pattern:$0x73625140]
        %1896 = vst [vmem:[#allocation1] ss:$4 sm:$0xff] %v1866
        %v1897 = vld.sshfl [vmem:[#allocation1] sm:$0xff pattern:$0x73625140]
        %v1898 = vld.sshfl [vmem:[#allocation1 + $0x8] sm:$0xff pattern:$0x73625140]
        %1899 = vst [vmem:[%s1886] ss:$4 sm:$0xff] %v1868
        %v1900 = vld.sshfl [vmem:[#allocation1 + $0x20] sm:$0xff pattern:$0x73625140]
        %v1901 = vld.sshfl [vmem:[#allocation1 + $0x28] sm:$0xff pattern:$0x73625140]
        %1902 = vst [vmem:[#allocation1] ss:$4 sm:$0xff] %v1870
        %v1903 = vld.sshfl [vmem:[#allocation1] sm:$0xff pattern:$0x73625140]
        %v1904 = vld.sshfl [vmem:[#allocation1 + $0x8] sm:$0xff pattern:$0x73625140]
        %1905 = vst [vmem:[%s1886] ss:$4 sm:$0xff] %v1872
        %v1906 = vld.sshfl [vmem:[#allocation1 + $0x20] sm:$0xff pattern:$0x73625140]
        %v1907 = vld.sshfl [vmem:[#allocation1 + $0x28] sm:$0xff pattern:$0x73625140]
        %1908 = vst [vmem:[#allocation1] ss:$4 sm:$0xff] %v1873
        %v1909 = vld.sshfl [vmem:[#allocation1] sm:$0xff pattern:$0x73625140]
        %v1910 = vld.sshfl [vmem:[#allocation1 + $0x8] sm:$0xff pattern:$0x73625140]
        %1911 = vst [vmem:[%s1886] ss:$4 sm:$0xff] %v1875
        %v1912 = vld.sshfl [vmem:[#allocation1 + $0x20] sm:$0xff pattern:$0x73625140]
        %v1913 = vld.sshfl [vmem:[#allocation1 + $0x28] sm:$0xff pattern:$0x73625140]
        %1914 = vst [vmem:[#allocation1] ss:$4 sm:$0xff] %v1877
        %v1915 = vld.sshfl [vmem:[#allocation1] sm:$0xff pattern:$0x73625140]
        %v1916 = vld.sshfl [vmem:[#allocation1 + $0x8] sm:$0xff pattern:$0x73625140]
        %1917 = vst [vmem:[%s1886] ss:$4 sm:$0xff] %v1879
        %v1918 = vld.sshfl [vmem:[#allocation1 + $0x20] sm:$0xff pattern:$0x73625140]
        %v1919 = vld.sshfl [vmem:[#allocation1 + $0x28] sm:$0xff pattern:$0x73625140]
        %1920 = vst [vmem:[#allocation1] ss:$4 sm:$0xff] %v1880
        %v1921 = vld.sshfl [vmem:[#allocation1] sm:$0xff pattern:$0x73625140]
        %v1922 = vld.sshfl [vmem:[#allocation1 + $0x8] sm:$0xff pattern:$0x73625140]
        %1923 = vst [vmem:[%s1886] ss:$4 sm:$0xff] %v1882
        %v1924 = vld.sshfl [vmem:[#allocation1 + $0x20] sm:$0xff pattern:$0x73625140]
        %v1925 = vld.sshfl [vmem:[#allocation1 + $0x28] sm:$0xff pattern:$0x73625140]
        %v1954 = vsel %vm1855, %v1884, -inf
        %v1955 = vrot.slane %v1954, 4
        %v1956 = vmax.f32 %v1954, %v1955
        %v1957 = vrot.slane %v1956, 2
        %v1958 = vmax.f32 %v1956, %v1957
        %v1959 = vrot.slane %v1958, 1
        %v1960 = vmax.f32 %v1958, %v1959
        %vm1961 = vcmask 713728
        %v1962 = vsel %vm1961, %v1885, -inf
        %v1963 = vrot.slane %v1962, 4
        %v1964 = vmax.f32 %v1962, %v1963
        %v1965 = vrot.slane %v1964, 2
        %v1966 = vmax.f32 %v1964, %v1965
        %v1967 = vrot.slane %v1966, 1
        %v1968 = vmax.f32 %v1966, %v1967
        %v1969 = vsel %vm1855, %v1888, -inf
        %v1970 = vrot.slane %v1969, 4
        %v1971 = vmax.f32 %v1969, %v1970
        %v1972 = vrot.slane %v1971, 2
        %v1973 = vmax.f32 %v1971, %v1972
        %v1974 = vrot.slane %v1973, 1
        %v1975 = vmax.f32 %v1973, %v1974
        %v1976 = vsel %vm1961, %v1889, -inf
        %v1977 = vrot.slane %v1976, 4
        %v1978 = vmax.f32 %v1976, %v1977
        %v1979 = vrot.slane %v1978, 2
        %v1980 = vmax.f32 %v1978, %v1979
        %v1981 = vrot.slane %v1980, 1
        %v1982 = vmax.f32 %v1980, %v1981
        %v1983 = vsel %vm1855, %v1891, -inf
        %v1984 = vrot.slane %v1983, 4
        %v1985 = vmax.f32 %v1983, %v1984
        %v1986 = vrot.slane %v1985, 2
        %v1987 = vmax.f32 %v1985, %v1986
        %v1988 = vrot.slane %v1987, 1
        %v1989 = vmax.f32 %v1987, %v1988
        %v1990 = vsel %vm1961, %v1892, -inf
        %v1991 = vrot.slane %v1990, 4
        %v1992 = vmax.f32 %v1990, %v1991
        %v1993 = vrot.slane %v1992, 2
        %v1994 = vmax.f32 %v1992, %v1993
        %v1995 = vrot.slane %v1994, 1
        %v1996 = vmax.f32 %v1994, %v1995
        %v1997 = vsel %vm1855, %v1894, -inf
        %v1998 = vrot.slane %v1997, 4
        %v1999 = vmax.f32 %v1997, %v1998
        %v2000 = vrot.slane %v1999, 2
        %v2001 = vmax.f32 %v1999, %v2000
        %v2002 = vrot.slane %v2001, 1
        %v2003 = vmax.f32 %v2001, %v2002
        %v2004 = vsel %vm1961, %v1895, -inf
        %v2005 = vrot.slane %v2004, 4
        %v2006 = vmax.f32 %v2004, %v2005
        %v2007 = vrot.slane %v2006, 2
        %v2008 = vmax.f32 %v2006, %v2007
        %v2009 = vrot.slane %v2008, 1
        %v2010 = vmax.f32 %v2008, %v2009
        %v2011 = vsel %vm1855, %v1897, -inf
        %v2012 = vrot.slane %v2011, 4
        %v2013 = vmax.f32 %v2011, %v2012
        %v2014 = vrot.slane %v2013, 2
        %v2015 = vmax.f32 %v2013, %v2014
        %v2016 = vrot.slane %v2015, 1
        %v2017 = vmax.f32 %v2015, %v2016
        %v2018 = vsel %vm1961, %v1898, -inf
        %v2019 = vrot.slane %v2018, 4
        %v2020 = vmax.f32 %v2018, %v2019
        %v2021 = vrot.slane %v2020, 2
        %v2022 = vmax.f32 %v2020, %v2021
        %v2023 = vrot.slane %v2022, 1
        %v2024 = vmax.f32 %v2022, %v2023
        %v2025 = vsel %vm1855, %v1900, -inf
        %v2026 = vrot.slane %v2025, 4
        %v2027 = vmax.f32 %v2025, %v2026
        %v2028 = vrot.slane %v2027, 2
        %v2029 = vmax.f32 %v2027, %v2028
        %v2030 = vrot.slane %v2029, 1
        %v2031 = vmax.f32 %v2029, %v2030
        %v2032 = vsel %vm1961, %v1901, -inf
        %v2033 = vrot.slane %v2032, 4
        %v2034 = vmax.f32 %v2032, %v2033
        %v2035 = vrot.slane %v2034, 2
        %v2036 = vmax.f32 %v2034, %v2035
        %v2037 = vrot.slane %v2036, 1
        %v2038 = vmax.f32 %v2036, %v2037
        %v2039 = vsel %vm1855, %v1903, -inf
        %v2040 = vrot.slane %v2039, 4
        %v2041 = vmax.f32 %v2039, %v2040
        %v2042 = vrot.slane %v2041, 2
        %v2043 = vmax.f32 %v2041, %v2042
        %v2044 = vrot.slane %v2043, 1
        %v2045 = vmax.f32 %v2043, %v2044
        %v2046 = vsel %vm1961, %v1904, -inf
        %v2047 = vrot.slane %v2046, 4
        %v2048 = vmax.f32 %v2046, %v2047
        %v2049 = vrot.slane %v2048, 2
        %v2050 = vmax.f32 %v2048, %v2049
        %v2051 = vrot.slane %v2050, 1
        %v2052 = vmax.f32 %v2050, %v2051
        %v2053 = vsel %vm1855, %v1906, -inf
        %v2054 = vrot.slane %v2053, 4
        %v2055 = vmax.f32 %v2053, %v2054
        %v2056 = vrot.slane %v2055, 2
        %v2057 = vmax.f32 %v2055, %v2056
        %v2058 = vrot.slane %v2057, 1
        %v2059 = vmax.f32 %v2057, %v2058
        %v2060 = vsel %vm1961, %v1907, -inf
        %v2061 = vrot.slane %v2060, 4
        %v2062 = vmax.f32 %v2060, %v2061
        %v2063 = vrot.slane %v2062, 2
        %v2064 = vmax.f32 %v2062, %v2063
        %v2065 = vrot.slane %v2064, 1
        %v2066 = vmax.f32 %v2064, %v2065
        %v2067 = vsel %vm1855, %v1909, -inf
        %v2068 = vrot.slane %v2067, 4
        %v2069 = vmax.f32 %v2067, %v2068
        %v2070 = vrot.slane %v2069, 2
        %v2071 = vmax.f32 %v2069, %v2070
        %v2072 = vrot.slane %v2071, 1
        %v2073 = vmax.f32 %v2071, %v2072
        %v2074 = vsel %vm1961, %v1910, -inf
        %v2075 = vrot.slane %v2074, 4
        %v2076 = vmax.f32 %v2074, %v2075
        %v2077 = vrot.slane %v2076, 2
        %v2078 = vmax.f32 %v2076, %v2077
        %v2079 = vrot.slane %v2078, 1
        %v2080 = vmax.f32 %v2078, %v2079
        %v2081 = vsel %vm1855, %v1912, -inf
        %v2082 = vrot.slane %v2081, 4
        %v2083 = vmax.f32 %v2081, %v2082
        %v2084 = vrot.slane %v2083, 2
        %v2085 = vmax.f32 %v2083, %v2084
        %v2086 = vrot.slane %v2085, 1
        %v2087 = vmax.f32 %v2085, %v2086
        %v2088 = vsel %vm1961, %v1913, -inf
        %v2089 = vrot.slane %v2088, 4
        %v2090 = vmax.f32 %v2088, %v2089
        %v2091 = vrot.slane %v2090, 2
        %v2092 = vmax.f32 %v2090, %v2091
        %v2093 = vrot.slane %v2092, 1
        %v2094 = vmax.f32 %v2092, %v2093
        %v2095 = vsel %vm1855, %v1915, -inf
        %v2096 = vrot.slane %v2095, 4
        %v2097 = vmax.f32 %v2095, %v2096
        %v2098 = vrot.slane %v2097, 2
        %v2099 = vmax.f32 %v2097, %v2098
        %v2100 = vrot.slane %v2099, 1
        %v2101 = vmax.f32 %v2099, %v2100
        %v2102 = vsel %vm1961, %v1916, -inf
        %v2103 = vrot.slane %v2102, 4
        %v2104 = vmax.f32 %v2102, %v2103
        %v2105 = vrot.slane %v2104, 2
        %v2106 = vmax.f32 %v2104, %v2105
        %v2107 = vrot.slane %v2106, 1
        %v2108 = vmax.f32 %v2106, %v2107
        %v2109 = vsel %vm1855, %v1918, -inf
        %v2110 = vrot.slane %v2109, 4
        %v2111 = vmax.f32 %v2109, %v2110
        %v2112 = vrot.slane %v2111, 2
        %v2113 = vmax.f32 %v2111, %v2112
        %v2114 = vrot.slane %v2113, 1
        %v2115 = vmax.f32 %v2113, %v2114
        %v2116 = vsel %vm1961, %v1919, -inf
        %v2117 = vrot.slane %v2116, 4
        %v2118 = vmax.f32 %v2116, %v2117
        %v2119 = vrot.slane %v2118, 2
        %v2120 = vmax.f32 %v2118, %v2119
        %v2121 = vrot.slane %v2120, 1
        %v2122 = vmax.f32 %v2120, %v2121
        %v2123 = vsel %vm1855, %v1921, -inf
        %v2124 = vrot.slane %v2123, 4
        %v2125 = vmax.f32 %v2123, %v2124
        %v2126 = vrot.slane %v2125, 2
        %v2127 = vmax.f32 %v2125, %v2126
        %v2128 = vrot.slane %v2127, 1
        %v2129 = vmax.f32 %v2127, %v2128
        %v2130 = vsel %vm1961, %v1922, -inf
        %v2131 = vrot.slane %v2130, 4
        %v2132 = vmax.f32 %v2130, %v2131
        %v2133 = vrot.slane %v2132, 2
        %v2134 = vmax.f32 %v2132, %v2133
        %v2135 = vrot.slane %v2134, 1
        %v2136 = vmax.f32 %v2134, %v2135
        %v2137 = vsel %vm1855, %v1924, -inf
        %v2138 = vrot.slane %v2137, 4
        %v2139 = vmax.f32 %v2137, %v2138
        %v2140 = vrot.slane %v2139, 2
        %v2141 = vmax.f32 %v2139, %v2140
        %v2142 = vrot.slane %v2141, 1
        %v2143 = vmax.f32 %v2141, %v2142
        %v2144 = vsel %vm1961, %v1925, -inf
        %v2145 = vrot.slane %v2144, 4
        %v2146 = vmax.f32 %v2144, %v2145
        %v2147 = vrot.slane %v2146, 2
        %v2148 = vmax.f32 %v2146, %v2147
        %v2149 = vrot.slane %v2148, 1
        %v2150 = vmax.f32 %v2148, %v2149
        %v2151 = vld [vmem:[%s2] sm:$0x3]
        %v2153 = vperm.slane %v2151, 0
        %v2154 = vperm.slane %v2151, 1
        %v2157 = vadd.f32 %v1960, %v2153
        %v2158 = vadd.f32 %v1968, %v2154
        %v2159 = vadd.f32 %v1975, %v2153
        %v2160 = vadd.f32 %v1982, %v2154
        %v2161 = vadd.f32 %v1989, %v2153
        %v2162 = vadd.f32 %v1996, %v2154
        %v2163 = vadd.f32 %v2003, %v2153
        %v2164 = vadd.f32 %v2010, %v2154
        %v2165 = vadd.f32 %v2017, %v2153
        %v2166 = vadd.f32 %v2024, %v2154
        %v2167 = vadd.f32 %v2031, %v2153
        %v2168 = vadd.f32 %v2038, %v2154
        %v2169 = vadd.f32 %v2045, %v2153
        %v2170 = vadd.f32 %v2052, %v2154
        %v2171 = vadd.f32 %v2059, %v2153
        %v2172 = vadd.f32 %v2066, %v2154
        %v2173 = vadd.f32 %v2073, %v2153
        %v2174 = vadd.f32 %v2080, %v2154
        %v2175 = vadd.f32 %v2087, %v2153
        %v2176 = vadd.f32 %v2094, %v2154
        %v2177 = vadd.f32 %v2101, %v2153
        %v2178 = vadd.f32 %v2108, %v2154
        %v2179 = vadd.f32 %v2115, %v2153
        %v2180 = vadd.f32 %v2122, %v2154
        %v2181 = vadd.f32 %v2129, %v2153
        %v2182 = vadd.f32 %v2136, %v2154
        %v2183 = vadd.f32 %v2143, %v2153
        %v2184 = vadd.f32 %v2150, %v2154
        %v2185 = vmax.f32 %v2157, 0.0
        %v2186 = vmax.f32 %v2158, 0.0
        %v2187 = vmax.f32 %v2159, 0.0
        %v2188 = vmax.f32 %v2160, 0.0
        %v2189 = vmax.f32 %v2161, 0.0
        %v2190 = vmax.f32 %v2162, 0.0
        %v2191 = vmax.f32 %v2163, 0.0
        %v2192 = vmax.f32 %v2164, 0.0
        %v2193 = vmax.f32 %v2165, 0.0
        %v2194 = vmax.f32 %v2166, 0.0
        %v2195 = vmax.f32 %v2167, 0.0
        %v2196 = vmax.f32 %v2168, 0.0
        %v2197 = vmax.f32 %v2169, 0.0
        %v2198 = vmax.f32 %v2170, 0.0
        %v2199 = vmax.f32 %v2171, 0.0
        %v2200 = vmax.f32 %v2172, 0.0
        %v2201 = vmax.f32 %v2173, 0.0
        %v2202 = vmax.f32 %v2174, 0.0
        %v2203 = vmax.f32 %v2175, 0.0
        %v2204 = vmax.f32 %v2176, 0.0
        %v2205 = vmax.f32 %v2177, 0.0
        %v2206 = vmax.f32 %v2178, 0.0
        %v2207 = vmax.f32 %v2179, 0.0
        %v2208 = vmax.f32 %v2180, 0.0
        %v2209 = vmax.f32 %v2181, 0.0
        %v2210 = vmax.f32 %v2182, 0.0
        %v2211 = vmax.f32 %v2183, 0.0
        %v2212 = vmax.f32 %v2184, 0.0
        %v2213 = vlaneseq
        %vm2214 = vcmp.ge.s32.totalorder %v2213, 0
        %vm2215 = vcmp.lt.s32.totalorder %v2213, 216
        %vm2216 = vmand %vm2214, %vm2215
        %2217 = vst.msk [vmem:[#allocation3] ss:$8 sm:$0x3] %vm2216, 0.0
        %2218 = vst.msk [vmem:[#allocation3] ss:$8 sm:$0x0] %vm2216, 0.0
        %s2219 = scalar_lea.vmem [#allocation3], 23
        %2220 = vst.msk [vmem:[%s2219] ss:$8 sm:$0x3] %vm2216, 0.0
        %2221 = vst.msk [vmem:[%s2219] ss:$8 sm:$0x0] %vm2216, 0.0
        %v2250 = vrot.slane %v2185, 7
        %v2251 = vrot.slane %v2187, 6
        %vm2252 = vcmask 1042434
        %v2253 = vsel %vm2252, %v2251, %v2250
        %v2254 = vrot.slane %v2189, 5
        %vm2255 = vcmask 1043459
        %v2256 = vsel %vm2255, %v2254, %v2253
        %v2257 = vrot.slane %v2191, 4
        %vm2258 = vcmask 1044484
        %v2259 = vsel %vm2258, %v2257, %v2256
        %v2260 = vrot.slane %v2193, 3
        %vm2261 = vcmask 1045509
        %v2262 = vsel %vm2261, %v2260, %v2259
        %v2263 = vrot.slane %v2195, 2
        %vm2264 = vcmask 1046534
        %v2265 = vsel %vm2264, %v2263, %v2262
        %v2266 = vrot.slane %v2197, 1
        %vm2267 = vcmask 1047559
        %v2268 = vsel %vm2267, %v2266, %v2265
        %v2269 = vrot.slane %v2186, 7
        %v2270 = vrot.slane %v2188, 6
        %v2271 = vsel %vm2252, %v2270, %v2269
        %v2272 = vrot.slane %v2190, 5
        %v2273 = vsel %vm2255, %v2272, %v2271
        %v2274 = vrot.slane %v2192, 4
        %v2275 = vsel %vm2258, %v2274, %v2273
        %v2276 = vrot.slane %v2194, 3
        %v2277 = vsel %vm2261, %v2276, %v2275
        %v2278 = vrot.slane %v2196, 2
        %v2279 = vsel %vm2264, %v2278, %v2277
        %v2280 = vrot.slane %v2198, 1
        %v2281 = vsel %vm2267, %v2280, %v2279
        %v2282 = vrot.slane %v2201, 7
        %vm2283 = vcmask 1041409
        %v2284 = vsel %vm2283, %v2282, %v2199
        %v2285 = vrot.slane %v2203, 6
        %v2286 = vsel %vm2252, %v2285, %v2284
        %v2287 = vrot.slane %v2205, 5
        %v2288 = vsel %vm2255, %v2287, %v2286
        %v2289 = vrot.slane %v2207, 4
        %v2290 = vsel %vm2258, %v2289, %v2288
        %v2291 = vrot.slane %v2209, 3
        %v2292 = vsel %vm2261, %v2291, %v2290
        %v2293 = vrot.slane %v2211, 2
        %v2294 = vsel %vm2264, %v2293, %v2292
        %v2295 = vrot.slane %v2202, 7
        %v2296 = vsel %vm2283, %v2295, %v2200
        %v2297 = vrot.slane %v2204, 6
        %v2298 = vsel %vm2252, %v2297, %v2296
        %v2299 = vrot.slane %v2206, 5
        %v2300 = vsel %vm2255, %v2299, %v2298
        %v2301 = vrot.slane %v2208, 4
        %v2302 = vsel %vm2258, %v2301, %v2300
        %v2303 = vrot.slane %v2210, 3
        %v2304 = vsel %vm2261, %v2303, %v2302
        %v2305 = vrot.slane %v2212, 2
        %v2306 = vsel %vm2264, %v2305, %v2304
        %2311 = vst [vmem:[#allocation3] sm:$0xfe] %v2268
        %vm2312 = vcmask 719873
        %2313 = vst.msk [vmem:[#allocation3 + $0x8] sm:$0xfe] %vm2312, %v2281
        %2314 = vst [vmem:[#allocation3 + $0x10] sm:$0x7f] %v2294
        %vm2315 = vcmask 718848
        %2316 = vst.msk [vmem:[#allocation3 + $0x18] sm:$0x7f] %vm2315, %v2306
        %v2317 = vld [vmem:[#allocation2 + $0x30] sm:$0xc0]
        %v2318 = vld [vmem:[#allocation2 + $0x38] sm:$0xc0]
        %v2319 = vld [vmem:[#allocation2 + $0x40] sm:$0xff]
        %v2320 = vld [vmem:[#allocation2 + $0x48] sm:$0xff]
        %v2321 = vld [vmem:[#allocation2 + $0x50] sm:$0xff]
        %v2322 = vld [vmem:[#allocation2 + $0x58] sm:$0xff]
        %v2323 = vld [vmem:[#allocation2 + $0x60] sm:$0xff]
        %v2324 = vld [vmem:[#allocation2 + $0x68] sm:$0xff]
        %v2325 = vld [vmem:[#allocation2 + $0x70] sm:$0x3]
        %v2326 = vld [vmem:[#allocation2 + $0x78] sm:$0x3]
        %2337 = vrot.lane.b32.xlu0 %v2317, 120
        %v2338 = vpop.permute.xlu0 %2337
        %2339 = vrot.lane.b32.xlu0 %v2318, 120
        %v2340 = vpop.permute.xlu0 %2339
        %2341 = vrot.lane.b32.xlu0 %v2319, 120
        %v2342 = vpop.permute.xlu0 %2341
        %2343 = vrot.lane.b32.xlu0 %v2320, 120
        %v2344 = vpop.permute.xlu0 %2343
        %2345 = vrot.lane.b32.xlu0 %v2321, 120
        %v2346 = vpop.permute.xlu0 %2345
        %2347 = vrot.lane.b32.xlu0 %v2322, 120
        %v2348 = vpop.permute.xlu0 %2347
        %2349 = vrot.lane.b32.xlu0 %v2323, 120
        %v2350 = vpop.permute.xlu0 %2349
        %2351 = vrot.lane.b32.xlu0 %v2324, 120
        %v2352 = vpop.permute.xlu0 %2351
        %2353 = vrot.lane.b32.xlu0 %v2325, 120
        %v2354 = vpop.permute.xlu0 %2353
        %2355 = vrot.lane.b32.xlu0 %v2326, 120
        %v2356 = vpop.permute.xlu0 %2355
        %v2357 = vsel %vm1822, %v2338, %v2340
        %v2358 = vsel %vm1822, %v2342, %v2344
        %v2359 = vsel %vm1822, %v2346, %v2348
        %v2360 = vsel %vm1822, %v2350, %v2352
        %v2361 = vsel %vm1822, %v2354, %v2356
        %v2372 = vmax.f32 %v2317, %v2357
        %v2373 = vmax.f32 %v2318, %v2340
        %v2374 = vmax.f32 %v2319, %v2358
        %v2375 = vmax.f32 %v2320, %v2344
        %v2376 = vmax.f32 %v2321, %v2359
        %v2377 = vmax.f32 %v2322, %v2348
        %v2378 = vmax.f32 %v2323, %v2360
        %v2379 = vmax.f32 %v2324, %v2352
        %v2380 = vmax.f32 %v2325, %v2361
        %v2381 = vmax.f32 %v2326, %v2356
        %2392 = vst.sshfl [vmem:[#allocation1] sm:$0xff pattern:$0x73625140] %v2372
        %2393 = vst.sshfl [vmem:[#allocation1 + $0x8] sm:$0xff pattern:$0x73625140] %v2373
        %2394 = vst.sshfl [vmem:[#allocation1 + $0x20] sm:$0xff pattern:$0x73625140] %v2374
        %2395 = vst.sshfl [vmem:[#allocation1 + $0x28] sm:$0xff pattern:$0x73625140] %v2375
        %s2396 = scalar_lea.vmem [#allocation1], 3
        %v2397 = vld [vmem:[%s2396] ss:$4 sm:$0xff]
        %s2398 = scalar_lea.vmem [#allocation1], 32
        %v2399 = vld [vmem:[%s2398] ss:$4 sm:$0xff]
        %s2400 = scalar_lea.vmem [#allocation1], 33
        %v2401 = vld [vmem:[%s2400] ss:$4 sm:$0xff]
        %s2402 = scalar_lea.vmem [#allocation1], 34
        %v2403 = vld [vmem:[%s2402] ss:$4 sm:$0xff]
        %s2404 = scalar_lea.vmem [#allocation1], 35
        %v2405 = vld [vmem:[%s2404] ss:$4 sm:$0xff]
        %2406 = vst.sshfl [vmem:[#allocation1] sm:$0xff pattern:$0x73625140] %v2376
        %2407 = vst.sshfl [vmem:[#allocation1 + $0x8] sm:$0xff pattern:$0x73625140] %v2377
        %2408 = vst.sshfl [vmem:[#allocation1 + $0x20] sm:$0xff pattern:$0x73625140] %v2378
        %2409 = vst.sshfl [vmem:[#allocation1 + $0x28] sm:$0xff pattern:$0x73625140] %v2379
        %v2410 = vld [vmem:[#allocation1] ss:$4 sm:$0xff]
        %s2411 = scalar_lea.vmem [#allocation1], 1
        %v2412 = vld [vmem:[%s2411] ss:$4 sm:$0xff]
        %s2413 = scalar_lea.vmem [#allocation1], 2
        %v2414 = vld [vmem:[%s2413] ss:$4 sm:$0xff]
        %v2415 = vld [vmem:[%s2396] ss:$4 sm:$0xff]
        %v2416 = vld [vmem:[%s2398] ss:$4 sm:$0xff]
        %v2417 = vld [vmem:[%s2400] ss:$4 sm:$0xff]
        %v2418 = vld [vmem:[%s2402] ss:$4 sm:$0xff]
        %v2419 = vld [vmem:[%s2404] ss:$4 sm:$0xff]
        %2420 = vst.sshfl [vmem:[#allocation1] sm:$0xff pattern:$0x73625140] %v2380
        %2421 = vst.sshfl [vmem:[#allocation1 + $0x8] sm:$0xff pattern:$0x73625140] %v2381
        %v2422 = vld [vmem:[#allocation1] ss:$4 sm:$0xff]
        %2423 = vst [vmem:[#allocation1] ss:$4 sm:$0xff] %v2397
        %v2424 = vld.sshfl [vmem:[#allocation1] sm:$0xff pattern:$0x73625140]
        %v2425 = vld.sshfl [vmem:[#allocation1 + $0x8] sm:$0xff pattern:$0x73625140]
        %s2426 = scalar_lea.vmem [#allocation1], 32
        %2427 = vst [vmem:[%s2426] ss:$4 sm:$0xff] %v2399
        %v2428 = vld.sshfl [vmem:[#allocation1 + $0x20] sm:$0xff pattern:$0x73625140]
        %v2429 = vld.sshfl [vmem:[#allocation1 + $0x28] sm:$0xff pattern:$0x73625140]
        %2430 = vst [vmem:[#allocation1] ss:$4 sm:$0xff] %v2401
        %v2431 = vld.sshfl [vmem:[#allocation1] sm:$0xff pattern:$0x73625140]
        %v2432 = vld.sshfl [vmem:[#allocation1 + $0x8] sm:$0xff pattern:$0x73625140]
        %2433 = vst [vmem:[%s2426] ss:$4 sm:$0xff] %v2403
        %v2434 = vld.sshfl [vmem:[#allocation1 + $0x20] sm:$0xff pattern:$0x73625140]
        %v2435 = vld.sshfl [vmem:[#allocation1 + $0x28] sm:$0xff pattern:$0x73625140]
        %2436 = vst [vmem:[#allocation1] ss:$4 sm:$0xff] %v2405
        %v2437 = vld.sshfl [vmem:[#allocation1] sm:$0xff pattern:$0x73625140]
        %v2438 = vld.sshfl [vmem:[#allocation1 + $0x8] sm:$0xff pattern:$0x73625140]
        %2439 = vst [vmem:[%s2426] ss:$4 sm:$0xff] %v2410
        %v2440 = vld.sshfl [vmem:[#allocation1 + $0x20] sm:$0xff pattern:$0x73625140]
        %v2441 = vld.sshfl [vmem:[#allocation1 + $0x28] sm:$0xff pattern:$0x73625140]
        %2442 = vst [vmem:[#allocation1] ss:$4 sm:$0xff] %v2412
        %v2443 = vld.sshfl [vmem:[#allocation1] sm:$0xff pattern:$0x73625140]
        %v2444 = vld.sshfl [vmem:[#allocation1 + $0x8] sm:$0xff pattern:$0x73625140]
        %2445 = vst [vmem:[%s2426] ss:$4 sm:$0xff] %v2414
        %v2446 = vld.sshfl [vmem:[#allocation1 + $0x20] sm:$0xff pattern:$0x73625140]
        %v2447 = vld.sshfl [vmem:[#allocation1 + $0x28] sm:$0xff pattern:$0x73625140]
        %2448 = vst [vmem:[#allocation1] ss:$4 sm:$0xff] %v2415
        %v2449 = vld.sshfl [vmem:[#allocation1] sm:$0xff pattern:$0x73625140]
        %v2450 = vld.sshfl [vmem:[#allocation1 + $0x8] sm:$0xff pattern:$0x73625140]
        %2451 = vst [vmem:[%s2426] ss:$4 sm:$0xff] %v2416
        %v2452 = vld.sshfl [vmem:[#allocation1 + $0x20] sm:$0xff pattern:$0x73625140]
        %v2453 = vld.sshfl [vmem:[#allocation1 + $0x28] sm:$0xff pattern:$0x73625140]
        %2454 = vst [vmem:[#allocation1] ss:$4 sm:$0xff] %v2417
        %v2455 = vld.sshfl [vmem:[#allocation1] sm:$0xff pattern:$0x73625140]
        %v2456 = vld.sshfl [vmem:[#allocation1 + $0x8] sm:$0xff pattern:$0x73625140]
        %2457 = vst [vmem:[%s2426] ss:$4 sm:$0xff] %v2418
        %v2458 = vld.sshfl [vmem:[#allocation1 + $0x20] sm:$0xff pattern:$0x73625140]
        %v2459 = vld.sshfl [vmem:[#allocation1 + $0x28] sm:$0xff pattern:$0x73625140]
        %2460 = vst [vmem:[#allocation1] ss:$4 sm:$0xff] %v2419
        %v2461 = vld.sshfl [vmem:[#allocation1] sm:$0xff pattern:$0x73625140]
        %v2462 = vld.sshfl [vmem:[#allocation1 + $0x8] sm:$0xff pattern:$0x73625140]
        %2463 = vst [vmem:[%s2426] ss:$4 sm:$0xff] %v2422
        %v2464 = vld.sshfl [vmem:[#allocation1 + $0x20] sm:$0xff pattern:$0x73625140]
        %v2465 = vld.sshfl [vmem:[#allocation1 + $0x28] sm:$0xff pattern:$0x73625140]
        %v2494 = vsel %vm1855, %v2424, -inf
        %v2495 = vrot.slane %v2494, 4
        %v2496 = vmax.f32 %v2494, %v2495
        %v2497 = vrot.slane %v2496, 2
        %v2498 = vmax.f32 %v2496, %v2497
        %v2499 = vrot.slane %v2498, 1
        %v2500 = vmax.f32 %v2498, %v2499
        %v2501 = vsel %vm1961, %v2425, -inf
        %v2502 = vrot.slane %v2501, 4
        %v2503 = vmax.f32 %v2501, %v2502
        %v2504 = vrot.slane %v2503, 2
        %v2505 = vmax.f32 %v2503, %v2504
        %v2506 = vrot.slane %v2505, 1
        %v2507 = vmax.f32 %v2505, %v2506
        %v2508 = vsel %vm1855, %v2428, -inf
        %v2509 = vrot.slane %v2508, 4
        %v2510 = vmax.f32 %v2508, %v2509
        %v2511 = vrot.slane %v2510, 2
        %v2512 = vmax.f32 %v2510, %v2511
        %v2513 = vrot.slane %v2512, 1
        %v2514 = vmax.f32 %v2512, %v2513
        %v2515 = vsel %vm1961, %v2429, -inf
        %v2516 = vrot.slane %v2515, 4
        %v2517 = vmax.f32 %v2515, %v2516
        %v2518 = vrot.slane %v2517, 2
        %v2519 = vmax.f32 %v2517, %v2518
        %v2520 = vrot.slane %v2519, 1
        %v2521 = vmax.f32 %v2519, %v2520
        %v2522 = vsel %vm1855, %v2431, -inf
        %v2523 = vrot.slane %v2522, 4
        %v2524 = vmax.f32 %v2522, %v2523
        %v2525 = vrot.slane %v2524, 2
        %v2526 = vmax.f32 %v2524, %v2525
        %v2527 = vrot.slane %v2526, 1
        %v2528 = vmax.f32 %v2526, %v2527
        %v2529 = vsel %vm1961, %v2432, -inf
        %v2530 = vrot.slane %v2529, 4
        %v2531 = vmax.f32 %v2529, %v2530
        %v2532 = vrot.slane %v2531, 2
        %v2533 = vmax.f32 %v2531, %v2532
        %v2534 = vrot.slane %v2533, 1
        %v2535 = vmax.f32 %v2533, %v2534
        %v2536 = vsel %vm1855, %v2434, -inf
        %v2537 = vrot.slane %v2536, 4
        %v2538 = vmax.f32 %v2536, %v2537
        %v2539 = vrot.slane %v2538, 2
        %v2540 = vmax.f32 %v2538, %v2539
        %v2541 = vrot.slane %v2540, 1
        %v2542 = vmax.f32 %v2540, %v2541
        %v2543 = vsel %vm1961, %v2435, -inf
        %v2544 = vrot.slane %v2543, 4
        %v2545 = vmax.f32 %v2543, %v2544
        %v2546 = vrot.slane %v2545, 2
        %v2547 = vmax.f32 %v2545, %v2546
        %v2548 = vrot.slane %v2547, 1
        %v2549 = vmax.f32 %v2547, %v2548
        %v2550 = vsel %vm1855, %v2437, -inf
        %v2551 = vrot.slane %v2550, 4
        %v2552 = vmax.f32 %v2550, %v2551
        %v2553 = vrot.slane %v2552, 2
        %v2554 = vmax.f32 %v2552, %v2553
        %v2555 = vrot.slane %v2554, 1
        %v2556 = vmax.f32 %v2554, %v2555
        %v2557 = vsel %vm1961, %v2438, -inf
        %v2558 = vrot.slane %v2557, 4
        %v2559 = vmax.f32 %v2557, %v2558
        %v2560 = vrot.slane %v2559, 2
        %v2561 = vmax.f32 %v2559, %v2560
        %v2562 = vrot.slane %v2561, 1
        %v2563 = vmax.f32 %v2561, %v2562
        %v2564 = vsel %vm1855, %v2440, -inf
        %v2565 = vrot.slane %v2564, 4
        %v2566 = vmax.f32 %v2564, %v2565
        %v2567 = vrot.slane %v2566, 2
        %v2568 = vmax.f32 %v2566, %v2567
        %v2569 = vrot.slane %v2568, 1
        %v2570 = vmax.f32 %v2568, %v2569
        %v2571 = vsel %vm1961, %v2441, -inf
        %v2572 = vrot.slane %v2571, 4
        %v2573 = vmax.f32 %v2571, %v2572
        %v2574 = vrot.slane %v2573, 2
        %v2575 = vmax.f32 %v2573, %v2574
        %v2576 = vrot.slane %v2575, 1
        %v2577 = vmax.f32 %v2575, %v2576
        %v2578 = vsel %vm1855, %v2443, -inf
        %v2579 = vrot.slane %v2578, 4
        %v2580 = vmax.f32 %v2578, %v2579
        %v2581 = vrot.slane %v2580, 2
        %v2582 = vmax.f32 %v2580, %v2581
        %v2583 = vrot.slane %v2582, 1
        %v2584 = vmax.f32 %v2582, %v2583
        %v2585 = vsel %vm1961, %v2444, -inf
        %v2586 = vrot.slane %v2585, 4
        %v2587 = vmax.f32 %v2585, %v2586
        %v2588 = vrot.slane %v2587, 2
        %v2589 = vmax.f32 %v2587, %v2588
        %v2590 = vrot.slane %v2589, 1
        %v2591 = vmax.f32 %v2589, %v2590
        %v2592 = vsel %vm1855, %v2446, -inf
        %v2593 = vrot.slane %v2592, 4
        %v2594 = vmax.f32 %v2592, %v2593
        %v2595 = vrot.slane %v2594, 2
        %v2596 = vmax.f32 %v2594, %v2595
        %v2597 = vrot.slane %v2596, 1
        %v2598 = vmax.f32 %v2596, %v2597
        %v2599 = vsel %vm1961, %v2447, -inf
        %v2600 = vrot.slane %v2599, 4
        %v2601 = vmax.f32 %v2599, %v2600
        %v2602 = vrot.slane %v2601, 2
        %v2603 = vmax.f32 %v2601, %v2602
        %v2604 = vrot.slane %v2603, 1
        %v2605 = vmax.f32 %v2603, %v2604
        %v2606 = vsel %vm1855, %v2449, -inf
        %v2607 = vrot.slane %v2606, 4
        %v2608 = vmax.f32 %v2606, %v2607
        %v2609 = vrot.slane %v2608, 2
        %v2610 = vmax.f32 %v2608, %v2609
        %v2611 = vrot.slane %v2610, 1
        %v2612 = vmax.f32 %v2610, %v2611
        %v2613 = vsel %vm1961, %v2450, -inf
        %v2614 = vrot.slane %v2613, 4
        %v2615 = vmax.f32 %v2613, %v2614
        %v2616 = vrot.slane %v2615, 2
        %v2617 = vmax.f32 %v2615, %v2616
        %v2618 = vrot.slane %v2617, 1
        %v2619 = vmax.f32 %v2617, %v2618
        %v2620 = vsel %vm1855, %v2452, -inf
        %v2621 = vrot.slane %v2620, 4
        %v2622 = vmax.f32 %v2620, %v2621
        %v2623 = vrot.slane %v2622, 2
        %v2624 = vmax.f32 %v2622, %v2623
        %v2625 = vrot.slane %v2624, 1
        %v2626 = vmax.f32 %v2624, %v2625
        %v2627 = vsel %vm1961, %v2453, -inf
        %v2628 = vrot.slane %v2627, 4
        %v2629 = vmax.f32 %v2627, %v2628
        %v2630 = vrot.slane %v2629, 2
        %v2631 = vmax.f32 %v2629, %v2630
        %v2632 = vrot.slane %v2631, 1
        %v2633 = vmax.f32 %v2631, %v2632
        %v2634 = vsel %vm1855, %v2455, -inf
        %v2635 = vrot.slane %v2634, 4
        %v2636 = vmax.f32 %v2634, %v2635
        %v2637 = vrot.slane %v2636, 2
        %v2638 = vmax.f32 %v2636, %v2637
        %v2639 = vrot.slane %v2638, 1
        %v2640 = vmax.f32 %v2638, %v2639
        %v2641 = vsel %vm1961, %v2456, -inf
        %v2642 = vrot.slane %v2641, 4
        %v2643 = vmax.f32 %v2641, %v2642
        %v2644 = vrot.slane %v2643, 2
        %v2645 = vmax.f32 %v2643, %v2644
        %v2646 = vrot.slane %v2645, 1
        %v2647 = vmax.f32 %v2645, %v2646
        %v2648 = vsel %vm1855, %v2458, -inf
        %v2649 = vrot.slane %v2648, 4
        %v2650 = vmax.f32 %v2648, %v2649
        %v2651 = vrot.slane %v2650, 2
        %v2652 = vmax.f32 %v2650, %v2651
        %v2653 = vrot.slane %v2652, 1
        %v2654 = vmax.f32 %v2652, %v2653
        %v2655 = vsel %vm1961, %v2459, -inf
        %v2656 = vrot.slane %v2655, 4
        %v2657 = vmax.f32 %v2655, %v2656
        %v2658 = vrot.slane %v2657, 2
        %v2659 = vmax.f32 %v2657, %v2658
        %v2660 = vrot.slane %v2659, 1
        %v2661 = vmax.f32 %v2659, %v2660
        %v2662 = vsel %vm1855, %v2461, -inf
        %v2663 = vrot.slane %v2662, 4
        %v2664 = vmax.f32 %v2662, %v2663
        %v2665 = vrot.slane %v2664, 2
        %v2666 = vmax.f32 %v2664, %v2665
        %v2667 = vrot.slane %v2666, 1
        %v2668 = vmax.f32 %v2666, %v2667
        %v2669 = vsel %vm1961, %v2462, -inf
        %v2670 = vrot.slane %v2669, 4
        %v2671 = vmax.f32 %v2669, %v2670
        %v2672 = vrot.slane %v2671, 2
        %v2673 = vmax.f32 %v2671, %v2672
        %v2674 = vrot.slane %v2673, 1
        %v2675 = vmax.f32 %v2673, %v2674
        %v2676 = vsel %vm1855, %v2464, -inf
        %v2677 = vrot.slane %v2676, 4
        %v2678 = vmax.f32 %v2676, %v2677
        %v2679 = vrot.slane %v2678, 2
        %v2680 = vmax.f32 %v2678, %v2679
        %v2681 = vrot.slane %v2680, 1
        %v2682 = vmax.f32 %v2680, %v2681
        %v2683 = vsel %vm1961, %v2465, -inf
        %v2684 = vrot.slane %v2683, 4
        %v2685 = vmax.f32 %v2683, %v2684
        %v2686 = vrot.slane %v2685, 2
        %v2687 = vmax.f32 %v2685, %v2686
        %v2688 = vrot.slane %v2687, 1
        %v2689 = vmax.f32 %v2687, %v2688
        %v2690 = vld [vmem:[%s2] sm:$0x3]
        %v2692 = vperm.slane %v2690, 0
        %v2693 = vperm.slane %v2690, 1
        %v2696 = vadd.f32 %v2500, %v2692
        %v2697 = vadd.f32 %v2507, %v2693
        %v2698 = vadd.f32 %v2514, %v2692
        %v2699 = vadd.f32 %v2521, %v2693
        %v2700 = vadd.f32 %v2528, %v2692
        %v2701 = vadd.f32 %v2535, %v2693
        %v2702 = vadd.f32 %v2542, %v2692
        %v2703 = vadd.f32 %v2549, %v2693
        %v2704 = vadd.f32 %v2556, %v2692
        %v2705 = vadd.f32 %v2563, %v2693
        %v2706 = vadd.f32 %v2570, %v2692
        %v2707 = vadd.f32 %v2577, %v2693
        %v2708 = vadd.f32 %v2584, %v2692
        %v2709 = vadd.f32 %v2591, %v2693
        %v2710 = vadd.f32 %v2598, %v2692
        %v2711 = vadd.f32 %v2605, %v2693
        %v2712 = vadd.f32 %v2612, %v2692
        %v2713 = vadd.f32 %v2619, %v2693
        %v2714 = vadd.f32 %v2626, %v2692
        %v2715 = vadd.f32 %v2633, %v2693
        %v2716 = vadd.f32 %v2640, %v2692
        %v2717 = vadd.f32 %v2647, %v2693
        %v2718 = vadd.f32 %v2654, %v2692
        %v2719 = vadd.f32 %v2661, %v2693
        %v2720 = vadd.f32 %v2668, %v2692
        %v2721 = vadd.f32 %v2675, %v2693
        %v2722 = vadd.f32 %v2682, %v2692
        %v2723 = vadd.f32 %v2689, %v2693
        %v2724 = vmax.f32 %v2696, 0.0
        %v2725 = vmax.f32 %v2697, 0.0
        %v2726 = vmax.f32 %v2698, 0.0
        %v2727 = vmax.f32 %v2699, 0.0
        %v2728 = vmax.f32 %v2700, 0.0
        %v2729 = vmax.f32 %v2701, 0.0
        %v2730 = vmax.f32 %v2702, 0.0
        %v2731 = vmax.f32 %v2703, 0.0
        %v2732 = vmax.f32 %v2704, 0.0
        %v2733 = vmax.f32 %v2705, 0.0
        %v2734 = vmax.f32 %v2706, 0.0
        %v2735 = vmax.f32 %v2707, 0.0
        %v2736 = vmax.f32 %v2708, 0.0
        %v2737 = vmax.f32 %v2709, 0.0
        %v2738 = vmax.f32 %v2710, 0.0
        %v2739 = vmax.f32 %v2711, 0.0
        %v2740 = vmax.f32 %v2712, 0.0
        %v2741 = vmax.f32 %v2713, 0.0
        %v2742 = vmax.f32 %v2714, 0.0
        %v2743 = vmax.f32 %v2715, 0.0
        %v2744 = vmax.f32 %v2716, 0.0
        %v2745 = vmax.f32 %v2717, 0.0
        %v2746 = vmax.f32 %v2718, 0.0
        %v2747 = vmax.f32 %v2719, 0.0
        %v2748 = vmax.f32 %v2720, 0.0
        %v2749 = vmax.f32 %v2721, 0.0
        %v2750 = vmax.f32 %v2722, 0.0
        %v2751 = vmax.f32 %v2723, 0.0
        %s2752 = scalar_lea.vmem [#allocation3], 32
        %2753 = vst.msk [vmem:[%s2752] ss:$8 sm:$0x3] %vm2216, 0.0
        %2754 = vst.msk [vmem:[%s2752] ss:$8 sm:$0x0] %vm2216, 0.0
        %s2755 = scalar_lea.vmem [#allocation3], 55
        %2756 = vst.msk [vmem:[%s2755] ss:$8 sm:$0x3] %vm2216, 0.0
        %2757 = vst.msk [vmem:[%s2755] ss:$8 sm:$0x0] %vm2216, 0.0
        %v2786 = vrot.slane %v2724, 7
        %v2787 = vrot.slane %v2726, 6
        %v2788 = vsel %vm2252, %v2787, %v2786
        %v2789 = vrot.slane %v2728, 5
        %v2790 = vsel %vm2255, %v2789, %v2788
        %v2791 = vrot.slane %v2730, 4
        %v2792 = vsel %vm2258, %v2791, %v2790
        %v2793 = vrot.slane %v2732, 3
        %v2794 = vsel %vm2261, %v2793, %v2792
        %v2795 = vrot.slane %v2734, 2
        %v2796 = vsel %vm2264, %v2795, %v2794
        %v2797 = vrot.slane %v2736, 1
        %v2798 = vsel %vm2267, %v2797, %v2796
        %v2799 = vrot.slane %v2725, 7
        %v2800 = vrot.slane %v2727, 6
        %v2801 = vsel %vm2252, %v2800, %v2799
        %v2802 = vrot.slane %v2729, 5
        %v2803 = vsel %vm2255, %v2802, %v2801
        %v2804 = vrot.slane %v2731, 4
        %v2805 = vsel %vm2258, %v2804, %v2803
        %v2806 = vrot.slane %v2733, 3
        %v2807 = vsel %vm2261, %v2806, %v2805
        %v2808 = vrot.slane %v2735, 2
        %v2809 = vsel %vm2264, %v2808, %v2807
        %v2810 = vrot.slane %v2737, 1
        %v2811 = vsel %vm2267, %v2810, %v2809
        %v2812 = vrot.slane %v2740, 7
        %v2813 = vsel %vm2283, %v2812, %v2738
        %v2814 = vrot.slane %v2742, 6
        %v2815 = vsel %vm2252, %v2814, %v2813
        %v2816 = vrot.slane %v2744, 5
        %v2817 = vsel %vm2255, %v2816, %v2815
        %v2818 = vrot.slane %v2746, 4
        %v2819 = vsel %vm2258, %v2818, %v2817
        %v2820 = vrot.slane %v2748, 3
        %v2821 = vsel %vm2261, %v2820, %v2819
        %v2822 = vrot.slane %v2750, 2
        %v2823 = vsel %vm2264, %v2822, %v2821
        %v2824 = vrot.slane %v2741, 7
        %v2825 = vsel %vm2283, %v2824, %v2739
        %v2826 = vrot.slane %v2743, 6
        %v2827 = vsel %vm2252, %v2826, %v2825
        %v2828 = vrot.slane %v2745, 5
        %v2829 = vsel %vm2255, %v2828, %v2827
        %v2830 = vrot.slane %v2747, 4
        %v2831 = vsel %vm2258, %v2830, %v2829
        %v2832 = vrot.slane %v2749, 3
        %v2833 = vsel %vm2261, %v2832, %v2831
        %v2834 = vrot.slane %v2751, 2
        %v2835 = vsel %vm2264, %v2834, %v2833
        %2840 = vst [vmem:[#allocation3 + $0x20] sm:$0xfe] %v2798
        %2841 = vst.msk [vmem:[#allocation3 + $0x28] sm:$0xfe] %vm2312, %v2811
        %2842 = vst [vmem:[#allocation3 + $0x30] sm:$0x7f] %v2823
        %2843 = vst.msk [vmem:[#allocation3 + $0x38] sm:$0x7f] %vm2315, %v2835
        %v2844 = vld [vmem:[#allocation2 + $0x70] sm:$0xf0]
        %v2845 = vld [vmem:[#allocation2 + $0x78] sm:$0xf0]
        %v2846 = vld [vmem:[#allocation2 + $0x80] sm:$0xff]
        %v2847 = vld [vmem:[#allocation2 + $0x88] sm:$0xff]
        %v2848 = vld [vmem:[#allocation2 + $0x90] sm:$0xff]
        %v2849 = vld [vmem:[#allocation2 + $0x98] sm:$0xff]
        %v2850 = vld [vmem:[#allocation2 + $0xa0] sm:$0xff]
        %v2851 = vld [vmem:[#allocation2 + $0xa8] sm:$0xff]
        %2860 = vrot.lane.b32.xlu0 %v2844, 120
        %v2861 = vpop.permute.xlu0 %2860
        %2862 = vrot.lane.b32.xlu0 %v2845, 120
        %v2863 = vpop.permute.xlu0 %2862
        %2864 = vrot.lane.b32.xlu0 %v2846, 120
        %v2865 = vpop.permute.xlu0 %2864
        %2866 = vrot.lane.b32.xlu0 %v2847, 120
        %v2867 = vpop.permute.xlu0 %2866
        %2868 = vrot.lane.b32.xlu0 %v2848, 120
        %v2869 = vpop.permute.xlu0 %2868
        %2870 = vrot.lane.b32.xlu0 %v2849, 120
        %v2871 = vpop.permute.xlu0 %2870
        %2872 = vrot.lane.b32.xlu0 %v2850, 120
        %v2873 = vpop.permute.xlu0 %2872
        %2874 = vrot.lane.b32.xlu0 %v2851, 120
        %v2875 = vpop.permute.xlu0 %2874
        %v2876 = vsel %vm1822, %v2861, %v2863
        %v2877 = vsel %vm1822, %v2865, %v2867
        %v2878 = vsel %vm1822, %v2869, %v2871
        %v2879 = vsel %vm1822, %v2873, %v2875
        %v2888 = vmax.f32 %v2844, %v2876
        %v2889 = vmax.f32 %v2845, %v2863
        %v2890 = vmax.f32 %v2846, %v2877
        %v2891 = vmax.f32 %v2847, %v2867
        %v2892 = vmax.f32 %v2848, %v2878
        %v2893 = vmax.f32 %v2849, %v2871
        %v2894 = vmax.f32 %v2850, %v2879
        %v2895 = vmax.f32 %v2851, %v2875
        %2904 = vst.sshfl [vmem:[#allocation1] sm:$0xff pattern:$0x73625140] %v2888
        %2905 = vst.sshfl [vmem:[#allocation1 + $0x8] sm:$0xff pattern:$0x73625140] %v2889
        %2906 = vst.sshfl [vmem:[#allocation1 + $0x20] sm:$0xff pattern:$0x73625140] %v2890
        %2907 = vst.sshfl [vmem:[#allocation1 + $0x28] sm:$0xff pattern:$0x73625140] %v2891
        %s2908 = scalar_lea.vmem [#allocation1], 2
        %v2909 = vld [vmem:[%s2908] ss:$4 sm:$0xff]
        %s2910 = scalar_lea.vmem [#allocation1], 3
        %v2911 = vld [vmem:[%s2910] ss:$4 sm:$0xff]
        %s2912 = scalar_lea.vmem [#allocation1], 32
        %v2913 = vld [vmem:[%s2912] ss:$4 sm:$0xff]
        %s2914 = scalar_lea.vmem [#allocation1], 33
        %v2915 = vld [vmem:[%s2914] ss:$4 sm:$0xff]
        %s2916 = scalar_lea.vmem [#allocation1], 34
        %v2917 = vld [vmem:[%s2916] ss:$4 sm:$0xff]
        %s2918 = scalar_lea.vmem [#allocation1], 35
        %v2919 = vld [vmem:[%s2918] ss:$4 sm:$0xff]
        %2920 = vst.sshfl [vmem:[#allocation1] sm:$0xff pattern:$0x73625140] %v2892
        %2921 = vst.sshfl [vmem:[#allocation1 + $0x8] sm:$0xff pattern:$0x73625140] %v2893
        %2922 = vst.sshfl [vmem:[#allocation1 + $0x20] sm:$0xff pattern:$0x73625140] %v2894
        %2923 = vst.sshfl [vmem:[#allocation1 + $0x28] sm:$0xff pattern:$0x73625140] %v2895
        %v2924 = vld [vmem:[#allocation1] ss:$4 sm:$0xff]
        %s2925 = scalar_lea.vmem [#allocation1], 1
        %v2926 = vld [vmem:[%s2925] ss:$4 sm:$0xff]
        %v2927 = vld [vmem:[%s2908] ss:$4 sm:$0xff]
        %v2928 = vld [vmem:[%s2910] ss:$4 sm:$0xff]
        %v2929 = vld [vmem:[%s2912] ss:$4 sm:$0xff]
        %v2930 = vld [vmem:[%s2914] ss:$4 sm:$0xff]
        %v2931 = vld [vmem:[%s2916] ss:$4 sm:$0xff]
        %v2932 = vld [vmem:[%s2918] ss:$4 sm:$0xff]
        %2933 = vst [vmem:[#allocation1] ss:$4 sm:$0xff] %v2909
        %v2934 = vld.sshfl [vmem:[#allocation1] sm:$0xff pattern:$0x73625140]
        %v2935 = vld.sshfl [vmem:[#allocation1 + $0x8] sm:$0xff pattern:$0x73625140]
        %s2936 = scalar_lea.vmem [#allocation1], 32
        %2937 = vst [vmem:[%s2936] ss:$4 sm:$0xff] %v2911
        %v2938 = vld.sshfl [vmem:[#allocation1 + $0x20] sm:$0xff pattern:$0x73625140]
        %v2939 = vld.sshfl [vmem:[#allocation1 + $0x28] sm:$0xff pattern:$0x73625140]
        %2940 = vst [vmem:[#allocation1] ss:$4 sm:$0xff] %v2913
        %v2941 = vld.sshfl [vmem:[#allocation1] sm:$0xff pattern:$0x73625140]
        %v2942 = vld.sshfl [vmem:[#allocation1 + $0x8] sm:$0xff pattern:$0x73625140]
        %2943 = vst [vmem:[%s2936] ss:$4 sm:$0xff] %v2915
        %v2944 = vld.sshfl [vmem:[#allocation1 + $0x20] sm:$0xff pattern:$0x73625140]
        %v2945 = vld.sshfl [vmem:[#allocation1 + $0x28] sm:$0xff pattern:$0x73625140]
        %2946 = vst [vmem:[#allocation1] ss:$4 sm:$0xff] %v2917
        %v2947 = vld.sshfl [vmem:[#allocation1] sm:$0xff pattern:$0x73625140]
        %v2948 = vld.sshfl [vmem:[#allocation1 + $0x8] sm:$0xff pattern:$0x73625140]
        %2949 = vst [vmem:[%s2936] ss:$4 sm:$0xff] %v2919
        %v2950 = vld.sshfl [vmem:[#allocation1 + $0x20] sm:$0xff pattern:$0x73625140]
        %v2951 = vld.sshfl [vmem:[#allocation1 + $0x28] sm:$0xff pattern:$0x73625140]
        %2952 = vst [vmem:[#allocation1] ss:$4 sm:$0xff] %v2924
        %v2953 = vld.sshfl [vmem:[#allocation1] sm:$0xff pattern:$0x73625140]
        %v2954 = vld.sshfl [vmem:[#allocation1 + $0x8] sm:$0xff pattern:$0x73625140]
        %2955 = vst [vmem:[%s2936] ss:$4 sm:$0xff] %v2926
        %v2956 = vld.sshfl [vmem:[#allocation1 + $0x20] sm:$0xff pattern:$0x73625140]
        %v2957 = vld.sshfl [vmem:[#allocation1 + $0x28] sm:$0xff pattern:$0x73625140]
        %2958 = vst [vmem:[#allocation1] ss:$4 sm:$0xff] %v2927
        %v2959 = vld.sshfl [vmem:[#allocation1] sm:$0xff pattern:$0x73625140]
        %v2960 = vld.sshfl [vmem:[#allocation1 + $0x8] sm:$0xff pattern:$0x73625140]
        %2961 = vst [vmem:[%s2936] ss:$4 sm:$0xff] %v2928
        %v2962 = vld.sshfl [vmem:[#allocation1 + $0x20] sm:$0xff pattern:$0x73625140]
        %v2963 = vld.sshfl [vmem:[#allocation1 + $0x28] sm:$0xff pattern:$0x73625140]
        %2964 = vst [vmem:[#allocation1] ss:$4 sm:$0xff] %v2929
        %v2965 = vld.sshfl [vmem:[#allocation1] sm:$0xff pattern:$0x73625140]
        %v2966 = vld.sshfl [vmem:[#allocation1 + $0x8] sm:$0xff pattern:$0x73625140]
        %2967 = vst [vmem:[%s2936] ss:$4 sm:$0xff] %v2930
        %v2968 = vld.sshfl [vmem:[#allocation1 + $0x20] sm:$0xff pattern:$0x73625140]
        %v2969 = vld.sshfl [vmem:[#allocation1 + $0x28] sm:$0xff pattern:$0x73625140]
        %2970 = vst [vmem:[#allocation1] ss:$4 sm:$0xff] %v2931
        %v2971 = vld.sshfl [vmem:[#allocation1] sm:$0xff pattern:$0x73625140]
        %v2972 = vld.sshfl [vmem:[#allocation1 + $0x8] sm:$0xff pattern:$0x73625140]
        %2973 = vst [vmem:[%s2936] ss:$4 sm:$0xff] %v2932
        %v2974 = vld.sshfl [vmem:[#allocation1 + $0x20] sm:$0xff pattern:$0x73625140]
        %v2975 = vld.sshfl [vmem:[#allocation1 + $0x28] sm:$0xff pattern:$0x73625140]
        %v3004 = vsel %vm1855, %v2934, -inf
        %v3005 = vrot.slane %v3004, 4
        %v3006 = vmax.f32 %v3004, %v3005
        %v3007 = vrot.slane %v3006, 2
        %v3008 = vmax.f32 %v3006, %v3007
        %v3009 = vrot.slane %v3008, 1
        %v3010 = vmax.f32 %v3008, %v3009
        %v3011 = vsel %vm1961, %v2935, -inf
        %v3012 = vrot.slane %v3011, 4
        %v3013 = vmax.f32 %v3011, %v3012
        %v3014 = vrot.slane %v3013, 2
        %v3015 = vmax.f32 %v3013, %v3014
        %v3016 = vrot.slane %v3015, 1
        %v3017 = vmax.f32 %v3015, %v3016
        %v3018 = vsel %vm1855, %v2938, -inf
        %v3019 = vrot.slane %v3018, 4
        %v3020 = vmax.f32 %v3018, %v3019
        %v3021 = vrot.slane %v3020, 2
        %v3022 = vmax.f32 %v3020, %v3021
        %v3023 = vrot.slane %v3022, 1
        %v3024 = vmax.f32 %v3022, %v3023
        %v3025 = vsel %vm1961, %v2939, -inf
        %v3026 = vrot.slane %v3025, 4
        %v3027 = vmax.f32 %v3025, %v3026
        %v3028 = vrot.slane %v3027, 2
        %v3029 = vmax.f32 %v3027, %v3028
        %v3030 = vrot.slane %v3029, 1
        %v3031 = vmax.f32 %v3029, %v3030
        %v3032 = vsel %vm1855, %v2941, -inf
        %v3033 = vrot.slane %v3032, 4
        %v3034 = vmax.f32 %v3032, %v3033
        %v3035 = vrot.slane %v3034, 2
        %v3036 = vmax.f32 %v3034, %v3035
        %v3037 = vrot.slane %v3036, 1
        %v3038 = vmax.f32 %v3036, %v3037
        %v3039 = vsel %vm1961, %v2942, -inf
        %v3040 = vrot.slane %v3039, 4
        %v3041 = vmax.f32 %v3039, %v3040
        %v3042 = vrot.slane %v3041, 2
        %v3043 = vmax.f32 %v3041, %v3042
        %v3044 = vrot.slane %v3043, 1
        %v3045 = vmax.f32 %v3043, %v3044
        %v3046 = vsel %vm1855, %v2944, -inf
        %v3047 = vrot.slane %v3046, 4
        %v3048 = vmax.f32 %v3046, %v3047
        %v3049 = vrot.slane %v3048, 2
        %v3050 = vmax.f32 %v3048, %v3049
        %v3051 = vrot.slane %v3050, 1
        %v3052 = vmax.f32 %v3050, %v3051
        %v3053 = vsel %vm1961, %v2945, -inf
        %v3054 = vrot.slane %v3053, 4
        %v3055 = vmax.f32 %v3053, %v3054
        %v3056 = vrot.slane %v3055, 2
        %v3057 = vmax.f32 %v3055, %v3056
        %v3058 = vrot.slane %v3057, 1
        %v3059 = vmax.f32 %v3057, %v3058
        %v3060 = vsel %vm1855, %v2947, -inf
        %v3061 = vrot.slane %v3060, 4
        %v3062 = vmax.f32 %v3060, %v3061
        %v3063 = vrot.slane %v3062, 2
        %v3064 = vmax.f32 %v3062, %v3063
        %v3065 = vrot.slane %v3064, 1
        %v3066 = vmax.f32 %v3064, %v3065
        %v3067 = vsel %vm1961, %v2948, -inf
        %v3068 = vrot.slane %v3067, 4
        %v3069 = vmax.f32 %v3067, %v3068
        %v3070 = vrot.slane %v3069, 2
        %v3071 = vmax.f32 %v3069, %v3070
        %v3072 = vrot.slane %v3071, 1
        %v3073 = vmax.f32 %v3071, %v3072
        %v3074 = vsel %vm1855, %v2950, -inf
        %v3075 = vrot.slane %v3074, 4
        %v3076 = vmax.f32 %v3074, %v3075
        %v3077 = vrot.slane %v3076, 2
        %v3078 = vmax.f32 %v3076, %v3077
        %v3079 = vrot.slane %v3078, 1
        %v3080 = vmax.f32 %v3078, %v3079
        %v3081 = vsel %vm1961, %v2951, -inf
        %v3082 = vrot.slane %v3081, 4
        %v3083 = vmax.f32 %v3081, %v3082
        %v3084 = vrot.slane %v3083, 2
        %v3085 = vmax.f32 %v3083, %v3084
        %v3086 = vrot.slane %v3085, 1
        %v3087 = vmax.f32 %v3085, %v3086
        %v3088 = vsel %vm1855, %v2953, -inf
        %v3089 = vrot.slane %v3088, 4
        %v3090 = vmax.f32 %v3088, %v3089
        %v3091 = vrot.slane %v3090, 2
        %v3092 = vmax.f32 %v3090, %v3091
        %v3093 = vrot.slane %v3092, 1
        %v3094 = vmax.f32 %v3092, %v3093
        %v3095 = vsel %vm1961, %v2954, -inf
        %v3096 = vrot.slane %v3095, 4
        %v3097 = vmax.f32 %v3095, %v3096
        %v3098 = vrot.slane %v3097, 2
        %v3099 = vmax.f32 %v3097, %v3098
        %v3100 = vrot.slane %v3099, 1
        %v3101 = vmax.f32 %v3099, %v3100
        %v3102 = vsel %vm1855, %v2956, -inf
        %v3103 = vrot.slane %v3102, 4
        %v3104 = vmax.f32 %v3102, %v3103
        %v3105 = vrot.slane %v3104, 2
        %v3106 = vmax.f32 %v3104, %v3105
        %v3107 = vrot.slane %v3106, 1
        %v3108 = vmax.f32 %v3106, %v3107
        %v3109 = vsel %vm1961, %v2957, -inf
        %v3110 = vrot.slane %v3109, 4
        %v3111 = vmax.f32 %v3109, %v3110
        %v3112 = vrot.slane %v3111, 2
        %v3113 = vmax.f32 %v3111, %v3112
        %v3114 = vrot.slane %v3113, 1
        %v3115 = vmax.f32 %v3113, %v3114
        %v3116 = vsel %vm1855, %v2959, -inf
        %v3117 = vrot.slane %v3116, 4
        %v3118 = vmax.f32 %v3116, %v3117
        %v3119 = vrot.slane %v3118, 2
        %v3120 = vmax.f32 %v3118, %v3119
        %v3121 = vrot.slane %v3120, 1
        %v3122 = vmax.f32 %v3120, %v3121
        %v3123 = vsel %vm1961, %v2960, -inf
        %v3124 = vrot.slane %v3123, 4
        %v3125 = vmax.f32 %v3123, %v3124
        %v3126 = vrot.slane %v3125, 2
        %v3127 = vmax.f32 %v3125, %v3126
        %v3128 = vrot.slane %v3127, 1
        %v3129 = vmax.f32 %v3127, %v3128
        %v3130 = vsel %vm1855, %v2962, -inf
        %v3131 = vrot.slane %v3130, 4
        %v3132 = vmax.f32 %v3130, %v3131
        %v3133 = vrot.slane %v3132, 2
        %v3134 = vmax.f32 %v3132, %v3133
        %v3135 = vrot.slane %v3134, 1
        %v3136 = vmax.f32 %v3134, %v3135
        %v3137 = vsel %vm1961, %v2963, -inf
        %v3138 = vrot.slane %v3137, 4
        %v3139 = vmax.f32 %v3137, %v3138
        %v3140 = vrot.slane %v3139, 2
        %v3141 = vmax.f32 %v3139, %v3140
        %v3142 = vrot.slane %v3141, 1
        %v3143 = vmax.f32 %v3141, %v3142
        %v3144 = vsel %vm1855, %v2965, -inf
        %v3145 = vrot.slane %v3144, 4
        %v3146 = vmax.f32 %v3144, %v3145
        %v3147 = vrot.slane %v3146, 2
        %v3148 = vmax.f32 %v3146, %v3147
        %v3149 = vrot.slane %v3148, 1
        %v3150 = vmax.f32 %v3148, %v3149
        %v3151 = vsel %vm1961, %v2966, -inf
        %v3152 = vrot.slane %v3151, 4
        %v3153 = vmax.f32 %v3151, %v3152
        %v3154 = vrot.slane %v3153, 2
        %v3155 = vmax.f32 %v3153, %v3154
        %v3156 = vrot.slane %v3155, 1
        %v3157 = vmax.f32 %v3155, %v3156
        %v3158 = vsel %vm1855, %v2968, -inf
        %v3159 = vrot.slane %v3158, 4
        %v3160 = vmax.f32 %v3158, %v3159
        %v3161 = vrot.slane %v3160, 2
        %v3162 = vmax.f32 %v3160, %v3161
        %v3163 = vrot.slane %v3162, 1
        %v3164 = vmax.f32 %v3162, %v3163
        %v3165 = vsel %vm1961, %v2969, -inf
        %v3166 = vrot.slane %v3165, 4
        %v3167 = vmax.f32 %v3165, %v3166
        %v3168 = vrot.slane %v3167, 2
        %v3169 = vmax.f32 %v3167, %v3168
        %v3170 = vrot.slane %v3169, 1
        %v3171 = vmax.f32 %v3169, %v3170
        %v3172 = vsel %vm1855, %v2971, -inf
        %v3173 = vrot.slane %v3172, 4
        %v3174 = vmax.f32 %v3172, %v3173
        %v3175 = vrot.slane %v3174, 2
        %v3176 = vmax.f32 %v3174, %v3175
        %v3177 = vrot.slane %v3176, 1
        %v3178 = vmax.f32 %v3176, %v3177
        %v3179 = vsel %vm1961, %v2972, -inf
        %v3180 = vrot.slane %v3179, 4
        %v3181 = vmax.f32 %v3179, %v3180
        %v3182 = vrot.slane %v3181, 2
        %v3183 = vmax.f32 %v3181, %v3182
        %v3184 = vrot.slane %v3183, 1
        %v3185 = vmax.f32 %v3183, %v3184
        %v3186 = vsel %vm1855, %v2974, -inf
        %v3187 = vrot.slane %v3186, 4
        %v3188 = vmax.f32 %v3186, %v3187
        %v3189 = vrot.slane %v3188, 2
        %v3190 = vmax.f32 %v3188, %v3189
        %v3191 = vrot.slane %v3190, 1
        %v3192 = vmax.f32 %v3190, %v3191
        %v3193 = vsel %vm1961, %v2975, -inf
        %v3194 = vrot.slane %v3193, 4
        %v3195 = vmax.f32 %v3193, %v3194
        %v3196 = vrot.slane %v3195, 2
        %v3197 = vmax.f32 %v3195, %v3196
        %v3198 = vrot.slane %v3197, 1
        %v3199 = vmax.f32 %v3197, %v3198
        %v3200 = vld [vmem:[%s2] sm:$0x3]
        %v3202 = vperm.slane %v3200, 0
        %v3203 = vperm.slane %v3200, 1
        %v3206 = vadd.f32 %v3010, %v3202
        %v3207 = vadd.f32 %v3017, %v3203
        %v3208 = vadd.f32 %v3024, %v3202
        %v3209 = vadd.f32 %v3031, %v3203
        %v3210 = vadd.f32 %v3038, %v3202
        %v3211 = vadd.f32 %v3045, %v3203
        %v3212 = vadd.f32 %v3052, %v3202
        %v3213 = vadd.f32 %v3059, %v3203
        %v3214 = vadd.f32 %v3066, %v3202
        %v3215 = vadd.f32 %v3073, %v3203
        %v3216 = vadd.f32 %v3080, %v3202
        %v3217 = vadd.f32 %v3087, %v3203
        %v3218 = vadd.f32 %v3094, %v3202
        %v3219 = vadd.f32 %v3101, %v3203
        %v3220 = vadd.f32 %v3108, %v3202
        %v3221 = vadd.f32 %v3115, %v3203
        %v3222 = vadd.f32 %v3122, %v3202
        %v3223 = vadd.f32 %v3129, %v3203
        %v3224 = vadd.f32 %v3136, %v3202
        %v3225 = vadd.f32 %v3143, %v3203
        %v3226 = vadd.f32 %v3150, %v3202
        %v3227 = vadd.f32 %v3157, %v3203
        %v3228 = vadd.f32 %v3164, %v3202
        %v3229 = vadd.f32 %v3171, %v3203
        %v3230 = vadd.f32 %v3178, %v3202
        %v3231 = vadd.f32 %v3185, %v3203
        %v3232 = vadd.f32 %v3192, %v3202
        %v3233 = vadd.f32 %v3199, %v3203
        %v3234 = vmax.f32 %v3206, 0.0
        %v3235 = vmax.f32 %v3207, 0.0
        %v3236 = vmax.f32 %v3208, 0.0
        %v3237 = vmax.f32 %v3209, 0.0
        %v3238 = vmax.f32 %v3210, 0.0
        %v3239 = vmax.f32 %v3211, 0.0
        %v3240 = vmax.f32 %v3212, 0.0
        %v3241 = vmax.f32 %v3213, 0.0
        %v3242 = vmax.f32 %v3214, 0.0
        %v3243 = vmax.f32 %v3215, 0.0
        %v3244 = vmax.f32 %v3216, 0.0
        %v3245 = vmax.f32 %v3217, 0.0
        %v3246 = vmax.f32 %v3218, 0.0
        %v3247 = vmax.f32 %v3219, 0.0
        %v3248 = vmax.f32 %v3220, 0.0
        %v3249 = vmax.f32 %v3221, 0.0
        %v3250 = vmax.f32 %v3222, 0.0
        %v3251 = vmax.f32 %v3223, 0.0
        %v3252 = vmax.f32 %v3224, 0.0
        %v3253 = vmax.f32 %v3225, 0.0
        %v3254 = vmax.f32 %v3226, 0.0
        %v3255 = vmax.f32 %v3227, 0.0
        %v3256 = vmax.f32 %v3228, 0.0
        %v3257 = vmax.f32 %v3229, 0.0
        %v3258 = vmax.f32 %v3230, 0.0
        %v3259 = vmax.f32 %v3231, 0.0
        %v3260 = vmax.f32 %v3232, 0.0
        %v3261 = vmax.f32 %v3233, 0.0
        %s3262 = scalar_lea.vmem [#allocation3], 64
        %3263 = vst.msk [vmem:[%s3262] ss:$8 sm:$0x3] %vm2216, 0.0
        %3264 = vst.msk [vmem:[%s3262] ss:$8 sm:$0x0] %vm2216, 0.0
        %s3265 = scalar_lea.vmem [#allocation3], 87
        %3266 = vst.msk [vmem:[%s3265] ss:$8 sm:$0x3] %vm2216, 0.0
        %3267 = vst.msk [vmem:[%s3265] ss:$8 sm:$0x0] %vm2216, 0.0
        %v3296 = vrot.slane %v3234, 7
        %v3297 = vrot.slane %v3236, 6
        %v3298 = vsel %vm2252, %v3297, %v3296
        %v3299 = vrot.slane %v3238, 5
        %v3300 = vsel %vm2255, %v3299, %v3298
        %v3301 = vrot.slane %v3240, 4
        %v3302 = vsel %vm2258, %v3301, %v3300
        %v3303 = vrot.slane %v3242, 3
        %v3304 = vsel %vm2261, %v3303, %v3302
        %v3305 = vrot.slane %v3244, 2
        %v3306 = vsel %vm2264, %v3305, %v3304
        %v3307 = vrot.slane %v3246, 1
        %v3308 = vsel %vm2267, %v3307, %v3306
        %v3309 = vrot.slane %v3235, 7
        %v3310 = vrot.slane %v3237, 6
        %v3311 = vsel %vm2252, %v3310, %v3309
        %v3312 = vrot.slane %v3239, 5
        %v3313 = vsel %vm2255, %v3312, %v3311
        %v3314 = vrot.slane %v3241, 4
        %v3315 = vsel %vm2258, %v3314, %v3313
        %v3316 = vrot.slane %v3243, 3
        %v3317 = vsel %vm2261, %v3316, %v3315
        %v3318 = vrot.slane %v3245, 2
        %v3319 = vsel %vm2264, %v3318, %v3317
        %v3320 = vrot.slane %v3247, 1
        %v3321 = vsel %vm2267, %v3320, %v3319
        %v3322 = vrot.slane %v3250, 7
        %v3323 = vsel %vm2283, %v3322, %v3248
        %v3324 = vrot.slane %v3252, 6
        %v3325 = vsel %vm2252, %v3324, %v3323
        %v3326 = vrot.slane %v3254, 5
        %v3327 = vsel %vm2255, %v3326, %v3325
        %v3328 = vrot.slane %v3256, 4
        %v3329 = vsel %vm2258, %v3328, %v3327
        %v3330 = vrot.slane %v3258, 3
        %v3331 = vsel %vm2261, %v3330, %v3329
        %v3332 = vrot.slane %v3260, 2
        %v3333 = vsel %vm2264, %v3332, %v3331
        %v3334 = vrot.slane %v3251, 7
        %v3335 = vsel %vm2283, %v3334, %v3249
        %v3336 = vrot.slane %v3253, 6
        %v3337 = vsel %vm2252, %v3336, %v3335
        %v3338 = vrot.slane %v3255, 5
        %v3339 = vsel %vm2255, %v3338, %v3337
        %v3340 = vrot.slane %v3257, 4
        %v3341 = vsel %vm2258, %v3340, %v3339
        %v3342 = vrot.slane %v3259, 3
        %v3343 = vsel %vm2261, %v3342, %v3341
        %v3344 = vrot.slane %v3261, 2
        %v3345 = vsel %vm2264, %v3344, %v3343
        %3350 = vst [vmem:[#allocation3 + $0x40] sm:$0xfe] %v3308
        %3351 = vst.msk [vmem:[#allocation3 + $0x48] sm:$0xfe] %vm2312, %v3321
        %3352 = vst [vmem:[#allocation3 + $0x50] sm:$0x7f] %v3333
        %3353 = vst.msk [vmem:[#allocation3 + $0x58] sm:$0x7f] %vm2315, %v3345
        %v3354 = vld [vmem:[#allocation2 + $0xb0] sm:$0xfc]
        %v3355 = vld [vmem:[#allocation2 + $0xb8] sm:$0xfc]
        %v3356 = vld [vmem:[#allocation2 + $0xc0] sm:$0xff]
        %v3357 = vld [vmem:[#allocation2 + $0xc8] sm:$0xff]
        %v3358 = vld [vmem:[#allocation2 + $0xd0] sm:$0xff]
        %v3359 = vld [vmem:[#allocation2 + $0xd8] sm:$0xff]
        %v3360 = vld [vmem:[#allocation2 + $0xe0] sm:$0x3f]
        %v3361 = vld [vmem:[#allocation2 + $0xe8] sm:$0x3f]
        %3370 = vrot.lane.b32.xlu0 %v3354, 120
        %v3371 = vpop.permute.xlu0 %3370
        %3372 = vrot.lane.b32.xlu0 %v3355, 120
        %v3373 = vpop.permute.xlu0 %3372
        %3374 = vrot.lane.b32.xlu0 %v3356, 120
        %v3375 = vpop.permute.xlu0 %3374
        %3376 = vrot.lane.b32.xlu0 %v3357, 120
        %v3377 = vpop.permute.xlu0 %3376
        %3378 = vrot.lane.b32.xlu0 %v3358, 120
        %v3379 = vpop.permute.xlu0 %3378
        %3380 = vrot.lane.b32.xlu0 %v3359, 120
        %v3381 = vpop.permute.xlu0 %3380
        %3382 = vrot.lane.b32.xlu0 %v3360, 120
        %v3383 = vpop.permute.xlu0 %3382
        %3384 = vrot.lane.b32.xlu0 %v3361, 120
        %v3385 = vpop.permute.xlu0 %3384
        %v3386 = vsel %vm1822, %v3371, %v3373
        %v3387 = vsel %vm1822, %v3375, %v3377
        %v3388 = vsel %vm1822, %v3379, %v3381
        %v3389 = vsel %vm1822, %v3383, %v3385
        %v3398 = vmax.f32 %v3354, %v3386
        %v3399 = vmax.f32 %v3355, %v3373
        %v3400 = vmax.f32 %v3356, %v3387
        %v3401 = vmax.f32 %v3357, %v3377
        %v3402 = vmax.f32 %v3358, %v3388
        %v3403 = vmax.f32 %v3359, %v3381
        %v3404 = vmax.f32 %v3360, %v3389
        %v3405 = vmax.f32 %v3361, %v3385
        %3414 = vst.sshfl [vmem:[#allocation1] sm:$0xff pattern:$0x73625140] %v3398
        %3415 = vst.sshfl [vmem:[#allocation1 + $0x8] sm:$0xff pattern:$0x73625140] %v3399
        %3416 = vst.sshfl [vmem:[#allocation1 + $0x20] sm:$0xff pattern:$0x73625140] %v3400
        %3417 = vst.sshfl [vmem:[#allocation1 + $0x28] sm:$0xff pattern:$0x73625140] %v3401
        %s3418 = scalar_lea.vmem [#allocation1], 1
        %v3419 = vld [vmem:[%s3418] ss:$4 sm:$0xff]
        %s3420 = scalar_lea.vmem [#allocation1], 2
        %v3421 = vld [vmem:[%s3420] ss:$4 sm:$0xff]
        %s3422 = scalar_lea.vmem [#allocation1], 3
        %v3423 = vld [vmem:[%s3422] ss:$4 sm:$0xff]
        %s3424 = scalar_lea.vmem [#allocation1], 32
        %v3425 = vld [vmem:[%s3424] ss:$4 sm:$0xff]
        %s3426 = scalar_lea.vmem [#allocation1], 33
        %v3427 = vld [vmem:[%s3426] ss:$4 sm:$0xff]
        %s3428 = scalar_lea.vmem [#allocation1], 34
        %v3429 = vld [vmem:[%s3428] ss:$4 sm:$0xff]
        %s3430 = scalar_lea.vmem [#allocation1], 35
        %v3431 = vld [vmem:[%s3430] ss:$4 sm:$0xff]
        %3432 = vst.sshfl [vmem:[#allocation1] sm:$0xff pattern:$0x73625140] %v3402
        %3433 = vst.sshfl [vmem:[#allocation1 + $0x8] sm:$0xff pattern:$0x73625140] %v3403
        %3434 = vst.sshfl [vmem:[#allocation1 + $0x20] sm:$0xff pattern:$0x73625140] %v3404
        %3435 = vst.sshfl [vmem:[#allocation1 + $0x28] sm:$0xff pattern:$0x73625140] %v3405
        %v3436 = vld [vmem:[#allocation1] ss:$4 sm:$0xff]
        %v3437 = vld [vmem:[%s3418] ss:$4 sm:$0xff]
        %v3438 = vld [vmem:[%s3420] ss:$4 sm:$0xff]
        %v3439 = vld [vmem:[%s3422] ss:$4 sm:$0xff]
        %v3440 = vld [vmem:[%s3424] ss:$4 sm:$0xff]
        %v3441 = vld [vmem:[%s3426] ss:$4 sm:$0xff]
        %v3442 = vld [vmem:[%s3428] ss:$4 sm:$0xff]
        %3443 = vst [vmem:[#allocation1] ss:$4 sm:$0xff] %v3419
        %v3444 = vld.sshfl [vmem:[#allocation1] sm:$0xff pattern:$0x73625140]
        %v3445 = vld.sshfl [vmem:[#allocation1 + $0x8] sm:$0xff pattern:$0x73625140]
        %s3446 = scalar_lea.vmem [#allocation1], 32
        %3447 = vst [vmem:[%s3446] ss:$4 sm:$0xff] %v3421
        %v3448 = vld.sshfl [vmem:[#allocation1 + $0x20] sm:$0xff pattern:$0x73625140]
        %v3449 = vld.sshfl [vmem:[#allocation1 + $0x28] sm:$0xff pattern:$0x73625140]
        %3450 = vst [vmem:[#allocation1] ss:$4 sm:$0xff] %v3423
        %v3451 = vld.sshfl [vmem:[#allocation1] sm:$0xff pattern:$0x73625140]
        %v3452 = vld.sshfl [vmem:[#allocation1 + $0x8] sm:$0xff pattern:$0x73625140]
        %3453 = vst [vmem:[%s3446] ss:$4 sm:$0xff] %v3425
        %v3454 = vld.sshfl [vmem:[#allocation1 + $0x20] sm:$0xff pattern:$0x73625140]
        %v3455 = vld.sshfl [vmem:[#allocation1 + $0x28] sm:$0xff pattern:$0x73625140]
        %3456 = vst [vmem:[#allocation1] ss:$4 sm:$0xff] %v3427
        %v3457 = vld.sshfl [vmem:[#allocation1] sm:$0xff pattern:$0x73625140]
        %v3458 = vld.sshfl [vmem:[#allocation1 + $0x8] sm:$0xff pattern:$0x73625140]
        %3459 = vst [vmem:[%s3446] ss:$4 sm:$0xff] %v3429
        %v3460 = vld.sshfl [vmem:[#allocation1 + $0x20] sm:$0xff pattern:$0x73625140]
        %v3461 = vld.sshfl [vmem:[#allocation1 + $0x28] sm:$0xff pattern:$0x73625140]
        %3462 = vst [vmem:[#allocation1] ss:$4 sm:$0xff] %v3431
        %v3463 = vld.sshfl [vmem:[#allocation1] sm:$0xff pattern:$0x73625140]
        %v3464 = vld.sshfl [vmem:[#allocation1 + $0x8] sm:$0xff pattern:$0x73625140]
        %3465 = vst [vmem:[%s3446] ss:$4 sm:$0xff] %v3436
        %v3466 = vld.sshfl [vmem:[#allocation1 + $0x20] sm:$0xff pattern:$0x73625140]
        %v3467 = vld.sshfl [vmem:[#allocation1 + $0x28] sm:$0xff pattern:$0x73625140]
        %3468 = vst [vmem:[#allocation1] ss:$4 sm:$0xff] %v3437
        %v3469 = vld.sshfl [vmem:[#allocation1] sm:$0xff pattern:$0x73625140]
        %v3470 = vld.sshfl [vmem:[#allocation1 + $0x8] sm:$0xff pattern:$0x73625140]
        %3471 = vst [vmem:[%s3446] ss:$4 sm:$0xff] %v3438
        %v3472 = vld.sshfl [vmem:[#allocation1 + $0x20] sm:$0xff pattern:$0x73625140]
        %v3473 = vld.sshfl [vmem:[#allocation1 + $0x28] sm:$0xff pattern:$0x73625140]
        %3474 = vst [vmem:[#allocation1] ss:$4 sm:$0xff] %v3439
        %v3475 = vld.sshfl [vmem:[#allocation1] sm:$0xff pattern:$0x73625140]
        %v3476 = vld.sshfl [vmem:[#allocation1 + $0x8] sm:$0xff pattern:$0x73625140]
        %3477 = vst [vmem:[%s3446] ss:$4 sm:$0xff] %v3440
        %v3478 = vld.sshfl [vmem:[#allocation1 + $0x20] sm:$0xff pattern:$0x73625140]
        %v3479 = vld.sshfl [vmem:[#allocation1 + $0x28] sm:$0xff pattern:$0x73625140]
        %3480 = vst [vmem:[#allocation1] ss:$4 sm:$0xff] %v3441
        %v3481 = vld.sshfl [vmem:[#allocation1] sm:$0xff pattern:$0x73625140]
        %v3482 = vld.sshfl [vmem:[#allocation1 + $0x8] sm:$0xff pattern:$0x73625140]
        %3483 = vst [vmem:[%s3446] ss:$4 sm:$0xff] %v3442
        %v3484 = vld.sshfl [vmem:[#allocation1 + $0x20] sm:$0xff pattern:$0x73625140]
        %v3485 = vld.sshfl [vmem:[#allocation1 + $0x28] sm:$0xff pattern:$0x73625140]
        %v3514 = vsel %vm1855, %v3444, -inf
        %v3515 = vrot.slane %v3514, 4
        %v3516 = vmax.f32 %v3514, %v3515
        %v3517 = vrot.slane %v3516, 2
        %v3518 = vmax.f32 %v3516, %v3517
        %v3519 = vrot.slane %v3518, 1
        %v3520 = vmax.f32 %v3518, %v3519
        %v3521 = vsel %vm1961, %v3445, -inf
        %v3522 = vrot.slane %v3521, 4
        %v3523 = vmax.f32 %v3521, %v3522
        %v3524 = vrot.slane %v3523, 2
        %v3525 = vmax.f32 %v3523, %v3524
        %v3526 = vrot.slane %v3525, 1
        %v3527 = vmax.f32 %v3525, %v3526
        %v3528 = vsel %vm1855, %v3448, -inf
        %v3529 = vrot.slane %v3528, 4
        %v3530 = vmax.f32 %v3528, %v3529
        %v3531 = vrot.slane %v3530, 2
        %v3532 = vmax.f32 %v3530, %v3531
        %v3533 = vrot.slane %v3532, 1
        %v3534 = vmax.f32 %v3532, %v3533
        %v3535 = vsel %vm1961, %v3449, -inf
        %v3536 = vrot.slane %v3535, 4
        %v3537 = vmax.f32 %v3535, %v3536
        %v3538 = vrot.slane %v3537, 2
        %v3539 = vmax.f32 %v3537, %v3538
        %v3540 = vrot.slane %v3539, 1
        %v3541 = vmax.f32 %v3539, %v3540
        %v3542 = vsel %vm1855, %v3451, -inf
        %v3543 = vrot.slane %v3542, 4
        %v3544 = vmax.f32 %v3542, %v3543
        %v3545 = vrot.slane %v3544, 2
        %v3546 = vmax.f32 %v3544, %v3545
        %v3547 = vrot.slane %v3546, 1
        %v3548 = vmax.f32 %v3546, %v3547
        %v3549 = vsel %vm1961, %v3452, -inf
        %v3550 = vrot.slane %v3549, 4
        %v3551 = vmax.f32 %v3549, %v3550
        %v3552 = vrot.slane %v3551, 2
        %v3553 = vmax.f32 %v3551, %v3552
        %v3554 = vrot.slane %v3553, 1
        %v3555 = vmax.f32 %v3553, %v3554
        %v3556 = vsel %vm1855, %v3454, -inf
        %v3557 = vrot.slane %v3556, 4
        %v3558 = vmax.f32 %v3556, %v3557
        %v3559 = vrot.slane %v3558, 2
        %v3560 = vmax.f32 %v3558, %v3559
        %v3561 = vrot.slane %v3560, 1
        %v3562 = vmax.f32 %v3560, %v3561
        %v3563 = vsel %vm1961, %v3455, -inf
        %v3564 = vrot.slane %v3563, 4
        %v3565 = vmax.f32 %v3563, %v3564
        %v3566 = vrot.slane %v3565, 2
        %v3567 = vmax.f32 %v3565, %v3566
        %v3568 = vrot.slane %v3567, 1
        %v3569 = vmax.f32 %v3567, %v3568
        %v3570 = vsel %vm1855, %v3457, -inf
        %v3571 = vrot.slane %v3570, 4
        %v3572 = vmax.f32 %v3570, %v3571
        %v3573 = vrot.slane %v3572, 2
        %v3574 = vmax.f32 %v3572, %v3573
        %v3575 = vrot.slane %v3574, 1
        %v3576 = vmax.f32 %v3574, %v3575
        %v3577 = vsel %vm1961, %v3458, -inf
        %v3578 = vrot.slane %v3577, 4
        %v3579 = vmax.f32 %v3577, %v3578
        %v3580 = vrot.slane %v3579, 2
        %v3581 = vmax.f32 %v3579, %v3580
        %v3582 = vrot.slane %v3581, 1
        %v3583 = vmax.f32 %v3581, %v3582
        %v3584 = vsel %vm1855, %v3460, -inf
        %v3585 = vrot.slane %v3584, 4
        %v3586 = vmax.f32 %v3584, %v3585
        %v3587 = vrot.slane %v3586, 2
        %v3588 = vmax.f32 %v3586, %v3587
        %v3589 = vrot.slane %v3588, 1
        %v3590 = vmax.f32 %v3588, %v3589
        %v3591 = vsel %vm1961, %v3461, -inf
        %v3592 = vrot.slane %v3591, 4
        %v3593 = vmax.f32 %v3591, %v3592
        %v3594 = vrot.slane %v3593, 2
        %v3595 = vmax.f32 %v3593, %v3594
        %v3596 = vrot.slane %v3595, 1
        %v3597 = vmax.f32 %v3595, %v3596
        %v3598 = vsel %vm1855, %v3463, -inf
        %v3599 = vrot.slane %v3598, 4
        %v3600 = vmax.f32 %v3598, %v3599
        %v3601 = vrot.slane %v3600, 2
        %v3602 = vmax.f32 %v3600, %v3601
        %v3603 = vrot.slane %v3602, 1
        %v3604 = vmax.f32 %v3602, %v3603
        %v3605 = vsel %vm1961, %v3464, -inf
        %v3606 = vrot.slane %v3605, 4
        %v3607 = vmax.f32 %v3605, %v3606
        %v3608 = vrot.slane %v3607, 2
        %v3609 = vmax.f32 %v3607, %v3608
        %v3610 = vrot.slane %v3609, 1
        %v3611 = vmax.f32 %v3609, %v3610
        %v3612 = vsel %vm1855, %v3466, -inf
        %v3613 = vrot.slane %v3612, 4
        %v3614 = vmax.f32 %v3612, %v3613
        %v3615 = vrot.slane %v3614, 2
        %v3616 = vmax.f32 %v3614, %v3615
        %v3617 = vrot.slane %v3616, 1
        %v3618 = vmax.f32 %v3616, %v3617
        %v3619 = vsel %vm1961, %v3467, -inf
        %v3620 = vrot.slane %v3619, 4
        %v3621 = vmax.f32 %v3619, %v3620
        %v3622 = vrot.slane %v3621, 2
        %v3623 = vmax.f32 %v3621, %v3622
        %v3624 = vrot.slane %v3623, 1
        %v3625 = vmax.f32 %v3623, %v3624
        %v3626 = vsel %vm1855, %v3469, -inf
        %v3627 = vrot.slane %v3626, 4
        %v3628 = vmax.f32 %v3626, %v3627
        %v3629 = vrot.slane %v3628, 2
        %v3630 = vmax.f32 %v3628, %v3629
        %v3631 = vrot.slane %v3630, 1
        %v3632 = vmax.f32 %v3630, %v3631
        %v3633 = vsel %vm1961, %v3470, -inf
        %v3634 = vrot.slane %v3633, 4
        %v3635 = vmax.f32 %v3633, %v3634
        %v3636 = vrot.slane %v3635, 2
        %v3637 = vmax.f32 %v3635, %v3636
        %v3638 = vrot.slane %v3637, 1
        %v3639 = vmax.f32 %v3637, %v3638
        %v3640 = vsel %vm1855, %v3472, -inf
        %v3641 = vrot.slane %v3640, 4
        %v3642 = vmax.f32 %v3640, %v3641
        %v3643 = vrot.slane %v3642, 2
        %v3644 = vmax.f32 %v3642, %v3643
        %v3645 = vrot.slane %v3644, 1
        %v3646 = vmax.f32 %v3644, %v3645
        %v3647 = vsel %vm1961, %v3473, -inf
        %v3648 = vrot.slane %v3647, 4
        %v3649 = vmax.f32 %v3647, %v3648
        %v3650 = vrot.slane %v3649, 2
        %v3651 = vmax.f32 %v3649, %v3650
        %v3652 = vrot.slane %v3651, 1
        %v3653 = vmax.f32 %v3651, %v3652
        %v3654 = vsel %vm1855, %v3475, -inf
        %v3655 = vrot.slane %v3654, 4
        %v3656 = vmax.f32 %v3654, %v3655
        %v3657 = vrot.slane %v3656, 2
        %v3658 = vmax.f32 %v3656, %v3657
        %v3659 = vrot.slane %v3658, 1
        %v3660 = vmax.f32 %v3658, %v3659
        %v3661 = vsel %vm1961, %v3476, -inf
        %v3662 = vrot.slane %v3661, 4
        %v3663 = vmax.f32 %v3661, %v3662
        %v3664 = vrot.slane %v3663, 2
        %v3665 = vmax.f32 %v3663, %v3664
        %v3666 = vrot.slane %v3665, 1
        %v3667 = vmax.f32 %v3665, %v3666
        %v3668 = vsel %vm1855, %v3478, -inf
        %v3669 = vrot.slane %v3668, 4
        %v3670 = vmax.f32 %v3668, %v3669
        %v3671 = vrot.slane %v3670, 2
        %v3672 = vmax.f32 %v3670, %v3671
        %v3673 = vrot.slane %v3672, 1
        %v3674 = vmax.f32 %v3672, %v3673
        %v3675 = vsel %vm1961, %v3479, -inf
        %v3676 = vrot.slane %v3675, 4
        %v3677 = vmax.f32 %v3675, %v3676
        %v3678 = vrot.slane %v3677, 2
        %v3679 = vmax.f32 %v3677, %v3678
        %v3680 = vrot.slane %v3679, 1
        %v3681 = vmax.f32 %v3679, %v3680
        %v3682 = vsel %vm1855, %v3481, -inf
        %v3683 = vrot.slane %v3682, 4
        %v3684 = vmax.f32 %v3682, %v3683
        %v3685 = vrot.slane %v3684, 2
        %v3686 = vmax.f32 %v3684, %v3685
        %v3687 = vrot.slane %v3686, 1
        %v3688 = vmax.f32 %v3686, %v3687
        %v3689 = vsel %vm1961, %v3482, -inf
        %v3690 = vrot.slane %v3689, 4
        %v3691 = vmax.f32 %v3689, %v3690
        %v3692 = vrot.slane %v3691, 2
        %v3693 = vmax.f32 %v3691, %v3692
        %v3694 = vrot.slane %v3693, 1
        %v3695 = vmax.f32 %v3693, %v3694
        %v3696 = vsel %vm1855, %v3484, -inf
        %v3697 = vrot.slane %v3696, 4
        %v3698 = vmax.f32 %v3696, %v3697
        %v3699 = vrot.slane %v3698, 2
        %v3700 = vmax.f32 %v3698, %v3699
        %v3701 = vrot.slane %v3700, 1
        %v3702 = vmax.f32 %v3700, %v3701
        %v3703 = vsel %vm1961, %v3485, -inf
        %v3704 = vrot.slane %v3703, 4
        %v3705 = vmax.f32 %v3703, %v3704
        %v3706 = vrot.slane %v3705, 2
        %v3707 = vmax.f32 %v3705, %v3706
        %v3708 = vrot.slane %v3707, 1
        %v3709 = vmax.f32 %v3707, %v3708
        %v3710 = vld [vmem:[%s2] sm:$0x3]
        %v3712 = vperm.slane %v3710, 0
        %v3713 = vperm.slane %v3710, 1
        %v3716 = vadd.f32 %v3520, %v3712
        %v3717 = vadd.f32 %v3527, %v3713
        %v3718 = vadd.f32 %v3534, %v3712
        %v3719 = vadd.f32 %v3541, %v3713
        %v3720 = vadd.f32 %v3548, %v3712
        %v3721 = vadd.f32 %v3555, %v3713
        %v3722 = vadd.f32 %v3562, %v3712
        %v3723 = vadd.f32 %v3569, %v3713
        %v3724 = vadd.f32 %v3576, %v3712
        %v3725 = vadd.f32 %v3583, %v3713
        %v3726 = vadd.f32 %v3590, %v3712
        %v3727 = vadd.f32 %v3597, %v3713
        %v3728 = vadd.f32 %v3604, %v3712
        %v3729 = vadd.f32 %v3611, %v3713
        %v3730 = vadd.f32 %v3618, %v3712
        %v3731 = vadd.f32 %v3625, %v3713
        %v3732 = vadd.f32 %v3632, %v3712
        %v3733 = vadd.f32 %v3639, %v3713
        %v3734 = vadd.f32 %v3646, %v3712
        %v3735 = vadd.f32 %v3653, %v3713
        %v3736 = vadd.f32 %v3660, %v3712
        %v3737 = vadd.f32 %v3667, %v3713
        %v3738 = vadd.f32 %v3674, %v3712
        %v3739 = vadd.f32 %v3681, %v3713
        %v3740 = vadd.f32 %v3688, %v3712
        %v3741 = vadd.f32 %v3695, %v3713
        %v3742 = vadd.f32 %v3702, %v3712
        %v3743 = vadd.f32 %v3709, %v3713
        %v3744 = vmax.f32 %v3716, 0.0
        %v3745 = vmax.f32 %v3717, 0.0
        %v3746 = vmax.f32 %v3718, 0.0
        %v3747 = vmax.f32 %v3719, 0.0
        %v3748 = vmax.f32 %v3720, 0.0
        %v3749 = vmax.f32 %v3721, 0.0
        %v3750 = vmax.f32 %v3722, 0.0
        %v3751 = vmax.f32 %v3723, 0.0
        %v3752 = vmax.f32 %v3724, 0.0
        %v3753 = vmax.f32 %v3725, 0.0
        %v3754 = vmax.f32 %v3726, 0.0
        %v3755 = vmax.f32 %v3727, 0.0
        %v3756 = vmax.f32 %v3728, 0.0
        %v3757 = vmax.f32 %v3729, 0.0
        %v3758 = vmax.f32 %v3730, 0.0
        %v3759 = vmax.f32 %v3731, 0.0
        %v3760 = vmax.f32 %v3732, 0.0
        %v3761 = vmax.f32 %v3733, 0.0
        %v3762 = vmax.f32 %v3734, 0.0
        %v3763 = vmax.f32 %v3735, 0.0
        %v3764 = vmax.f32 %v3736, 0.0
        %v3765 = vmax.f32 %v3737, 0.0
        %v3766 = vmax.f32 %v3738, 0.0
        %v3767 = vmax.f32 %v3739, 0.0
        %v3768 = vmax.f32 %v3740, 0.0
        %v3769 = vmax.f32 %v3741, 0.0
        %v3770 = vmax.f32 %v3742, 0.0
        %v3771 = vmax.f32 %v3743, 0.0
        %s3772 = scalar_lea.vmem [#allocation3], 96
        %3773 = vst.msk [vmem:[%s3772] ss:$8 sm:$0x3] %vm2216, 0.0
        %3774 = vst.msk [vmem:[%s3772] ss:$8 sm:$0x0] %vm2216, 0.0
        %s3775 = scalar_lea.vmem [#allocation3], 119
        %3776 = vst.msk [vmem:[%s3775] ss:$8 sm:$0x3] %vm2216, 0.0
        %3777 = vst.msk [vmem:[%s3775] ss:$8 sm:$0x0] %vm2216, 0.0
        %v3806 = vrot.slane %v3744, 7
        %v3807 = vrot.slane %v3746, 6
        %v3808 = vsel %vm2252, %v3807, %v3806
        %v3809 = vrot.slane %v3748, 5
        %v3810 = vsel %vm2255, %v3809, %v3808
        %v3811 = vrot.slane %v3750, 4
        %v3812 = vsel %vm2258, %v3811, %v3810
        %v3813 = vrot.slane %v3752, 3
        %v3814 = vsel %vm2261, %v3813, %v3812
        %v3815 = vrot.slane %v3754, 2
        %v3816 = vsel %vm2264, %v3815, %v3814
        %v3817 = vrot.slane %v3756, 1
        %v3818 = vsel %vm2267, %v3817, %v3816
        %v3819 = vrot.slane %v3745, 7
        %v3820 = vrot.slane %v3747, 6
        %v3821 = vsel %vm2252, %v3820, %v3819
        %v3822 = vrot.slane %v3749, 5
        %v3823 = vsel %vm2255, %v3822, %v3821
        %v3824 = vrot.slane %v3751, 4
        %v3825 = vsel %vm2258, %v3824, %v3823
        %v3826 = vrot.slane %v3753, 3
        %v3827 = vsel %vm2261, %v3826, %v3825
        %v3828 = vrot.slane %v3755, 2
        %v3829 = vsel %vm2264, %v3828, %v3827
        %v3830 = vrot.slane %v3757, 1
        %v3831 = vsel %vm2267, %v3830, %v3829
        %v3832 = vrot.slane %v3760, 7
        %v3833 = vsel %vm2283, %v3832, %v3758
        %v3834 = vrot.slane %v3762, 6
        %v3835 = vsel %vm2252, %v3834, %v3833
        %v3836 = vrot.slane %v3764, 5
        %v3837 = vsel %vm2255, %v3836, %v3835
        %v3838 = vrot.slane %v3766, 4
        %v3839 = vsel %vm2258, %v3838, %v3837
        %v3840 = vrot.slane %v3768, 3
        %v3841 = vsel %vm2261, %v3840, %v3839
        %v3842 = vrot.slane %v3770, 2
        %v3843 = vsel %vm2264, %v3842, %v3841
        %v3844 = vrot.slane %v3761, 7
        %v3845 = vsel %vm2283, %v3844, %v3759
        %v3846 = vrot.slane %v3763, 6
        %v3847 = vsel %vm2252, %v3846, %v3845
        %v3848 = vrot.slane %v3765, 5
        %v3849 = vsel %vm2255, %v3848, %v3847
        %v3850 = vrot.slane %v3767, 4
        %v3851 = vsel %vm2258, %v3850, %v3849
        %v3852 = vrot.slane %v3769, 3
        %v3853 = vsel %vm2261, %v3852, %v3851
        %v3854 = vrot.slane %v3771, 2
        %v3855 = vsel %vm2264, %v3854, %v3853
        %3860 = vst [vmem:[#allocation3 + $0x60] sm:$0xfe] %v3818
        %3861 = vst.msk [vmem:[#allocation3 + $0x68] sm:$0xfe] %vm2312, %v3831
        %3862 = vst [vmem:[#allocation3 + $0x70] sm:$0x7f] %v3843
        %3863 = vst.msk [vmem:[#allocation3 + $0x78] sm:$0x7f] %vm2315, %v3855
        %v3864 = vld [vmem:[#allocation2 + $0xf0] sm:$0xff]
        %v3865 = vld [vmem:[#allocation2 + $0xf8] sm:$0xff]
        %v3866 = vld [vmem:[#allocation2 + $0x100] sm:$0xff]
        %v3867 = vld [vmem:[#allocation2 + $0x108] sm:$0xff]
        %v3868 = vld [vmem:[#allocation2 + $0x110] sm:$0xff]
        %v3869 = vld [vmem:[#allocation2 + $0x118] sm:$0xff]
        %v3870 = vld [vmem:[#allocation2 + $0x120] sm:$0xf]
        %v3871 = vld [vmem:[#allocation2 + $0x128] sm:$0xf]
        %3880 = vrot.lane.b32.xlu0 %v3864, 120
        %v3881 = vpop.permute.xlu0 %3880
        %3882 = vrot.lane.b32.xlu0 %v3865, 120
        %v3883 = vpop.permute.xlu0 %3882
        %3884 = vrot.lane.b32.xlu0 %v3866, 120
        %v3885 = vpop.permute.xlu0 %3884
        %3886 = vrot.lane.b32.xlu0 %v3867, 120
        %v3887 = vpop.permute.xlu0 %3886
        %3888 = vrot.lane.b32.xlu0 %v3868, 120
        %v3889 = vpop.permute.xlu0 %3888
        %3890 = vrot.lane.b32.xlu0 %v3869, 120
        %v3891 = vpop.permute.xlu0 %3890
        %3892 = vrot.lane.b32.xlu0 %v3870, 120
        %v3893 = vpop.permute.xlu0 %3892
        %3894 = vrot.lane.b32.xlu0 %v3871, 120
        %v3895 = vpop.permute.xlu0 %3894
        %v3896 = vsel %vm1822, %v3881, %v3883
        %v3897 = vsel %vm1822, %v3885, %v3887
        %v3898 = vsel %vm1822, %v3889, %v3891
        %v3899 = vsel %vm1822, %v3893, %v3895
        %v3908 = vmax.f32 %v3864, %v3896
        %v3909 = vmax.f32 %v3865, %v3883
        %v3910 = vmax.f32 %v3866, %v3897
        %v3911 = vmax.f32 %v3867, %v3887
        %v3912 = vmax.f32 %v3868, %v3898
        %v3913 = vmax.f32 %v3869, %v3891
        %v3914 = vmax.f32 %v3870, %v3899
        %v3915 = vmax.f32 %v3871, %v3895
        %v3924 = vrot.slane %v3909, 6
        %v3925 = vrot.slane %v3911, 6
        %v3926 = vrot.slane %v3913, 6
        %v3927 = vrot.slane %v3915, 6
        %v3928 = vsel %vm1855, %v3908, %v3924
        %v3929 = vsel %vm1857, %v3908, %v3924
        %v3930 = vrot.slane %v3929, 2
        %v3931 = vsel %vm1860, %v3908, %v3924
        %v3932 = vrot.slane %v3931, 4
        %v3933 = vsel %vm1863, %v3924, %v3908
        %v3934 = vrot.slane %v3933, 6
        %v3935 = vsel %vm1855, %v3910, %v3925
        %v3936 = vsel %vm1857, %v3910, %v3925
        %v3937 = vrot.slane %v3936, 2
        %v3938 = vsel %vm1860, %v3910, %v3925
        %v3939 = vrot.slane %v3938, 4
        %v3940 = vsel %vm1863, %v3925, %v3910
        %v3941 = vrot.slane %v3940, 6
        %v3942 = vsel %vm1855, %v3912, %v3926
        %v3943 = vsel %vm1857, %v3912, %v3926
        %v3944 = vrot.slane %v3943, 2
        %v3945 = vsel %vm1860, %v3912, %v3926
        %v3946 = vrot.slane %v3945, 4
        %v3947 = vsel %vm1863, %v3926, %v3912
        %v3948 = vrot.slane %v3947, 6
        %v3949 = vsel %vm1855, %v3914, %v3927
        %v3950 = vsel %vm1857, %v3914, %v3927
        %v3951 = vrot.slane %v3950, 2
        %3952 = vst [vmem:[#allocation1] ss:$4 sm:$0xff] %v3928
        %v3953 = vld.sshfl [vmem:[#allocation1] sm:$0xff pattern:$0x73625140]
        %v3954 = vld.sshfl [vmem:[#allocation1 + $0x8] sm:$0xff pattern:$0x73625140]
        %s3955 = scalar_lea.vmem [#allocation1], 32
        %3956 = vst [vmem:[%s3955] ss:$4 sm:$0xff] %v3930
        %v3957 = vld.sshfl [vmem:[#allocation1 + $0x20] sm:$0xff pattern:$0x73625140]
        %v3958 = vld.sshfl [vmem:[#allocation1 + $0x28] sm:$0xff pattern:$0x73625140]
        %3959 = vst [vmem:[#allocation1] ss:$4 sm:$0xff] %v3932
        %v3960 = vld.sshfl [vmem:[#allocation1] sm:$0xff pattern:$0x73625140]
        %v3961 = vld.sshfl [vmem:[#allocation1 + $0x8] sm:$0xff pattern:$0x73625140]
        %3962 = vst [vmem:[%s3955] ss:$4 sm:$0xff] %v3934
        %v3963 = vld.sshfl [vmem:[#allocation1 + $0x20] sm:$0xff pattern:$0x73625140]
        %v3964 = vld.sshfl [vmem:[#allocation1 + $0x28] sm:$0xff pattern:$0x73625140]
        %3965 = vst [vmem:[#allocation1] ss:$4 sm:$0xff] %v3935
        %v3966 = vld.sshfl [vmem:[#allocation1] sm:$0xff pattern:$0x73625140]
        %v3967 = vld.sshfl [vmem:[#allocation1 + $0x8] sm:$0xff pattern:$0x73625140]
        %3968 = vst [vmem:[%s3955] ss:$4 sm:$0xff] %v3937
        %v3969 = vld.sshfl [vmem:[#allocation1 + $0x20] sm:$0xff pattern:$0x73625140]
        %v3970 = vld.sshfl [vmem:[#allocation1 + $0x28] sm:$0xff pattern:$0x73625140]
        %3971 = vst [vmem:[#allocation1] ss:$4 sm:$0xff] %v3939
        %v3972 = vld.sshfl [vmem:[#allocation1] sm:$0xff pattern:$0x73625140]
        %v3973 = vld.sshfl [vmem:[#allocation1 + $0x8] sm:$0xff pattern:$0x73625140]
        %3974 = vst [vmem:[%s3955] ss:$4 sm:$0xff] %v3941
        %v3975 = vld.sshfl [vmem:[#allocation1 + $0x20] sm:$0xff pattern:$0x73625140]
        %v3976 = vld.sshfl [vmem:[#allocation1 + $0x28] sm:$0xff pattern:$0x73625140]
        %3977 = vst [vmem:[#allocation1] ss:$4 sm:$0xff] %v3942
        %v3978 = vld.sshfl [vmem:[#allocation1] sm:$0xff pattern:$0x73625140]
        %v3979 = vld.sshfl [vmem:[#allocation1 + $0x8] sm:$0xff pattern:$0x73625140]
        %3980 = vst [vmem:[%s3955] ss:$4 sm:$0xff] %v3944
        %v3981 = vld.sshfl [vmem:[#allocation1 + $0x20] sm:$0xff pattern:$0x73625140]
        %v3982 = vld.sshfl [vmem:[#allocation1 + $0x28] sm:$0xff pattern:$0x73625140]
        %3983 = vst [vmem:[#allocation1] ss:$4 sm:$0xff] %v3946
        %v3984 = vld.sshfl [vmem:[#allocation1] sm:$0xff pattern:$0x73625140]
        %v3985 = vld.sshfl [vmem:[#allocation1 + $0x8] sm:$0xff pattern:$0x73625140]
        %3986 = vst [vmem:[%s3955] ss:$4 sm:$0xff] %v3948
        %v3987 = vld.sshfl [vmem:[#allocation1 + $0x20] sm:$0xff pattern:$0x73625140]
        %v3988 = vld.sshfl [vmem:[#allocation1 + $0x28] sm:$0xff pattern:$0x73625140]
        %3989 = vst [vmem:[#allocation1] ss:$4 sm:$0xff] %v3949
        %v3990 = vld.sshfl [vmem:[#allocation1] sm:$0xff pattern:$0x73625140]
        %v3991 = vld.sshfl [vmem:[#allocation1 + $0x8] sm:$0xff pattern:$0x73625140]
        %3992 = vst [vmem:[%s3955] ss:$4 sm:$0xff] %v3951
        %v3993 = vld.sshfl [vmem:[#allocation1 + $0x20] sm:$0xff pattern:$0x73625140]
        %v3994 = vld.sshfl [vmem:[#allocation1 + $0x28] sm:$0xff pattern:$0x73625140]
        %v4023 = vsel %vm1855, %v3953, -inf
        %v4024 = vrot.slane %v4023, 4
        %v4025 = vmax.f32 %v4023, %v4024
        %v4026 = vrot.slane %v4025, 2
        %v4027 = vmax.f32 %v4025, %v4026
        %v4028 = vrot.slane %v4027, 1
        %v4029 = vmax.f32 %v4027, %v4028
        %v4030 = vsel %vm1961, %v3954, -inf
        %v4031 = vrot.slane %v4030, 4
        %v4032 = vmax.f32 %v4030, %v4031
        %v4033 = vrot.slane %v4032, 2
        %v4034 = vmax.f32 %v4032, %v4033
        %v4035 = vrot.slane %v4034, 1
        %v4036 = vmax.f32 %v4034, %v4035
        %v4037 = vsel %vm1855, %v3957, -inf
        %v4038 = vrot.slane %v4037, 4
        %v4039 = vmax.f32 %v4037, %v4038
        %v4040 = vrot.slane %v4039, 2
        %v4041 = vmax.f32 %v4039, %v4040
        %v4042 = vrot.slane %v4041, 1
        %v4043 = vmax.f32 %v4041, %v4042
        %v4044 = vsel %vm1961, %v3958, -inf
        %v4045 = vrot.slane %v4044, 4
        %v4046 = vmax.f32 %v4044, %v4045
        %v4047 = vrot.slane %v4046, 2
        %v4048 = vmax.f32 %v4046, %v4047
        %v4049 = vrot.slane %v4048, 1
        %v4050 = vmax.f32 %v4048, %v4049
        %v4051 = vsel %vm1855, %v3960, -inf
        %v4052 = vrot.slane %v4051, 4
        %v4053 = vmax.f32 %v4051, %v4052
        %v4054 = vrot.slane %v4053, 2
        %v4055 = vmax.f32 %v4053, %v4054
        %v4056 = vrot.slane %v4055, 1
        %v4057 = vmax.f32 %v4055, %v4056
        %v4058 = vsel %vm1961, %v3961, -inf
        %v4059 = vrot.slane %v4058, 4
        %v4060 = vmax.f32 %v4058, %v4059
        %v4061 = vrot.slane %v4060, 2
        %v4062 = vmax.f32 %v4060, %v4061
        %v4063 = vrot.slane %v4062, 1
        %v4064 = vmax.f32 %v4062, %v4063
        %v4065 = vsel %vm1855, %v3963, -inf
        %v4066 = vrot.slane %v4065, 4
        %v4067 = vmax.f32 %v4065, %v4066
        %v4068 = vrot.slane %v4067, 2
        %v4069 = vmax.f32 %v4067, %v4068
        %v4070 = vrot.slane %v4069, 1
        %v4071 = vmax.f32 %v4069, %v4070
        %v4072 = vsel %vm1961, %v3964, -inf
        %v4073 = vrot.slane %v4072, 4
        %v4074 = vmax.f32 %v4072, %v4073
        %v4075 = vrot.slane %v4074, 2
        %v4076 = vmax.f32 %v4074, %v4075
        %v4077 = vrot.slane %v4076, 1
        %v4078 = vmax.f32 %v4076, %v4077
        %v4079 = vsel %vm1855, %v3966, -inf
        %v4080 = vrot.slane %v4079, 4
        %v4081 = vmax.f32 %v4079, %v4080
        %v4082 = vrot.slane %v4081, 2
        %v4083 = vmax.f32 %v4081, %v4082
        %v4084 = vrot.slane %v4083, 1
        %v4085 = vmax.f32 %v4083, %v4084
        %v4086 = vsel %vm1961, %v3967, -inf
        %v4087 = vrot.slane %v4086, 4
        %v4088 = vmax.f32 %v4086, %v4087
        %v4089 = vrot.slane %v4088, 2
        %v4090 = vmax.f32 %v4088, %v4089
        %v4091 = vrot.slane %v4090, 1
        %v4092 = vmax.f32 %v4090, %v4091
        %v4093 = vsel %vm1855, %v3969, -inf
        %v4094 = vrot.slane %v4093, 4
        %v4095 = vmax.f32 %v4093, %v4094
        %v4096 = vrot.slane %v4095, 2
        %v4097 = vmax.f32 %v4095, %v4096
        %v4098 = vrot.slane %v4097, 1
        %v4099 = vmax.f32 %v4097, %v4098
        %v4100 = vsel %vm1961, %v3970, -inf
        %v4101 = vrot.slane %v4100, 4
        %v4102 = vmax.f32 %v4100, %v4101
        %v4103 = vrot.slane %v4102, 2
        %v4104 = vmax.f32 %v4102, %v4103
        %v4105 = vrot.slane %v4104, 1
        %v4106 = vmax.f32 %v4104, %v4105
        %v4107 = vsel %vm1855, %v3972, -inf
        %v4108 = vrot.slane %v4107, 4
        %v4109 = vmax.f32 %v4107, %v4108
        %v4110 = vrot.slane %v4109, 2
        %v4111 = vmax.f32 %v4109, %v4110
        %v4112 = vrot.slane %v4111, 1
        %v4113 = vmax.f32 %v4111, %v4112
        %v4114 = vsel %vm1961, %v3973, -inf
        %v4115 = vrot.slane %v4114, 4
        %v4116 = vmax.f32 %v4114, %v4115
        %v4117 = vrot.slane %v4116, 2
        %v4118 = vmax.f32 %v4116, %v4117
        %v4119 = vrot.slane %v4118, 1
        %v4120 = vmax.f32 %v4118, %v4119
        %v4121 = vsel %vm1855, %v3975, -inf
        %v4122 = vrot.slane %v4121, 4
        %v4123 = vmax.f32 %v4121, %v4122
        %v4124 = vrot.slane %v4123, 2
        %v4125 = vmax.f32 %v4123, %v4124
        %v4126 = vrot.slane %v4125, 1
        %v4127 = vmax.f32 %v4125, %v4126
        %v4128 = vsel %vm1961, %v3976, -inf
        %v4129 = vrot.slane %v4128, 4
        %v4130 = vmax.f32 %v4128, %v4129
        %v4131 = vrot.slane %v4130, 2
        %v4132 = vmax.f32 %v4130, %v4131
        %v4133 = vrot.slane %v4132, 1
        %v4134 = vmax.f32 %v4132, %v4133
        %v4135 = vsel %vm1855, %v3978, -inf
        %v4136 = vrot.slane %v4135, 4
        %v4137 = vmax.f32 %v4135, %v4136
        %v4138 = vrot.slane %v4137, 2
        %v4139 = vmax.f32 %v4137, %v4138
        %v4140 = vrot.slane %v4139, 1
        %v4141 = vmax.f32 %v4139, %v4140
        %v4142 = vsel %vm1961, %v3979, -inf
        %v4143 = vrot.slane %v4142, 4
        %v4144 = vmax.f32 %v4142, %v4143
        %v4145 = vrot.slane %v4144, 2
        %v4146 = vmax.f32 %v4144, %v4145
        %v4147 = vrot.slane %v4146, 1
        %v4148 = vmax.f32 %v4146, %v4147
        %v4149 = vsel %vm1855, %v3981, -inf
        %v4150 = vrot.slane %v4149, 4
        %v4151 = vmax.f32 %v4149, %v4150
        %v4152 = vrot.slane %v4151, 2
        %v4153 = vmax.f32 %v4151, %v4152
        %v4154 = vrot.slane %v4153, 1
        %v4155 = vmax.f32 %v4153, %v4154
        %v4156 = vsel %vm1961, %v3982, -inf
        %v4157 = vrot.slane %v4156, 4
        %v4158 = vmax.f32 %v4156, %v4157
        %v4159 = vrot.slane %v4158, 2
        %v4160 = vmax.f32 %v4158, %v4159
        %v4161 = vrot.slane %v4160, 1
        %v4162 = vmax.f32 %v4160, %v4161
        %v4163 = vsel %vm1855, %v3984, -inf
        %v4164 = vrot.slane %v4163, 4
        %v4165 = vmax.f32 %v4163, %v4164
        %v4166 = vrot.slane %v4165, 2
        %v4167 = vmax.f32 %v4165, %v4166
        %v4168 = vrot.slane %v4167, 1
        %v4169 = vmax.f32 %v4167, %v4168
        %v4170 = vsel %vm1961, %v3985, -inf
        %v4171 = vrot.slane %v4170, 4
        %v4172 = vmax.f32 %v4170, %v4171
        %v4173 = vrot.slane %v4172, 2
        %v4174 = vmax.f32 %v4172, %v4173
        %v4175 = vrot.slane %v4174, 1
        %v4176 = vmax.f32 %v4174, %v4175
        %v4177 = vsel %vm1855, %v3987, -inf
        %v4178 = vrot.slane %v4177, 4
        %v4179 = vmax.f32 %v4177, %v4178
        %v4180 = vrot.slane %v4179, 2
        %v4181 = vmax.f32 %v4179, %v4180
        %v4182 = vrot.slane %v4181, 1
        %v4183 = vmax.f32 %v4181, %v4182
        %v4184 = vsel %vm1961, %v3988, -inf
        %v4185 = vrot.slane %v4184, 4
        %v4186 = vmax.f32 %v4184, %v4185
        %v4187 = vrot.slane %v4186, 2
        %v4188 = vmax.f32 %v4186, %v4187
        %v4189 = vrot.slane %v4188, 1
        %v4190 = vmax.f32 %v4188, %v4189
        %v4191 = vsel %vm1855, %v3990, -inf
        %v4192 = vrot.slane %v4191, 4
        %v4193 = vmax.f32 %v4191, %v4192
        %v4194 = vrot.slane %v4193, 2
        %v4195 = vmax.f32 %v4193, %v4194
        %v4196 = vrot.slane %v4195, 1
        %v4197 = vmax.f32 %v4195, %v4196
        %v4198 = vsel %vm1961, %v3991, -inf
        %v4199 = vrot.slane %v4198, 4
        %v4200 = vmax.f32 %v4198, %v4199
        %v4201 = vrot.slane %v4200, 2
        %v4202 = vmax.f32 %v4200, %v4201
        %v4203 = vrot.slane %v4202, 1
        %v4204 = vmax.f32 %v4202, %v4203
        %v4205 = vsel %vm1855, %v3993, -inf
        %v4206 = vrot.slane %v4205, 4
        %v4207 = vmax.f32 %v4205, %v4206
        %v4208 = vrot.slane %v4207, 2
        %v4209 = vmax.f32 %v4207, %v4208
        %v4210 = vrot.slane %v4209, 1
        %v4211 = vmax.f32 %v4209, %v4210
        %v4212 = vsel %vm1961, %v3994, -inf
        %v4213 = vrot.slane %v4212, 4
        %v4214 = vmax.f32 %v4212, %v4213
        %v4215 = vrot.slane %v4214, 2
        %v4216 = vmax.f32 %v4214, %v4215
        %v4217 = vrot.slane %v4216, 1
        %v4218 = vmax.f32 %v4216, %v4217
        %v4219 = vld [vmem:[%s2] sm:$0x3]
        %v4221 = vperm.slane %v4219, 0
        %v4222 = vperm.slane %v4219, 1
        %v4225 = vadd.f32 %v4029, %v4221
        %v4226 = vadd.f32 %v4036, %v4222
        %v4227 = vadd.f32 %v4043, %v4221
        %v4228 = vadd.f32 %v4050, %v4222
        %v4229 = vadd.f32 %v4057, %v4221
        %v4230 = vadd.f32 %v4064, %v4222
        %v4231 = vadd.f32 %v4071, %v4221
        %v4232 = vadd.f32 %v4078, %v4222
        %v4233 = vadd.f32 %v4085, %v4221
        %v4234 = vadd.f32 %v4092, %v4222
        %v4235 = vadd.f32 %v4099, %v4221
        %v4236 = vadd.f32 %v4106, %v4222
        %v4237 = vadd.f32 %v4113, %v4221
        %v4238 = vadd.f32 %v4120, %v4222
        %v4239 = vadd.f32 %v4127, %v4221
        %v4240 = vadd.f32 %v4134, %v4222
        %v4241 = vadd.f32 %v4141, %v4221
        %v4242 = vadd.f32 %v4148, %v4222
        %v4243 = vadd.f32 %v4155, %v4221
        %v4244 = vadd.f32 %v4162, %v4222
        %v4245 = vadd.f32 %v4169, %v4221
        %v4246 = vadd.f32 %v4176, %v4222
        %v4247 = vadd.f32 %v4183, %v4221
        %v4248 = vadd.f32 %v4190, %v4222
        %v4249 = vadd.f32 %v4197, %v4221
        %v4250 = vadd.f32 %v4204, %v4222
        %v4251 = vadd.f32 %v4211, %v4221
        %v4252 = vadd.f32 %v4218, %v4222
        %v4253 = vmax.f32 %v4225, 0.0
        %v4254 = vmax.f32 %v4226, 0.0
        %v4255 = vmax.f32 %v4227, 0.0
        %v4256 = vmax.f32 %v4228, 0.0
        %v4257 = vmax.f32 %v4229, 0.0
        %v4258 = vmax.f32 %v4230, 0.0
        %v4259 = vmax.f32 %v4231, 0.0
        %v4260 = vmax.f32 %v4232, 0.0
        %v4261 = vmax.f32 %v4233, 0.0
        %v4262 = vmax.f32 %v4234, 0.0
        %v4263 = vmax.f32 %v4235, 0.0
        %v4264 = vmax.f32 %v4236, 0.0
        %v4265 = vmax.f32 %v4237, 0.0
        %v4266 = vmax.f32 %v4238, 0.0
        %v4267 = vmax.f32 %v4239, 0.0
        %v4268 = vmax.f32 %v4240, 0.0
        %v4269 = vmax.f32 %v4241, 0.0
        %v4270 = vmax.f32 %v4242, 0.0
        %v4271 = vmax.f32 %v4243, 0.0
        %v4272 = vmax.f32 %v4244, 0.0
        %v4273 = vmax.f32 %v4245, 0.0
        %v4274 = vmax.f32 %v4246, 0.0
        %v4275 = vmax.f32 %v4247, 0.0
        %v4276 = vmax.f32 %v4248, 0.0
        %v4277 = vmax.f32 %v4249, 0.0
        %v4278 = vmax.f32 %v4250, 0.0
        %v4279 = vmax.f32 %v4251, 0.0
        %v4280 = vmax.f32 %v4252, 0.0
        %s4281 = scalar_lea.vmem [#allocation3], 128
        %4282 = vst.msk [vmem:[%s4281] ss:$8 sm:$0x3] %vm2216, 0.0
        %4283 = vst.msk [vmem:[%s4281] ss:$8 sm:$0x0] %vm2216, 0.0
        %s4284 = scalar_lea.vmem [#allocation3], 151
        %4285 = vst.msk [vmem:[%s4284] ss:$8 sm:$0x3] %vm2216, 0.0
        %4286 = vst.msk [vmem:[%s4284] ss:$8 sm:$0x0] %vm2216, 0.0
        %v4315 = vrot.slane %v4253, 7
        %v4316 = vrot.slane %v4255, 6
        %v4317 = vsel %vm2252, %v4316, %v4315
        %v4318 = vrot.slane %v4257, 5
        %v4319 = vsel %vm2255, %v4318, %v4317
        %v4320 = vrot.slane %v4259, 4
        %v4321 = vsel %vm2258, %v4320, %v4319
        %v4322 = vrot.slane %v4261, 3
        %v4323 = vsel %vm2261, %v4322, %v4321
        %v4324 = vrot.slane %v4263, 2
        %v4325 = vsel %vm2264, %v4324, %v4323
        %v4326 = vrot.slane %v4265, 1
        %v4327 = vsel %vm2267, %v4326, %v4325
        %v4328 = vrot.slane %v4254, 7
        %v4329 = vrot.slane %v4256, 6
        %v4330 = vsel %vm2252, %v4329, %v4328
        %v4331 = vrot.slane %v4258, 5
        %v4332 = vsel %vm2255, %v4331, %v4330
        %v4333 = vrot.slane %v4260, 4
        %v4334 = vsel %vm2258, %v4333, %v4332
        %v4335 = vrot.slane %v4262, 3
        %v4336 = vsel %vm2261, %v4335, %v4334
        %v4337 = vrot.slane %v4264, 2
        %v4338 = vsel %vm2264, %v4337, %v4336
        %v4339 = vrot.slane %v4266, 1
        %v4340 = vsel %vm2267, %v4339, %v4338
        %v4341 = vrot.slane %v4269, 7
        %v4342 = vsel %vm2283, %v4341, %v4267
        %v4343 = vrot.slane %v4271, 6
        %v4344 = vsel %vm2252, %v4343, %v4342
        %v4345 = vrot.slane %v4273, 5
        %v4346 = vsel %vm2255, %v4345, %v4344
        %v4347 = vrot.slane %v4275, 4
        %v4348 = vsel %vm2258, %v4347, %v4346
        %v4349 = vrot.slane %v4277, 3
        %v4350 = vsel %vm2261, %v4349, %v4348
        %v4351 = vrot.slane %v4279, 2
        %v4352 = vsel %vm2264, %v4351, %v4350
        %v4353 = vrot.slane %v4270, 7
        %v4354 = vsel %vm2283, %v4353, %v4268
        %v4355 = vrot.slane %v4272, 6
        %v4356 = vsel %vm2252, %v4355, %v4354
        %v4357 = vrot.slane %v4274, 5
        %v4358 = vsel %vm2255, %v4357, %v4356
        %v4359 = vrot.slane %v4276, 4
        %v4360 = vsel %vm2258, %v4359, %v4358
        %v4361 = vrot.slane %v4278, 3
        %v4362 = vsel %vm2261, %v4361, %v4360
        %v4363 = vrot.slane %v4280, 2
        %v4364 = vsel %vm2264, %v4363, %v4362
        %4369 = vst [vmem:[#allocation3 + $0x80] sm:$0xfe] %v4327
        %4370 = vst.msk [vmem:[#allocation3 + $0x88] sm:$0xfe] %vm2312, %v4340
        %4371 = vst [vmem:[#allocation3 + $0x90] sm:$0x7f] %v4352
        %4372 = vst.msk [vmem:[#allocation3 + $0x98] sm:$0x7f] %vm2315, %v4364
        %v4373 = vld [vmem:[#allocation2 + $0x120] sm:$0xc0]
        %v4374 = vld [vmem:[#allocation2 + $0x128] sm:$0xc0]
        %v4375 = vld [vmem:[#allocation2 + $0x130] sm:$0xff]
        %v4376 = vld [vmem:[#allocation2 + $0x138] sm:$0xff]
        %v4377 = vld [vmem:[#allocation2 + $0x140] sm:$0xff]
        %v4378 = vld [vmem:[#allocation2 + $0x148] sm:$0xff]
        %v4379 = vld [vmem:[#allocation2 + $0x150] sm:$0xff]
        %v4380 = vld [vmem:[#allocation2 + $0x158] sm:$0xff]
        %v4381 = vld [vmem:[#allocation2 + $0x160] sm:$0x3]
        %v4382 = vld [vmem:[#allocation2 + $0x168] sm:$0x3]
        %4393 = vrot.lane.b32.xlu0 %v4373, 120
        %v4394 = vpop.permute.xlu0 %4393
        %4395 = vrot.lane.b32.xlu0 %v4374, 120
        %v4396 = vpop.permute.xlu0 %4395
        %4397 = vrot.lane.b32.xlu0 %v4375, 120
        %v4398 = vpop.permute.xlu0 %4397
        %4399 = vrot.lane.b32.xlu0 %v4376, 120
        %v4400 = vpop.permute.xlu0 %4399
        %4401 = vrot.lane.b32.xlu0 %v4377, 120
        %v4402 = vpop.permute.xlu0 %4401
        %4403 = vrot.lane.b32.xlu0 %v4378, 120
        %v4404 = vpop.permute.xlu0 %4403
        %4405 = vrot.lane.b32.xlu0 %v4379, 120
        %v4406 = vpop.permute.xlu0 %4405
        %4407 = vrot.lane.b32.xlu0 %v4380, 120
        %v4408 = vpop.permute.xlu0 %4407
        %4409 = vrot.lane.b32.xlu0 %v4381, 120
        %v4410 = vpop.permute.xlu0 %4409
        %4411 = vrot.lane.b32.xlu0 %v4382, 120
        %v4412 = vpop.permute.xlu0 %4411
        %v4413 = vsel %vm1822, %v4394, %v4396
        %v4414 = vsel %vm1822, %v4398, %v4400
        %v4415 = vsel %vm1822, %v4402, %v4404
        %v4416 = vsel %vm1822, %v4406, %v4408
        %v4417 = vsel %vm1822, %v4410, %v4412
        %v4428 = vmax.f32 %v4373, %v4413
        %v4429 = vmax.f32 %v4374, %v4396
        %v4430 = vmax.f32 %v4375, %v4414
        %v4431 = vmax.f32 %v4376, %v4400
        %v4432 = vmax.f32 %v4377, %v4415
        %v4433 = vmax.f32 %v4378, %v4404
        %v4434 = vmax.f32 %v4379, %v4416
        %v4435 = vmax.f32 %v4380, %v4408
        %v4436 = vmax.f32 %v4381, %v4417
        %v4437 = vmax.f32 %v4382, %v4412
        %4448 = vst.sshfl [vmem:[#allocation1] sm:$0xff pattern:$0x73625140] %v4428
        %4449 = vst.sshfl [vmem:[#allocation1 + $0x8] sm:$0xff pattern:$0x73625140] %v4429
        %4450 = vst.sshfl [vmem:[#allocation1 + $0x20] sm:$0xff pattern:$0x73625140] %v4430
        %4451 = vst.sshfl [vmem:[#allocation1 + $0x28] sm:$0xff pattern:$0x73625140] %v4431
        %s4452 = scalar_lea.vmem [#allocation1], 3
        %v4453 = vld [vmem:[%s4452] ss:$4 sm:$0xff]
        %s4454 = scalar_lea.vmem [#allocation1], 32
        %v4455 = vld [vmem:[%s4454] ss:$4 sm:$0xff]
        %s4456 = scalar_lea.vmem [#allocation1], 33
        %v4457 = vld [vmem:[%s4456] ss:$4 sm:$0xff]
        %s4458 = scalar_lea.vmem [#allocation1], 34
        %v4459 = vld [vmem:[%s4458] ss:$4 sm:$0xff]
        %s4460 = scalar_lea.vmem [#allocation1], 35
        %v4461 = vld [vmem:[%s4460] ss:$4 sm:$0xff]
        %4462 = vst.sshfl [vmem:[#allocation1] sm:$0xff pattern:$0x73625140] %v4432
        %4463 = vst.sshfl [vmem:[#allocation1 + $0x8] sm:$0xff pattern:$0x73625140] %v4433
        %4464 = vst.sshfl [vmem:[#allocation1 + $0x20] sm:$0xff pattern:$0x73625140] %v4434
        %4465 = vst.sshfl [vmem:[#allocation1 + $0x28] sm:$0xff pattern:$0x73625140] %v4435
        %v4466 = vld [vmem:[#allocation1] ss:$4 sm:$0xff]
        %s4467 = scalar_lea.vmem [#allocation1], 1
        %v4468 = vld [vmem:[%s4467] ss:$4 sm:$0xff]
        %s4469 = scalar_lea.vmem [#allocation1], 2
        %v4470 = vld [vmem:[%s4469] ss:$4 sm:$0xff]
        %v4471 = vld [vmem:[%s4452] ss:$4 sm:$0xff]
        %v4472 = vld [vmem:[%s4454] ss:$4 sm:$0xff]
        %v4473 = vld [vmem:[%s4456] ss:$4 sm:$0xff]
        %v4474 = vld [vmem:[%s4458] ss:$4 sm:$0xff]
        %v4475 = vld [vmem:[%s4460] ss:$4 sm:$0xff]
        %4476 = vst.sshfl [vmem:[#allocation1] sm:$0xff pattern:$0x73625140] %v4436
        %4477 = vst.sshfl [vmem:[#allocation1 + $0x8] sm:$0xff pattern:$0x73625140] %v4437
        %v4478 = vld [vmem:[#allocation1] ss:$4 sm:$0xff]
        %4479 = vst [vmem:[#allocation1] ss:$4 sm:$0xff] %v4453
        %v4480 = vld.sshfl [vmem:[#allocation1] sm:$0xff pattern:$0x73625140]
        %v4481 = vld.sshfl [vmem:[#allocation1 + $0x8] sm:$0xff pattern:$0x73625140]
        %s4482 = scalar_lea.vmem [#allocation1], 32
        %4483 = vst [vmem:[%s4482] ss:$4 sm:$0xff] %v4455
        %v4484 = vld.sshfl [vmem:[#allocation1 + $0x20] sm:$0xff pattern:$0x73625140]
        %v4485 = vld.sshfl [vmem:[#allocation1 + $0x28] sm:$0xff pattern:$0x73625140]
        %4486 = vst [vmem:[#allocation1] ss:$4 sm:$0xff] %v4457
        %v4487 = vld.sshfl [vmem:[#allocation1] sm:$0xff pattern:$0x73625140]
        %v4488 = vld.sshfl [vmem:[#allocation1 + $0x8] sm:$0xff pattern:$0x73625140]
        %4489 = vst [vmem:[%s4482] ss:$4 sm:$0xff] %v4459
        %v4490 = vld.sshfl [vmem:[#allocation1 + $0x20] sm:$0xff pattern:$0x73625140]
        %v4491 = vld.sshfl [vmem:[#allocation1 + $0x28] sm:$0xff pattern:$0x73625140]
        %4492 = vst [vmem:[#allocation1] ss:$4 sm:$0xff] %v4461
        %v4493 = vld.sshfl [vmem:[#allocation1] sm:$0xff pattern:$0x73625140]
        %v4494 = vld.sshfl [vmem:[#allocation1 + $0x8] sm:$0xff pattern:$0x73625140]
        %4495 = vst [vmem:[%s4482] ss:$4 sm:$0xff] %v4466
        %v4496 = vld.sshfl [vmem:[#allocation1 + $0x20] sm:$0xff pattern:$0x73625140]
        %v4497 = vld.sshfl [vmem:[#allocation1 + $0x28] sm:$0xff pattern:$0x73625140]
        %4498 = vst [vmem:[#allocation1] ss:$4 sm:$0xff] %v4468
        %v4499 = vld.sshfl [vmem:[#allocation1] sm:$0xff pattern:$0x73625140]
        %v4500 = vld.sshfl [vmem:[#allocation1 + $0x8] sm:$0xff pattern:$0x73625140]
        %4501 = vst [vmem:[%s4482] ss:$4 sm:$0xff] %v4470
        %v4502 = vld.sshfl [vmem:[#allocation1 + $0x20] sm:$0xff pattern:$0x73625140]
        %v4503 = vld.sshfl [vmem:[#allocation1 + $0x28] sm:$0xff pattern:$0x73625140]
        %4504 = vst [vmem:[#allocation1] ss:$4 sm:$0xff] %v4471
        %v4505 = vld.sshfl [vmem:[#allocation1] sm:$0xff pattern:$0x73625140]
        %v4506 = vld.sshfl [vmem:[#allocation1 + $0x8] sm:$0xff pattern:$0x73625140]
        %4507 = vst [vmem:[%s4482] ss:$4 sm:$0xff] %v4472
        %v4508 = vld.sshfl [vmem:[#allocation1 + $0x20] sm:$0xff pattern:$0x73625140]
        %v4509 = vld.sshfl [vmem:[#allocation1 + $0x28] sm:$0xff pattern:$0x73625140]
        %4510 = vst [vmem:[#allocation1] ss:$4 sm:$0xff] %v4473
        %v4511 = vld.sshfl [vmem:[#allocation1] sm:$0xff pattern:$0x73625140]
        %v4512 = vld.sshfl [vmem:[#allocation1 + $0x8] sm:$0xff pattern:$0x73625140]
        %4513 = vst [vmem:[%s4482] ss:$4 sm:$0xff] %v4474
        %v4514 = vld.sshfl [vmem:[#allocation1 + $0x20] sm:$0xff pattern:$0x73625140]
        %v4515 = vld.sshfl [vmem:[#allocation1 + $0x28] sm:$0xff pattern:$0x73625140]
        %4516 = vst [vmem:[#allocation1] ss:$4 sm:$0xff] %v4475
        %v4517 = vld.sshfl [vmem:[#allocation1] sm:$0xff pattern:$0x73625140]
        %v4518 = vld.sshfl [vmem:[#allocation1 + $0x8] sm:$0xff pattern:$0x73625140]
        %4519 = vst [vmem:[%s4482] ss:$4 sm:$0xff] %v4478
        %v4520 = vld.sshfl [vmem:[#allocation1 + $0x20] sm:$0xff pattern:$0x73625140]
        %v4521 = vld.sshfl [vmem:[#allocation1 + $0x28] sm:$0xff pattern:$0x73625140]
        %v4550 = vsel %vm1855, %v4480, -inf
        %v4551 = vrot.slane %v4550, 4
        %v4552 = vmax.f32 %v4550, %v4551
        %v4553 = vrot.slane %v4552, 2
        %v4554 = vmax.f32 %v4552, %v4553
        %v4555 = vrot.slane %v4554, 1
        %v4556 = vmax.f32 %v4554, %v4555
        %v4557 = vsel %vm1961, %v4481, -inf
        %v4558 = vrot.slane %v4557, 4
        %v4559 = vmax.f32 %v4557, %v4558
        %v4560 = vrot.slane %v4559, 2
        %v4561 = vmax.f32 %v4559, %v4560
        %v4562 = vrot.slane %v4561, 1
        %v4563 = vmax.f32 %v4561, %v4562
        %v4564 = vsel %vm1855, %v4484, -inf
        %v4565 = vrot.slane %v4564, 4
        %v4566 = vmax.f32 %v4564, %v4565
        %v4567 = vrot.slane %v4566, 2
        %v4568 = vmax.f32 %v4566, %v4567
        %v4569 = vrot.slane %v4568, 1
        %v4570 = vmax.f32 %v4568, %v4569
        %v4571 = vsel %vm1961, %v4485, -inf
        %v4572 = vrot.slane %v4571, 4
        %v4573 = vmax.f32 %v4571, %v4572
        %v4574 = vrot.slane %v4573, 2
        %v4575 = vmax.f32 %v4573, %v4574
        %v4576 = vrot.slane %v4575, 1
        %v4577 = vmax.f32 %v4575, %v4576
        %v4578 = vsel %vm1855, %v4487, -inf
        %v4579 = vrot.slane %v4578, 4
        %v4580 = vmax.f32 %v4578, %v4579
        %v4581 = vrot.slane %v4580, 2
        %v4582 = vmax.f32 %v4580, %v4581
        %v4583 = vrot.slane %v4582, 1
        %v4584 = vmax.f32 %v4582, %v4583
        %v4585 = vsel %vm1961, %v4488, -inf
        %v4586 = vrot.slane %v4585, 4
        %v4587 = vmax.f32 %v4585, %v4586
        %v4588 = vrot.slane %v4587, 2
        %v4589 = vmax.f32 %v4587, %v4588
        %v4590 = vrot.slane %v4589, 1
        %v4591 = vmax.f32 %v4589, %v4590
        %v4592 = vsel %vm1855, %v4490, -inf
        %v4593 = vrot.slane %v4592, 4
        %v4594 = vmax.f32 %v4592, %v4593
        %v4595 = vrot.slane %v4594, 2
        %v4596 = vmax.f32 %v4594, %v4595
        %v4597 = vrot.slane %v4596, 1
        %v4598 = vmax.f32 %v4596, %v4597
        %v4599 = vsel %vm1961, %v4491, -inf
        %v4600 = vrot.slane %v4599, 4
        %v4601 = vmax.f32 %v4599, %v4600
        %v4602 = vrot.slane %v4601, 2
        %v4603 = vmax.f32 %v4601, %v4602
        %v4604 = vrot.slane %v4603, 1
        %v4605 = vmax.f32 %v4603, %v4604
        %v4606 = vsel %vm1855, %v4493, -inf
        %v4607 = vrot.slane %v4606, 4
        %v4608 = vmax.f32 %v4606, %v4607
        %v4609 = vrot.slane %v4608, 2
        %v4610 = vmax.f32 %v4608, %v4609
        %v4611 = vrot.slane %v4610, 1
        %v4612 = vmax.f32 %v4610, %v4611
        %v4613 = vsel %vm1961, %v4494, -inf
        %v4614 = vrot.slane %v4613, 4
        %v4615 = vmax.f32 %v4613, %v4614
        %v4616 = vrot.slane %v4615, 2
        %v4617 = vmax.f32 %v4615, %v4616
        %v4618 = vrot.slane %v4617, 1
        %v4619 = vmax.f32 %v4617, %v4618
        %v4620 = vsel %vm1855, %v4496, -inf
        %v4621 = vrot.slane %v4620, 4
        %v4622 = vmax.f32 %v4620, %v4621
        %v4623 = vrot.slane %v4622, 2
        %v4624 = vmax.f32 %v4622, %v4623
        %v4625 = vrot.slane %v4624, 1
        %v4626 = vmax.f32 %v4624, %v4625
        %v4627 = vsel %vm1961, %v4497, -inf
        %v4628 = vrot.slane %v4627, 4
        %v4629 = vmax.f32 %v4627, %v4628
        %v4630 = vrot.slane %v4629, 2
        %v4631 = vmax.f32 %v4629, %v4630
        %v4632 = vrot.slane %v4631, 1
        %v4633 = vmax.f32 %v4631, %v4632
        %v4634 = vsel %vm1855, %v4499, -inf
        %v4635 = vrot.slane %v4634, 4
        %v4636 = vmax.f32 %v4634, %v4635
        %v4637 = vrot.slane %v4636, 2
        %v4638 = vmax.f32 %v4636, %v4637
        %v4639 = vrot.slane %v4638, 1
        %v4640 = vmax.f32 %v4638, %v4639
        %v4641 = vsel %vm1961, %v4500, -inf
        %v4642 = vrot.slane %v4641, 4
        %v4643 = vmax.f32 %v4641, %v4642
        %v4644 = vrot.slane %v4643, 2
        %v4645 = vmax.f32 %v4643, %v4644
        %v4646 = vrot.slane %v4645, 1
        %v4647 = vmax.f32 %v4645, %v4646
        %v4648 = vsel %vm1855, %v4502, -inf
        %v4649 = vrot.slane %v4648, 4
        %v4650 = vmax.f32 %v4648, %v4649
        %v4651 = vrot.slane %v4650, 2
        %v4652 = vmax.f32 %v4650, %v4651
        %v4653 = vrot.slane %v4652, 1
        %v4654 = vmax.f32 %v4652, %v4653
        %v4655 = vsel %vm1961, %v4503, -inf
        %v4656 = vrot.slane %v4655, 4
        %v4657 = vmax.f32 %v4655, %v4656
        %v4658 = vrot.slane %v4657, 2
        %v4659 = vmax.f32 %v4657, %v4658
        %v4660 = vrot.slane %v4659, 1
        %v4661 = vmax.f32 %v4659, %v4660
        %v4662 = vsel %vm1855, %v4505, -inf
        %v4663 = vrot.slane %v4662, 4
        %v4664 = vmax.f32 %v4662, %v4663
        %v4665 = vrot.slane %v4664, 2
        %v4666 = vmax.f32 %v4664, %v4665
        %v4667 = vrot.slane %v4666, 1
        %v4668 = vmax.f32 %v4666, %v4667
        %v4669 = vsel %vm1961, %v4506, -inf
        %v4670 = vrot.slane %v4669, 4
        %v4671 = vmax.f32 %v4669, %v4670
        %v4672 = vrot.slane %v4671, 2
        %v4673 = vmax.f32 %v4671, %v4672
        %v4674 = vrot.slane %v4673, 1
        %v4675 = vmax.f32 %v4673, %v4674
        %v4676 = vsel %vm1855, %v4508, -inf
        %v4677 = vrot.slane %v4676, 4
        %v4678 = vmax.f32 %v4676, %v4677
        %v4679 = vrot.slane %v4678, 2
        %v4680 = vmax.f32 %v4678, %v4679
        %v4681 = vrot.slane %v4680, 1
        %v4682 = vmax.f32 %v4680, %v4681
        %v4683 = vsel %vm1961, %v4509, -inf
        %v4684 = vrot.slane %v4683, 4
        %v4685 = vmax.f32 %v4683, %v4684
        %v4686 = vrot.slane %v4685, 2
        %v4687 = vmax.f32 %v4685, %v4686
        %v4688 = vrot.slane %v4687, 1
        %v4689 = vmax.f32 %v4687, %v4688
        %v4690 = vsel %vm1855, %v4511, -inf
        %v4691 = vrot.slane %v4690, 4
        %v4692 = vmax.f32 %v4690, %v4691
        %v4693 = vrot.slane %v4692, 2
        %v4694 = vmax.f32 %v4692, %v4693
        %v4695 = vrot.slane %v4694, 1
        %v4696 = vmax.f32 %v4694, %v4695
        %v4697 = vsel %vm1961, %v4512, -inf
        %v4698 = vrot.slane %v4697, 4
        %v4699 = vmax.f32 %v4697, %v4698
        %v4700 = vrot.slane %v4699, 2
        %v4701 = vmax.f32 %v4699, %v4700
        %v4702 = vrot.slane %v4701, 1
        %v4703 = vmax.f32 %v4701, %v4702
        %v4704 = vsel %vm1855, %v4514, -inf
        %v4705 = vrot.slane %v4704, 4
        %v4706 = vmax.f32 %v4704, %v4705
        %v4707 = vrot.slane %v4706, 2
        %v4708 = vmax.f32 %v4706, %v4707
        %v4709 = vrot.slane %v4708, 1
        %v4710 = vmax.f32 %v4708, %v4709
        %v4711 = vsel %vm1961, %v4515, -inf
        %v4712 = vrot.slane %v4711, 4
        %v4713 = vmax.f32 %v4711, %v4712
        %v4714 = vrot.slane %v4713, 2
        %v4715 = vmax.f32 %v4713, %v4714
        %v4716 = vrot.slane %v4715, 1
        %v4717 = vmax.f32 %v4715, %v4716
        %v4718 = vsel %vm1855, %v4517, -inf
        %v4719 = vrot.slane %v4718, 4
        %v4720 = vmax.f32 %v4718, %v4719
        %v4721 = vrot.slane %v4720, 2
        %v4722 = vmax.f32 %v4720, %v4721
        %v4723 = vrot.slane %v4722, 1
        %v4724 = vmax.f32 %v4722, %v4723
        %v4725 = vsel %vm1961, %v4518, -inf
        %v4726 = vrot.slane %v4725, 4
        %v4727 = vmax.f32 %v4725, %v4726
        %v4728 = vrot.slane %v4727, 2
        %v4729 = vmax.f32 %v4727, %v4728
        %v4730 = vrot.slane %v4729, 1
        %v4731 = vmax.f32 %v4729, %v4730
        %v4732 = vsel %vm1855, %v4520, -inf
        %v4733 = vrot.slane %v4732, 4
        %v4734 = vmax.f32 %v4732, %v4733
        %v4735 = vrot.slane %v4734, 2
        %v4736 = vmax.f32 %v4734, %v4735
        %v4737 = vrot.slane %v4736, 1
        %v4738 = vmax.f32 %v4736, %v4737
        %v4739 = vsel %vm1961, %v4521, -inf
        %v4740 = vrot.slane %v4739, 4
        %v4741 = vmax.f32 %v4739, %v4740
        %v4742 = vrot.slane %v4741, 2
        %v4743 = vmax.f32 %v4741, %v4742
        %v4744 = vrot.slane %v4743, 1
        %v4745 = vmax.f32 %v4743, %v4744
        %v4746 = vld [vmem:[%s2] sm:$0x3]
        %v4748 = vperm.slane %v4746, 0
        %v4749 = vperm.slane %v4746, 1
        %v4752 = vadd.f32 %v4556, %v4748
        %v4753 = vadd.f32 %v4563, %v4749
        %v4754 = vadd.f32 %v4570, %v4748
        %v4755 = vadd.f32 %v4577, %v4749
        %v4756 = vadd.f32 %v4584, %v4748
        %v4757 = vadd.f32 %v4591, %v4749
        %v4758 = vadd.f32 %v4598, %v4748
        %v4759 = vadd.f32 %v4605, %v4749
        %v4760 = vadd.f32 %v4612, %v4748
        %v4761 = vadd.f32 %v4619, %v4749
        %v4762 = vadd.f32 %v4626, %v4748
        %v4763 = vadd.f32 %v4633, %v4749
        %v4764 = vadd.f32 %v4640, %v4748
        %v4765 = vadd.f32 %v4647, %v4749
        %v4766 = vadd.f32 %v4654, %v4748
        %v4767 = vadd.f32 %v4661, %v4749
        %v4768 = vadd.f32 %v4668, %v4748
        %v4769 = vadd.f32 %v4675, %v4749
        %v4770 = vadd.f32 %v4682, %v4748
        %v4771 = vadd.f32 %v4689, %v4749
        %v4772 = vadd.f32 %v4696, %v4748
        %v4773 = vadd.f32 %v4703, %v4749
        %v4774 = vadd.f32 %v4710, %v4748
        %v4775 = vadd.f32 %v4717, %v4749
        %v4776 = vadd.f32 %v4724, %v4748
        %v4777 = vadd.f32 %v4731, %v4749
        %v4778 = vadd.f32 %v4738, %v4748
        %v4779 = vadd.f32 %v4745, %v4749
        %v4780 = vmax.f32 %v4752, 0.0
        %v4781 = vmax.f32 %v4753, 0.0
        %v4782 = vmax.f32 %v4754, 0.0
        %v4783 = vmax.f32 %v4755, 0.0
        %v4784 = vmax.f32 %v4756, 0.0
        %v4785 = vmax.f32 %v4757, 0.0
        %v4786 = vmax.f32 %v4758, 0.0
        %v4787 = vmax.f32 %v4759, 0.0
        %v4788 = vmax.f32 %v4760, 0.0
        %v4789 = vmax.f32 %v4761, 0.0
        %v4790 = vmax.f32 %v4762, 0.0
        %v4791 = vmax.f32 %v4763, 0.0
        %v4792 = vmax.f32 %v4764, 0.0
        %v4793 = vmax.f32 %v4765, 0.0
        %v4794 = vmax.f32 %v4766, 0.0
        %v4795 = vmax.f32 %v4767, 0.0
        %v4796 = vmax.f32 %v4768, 0.0
        %v4797 = vmax.f32 %v4769, 0.0
        %v4798 = vmax.f32 %v4770, 0.0
        %v4799 = vmax.f32 %v4771, 0.0
        %v4800 = vmax.f32 %v4772, 0.0
        %v4801 = vmax.f32 %v4773, 0.0
        %v4802 = vmax.f32 %v4774, 0.0
        %v4803 = vmax.f32 %v4775, 0.0
        %v4804 = vmax.f32 %v4776, 0.0
        %v4805 = vmax.f32 %v4777, 0.0
        %v4806 = vmax.f32 %v4778, 0.0
        %v4807 = vmax.f32 %v4779, 0.0
        %s4808 = scalar_lea.vmem [#allocation3], 160
        %4809 = vst.msk [vmem:[%s4808] ss:$8 sm:$0x3] %vm2216, 0.0
        %4810 = vst.msk [vmem:[%s4808] ss:$8 sm:$0x0] %vm2216, 0.0
        %s4811 = scalar_lea.vmem [#allocation3], 183
        %4812 = vst.msk [vmem:[%s4811] ss:$8 sm:$0x3] %vm2216, 0.0
        %4813 = vst.msk [vmem:[%s4811] ss:$8 sm:$0x0] %vm2216, 0.0
        %v4842 = vrot.slane %v4780, 7
        %v4843 = vrot.slane %v4782, 6
        %v4844 = vsel %vm2252, %v4843, %v4842
        %v4845 = vrot.slane %v4784, 5
        %v4846 = vsel %vm2255, %v4845, %v4844
        %v4847 = vrot.slane %v4786, 4
        %v4848 = vsel %vm2258, %v4847, %v4846
        %v4849 = vrot.slane %v4788, 3
        %v4850 = vsel %vm2261, %v4849, %v4848
        %v4851 = vrot.slane %v4790, 2
        %v4852 = vsel %vm2264, %v4851, %v4850
        %v4853 = vrot.slane %v4792, 1
        %v4854 = vsel %vm2267, %v4853, %v4852
        %v4855 = vrot.slane %v4781, 7
        %v4856 = vrot.slane %v4783, 6
        %v4857 = vsel %vm2252, %v4856, %v4855
        %v4858 = vrot.slane %v4785, 5
        %v4859 = vsel %vm2255, %v4858, %v4857
        %v4860 = vrot.slane %v4787, 4
        %v4861 = vsel %vm2258, %v4860, %v4859
        %v4862 = vrot.slane %v4789, 3
        %v4863 = vsel %vm2261, %v4862, %v4861
        %v4864 = vrot.slane %v4791, 2
        %v4865 = vsel %vm2264, %v4864, %v4863
        %v4866 = vrot.slane %v4793, 1
        %v4867 = vsel %vm2267, %v4866, %v4865
        %v4868 = vrot.slane %v4796, 7
        %v4869 = vsel %vm2283, %v4868, %v4794
        %v4870 = vrot.slane %v4798, 6
        %v4871 = vsel %vm2252, %v4870, %v4869
        %v4872 = vrot.slane %v4800, 5
        %v4873 = vsel %vm2255, %v4872, %v4871
        %v4874 = vrot.slane %v4802, 4
        %v4875 = vsel %vm2258, %v4874, %v4873
        %v4876 = vrot.slane %v4804, 3
        %v4877 = vsel %vm2261, %v4876, %v4875
        %v4878 = vrot.slane %v4806, 2
        %v4879 = vsel %vm2264, %v4878, %v4877
        %v4880 = vrot.slane %v4797, 7
        %v4881 = vsel %vm2283, %v4880, %v4795
        %v4882 = vrot.slane %v4799, 6
        %v4883 = vsel %vm2252, %v4882, %v4881
        %v4884 = vrot.slane %v4801, 5
        %v4885 = vsel %vm2255, %v4884, %v4883
        %v4886 = vrot.slane %v4803, 4
        %v4887 = vsel %vm2258, %v4886, %v4885
        %v4888 = vrot.slane %v4805, 3
        %v4889 = vsel %vm2261, %v4888, %v4887
        %v4890 = vrot.slane %v4807, 2
        %v4891 = vsel %vm2264, %v4890, %v4889
        %4896 = vst [vmem:[#allocation3 + $0xa0] sm:$0xfe] %v4854
        %4897 = vst.msk [vmem:[#allocation3 + $0xa8] sm:$0xfe] %vm2312, %v4867
        %4898 = vst [vmem:[#allocation3 + $0xb0] sm:$0x7f] %v4879
        %4899 = vst.msk [vmem:[#allocation3 + $0xb8] sm:$0x7f] %vm2315, %v4891
        %v4900 = vld [vmem:[#allocation2 + $0x160] sm:$0xf0]
        %v4901 = vld [vmem:[#allocation2 + $0x168] sm:$0xf0]
        %v4902 = vld [vmem:[#allocation2 + $0x170] sm:$0xff]
        %v4903 = vld [vmem:[#allocation2 + $0x178] sm:$0xff]
        %v4904 = vld [vmem:[#allocation2 + $0x180] sm:$0xff]
        %v4905 = vld [vmem:[#allocation2 + $0x188] sm:$0xff]
        %v4906 = vld [vmem:[#allocation2 + $0x190] sm:$0xff]
        %v4907 = vld [vmem:[#allocation2 + $0x198] sm:$0xff]
        %4916 = vrot.lane.b32.xlu0 %v4900, 120
        %v4917 = vpop.permute.xlu0 %4916
        %4918 = vrot.lane.b32.xlu0 %v4901, 120
        %v4919 = vpop.permute.xlu0 %4918
        %4920 = vrot.lane.b32.xlu0 %v4902, 120
        %v4921 = vpop.permute.xlu0 %4920
        %4922 = vrot.lane.b32.xlu0 %v4903, 120
        %v4923 = vpop.permute.xlu0 %4922
        %4924 = vrot.lane.b32.xlu0 %v4904, 120
        %v4925 = vpop.permute.xlu0 %4924
        %4926 = vrot.lane.b32.xlu0 %v4905, 120
        %v4927 = vpop.permute.xlu0 %4926
        %4928 = vrot.lane.b32.xlu0 %v4906, 120
        %v4929 = vpop.permute.xlu0 %4928
        %4930 = vrot.lane.b32.xlu0 %v4907, 120
        %v4931 = vpop.permute.xlu0 %4930
        %v4932 = vsel %vm1822, %v4917, %v4919
        %v4933 = vsel %vm1822, %v4921, %v4923
        %v4934 = vsel %vm1822, %v4925, %v4927
        %v4935 = vsel %vm1822, %v4929, %v4931
        %v4944 = vmax.f32 %v4900, %v4932
        %v4945 = vmax.f32 %v4901, %v4919
        %v4946 = vmax.f32 %v4902, %v4933
        %v4947 = vmax.f32 %v4903, %v4923
        %v4948 = vmax.f32 %v4904, %v4934
        %v4949 = vmax.f32 %v4905, %v4927
        %v4950 = vmax.f32 %v4906, %v4935
        %v4951 = vmax.f32 %v4907, %v4931
        %4960 = vst.sshfl [vmem:[#allocation1] sm:$0xff pattern:$0x73625140] %v4944
        %4961 = vst.sshfl [vmem:[#allocation1 + $0x8] sm:$0xff pattern:$0x73625140] %v4945
        %4962 = vst.sshfl [vmem:[#allocation1 + $0x20] sm:$0xff pattern:$0x73625140] %v4946
        %4963 = vst.sshfl [vmem:[#allocation1 + $0x28] sm:$0xff pattern:$0x73625140] %v4947
        %s4964 = scalar_lea.vmem [#allocation1], 2
        %v4965 = vld [vmem:[%s4964] ss:$4 sm:$0xff]
        %s4966 = scalar_lea.vmem [#allocation1], 3
        %v4967 = vld [vmem:[%s4966] ss:$4 sm:$0xff]
        %s4968 = scalar_lea.vmem [#allocation1], 32
        %v4969 = vld [vmem:[%s4968] ss:$4 sm:$0xff]
        %s4970 = scalar_lea.vmem [#allocation1], 33
        %v4971 = vld [vmem:[%s4970] ss:$4 sm:$0xff]
        %s4972 = scalar_lea.vmem [#allocation1], 34
        %v4973 = vld [vmem:[%s4972] ss:$4 sm:$0xff]
        %s4974 = scalar_lea.vmem [#allocation1], 35
        %v4975 = vld [vmem:[%s4974] ss:$4 sm:$0xff]
        %4976 = vst.sshfl [vmem:[#allocation1] sm:$0xff pattern:$0x73625140] %v4948
        %4977 = vst.sshfl [vmem:[#allocation1 + $0x8] sm:$0xff pattern:$0x73625140] %v4949
        %4978 = vst.sshfl [vmem:[#allocation1 + $0x20] sm:$0xff pattern:$0x73625140] %v4950
        %4979 = vst.sshfl [vmem:[#allocation1 + $0x28] sm:$0xff pattern:$0x73625140] %v4951
        %v4980 = vld [vmem:[#allocation1] ss:$4 sm:$0xff]
        %s4981 = scalar_lea.vmem [#allocation1], 1
        %v4982 = vld [vmem:[%s4981] ss:$4 sm:$0xff]
        %v4983 = vld [vmem:[%s4964] ss:$4 sm:$0xff]
        %v4984 = vld [vmem:[%s4966] ss:$4 sm:$0xff]
        %v4985 = vld [vmem:[%s4968] ss:$4 sm:$0xff]
        %v4986 = vld [vmem:[%s4970] ss:$4 sm:$0xff]
        %v4987 = vld [vmem:[%s4972] ss:$4 sm:$0xff]
        %v4988 = vld [vmem:[%s4974] ss:$4 sm:$0xff]
        %4989 = vst [vmem:[#allocation1] ss:$4 sm:$0xff] %v4965
        %v4990 = vld.sshfl [vmem:[#allocation1] sm:$0xff pattern:$0x73625140]
        %v4991 = vld.sshfl [vmem:[#allocation1 + $0x8] sm:$0xff pattern:$0x73625140]
        %s4992 = scalar_lea.vmem [#allocation1], 32
        %4993 = vst [vmem:[%s4992] ss:$4 sm:$0xff] %v4967
        %v4994 = vld.sshfl [vmem:[#allocation1 + $0x20] sm:$0xff pattern:$0x73625140]
        %v4995 = vld.sshfl [vmem:[#allocation1 + $0x28] sm:$0xff pattern:$0x73625140]
        %4996 = vst [vmem:[#allocation1] ss:$4 sm:$0xff] %v4969
        %v4997 = vld.sshfl [vmem:[#allocation1] sm:$0xff pattern:$0x73625140]
        %v4998 = vld.sshfl [vmem:[#allocation1 + $0x8] sm:$0xff pattern:$0x73625140]
        %4999 = vst [vmem:[%s4992] ss:$4 sm:$0xff] %v4971
        %v5000 = vld.sshfl [vmem:[#allocation1 + $0x20] sm:$0xff pattern:$0x73625140]
        %v5001 = vld.sshfl [vmem:[#allocation1 + $0x28] sm:$0xff pattern:$0x73625140]
        %5002 = vst [vmem:[#allocation1] ss:$4 sm:$0xff] %v4973
        %v5003 = vld.sshfl [vmem:[#allocation1] sm:$0xff pattern:$0x73625140]
        %v5004 = vld.sshfl [vmem:[#allocation1 + $0x8] sm:$0xff pattern:$0x73625140]
        %5005 = vst [vmem:[%s4992] ss:$4 sm:$0xff] %v4975
        %v5006 = vld.sshfl [vmem:[#allocation1 + $0x20] sm:$0xff pattern:$0x73625140]
        %v5007 = vld.sshfl [vmem:[#allocation1 + $0x28] sm:$0xff pattern:$0x73625140]
        %5008 = vst [vmem:[#allocation1] ss:$4 sm:$0xff] %v4980
        %v5009 = vld.sshfl [vmem:[#allocation1] sm:$0xff pattern:$0x73625140]
        %v5010 = vld.sshfl [vmem:[#allocation1 + $0x8] sm:$0xff pattern:$0x73625140]
        %5011 = vst [vmem:[%s4992] ss:$4 sm:$0xff] %v4982
        %v5012 = vld.sshfl [vmem:[#allocation1 + $0x20] sm:$0xff pattern:$0x73625140]
        %v5013 = vld.sshfl [vmem:[#allocation1 + $0x28] sm:$0xff pattern:$0x73625140]
        %5014 = vst [vmem:[#allocation1] ss:$4 sm:$0xff] %v4983
        %v5015 = vld.sshfl [vmem:[#allocation1] sm:$0xff pattern:$0x73625140]
        %v5016 = vld.sshfl [vmem:[#allocation1 + $0x8] sm:$0xff pattern:$0x73625140]
        %5017 = vst [vmem:[%s4992] ss:$4 sm:$0xff] %v4984
        %v5018 = vld.sshfl [vmem:[#allocation1 + $0x20] sm:$0xff pattern:$0x73625140]
        %v5019 = vld.sshfl [vmem:[#allocation1 + $0x28] sm:$0xff pattern:$0x73625140]
        %5020 = vst [vmem:[#allocation1] ss:$4 sm:$0xff] %v4985
        %v5021 = vld.sshfl [vmem:[#allocation1] sm:$0xff pattern:$0x73625140]
        %v5022 = vld.sshfl [vmem:[#allocation1 + $0x8] sm:$0xff pattern:$0x73625140]
        %5023 = vst [vmem:[%s4992] ss:$4 sm:$0xff] %v4986
        %v5024 = vld.sshfl [vmem:[#allocation1 + $0x20] sm:$0xff pattern:$0x73625140]
        %v5025 = vld.sshfl [vmem:[#allocation1 + $0x28] sm:$0xff pattern:$0x73625140]
        %5026 = vst [vmem:[#allocation1] ss:$4 sm:$0xff] %v4987
        %v5027 = vld.sshfl [vmem:[#allocation1] sm:$0xff pattern:$0x73625140]
        %v5028 = vld.sshfl [vmem:[#allocation1 + $0x8] sm:$0xff pattern:$0x73625140]
        %5029 = vst [vmem:[%s4992] ss:$4 sm:$0xff] %v4988
        %v5030 = vld.sshfl [vmem:[#allocation1 + $0x20] sm:$0xff pattern:$0x73625140]
        %v5031 = vld.sshfl [vmem:[#allocation1 + $0x28] sm:$0xff pattern:$0x73625140]
        %v5060 = vsel %vm1855, %v4990, -inf
        %v5061 = vrot.slane %v5060, 4
        %v5062 = vmax.f32 %v5060, %v5061
        %v5063 = vrot.slane %v5062, 2
        %v5064 = vmax.f32 %v5062, %v5063
        %v5065 = vrot.slane %v5064, 1
        %v5066 = vmax.f32 %v5064, %v5065
        %v5067 = vsel %vm1961, %v4991, -inf
        %v5068 = vrot.slane %v5067, 4
        %v5069 = vmax.f32 %v5067, %v5068
        %v5070 = vrot.slane %v5069, 2
        %v5071 = vmax.f32 %v5069, %v5070
        %v5072 = vrot.slane %v5071, 1
        %v5073 = vmax.f32 %v5071, %v5072
        %v5074 = vsel %vm1855, %v4994, -inf
        %v5075 = vrot.slane %v5074, 4
        %v5076 = vmax.f32 %v5074, %v5075
        %v5077 = vrot.slane %v5076, 2
        %v5078 = vmax.f32 %v5076, %v5077
        %v5079 = vrot.slane %v5078, 1
        %v5080 = vmax.f32 %v5078, %v5079
        %v5081 = vsel %vm1961, %v4995, -inf
        %v5082 = vrot.slane %v5081, 4
        %v5083 = vmax.f32 %v5081, %v5082
        %v5084 = vrot.slane %v5083, 2
        %v5085 = vmax.f32 %v5083, %v5084
        %v5086 = vrot.slane %v5085, 1
        %v5087 = vmax.f32 %v5085, %v5086
        %v5088 = vsel %vm1855, %v4997, -inf
        %v5089 = vrot.slane %v5088, 4
        %v5090 = vmax.f32 %v5088, %v5089
        %v5091 = vrot.slane %v5090, 2
        %v5092 = vmax.f32 %v5090, %v5091
        %v5093 = vrot.slane %v5092, 1
        %v5094 = vmax.f32 %v5092, %v5093
        %v5095 = vsel %vm1961, %v4998, -inf
        %v5096 = vrot.slane %v5095, 4
        %v5097 = vmax.f32 %v5095, %v5096
        %v5098 = vrot.slane %v5097, 2
        %v5099 = vmax.f32 %v5097, %v5098
        %v5100 = vrot.slane %v5099, 1
        %v5101 = vmax.f32 %v5099, %v5100
        %v5102 = vsel %vm1855, %v5000, -inf
        %v5103 = vrot.slane %v5102, 4
        %v5104 = vmax.f32 %v5102, %v5103
        %v5105 = vrot.slane %v5104, 2
        %v5106 = vmax.f32 %v5104, %v5105
        %v5107 = vrot.slane %v5106, 1
        %v5108 = vmax.f32 %v5106, %v5107
        %v5109 = vsel %vm1961, %v5001, -inf
        %v5110 = vrot.slane %v5109, 4
        %v5111 = vmax.f32 %v5109, %v5110
        %v5112 = vrot.slane %v5111, 2
        %v5113 = vmax.f32 %v5111, %v5112
        %v5114 = vrot.slane %v5113, 1
        %v5115 = vmax.f32 %v5113, %v5114
        %v5116 = vsel %vm1855, %v5003, -inf
        %v5117 = vrot.slane %v5116, 4
        %v5118 = vmax.f32 %v5116, %v5117
        %v5119 = vrot.slane %v5118, 2
        %v5120 = vmax.f32 %v5118, %v5119
        %v5121 = vrot.slane %v5120, 1
        %v5122 = vmax.f32 %v5120, %v5121
        %v5123 = vsel %vm1961, %v5004, -inf
        %v5124 = vrot.slane %v5123, 4
        %v5125 = vmax.f32 %v5123, %v5124
        %v5126 = vrot.slane %v5125, 2
        %v5127 = vmax.f32 %v5125, %v5126
        %v5128 = vrot.slane %v5127, 1
        %v5129 = vmax.f32 %v5127, %v5128
        %v5130 = vsel %vm1855, %v5006, -inf
        %v5131 = vrot.slane %v5130, 4
        %v5132 = vmax.f32 %v5130, %v5131
        %v5133 = vrot.slane %v5132, 2
        %v5134 = vmax.f32 %v5132, %v5133
        %v5135 = vrot.slane %v5134, 1
        %v5136 = vmax.f32 %v5134, %v5135
        %v5137 = vsel %vm1961, %v5007, -inf
        %v5138 = vrot.slane %v5137, 4
        %v5139 = vmax.f32 %v5137, %v5138
        %v5140 = vrot.slane %v5139, 2
        %v5141 = vmax.f32 %v5139, %v5140
        %v5142 = vrot.slane %v5141, 1
        %v5143 = vmax.f32 %v5141, %v5142
        %v5144 = vsel %vm1855, %v5009, -inf
        %v5145 = vrot.slane %v5144, 4
        %v5146 = vmax.f32 %v5144, %v5145
        %v5147 = vrot.slane %v5146, 2
        %v5148 = vmax.f32 %v5146, %v5147
        %v5149 = vrot.slane %v5148, 1
        %v5150 = vmax.f32 %v5148, %v5149
        %v5151 = vsel %vm1961, %v5010, -inf
        %v5152 = vrot.slane %v5151, 4
        %v5153 = vmax.f32 %v5151, %v5152
        %v5154 = vrot.slane %v5153, 2
        %v5155 = vmax.f32 %v5153, %v5154
        %v5156 = vrot.slane %v5155, 1
        %v5157 = vmax.f32 %v5155, %v5156
        %v5158 = vsel %vm1855, %v5012, -inf
        %v5159 = vrot.slane %v5158, 4
        %v5160 = vmax.f32 %v5158, %v5159
        %v5161 = vrot.slane %v5160, 2
        %v5162 = vmax.f32 %v5160, %v5161
        %v5163 = vrot.slane %v5162, 1
        %v5164 = vmax.f32 %v5162, %v5163
        %v5165 = vsel %vm1961, %v5013, -inf
        %v5166 = vrot.slane %v5165, 4
        %v5167 = vmax.f32 %v5165, %v5166
        %v5168 = vrot.slane %v5167, 2
        %v5169 = vmax.f32 %v5167, %v5168
        %v5170 = vrot.slane %v5169, 1
        %v5171 = vmax.f32 %v5169, %v5170
        %v5172 = vsel %vm1855, %v5015, -inf
        %v5173 = vrot.slane %v5172, 4
        %v5174 = vmax.f32 %v5172, %v5173
        %v5175 = vrot.slane %v5174, 2
        %v5176 = vmax.f32 %v5174, %v5175
        %v5177 = vrot.slane %v5176, 1
        %v5178 = vmax.f32 %v5176, %v5177
        %v5179 = vsel %vm1961, %v5016, -inf
        %v5180 = vrot.slane %v5179, 4
        %v5181 = vmax.f32 %v5179, %v5180
        %v5182 = vrot.slane %v5181, 2
        %v5183 = vmax.f32 %v5181, %v5182
        %v5184 = vrot.slane %v5183, 1
        %v5185 = vmax.f32 %v5183, %v5184
        %v5186 = vsel %vm1855, %v5018, -inf
        %v5187 = vrot.slane %v5186, 4
        %v5188 = vmax.f32 %v5186, %v5187
        %v5189 = vrot.slane %v5188, 2
        %v5190 = vmax.f32 %v5188, %v5189
        %v5191 = vrot.slane %v5190, 1
        %v5192 = vmax.f32 %v5190, %v5191
        %v5193 = vsel %vm1961, %v5019, -inf
        %v5194 = vrot.slane %v5193, 4
        %v5195 = vmax.f32 %v5193, %v5194
        %v5196 = vrot.slane %v5195, 2
        %v5197 = vmax.f32 %v5195, %v5196
        %v5198 = vrot.slane %v5197, 1
        %v5199 = vmax.f32 %v5197, %v5198
        %v5200 = vsel %vm1855, %v5021, -inf
        %v5201 = vrot.slane %v5200, 4
        %v5202 = vmax.f32 %v5200, %v5201
        %v5203 = vrot.slane %v5202, 2
        %v5204 = vmax.f32 %v5202, %v5203
        %v5205 = vrot.slane %v5204, 1
        %v5206 = vmax.f32 %v5204, %v5205
        %v5207 = vsel %vm1961, %v5022, -inf
        %v5208 = vrot.slane %v5207, 4
        %v5209 = vmax.f32 %v5207, %v5208
        %v5210 = vrot.slane %v5209, 2
        %v5211 = vmax.f32 %v5209, %v5210
        %v5212 = vrot.slane %v5211, 1
        %v5213 = vmax.f32 %v5211, %v5212
        %v5214 = vsel %vm1855, %v5024, -inf
        %v5215 = vrot.slane %v5214, 4
        %v5216 = vmax.f32 %v5214, %v5215
        %v5217 = vrot.slane %v5216, 2
        %v5218 = vmax.f32 %v5216, %v5217
        %v5219 = vrot.slane %v5218, 1
        %v5220 = vmax.f32 %v5218, %v5219
        %v5221 = vsel %vm1961, %v5025, -inf
        %v5222 = vrot.slane %v5221, 4
        %v5223 = vmax.f32 %v5221, %v5222
        %v5224 = vrot.slane %v5223, 2
        %v5225 = vmax.f32 %v5223, %v5224
        %v5226 = vrot.slane %v5225, 1
        %v5227 = vmax.f32 %v5225, %v5226
        %v5228 = vsel %vm1855, %v5027, -inf
        %v5229 = vrot.slane %v5228, 4
        %v5230 = vmax.f32 %v5228, %v5229
        %v5231 = vrot.slane %v5230, 2
        %v5232 = vmax.f32 %v5230, %v5231
        %v5233 = vrot.slane %v5232, 1
        %v5234 = vmax.f32 %v5232, %v5233
        %v5235 = vsel %vm1961, %v5028, -inf
        %v5236 = vrot.slane %v5235, 4
        %v5237 = vmax.f32 %v5235, %v5236
        %v5238 = vrot.slane %v5237, 2
        %v5239 = vmax.f32 %v5237, %v5238
        %v5240 = vrot.slane %v5239, 1
        %v5241 = vmax.f32 %v5239, %v5240
        %v5242 = vsel %vm1855, %v5030, -inf
        %v5243 = vrot.slane %v5242, 4
        %v5244 = vmax.f32 %v5242, %v5243
        %v5245 = vrot.slane %v5244, 2
        %v5246 = vmax.f32 %v5244, %v5245
        %v5247 = vrot.slane %v5246, 1
        %v5248 = vmax.f32 %v5246, %v5247
        %v5249 = vsel %vm1961, %v5031, -inf
        %v5250 = vrot.slane %v5249, 4
        %v5251 = vmax.f32 %v5249, %v5250
        %v5252 = vrot.slane %v5251, 2
        %v5253 = vmax.f32 %v5251, %v5252
        %v5254 = vrot.slane %v5253, 1
        %v5255 = vmax.f32 %v5253, %v5254
        %v5256 = vld [vmem:[%s2] sm:$0x3]
        %v5258 = vperm.slane %v5256, 0
        %v5259 = vperm.slane %v5256, 1
        %v5262 = vadd.f32 %v5066, %v5258
        %v5263 = vadd.f32 %v5073, %v5259
        %v5264 = vadd.f32 %v5080, %v5258
        %v5265 = vadd.f32 %v5087, %v5259
        %v5266 = vadd.f32 %v5094, %v5258
        %v5267 = vadd.f32 %v5101, %v5259
        %v5268 = vadd.f32 %v5108, %v5258
        %v5269 = vadd.f32 %v5115, %v5259
        %v5270 = vadd.f32 %v5122, %v5258
        %v5271 = vadd.f32 %v5129, %v5259
        %v5272 = vadd.f32 %v5136, %v5258
        %v5273 = vadd.f32 %v5143, %v5259
        %v5274 = vadd.f32 %v5150, %v5258
        %v5275 = vadd.f32 %v5157, %v5259
        %v5276 = vadd.f32 %v5164, %v5258
        %v5277 = vadd.f32 %v5171, %v5259
        %v5278 = vadd.f32 %v5178, %v5258
        %v5279 = vadd.f32 %v5185, %v5259
        %v5280 = vadd.f32 %v5192, %v5258
        %v5281 = vadd.f32 %v5199, %v5259
        %v5282 = vadd.f32 %v5206, %v5258
        %v5283 = vadd.f32 %v5213, %v5259
        %v5284 = vadd.f32 %v5220, %v5258
        %v5285 = vadd.f32 %v5227, %v5259
        %v5286 = vadd.f32 %v5234, %v5258
        %v5287 = vadd.f32 %v5241, %v5259
        %v5288 = vadd.f32 %v5248, %v5258
        %v5289 = vadd.f32 %v5255, %v5259
        %v5290 = vmax.f32 %v5262, 0.0
        %v5291 = vmax.f32 %v5263, 0.0
        %v5292 = vmax.f32 %v5264, 0.0
        %v5293 = vmax.f32 %v5265, 0.0
        %v5294 = vmax.f32 %v5266, 0.0
        %v5295 = vmax.f32 %v5267, 0.0
        %v5296 = vmax.f32 %v5268, 0.0
        %v5297 = vmax.f32 %v5269, 0.0
        %v5298 = vmax.f32 %v5270, 0.0
        %v5299 = vmax.f32 %v5271, 0.0
        %v5300 = vmax.f32 %v5272, 0.0
        %v5301 = vmax.f32 %v5273, 0.0
        %v5302 = vmax.f32 %v5274, 0.0
        %v5303 = vmax.f32 %v5275, 0.0
        %v5304 = vmax.f32 %v5276, 0.0
        %v5305 = vmax.f32 %v5277, 0.0
        %v5306 = vmax.f32 %v5278, 0.0
        %v5307 = vmax.f32 %v5279, 0.0
        %v5308 = vmax.f32 %v5280, 0.0
        %v5309 = vmax.f32 %v5281, 0.0
        %v5310 = vmax.f32 %v5282, 0.0
        %v5311 = vmax.f32 %v5283, 0.0
        %v5312 = vmax.f32 %v5284, 0.0
        %v5313 = vmax.f32 %v5285, 0.0
        %v5314 = vmax.f32 %v5286, 0.0
        %v5315 = vmax.f32 %v5287, 0.0
        %v5316 = vmax.f32 %v5288, 0.0
        %v5317 = vmax.f32 %v5289, 0.0
        %s5318 = scalar_lea.vmem [#allocation3], 192
        %5319 = vst.msk [vmem:[%s5318] ss:$8 sm:$0x3] %vm2216, 0.0
        %5320 = vst.msk [vmem:[%s5318] ss:$8 sm:$0x0] %vm2216, 0.0
        %s5321 = scalar_lea.vmem [#allocation3], 215
        %5322 = vst.msk [vmem:[%s5321] ss:$8 sm:$0x3] %vm2216, 0.0
        %5323 = vst.msk [vmem:[%s5321] ss:$8 sm:$0x0] %vm2216, 0.0
        %v5352 = vrot.slane %v5290, 7
        %v5353 = vrot.slane %v5292, 6
        %v5354 = vsel %vm2252, %v5353, %v5352
        %v5355 = vrot.slane %v5294, 5
        %v5356 = vsel %vm2255, %v5355, %v5354
        %v5357 = vrot.slane %v5296, 4
        %v5358 = vsel %vm2258, %v5357, %v5356
        %v5359 = vrot.slane %v5298, 3
        %v5360 = vsel %vm2261, %v5359, %v5358
        %v5361 = vrot.slane %v5300, 2
        %v5362 = vsel %vm2264, %v5361, %v5360
        %v5363 = vrot.slane %v5302, 1
        %v5364 = vsel %vm2267, %v5363, %v5362
        %v5365 = vrot.slane %v5291, 7
        %v5366 = vrot.slane %v5293, 6
        %v5367 = vsel %vm2252, %v5366, %v5365
        %v5368 = vrot.slane %v5295, 5
        %v5369 = vsel %vm2255, %v5368, %v5367
        %v5370 = vrot.slane %v5297, 4
        %v5371 = vsel %vm2258, %v5370, %v5369
        %v5372 = vrot.slane %v5299, 3
        %v5373 = vsel %vm2261, %v5372, %v5371
        %v5374 = vrot.slane %v5301, 2
        %v5375 = vsel %vm2264, %v5374, %v5373
        %v5376 = vrot.slane %v5303, 1
        %v5377 = vsel %vm2267, %v5376, %v5375
        %v5378 = vrot.slane %v5306, 7
        %v5379 = vsel %vm2283, %v5378, %v5304
        %v5380 = vrot.slane %v5308, 6
        %v5381 = vsel %vm2252, %v5380, %v5379
        %v5382 = vrot.slane %v5310, 5
        %v5383 = vsel %vm2255, %v5382, %v5381
        %v5384 = vrot.slane %v5312, 4
        %v5385 = vsel %vm2258, %v5384, %v5383
        %v5386 = vrot.slane %v5314, 3
        %v5387 = vsel %vm2261, %v5386, %v5385
        %v5388 = vrot.slane %v5316, 2
        %v5389 = vsel %vm2264, %v5388, %v5387
        %v5390 = vrot.slane %v5307, 7
        %v5391 = vsel %vm2283, %v5390, %v5305
        %v5392 = vrot.slane %v5309, 6
        %v5393 = vsel %vm2252, %v5392, %v5391
        %v5394 = vrot.slane %v5311, 5
        %v5395 = vsel %vm2255, %v5394, %v5393
        %v5396 = vrot.slane %v5313, 4
        %v5397 = vsel %vm2258, %v5396, %v5395
        %v5398 = vrot.slane %v5315, 3
        %v5399 = vsel %vm2261, %v5398, %v5397
        %v5400 = vrot.slane %v5317, 2
        %v5401 = vsel %vm2264, %v5400, %v5399
        %5406 = vst [vmem:[#allocation3 + $0xc0] sm:$0xfe] %v5364
        %5407 = vst.msk [vmem:[#allocation3 + $0xc8] sm:$0xfe] %vm2312, %v5377
        %5408 = vst [vmem:[#allocation3 + $0xd0] sm:$0x7f] %v5389
        %5409 = vst.msk [vmem:[#allocation3 + $0xd8] sm:$0x7f] %vm2315, %v5401
        %v5410 = vld [vmem:[#allocation2 + $0x1a0] sm:$0xfc]
        %v5411 = vld [vmem:[#allocation2 + $0x1a8] sm:$0xfc]
        %v5412 = vld [vmem:[#allocation2 + $0x1b0] sm:$0xff]
        %v5413 = vld [vmem:[#allocation2 + $0x1b8] sm:$0xff]
        %v5414 = vld [vmem:[#allocation2 + $0x1c0] sm:$0xff]
        %v5415 = vld [vmem:[#allocation2 + $0x1c8] sm:$0xff]
        %v5416 = vld [vmem:[#allocation2 + $0x1d0] sm:$0x3f]
        %v5417 = vld [vmem:[#allocation2 + $0x1d8] sm:$0x3f]
        %5426 = vrot.lane.b32.xlu0 %v5410, 120
        %v5427 = vpop.permute.xlu0 %5426
        %5428 = vrot.lane.b32.xlu0 %v5411, 120
        %v5429 = vpop.permute.xlu0 %5428
        %5430 = vrot.lane.b32.xlu0 %v5412, 120
        %v5431 = vpop.permute.xlu0 %5430
        %5432 = vrot.lane.b32.xlu0 %v5413, 120
        %v5433 = vpop.permute.xlu0 %5432
        %5434 = vrot.lane.b32.xlu0 %v5414, 120
        %v5435 = vpop.permute.xlu0 %5434
        %5436 = vrot.lane.b32.xlu0 %v5415, 120
        %v5437 = vpop.permute.xlu0 %5436
        %5438 = vrot.lane.b32.xlu0 %v5416, 120
        %v5439 = vpop.permute.xlu0 %5438
        %5440 = vrot.lane.b32.xlu0 %v5417, 120
        %v5441 = vpop.permute.xlu0 %5440
        %v5442 = vsel %vm1822, %v5427, %v5429
        %v5443 = vsel %vm1822, %v5431, %v5433
        %v5444 = vsel %vm1822, %v5435, %v5437
        %v5445 = vsel %vm1822, %v5439, %v5441
        %v5454 = vmax.f32 %v5410, %v5442
        %v5455 = vmax.f32 %v5411, %v5429
        %v5456 = vmax.f32 %v5412, %v5443
        %v5457 = vmax.f32 %v5413, %v5433
        %v5458 = vmax.f32 %v5414, %v5444
        %v5459 = vmax.f32 %v5415, %v5437
        %v5460 = vmax.f32 %v5416, %v5445
        %v5461 = vmax.f32 %v5417, %v5441
        %5470 = vst.sshfl [vmem:[#allocation1] sm:$0xff pattern:$0x73625140] %v5454
        %5471 = vst.sshfl [vmem:[#allocation1 + $0x8] sm:$0xff pattern:$0x73625140] %v5455
        %5472 = vst.sshfl [vmem:[#allocation1 + $0x20] sm:$0xff pattern:$0x73625140] %v5456
        %5473 = vst.sshfl [vmem:[#allocation1 + $0x28] sm:$0xff pattern:$0x73625140] %v5457
        %s5474 = scalar_lea.vmem [#allocation1], 1
        %v5475 = vld [vmem:[%s5474] ss:$4 sm:$0xff]
        %s5476 = scalar_lea.vmem [#allocation1], 2
        %v5477 = vld [vmem:[%s5476] ss:$4 sm:$0xff]
        %s5478 = scalar_lea.vmem [#allocation1], 3
        %v5479 = vld [vmem:[%s5478] ss:$4 sm:$0xff]
        %s5480 = scalar_lea.vmem [#allocation1], 32
        %v5481 = vld [vmem:[%s5480] ss:$4 sm:$0xff]
        %s5482 = scalar_lea.vmem [#allocation1], 33
        %v5483 = vld [vmem:[%s5482] ss:$4 sm:$0xff]
        %s5484 = scalar_lea.vmem [#allocation1], 34
        %v5485 = vld [vmem:[%s5484] ss:$4 sm:$0xff]
        %s5486 = scalar_lea.vmem [#allocation1], 35
        %v5487 = vld [vmem:[%s5486] ss:$4 sm:$0xff]
        %5488 = vst.sshfl [vmem:[#allocation1] sm:$0xff pattern:$0x73625140] %v5458
        %5489 = vst.sshfl [vmem:[#allocation1 + $0x8] sm:$0xff pattern:$0x73625140] %v5459
        %5490 = vst.sshfl [vmem:[#allocation1 + $0x20] sm:$0xff pattern:$0x73625140] %v5460
        %5491 = vst.sshfl [vmem:[#allocation1 + $0x28] sm:$0xff pattern:$0x73625140] %v5461
        %v5492 = vld [vmem:[#allocation1] ss:$4 sm:$0xff]
        %v5493 = vld [vmem:[%s5474] ss:$4 sm:$0xff]
        %v5494 = vld [vmem:[%s5476] ss:$4 sm:$0xff]
        %v5495 = vld [vmem:[%s5478] ss:$4 sm:$0xff]
        %v5496 = vld [vmem:[%s5480] ss:$4 sm:$0xff]
        %v5497 = vld [vmem:[%s5482] ss:$4 sm:$0xff]
        %v5498 = vld [vmem:[%s5484] ss:$4 sm:$0xff]
        %5499 = vst [vmem:[#allocation1] ss:$4 sm:$0xff] %v5475
        %v5500 = vld.sshfl [vmem:[#allocation1] sm:$0xff pattern:$0x73625140]
        %v5501 = vld.sshfl [vmem:[#allocation1 + $0x8] sm:$0xff pattern:$0x73625140]
        %s5502 = scalar_lea.vmem [#allocation1], 32
        %5503 = vst [vmem:[%s5502] ss:$4 sm:$0xff] %v5477
        %v5504 = vld.sshfl [vmem:[#allocation1 + $0x20] sm:$0xff pattern:$0x73625140]
        %v5505 = vld.sshfl [vmem:[#allocation1 + $0x28] sm:$0xff pattern:$0x73625140]
        %5506 = vst [vmem:[#allocation1] ss:$4 sm:$0xff] %v5479
        %v5507 = vld.sshfl [vmem:[#allocation1] sm:$0xff pattern:$0x73625140]
        %v5508 = vld.sshfl [vmem:[#allocation1 + $0x8] sm:$0xff pattern:$0x73625140]
        %5509 = vst [vmem:[%s5502] ss:$4 sm:$0xff] %v5481
        %v5510 = vld.sshfl [vmem:[#allocation1 + $0x20] sm:$0xff pattern:$0x73625140]
        %v5511 = vld.sshfl [vmem:[#allocation1 + $0x28] sm:$0xff pattern:$0x73625140]
        %5512 = vst [vmem:[#allocation1] ss:$4 sm:$0xff] %v5483
        %v5513 = vld.sshfl [vmem:[#allocation1] sm:$0xff pattern:$0x73625140]
        %v5514 = vld.sshfl [vmem:[#allocation1 + $0x8] sm:$0xff pattern:$0x73625140]
        %5515 = vst [vmem:[%s5502] ss:$4 sm:$0xff] %v5485
        %v5516 = vld.sshfl [vmem:[#allocation1 + $0x20] sm:$0xff pattern:$0x73625140]
        %v5517 = vld.sshfl [vmem:[#allocation1 + $0x28] sm:$0xff pattern:$0x73625140]
        %5518 = vst [vmem:[#allocation1] ss:$4 sm:$0xff] %v5487
        %v5519 = vld.sshfl [vmem:[#allocation1] sm:$0xff pattern:$0x73625140]
        %v5520 = vld.sshfl [vmem:[#allocation1 + $0x8] sm:$0xff pattern:$0x73625140]
        %5521 = vst [vmem:[%s5502] ss:$4 sm:$0xff] %v5492
        %v5522 = vld.sshfl [vmem:[#allocation1 + $0x20] sm:$0xff pattern:$0x73625140]
        %v5523 = vld.sshfl [vmem:[#allocation1 + $0x28] sm:$0xff pattern:$0x73625140]
        %5524 = vst [vmem:[#allocation1] ss:$4 sm:$0xff] %v5493
        %v5525 = vld.sshfl [vmem:[#allocation1] sm:$0xff pattern:$0x73625140]
        %v5526 = vld.sshfl [vmem:[#allocation1 + $0x8] sm:$0xff pattern:$0x73625140]
        %5527 = vst [vmem:[%s5502] ss:$4 sm:$0xff] %v5494
        %v5528 = vld.sshfl [vmem:[#allocation1 + $0x20] sm:$0xff pattern:$0x73625140]
        %v5529 = vld.sshfl [vmem:[#allocation1 + $0x28] sm:$0xff pattern:$0x73625140]
        %5530 = vst [vmem:[#allocation1] ss:$4 sm:$0xff] %v5495
        %v5531 = vld.sshfl [vmem:[#allocation1] sm:$0xff pattern:$0x73625140]
        %v5532 = vld.sshfl [vmem:[#allocation1 + $0x8] sm:$0xff pattern:$0x73625140]
        %5533 = vst [vmem:[%s5502] ss:$4 sm:$0xff] %v5496
        %v5534 = vld.sshfl [vmem:[#allocation1 + $0x20] sm:$0xff pattern:$0x73625140]
        %v5535 = vld.sshfl [vmem:[#allocation1 + $0x28] sm:$0xff pattern:$0x73625140]
        %5536 = vst [vmem:[#allocation1] ss:$4 sm:$0xff] %v5497
        %v5537 = vld.sshfl [vmem:[#allocation1] sm:$0xff pattern:$0x73625140]
        %v5538 = vld.sshfl [vmem:[#allocation1 + $0x8] sm:$0xff pattern:$0x73625140]
        %5539 = vst [vmem:[%s5502] ss:$4 sm:$0xff] %v5498
        %v5540 = vld.sshfl [vmem:[#allocation1 + $0x20] sm:$0xff pattern:$0x73625140]
        %v5541 = vld.sshfl [vmem:[#allocation1 + $0x28] sm:$0xff pattern:$0x73625140]
        %v5570 = vsel %vm1855, %v5500, -inf
        %v5571 = vrot.slane %v5570, 4
        %v5572 = vmax.f32 %v5570, %v5571
        %v5573 = vrot.slane %v5572, 2
        %v5574 = vmax.f32 %v5572, %v5573
        %v5575 = vrot.slane %v5574, 1
        %v5576 = vmax.f32 %v5574, %v5575
        %v5577 = vsel %vm1961, %v5501, -inf
        %v5578 = vrot.slane %v5577, 4
        %v5579 = vmax.f32 %v5577, %v5578
        %v5580 = vrot.slane %v5579, 2
        %v5581 = vmax.f32 %v5579, %v5580
        %v5582 = vrot.slane %v5581, 1
        %v5583 = vmax.f32 %v5581, %v5582
        %v5584 = vsel %vm1855, %v5504, -inf
        %v5585 = vrot.slane %v5584, 4
        %v5586 = vmax.f32 %v5584, %v5585
        %v5587 = vrot.slane %v5586, 2
        %v5588 = vmax.f32 %v5586, %v5587
        %v5589 = vrot.slane %v5588, 1
        %v5590 = vmax.f32 %v5588, %v5589
        %v5591 = vsel %vm1961, %v5505, -inf
        %v5592 = vrot.slane %v5591, 4
        %v5593 = vmax.f32 %v5591, %v5592
        %v5594 = vrot.slane %v5593, 2
        %v5595 = vmax.f32 %v5593, %v5594
        %v5596 = vrot.slane %v5595, 1
        %v5597 = vmax.f32 %v5595, %v5596
        %v5598 = vsel %vm1855, %v5507, -inf
        %v5599 = vrot.slane %v5598, 4
        %v5600 = vmax.f32 %v5598, %v5599
        %v5601 = vrot.slane %v5600, 2
        %v5602 = vmax.f32 %v5600, %v5601
        %v5603 = vrot.slane %v5602, 1
        %v5604 = vmax.f32 %v5602, %v5603
        %v5605 = vsel %vm1961, %v5508, -inf
        %v5606 = vrot.slane %v5605, 4
        %v5607 = vmax.f32 %v5605, %v5606
        %v5608 = vrot.slane %v5607, 2
        %v5609 = vmax.f32 %v5607, %v5608
        %v5610 = vrot.slane %v5609, 1
        %v5611 = vmax.f32 %v5609, %v5610
        %v5612 = vsel %vm1855, %v5510, -inf
        %v5613 = vrot.slane %v5612, 4
        %v5614 = vmax.f32 %v5612, %v5613
        %v5615 = vrot.slane %v5614, 2
        %v5616 = vmax.f32 %v5614, %v5615
        %v5617 = vrot.slane %v5616, 1
        %v5618 = vmax.f32 %v5616, %v5617
        %v5619 = vsel %vm1961, %v5511, -inf
        %v5620 = vrot.slane %v5619, 4
        %v5621 = vmax.f32 %v5619, %v5620
        %v5622 = vrot.slane %v5621, 2
        %v5623 = vmax.f32 %v5621, %v5622
        %v5624 = vrot.slane %v5623, 1
        %v5625 = vmax.f32 %v5623, %v5624
        %v5626 = vsel %vm1855, %v5513, -inf
        %v5627 = vrot.slane %v5626, 4
        %v5628 = vmax.f32 %v5626, %v5627
        %v5629 = vrot.slane %v5628, 2
        %v5630 = vmax.f32 %v5628, %v5629
        %v5631 = vrot.slane %v5630, 1
        %v5632 = vmax.f32 %v5630, %v5631
        %v5633 = vsel %vm1961, %v5514, -inf
        %v5634 = vrot.slane %v5633, 4
        %v5635 = vmax.f32 %v5633, %v5634
        %v5636 = vrot.slane %v5635, 2
        %v5637 = vmax.f32 %v5635, %v5636
        %v5638 = vrot.slane %v5637, 1
        %v5639 = vmax.f32 %v5637, %v5638
        %v5640 = vsel %vm1855, %v5516, -inf
        %v5641 = vrot.slane %v5640, 4
        %v5642 = vmax.f32 %v5640, %v5641
        %v5643 = vrot.slane %v5642, 2
        %v5644 = vmax.f32 %v5642, %v5643
        %v5645 = vrot.slane %v5644, 1
        %v5646 = vmax.f32 %v5644, %v5645
        %v5647 = vsel %vm1961, %v5517, -inf
        %v5648 = vrot.slane %v5647, 4
        %v5649 = vmax.f32 %v5647, %v5648
        %v5650 = vrot.slane %v5649, 2
        %v5651 = vmax.f32 %v5649, %v5650
        %v5652 = vrot.slane %v5651, 1
        %v5653 = vmax.f32 %v5651, %v5652
        %v5654 = vsel %vm1855, %v5519, -inf
        %v5655 = vrot.slane %v5654, 4
        %v5656 = vmax.f32 %v5654, %v5655
        %v5657 = vrot.slane %v5656, 2
        %v5658 = vmax.f32 %v5656, %v5657
        %v5659 = vrot.slane %v5658, 1
        %v5660 = vmax.f32 %v5658, %v5659
        %v5661 = vsel %vm1961, %v5520, -inf
        %v5662 = vrot.slane %v5661, 4
        %v5663 = vmax.f32 %v5661, %v5662
        %v5664 = vrot.slane %v5663, 2
        %v5665 = vmax.f32 %v5663, %v5664
        %v5666 = vrot.slane %v5665, 1
        %v5667 = vmax.f32 %v5665, %v5666
        %v5668 = vsel %vm1855, %v5522, -inf
        %v5669 = vrot.slane %v5668, 4
        %v5670 = vmax.f32 %v5668, %v5669
        %v5671 = vrot.slane %v5670, 2
        %v5672 = vmax.f32 %v5670, %v5671
        %v5673 = vrot.slane %v5672, 1
        %v5674 = vmax.f32 %v5672, %v5673
        %v5675 = vsel %vm1961, %v5523, -inf
        %v5676 = vrot.slane %v5675, 4
        %v5677 = vmax.f32 %v5675, %v5676
        %v5678 = vrot.slane %v5677, 2
        %v5679 = vmax.f32 %v5677, %v5678
        %v5680 = vrot.slane %v5679, 1
        %v5681 = vmax.f32 %v5679, %v5680
        %v5682 = vsel %vm1855, %v5525, -inf
        %v5683 = vrot.slane %v5682, 4
        %v5684 = vmax.f32 %v5682, %v5683
        %v5685 = vrot.slane %v5684, 2
        %v5686 = vmax.f32 %v5684, %v5685
        %v5687 = vrot.slane %v5686, 1
        %v5688 = vmax.f32 %v5686, %v5687
        %v5689 = vsel %vm1961, %v5526, -inf
        %v5690 = vrot.slane %v5689, 4
        %v5691 = vmax.f32 %v5689, %v5690
        %v5692 = vrot.slane %v5691, 2
        %v5693 = vmax.f32 %v5691, %v5692
        %v5694 = vrot.slane %v5693, 1
        %v5695 = vmax.f32 %v5693, %v5694
        %v5696 = vsel %vm1855, %v5528, -inf
        %v5697 = vrot.slane %v5696, 4
        %v5698 = vmax.f32 %v5696, %v5697
        %v5699 = vrot.slane %v5698, 2
        %v5700 = vmax.f32 %v5698, %v5699
        %v5701 = vrot.slane %v5700, 1
        %v5702 = vmax.f32 %v5700, %v5701
        %v5703 = vsel %vm1961, %v5529, -inf
        %v5704 = vrot.slane %v5703, 4
        %v5705 = vmax.f32 %v5703, %v5704
        %v5706 = vrot.slane %v5705, 2
        %v5707 = vmax.f32 %v5705, %v5706
        %v5708 = vrot.slane %v5707, 1
        %v5709 = vmax.f32 %v5707, %v5708
        %v5710 = vsel %vm1855, %v5531, -inf
        %v5711 = vrot.slane %v5710, 4
        %v5712 = vmax.f32 %v5710, %v5711
        %v5713 = vrot.slane %v5712, 2
        %v5714 = vmax.f32 %v5712, %v5713
        %v5715 = vrot.slane %v5714, 1
        %v5716 = vmax.f32 %v5714, %v5715
        %v5717 = vsel %vm1961, %v5532, -inf
        %v5718 = vrot.slane %v5717, 4
        %v5719 = vmax.f32 %v5717, %v5718
        %v5720 = vrot.slane %v5719, 2
        %v5721 = vmax.f32 %v5719, %v5720
        %v5722 = vrot.slane %v5721, 1
        %v5723 = vmax.f32 %v5721, %v5722
        %v5724 = vsel %vm1855, %v5534, -inf
        %v5725 = vrot.slane %v5724, 4
        %v5726 = vmax.f32 %v5724, %v5725
        %v5727 = vrot.slane %v5726, 2
        %v5728 = vmax.f32 %v5726, %v5727
        %v5729 = vrot.slane %v5728, 1
        %v5730 = vmax.f32 %v5728, %v5729
        %v5731 = vsel %vm1961, %v5535, -inf
        %v5732 = vrot.slane %v5731, 4
        %v5733 = vmax.f32 %v5731, %v5732
        %v5734 = vrot.slane %v5733, 2
        %v5735 = vmax.f32 %v5733, %v5734
        %v5736 = vrot.slane %v5735, 1
        %v5737 = vmax.f32 %v5735, %v5736
        %v5738 = vsel %vm1855, %v5537, -inf
        %v5739 = vrot.slane %v5738, 4
        %v5740 = vmax.f32 %v5738, %v5739
        %v5741 = vrot.slane %v5740, 2
        %v5742 = vmax.f32 %v5740, %v5741
        %v5743 = vrot.slane %v5742, 1
        %v5744 = vmax.f32 %v5742, %v5743
        %v5745 = vsel %vm1961, %v5538, -inf
        %v5746 = vrot.slane %v5745, 4
        %v5747 = vmax.f32 %v5745, %v5746
        %v5748 = vrot.slane %v5747, 2
        %v5749 = vmax.f32 %v5747, %v5748
        %v5750 = vrot.slane %v5749, 1
        %v5751 = vmax.f32 %v5749, %v5750
        %v5752 = vsel %vm1855, %v5540, -inf
        %v5753 = vrot.slane %v5752, 4
        %v5754 = vmax.f32 %v5752, %v5753
        %v5755 = vrot.slane %v5754, 2
        %v5756 = vmax.f32 %v5754, %v5755
        %v5757 = vrot.slane %v5756, 1
        %v5758 = vmax.f32 %v5756, %v5757
        %v5759 = vsel %vm1961, %v5541, -inf
        %v5760 = vrot.slane %v5759, 4
        %v5761 = vmax.f32 %v5759, %v5760
        %v5762 = vrot.slane %v5761, 2
        %v5763 = vmax.f32 %v5761, %v5762
        %v5764 = vrot.slane %v5763, 1
        %v5765 = vmax.f32 %v5763, %v5764
        %v5766 = vld [vmem:[%s2] sm:$0x3]
        %v5768 = vperm.slane %v5766, 0
        %v5769 = vperm.slane %v5766, 1
        %v5772 = vadd.f32 %v5576, %v5768
        %v5773 = vadd.f32 %v5583, %v5769
        %v5774 = vadd.f32 %v5590, %v5768
        %v5775 = vadd.f32 %v5597, %v5769
        %v5776 = vadd.f32 %v5604, %v5768
        %v5777 = vadd.f32 %v5611, %v5769
        %v5778 = vadd.f32 %v5618, %v5768
        %v5779 = vadd.f32 %v5625, %v5769
        %v5780 = vadd.f32 %v5632, %v5768
        %v5781 = vadd.f32 %v5639, %v5769
        %v5782 = vadd.f32 %v5646, %v5768
        %v5783 = vadd.f32 %v5653, %v5769
        %v5784 = vadd.f32 %v5660, %v5768
        %v5785 = vadd.f32 %v5667, %v5769
        %v5786 = vadd.f32 %v5674, %v5768
        %v5787 = vadd.f32 %v5681, %v5769
        %v5788 = vadd.f32 %v5688, %v5768
        %v5789 = vadd.f32 %v5695, %v5769
        %v5790 = vadd.f32 %v5702, %v5768
        %v5791 = vadd.f32 %v5709, %v5769
        %v5792 = vadd.f32 %v5716, %v5768
        %v5793 = vadd.f32 %v5723, %v5769
        %v5794 = vadd.f32 %v5730, %v5768
        %v5795 = vadd.f32 %v5737, %v5769
        %v5796 = vadd.f32 %v5744, %v5768
        %v5797 = vadd.f32 %v5751, %v5769
        %v5798 = vadd.f32 %v5758, %v5768
        %v5799 = vadd.f32 %v5765, %v5769
        %v5800 = vmax.f32 %v5772, 0.0
        %v5801 = vmax.f32 %v5773, 0.0
        %v5802 = vmax.f32 %v5774, 0.0
        %v5803 = vmax.f32 %v5775, 0.0
        %v5804 = vmax.f32 %v5776, 0.0
        %v5805 = vmax.f32 %v5777, 0.0
        %v5806 = vmax.f32 %v5778, 0.0
        %v5807 = vmax.f32 %v5779, 0.0
        %v5808 = vmax.f32 %v5780, 0.0
        %v5809 = vmax.f32 %v5781, 0.0
        %v5810 = vmax.f32 %v5782, 0.0
        %v5811 = vmax.f32 %v5783, 0.0
        %v5812 = vmax.f32 %v5784, 0.0
        %v5813 = vmax.f32 %v5785, 0.0
        %v5814 = vmax.f32 %v5786, 0.0
        %v5815 = vmax.f32 %v5787, 0.0
        %v5816 = vmax.f32 %v5788, 0.0
        %v5817 = vmax.f32 %v5789, 0.0
        %v5818 = vmax.f32 %v5790, 0.0
        %v5819 = vmax.f32 %v5791, 0.0
        %v5820 = vmax.f32 %v5792, 0.0
        %v5821 = vmax.f32 %v5793, 0.0
        %v5822 = vmax.f32 %v5794, 0.0
        %v5823 = vmax.f32 %v5795, 0.0
        %v5824 = vmax.f32 %v5796, 0.0
        %v5825 = vmax.f32 %v5797, 0.0
        %v5826 = vmax.f32 %v5798, 0.0
        %v5827 = vmax.f32 %v5799, 0.0
        %s5828 = scalar_lea.vmem [#allocation3], 224
        %5829 = vst.msk [vmem:[%s5828] ss:$8 sm:$0x3] %vm2216, 0.0
        %5830 = vst.msk [vmem:[%s5828] ss:$8 sm:$0x0] %vm2216, 0.0
        %s5831 = scalar_lea.vmem [#allocation3], 247
        %5832 = vst.msk [vmem:[%s5831] ss:$8 sm:$0x3] %vm2216, 0.0
        %5833 = vst.msk [vmem:[%s5831] ss:$8 sm:$0x0] %vm2216, 0.0
        %v5862 = vrot.slane %v5800, 7
        %v5863 = vrot.slane %v5802, 6
        %v5864 = vsel %vm2252, %v5863, %v5862
        %v5865 = vrot.slane %v5804, 5
        %v5866 = vsel %vm2255, %v5865, %v5864
        %v5867 = vrot.slane %v5806, 4
        %v5868 = vsel %vm2258, %v5867, %v5866
        %v5869 = vrot.slane %v5808, 3
        %v5870 = vsel %vm2261, %v5869, %v5868
        %v5871 = vrot.slane %v5810, 2
        %v5872 = vsel %vm2264, %v5871, %v5870
        %v5873 = vrot.slane %v5812, 1
        %v5874 = vsel %vm2267, %v5873, %v5872
        %v5875 = vrot.slane %v5801, 7
        %v5876 = vrot.slane %v5803, 6
        %v5877 = vsel %vm2252, %v5876, %v5875
        %v5878 = vrot.slane %v5805, 5
        %v5879 = vsel %vm2255, %v5878, %v5877
        %v5880 = vrot.slane %v5807, 4
        %v5881 = vsel %vm2258, %v5880, %v5879
        %v5882 = vrot.slane %v5809, 3
        %v5883 = vsel %vm2261, %v5882, %v5881
        %v5884 = vrot.slane %v5811, 2
        %v5885 = vsel %vm2264, %v5884, %v5883
        %v5886 = vrot.slane %v5813, 1
        %v5887 = vsel %vm2267, %v5886, %v5885
        %v5888 = vrot.slane %v5816, 7
        %v5889 = vsel %vm2283, %v5888, %v5814
        %v5890 = vrot.slane %v5818, 6
        %v5891 = vsel %vm2252, %v5890, %v5889
        %v5892 = vrot.slane %v5820, 5
        %v5893 = vsel %vm2255, %v5892, %v5891
        %v5894 = vrot.slane %v5822, 4
        %v5895 = vsel %vm2258, %v5894, %v5893
        %v5896 = vrot.slane %v5824, 3
        %v5897 = vsel %vm2261, %v5896, %v5895
        %v5898 = vrot.slane %v5826, 2
        %v5899 = vsel %vm2264, %v5898, %v5897
        %v5900 = vrot.slane %v5817, 7
        %v5901 = vsel %vm2283, %v5900, %v5815
        %v5902 = vrot.slane %v5819, 6
        %v5903 = vsel %vm2252, %v5902, %v5901
        %v5904 = vrot.slane %v5821, 5
        %v5905 = vsel %vm2255, %v5904, %v5903
        %v5906 = vrot.slane %v5823, 4
        %v5907 = vsel %vm2258, %v5906, %v5905
        %v5908 = vrot.slane %v5825, 3
        %v5909 = vsel %vm2261, %v5908, %v5907
        %v5910 = vrot.slane %v5827, 2
        %v5911 = vsel %vm2264, %v5910, %v5909
        %5916 = vst [vmem:[#allocation3 + $0xe0] sm:$0xfe] %v5874
        %5917 = vst.msk [vmem:[#allocation3 + $0xe8] sm:$0xfe] %vm2312, %v5887
        %5918 = vst [vmem:[#allocation3 + $0xf0] sm:$0x7f] %v5899
        %5919 = vst.msk [vmem:[#allocation3 + $0xf8] sm:$0x7f] %vm2315, %v5911
        %v5920 = vld [vmem:[#allocation3] sm:$0xff]
        %v5921 = vld [vmem:[#allocation3 + $0x8] sm:$0xff]
        %v5922 = vld [vmem:[#allocation3 + $0x10] sm:$0xff]
        %v5923 = vld [vmem:[#allocation3 + $0x18] sm:$0xff]
        %v5924 = vld [vmem:[#allocation3 + $0x20] sm:$0xff]
        %v5925 = vld [vmem:[#allocation3 + $0x28] sm:$0xff]
        %v5926 = vld [vmem:[#allocation3 + $0x30] sm:$0xff]
        %v5927 = vld [vmem:[#allocation3 + $0x38] sm:$0xff]
        %v5928 = vld [vmem:[#allocation3 + $0x40] sm:$0xff]
        %v5929 = vld [vmem:[#allocation3 + $0x48] sm:$0xff]
        %v5930 = vld [vmem:[#allocation3 + $0x50] sm:$0xff]
        %v5931 = vld [vmem:[#allocation3 + $0x58] sm:$0xff]
        %v5932 = vld [vmem:[#allocation3 + $0x60] sm:$0xff]
        %v5933 = vld [vmem:[#allocation3 + $0x68] sm:$0xff]
        %v5934 = vld [vmem:[#allocation3 + $0x70] sm:$0xff]
        %v5935 = vld [vmem:[#allocation3 + $0x78] sm:$0xff]
        %v5936 = vld [vmem:[#allocation3 + $0x80] sm:$0xff]
        %v5937 = vld [vmem:[#allocation3 + $0x88] sm:$0xff]
        %v5938 = vld [vmem:[#allocation3 + $0x90] sm:$0xff]
        %v5939 = vld [vmem:[#allocation3 + $0x98] sm:$0xff]
        %v5940 = vld [vmem:[#allocation3 + $0xa0] sm:$0xff]
        %v5941 = vld [vmem:[#allocation3 + $0xa8] sm:$0xff]
        %v5942 = vld [vmem:[#allocation3 + $0xb0] sm:$0xff]
        %v5943 = vld [vmem:[#allocation3 + $0xb8] sm:$0xff]
        %v5944 = vld [vmem:[#allocation3 + $0xc0] sm:$0xff]
        %v5945 = vld [vmem:[#allocation3 + $0xc8] sm:$0xff]
        %v5946 = vld [vmem:[#allocation3 + $0xd0] sm:$0xff]
        %v5947 = vld [vmem:[#allocation3 + $0xd8] sm:$0xff]
        %v5948 = vld [vmem:[#allocation3 + $0xe0] sm:$0xff]
        %v5949 = vld [vmem:[#allocation3 + $0xe8] sm:$0xff]
        %v5950 = vld [vmem:[#allocation3 + $0xf0] sm:$0x3f]
        %v5951 = vld [vmem:[#allocation3 + $0xf8] sm:$0x3f]
        %v5952 = vld [vmem:[%s3] sm:$0xff]
        %v5953 = vld [vmem:[%s3 + $0x8] sm:$0xff]
        %v5954 = vld [vmem:[%s3 + $0x10] sm:$0xff]
        %v5955 = vld [vmem:[%s3 + $0x18] sm:$0xff]
        %v5956 = vld [vmem:[%s3 + $0x20] sm:$0xff]
        %v5957 = vld [vmem:[%s3 + $0x28] sm:$0xff]
        %v5958 = vld [vmem:[%s3 + $0x30] sm:$0xff]
        %v5959 = vld [vmem:[%s3 + $0x38] sm:$0xff]
        %v5960 = vld [vmem:[%s3 + $0x40] sm:$0xff]
        %v5961 = vld [vmem:[%s3 + $0x48] sm:$0xff]
        %v5962 = vld [vmem:[%s3 + $0x50] sm:$0xff]
        %v5963 = vld [vmem:[%s3 + $0x58] sm:$0xff]
        %v5964 = vld [vmem:[%s3 + $0x60] sm:$0xff]
        %v5965 = vld [vmem:[%s3 + $0x68] sm:$0xff]
        %v5966 = vld [vmem:[%s3 + $0x70] sm:$0xff]
        %v5967 = vld [vmem:[%s3 + $0x78] sm:$0xff]
        %v5968 = vld [vmem:[%s3 + $0x80] sm:$0xff]
        %v5969 = vld [vmem:[%s3 + $0x88] sm:$0xff]
        %v5970 = vld [vmem:[%s3 + $0x90] sm:$0xff]
        %v5971 = vld [vmem:[%s3 + $0x98] sm:$0xff]
        %v5972 = vld [vmem:[%s3 + $0xa0] sm:$0xff]
        %v5973 = vld [vmem:[%s3 + $0xa8] sm:$0xff]
        %v5974 = vld [vmem:[%s3 + $0xb0] sm:$0xff]
        %v5975 = vld [vmem:[%s3 + $0xb8] sm:$0xff]
        %v5976 = vld [vmem:[%s3 + $0xc0] sm:$0xff]
        %v5977 = vld [vmem:[%s3 + $0xc8] sm:$0xff]
        %v5978 = vld [vmem:[%s3 + $0xd0] sm:$0xff]
        %vm5979 = vcmask 719872
        %v5981 = vsel %vm5979, %v5921, 0
        %v5984 = vsel %vm5979, %v5923, 0
        %v5987 = vsel %vm5979, %v5925, 0
        %v5990 = vsel %vm5979, %v5927, 0
        %v5993 = vsel %vm5979, %v5929, 0
        %v5996 = vsel %vm5979, %v5931, 0
        %v5999 = vsel %vm5979, %v5933, 0
        %v6002 = vsel %vm5979, %v5935, 0
        %v6005 = vsel %vm5979, %v5937, 0
        %v6008 = vsel %vm5979, %v5939, 0
        %v6011 = vsel %vm5979, %v5941, 0
        %v6014 = vsel %vm5979, %v5943, 0
        %v6017 = vsel %vm5979, %v5945, 0
        %v6020 = vsel %vm5979, %v5947, 0
        %v6023 = vsel %vm5979, %v5949, 0
        %v6026 = vsel %vm5979, %v5951, 0
        %6028 = vmatpush.msra.mxu0 %v5967
        %6029 = vmatpush.msra.mxu0 %v5966
        %6030 = vmatpush.msra.mxu0 %v5965
        %6031 = vmatpush.msra.mxu0 %v5964
        %6032 = vmatpush.msra.mxu0 %v5963
        %6033 = vmatpush.msra.mxu0 %v5962
        %6034 = vmatpush.msra.mxu0 %v5961
        %6035 = vmatpush.msra.mxu0 %v5960
        %6036 = vmatpush.msra.mxu0 %v5959
        %6037 = vmatpush.msra.mxu0 %v5958
        %6038 = vmatpush.msra.mxu0 %v5957
        %6039 = vmatpush.msra.mxu0 %v5956
        %6040 = vmatpush.msra.mxu0 %v5955
        %6041 = vmatpush.msra.mxu0 %v5954
        %6042 = vmatpush.msra.mxu0 %v5953
        %6043 = vmatpush.msra.mxu0 %v5952
        %6044 = vmatmul.f32.gmra.mxu0 %v5920
        %v6045 = vpop.f32.mrf.mxu0
        %v6046 = vadd.f32 0.0, %v6045
        %6047 = vmatmul.f32.gmra.mxu0 %v5922
        %v6048 = vpop.f32.mrf.mxu0
        %v6049 = vadd.f32 0.0, %v6048
        %6050 = vmatmul.f32.gmra.mxu0 %v5924
        %v6051 = vpop.f32.mrf.mxu0
        %v6052 = vadd.f32 0.0, %v6051
        %6053 = vmatmul.f32.gmra.mxu0 %v5926
        %v6054 = vpop.f32.mrf.mxu0
        %v6055 = vadd.f32 0.0, %v6054
        %6056 = vmatmul.f32.gmra.mxu0 %v5928
        %v6057 = vpop.f32.mrf.mxu0
        %v6058 = vadd.f32 0.0, %v6057
        %6059 = vmatmul.f32.gmra.mxu0 %v5930
        %v6060 = vpop.f32.mrf.mxu0
        %v6061 = vadd.f32 0.0, %v6060
        %6062 = vmatmul.f32.gmra.mxu0 %v5932
        %v6063 = vpop.f32.mrf.mxu0
        %v6064 = vadd.f32 0.0, %v6063
        %6065 = vmatmul.f32.gmra.mxu0 %v5934
        %v6066 = vpop.f32.mrf.mxu0
        %v6067 = vadd.f32 0.0, %v6066
        %6068 = vmatmul.f32.gmra.mxu0 %v5936
        %v6069 = vpop.f32.mrf.mxu0
        %v6070 = vadd.f32 0.0, %v6069
        %6071 = vmatmul.f32.gmra.mxu0 %v5938
        %v6072 = vpop.f32.mrf.mxu0
        %v6073 = vadd.f32 0.0, %v6072
        %6074 = vmatmul.f32.gmra.mxu0 %v5940
        %v6075 = vpop.f32.mrf.mxu0
        %v6076 = vadd.f32 0.0, %v6075
        %6077 = vmatmul.f32.gmra.mxu0 %v5942
        %v6078 = vpop.f32.mrf.mxu0
        %v6079 = vadd.f32 0.0, %v6078
        %6080 = vmatmul.f32.gmra.mxu0 %v5944
        %v6081 = vpop.f32.mrf.mxu0
        %v6082 = vadd.f32 0.0, %v6081
        %6083 = vmatmul.f32.gmra.mxu0 %v5946
        %v6084 = vpop.f32.mrf.mxu0
        %v6085 = vadd.f32 0.0, %v6084
        %6086 = vmatmul.f32.gmra.mxu0 %v5948
        %v6087 = vpop.f32.mrf.mxu0
        %v6088 = vadd.f32 0.0, %v6087
        %6089 = vmatmul.f32.gmra.mxu0 %v5950
        %v6090 = vpop.f32.mrf.mxu0
        %v6091 = vadd.f32 0.0, %v6090
        %6092 = vdwg.mxu0
        %6093 = vmatpush.msra.mxu0 0.0
        %6094 = vmatpush.msra.mxu0 0.0
        %6095 = vmatpush.msra.mxu0 0.0
        %6096 = vmatpush.msra.mxu0 0.0
        %6097 = vmatpush.msra.mxu0 0.0
        %6098 = vmatpush.msra.mxu0 %v5978
        %6099 = vmatpush.msra.mxu0 %v5977
        %6100 = vmatpush.msra.mxu0 %v5976
        %6101 = vmatpush.msra.mxu0 %v5975
        %6102 = vmatpush.msra.mxu0 %v5974
        %6103 = vmatpush.msra.mxu0 %v5973
        %6104 = vmatpush.msra.mxu0 %v5972
        %6105 = vmatpush.msra.mxu0 %v5971
        %6106 = vmatpush.msra.mxu0 %v5970
        %6107 = vmatpush.msra.mxu0 %v5969
        %6108 = vmatpush.msra.mxu0 %v5968
        %6109 = vmatmul.f32.gmra.mxu0 %v5981
        %v6110 = vpop.f32.mrf.mxu0
        %v6111 = vadd.f32 %v6046, %v6110
        %6112 = vmatmul.f32.gmra.mxu0 %v5984
        %v6113 = vpop.f32.mrf.mxu0
        %v6114 = vadd.f32 %v6049, %v6113
        %6115 = vmatmul.f32.gmra.mxu0 %v5987
        %v6116 = vpop.f32.mrf.mxu0
        %v6117 = vadd.f32 %v6052, %v6116
        %6118 = vmatmul.f32.gmra.mxu0 %v5990
        %v6119 = vpop.f32.mrf.mxu0
        %v6120 = vadd.f32 %v6055, %v6119
        %6121 = vmatmul.f32.gmra.mxu0 %v5993
        %v6122 = vpop.f32.mrf.mxu0
        %v6123 = vadd.f32 %v6058, %v6122
        %6124 = vmatmul.f32.gmra.mxu0 %v5996
        %v6125 = vpop.f32.mrf.mxu0
        %v6126 = vadd.f32 %v6061, %v6125
        %6127 = vmatmul.f32.gmra.mxu0 %v5999
        %v6128 = vpop.f32.mrf.mxu0
        %v6129 = vadd.f32 %v6064, %v6128
        %6130 = vmatmul.f32.gmra.mxu0 %v6002
        %v6131 = vpop.f32.mrf.mxu0
        %v6132 = vadd.f32 %v6067, %v6131
        %6133 = vmatmul.f32.gmra.mxu0 %v6005
        %v6134 = vpop.f32.mrf.mxu0
        %v6135 = vadd.f32 %v6070, %v6134
        %6136 = vmatmul.f32.gmra.mxu0 %v6008
        %v6137 = vpop.f32.mrf.mxu0
        %v6138 = vadd.f32 %v6073, %v6137
        %6139 = vmatmul.f32.gmra.mxu0 %v6011
        %v6140 = vpop.f32.mrf.mxu0
        %v6141 = vadd.f32 %v6076, %v6140
        %6142 = vmatmul.f32.gmra.mxu0 %v6014
        %v6143 = vpop.f32.mrf.mxu0
        %v6144 = vadd.f32 %v6079, %v6143
        %6145 = vmatmul.f32.gmra.mxu0 %v6017
        %v6146 = vpop.f32.mrf.mxu0
        %v6147 = vadd.f32 %v6082, %v6146
        %6148 = vmatmul.f32.gmra.mxu0 %v6020
        %v6149 = vpop.f32.mrf.mxu0
        %v6150 = vadd.f32 %v6085, %v6149
        %6151 = vmatmul.f32.gmra.mxu0 %v6023
        %v6152 = vpop.f32.mrf.mxu0
        %v6153 = vadd.f32 %v6088, %v6152
        %6154 = vmatmul.f32.gmra.mxu0 %v6026
        %v6155 = vpop.f32.mrf.mxu0
        %v6156 = vadd.f32 %v6091, %v6155
        %6157 = vdwg.mxu0
        %6158 = vst.msk [vmem:[#allocation4] sm:$0xff] %vm337, %v6111
        %6159 = vst.msk [vmem:[#allocation4 + $0x8] sm:$0xff] %vm337, %v6114
        %6160 = vst.msk [vmem:[#allocation4 + $0x10] sm:$0xff] %vm337, %v6117
        %6161 = vst.msk [vmem:[#allocation4 + $0x18] sm:$0xff] %vm337, %v6120
        %6162 = vst.msk [vmem:[#allocation4 + $0x20] sm:$0xff] %vm337, %v6123
        %6163 = vst.msk [vmem:[#allocation4 + $0x28] sm:$0xff] %vm337, %v6126
        %6164 = vst.msk [vmem:[#allocation4 + $0x30] sm:$0xff] %vm337, %v6129
        %6165 = vst.msk [vmem:[#allocation4 + $0x38] sm:$0xff] %vm337, %v6132
        %6166 = vst.msk [vmem:[#allocation4 + $0x40] sm:$0xff] %vm337, %v6135
        %6167 = vst.msk [vmem:[#allocation4 + $0x48] sm:$0xff] %vm337, %v6138
        %6168 = vst.msk [vmem:[#allocation4 + $0x50] sm:$0xff] %vm337, %v6141
        %6169 = vst.msk [vmem:[#allocation4 + $0x58] sm:$0xff] %vm337, %v6144
        %6170 = vst.msk [vmem:[#allocation4 + $0x60] sm:$0xff] %vm337, %v6147
        %6171 = vst.msk [vmem:[#allocation4 + $0x68] sm:$0xff] %vm337, %v6150
        %6172 = vst.msk [vmem:[#allocation4 + $0x70] sm:$0xff] %vm337, %v6153
        %vm6173 = vcmask 914432
        %6174 = vst.msk [vmem:[#allocation4 + $0x78] sm:$0x3f] %vm6173, %v6156
        %v6175 = vld [vmem:[#allocation4] sm:$0xff]
        %v6176 = vld [vmem:[#allocation4 + $0x8] sm:$0xff]
        %v6177 = vld [vmem:[#allocation4 + $0x10] sm:$0xff]
        %v6178 = vld [vmem:[#allocation4 + $0x18] sm:$0xff]
        %v6179 = vld [vmem:[#allocation4 + $0x20] sm:$0xff]
        %v6180 = vld [vmem:[#allocation4 + $0x28] sm:$0xff]
        %v6181 = vld [vmem:[#allocation4 + $0x30] sm:$0xff]
        %v6182 = vld [vmem:[#allocation4 + $0x38] sm:$0xff]
        %v6183 = vld [vmem:[#allocation4 + $0x40] sm:$0xff]
        %v6184 = vld [vmem:[#allocation4 + $0x48] sm:$0xff]
        %v6185 = vld [vmem:[#allocation4 + $0x50] sm:$0xff]
        %v6186 = vld [vmem:[#allocation4 + $0x58] sm:$0xff]
        %v6187 = vld [vmem:[#allocation4 + $0x60] sm:$0xff]
        %v6188 = vld [vmem:[#allocation4 + $0x68] sm:$0xff]
        %v6189 = vld [vmem:[#allocation4 + $0x70] sm:$0xff]
        %v6190 = vld [vmem:[#allocation4 + $0x78] sm:$0x3f]
        %v6191 = vld [vmem:[#allocation3] sm:$0xfe]
        %v6192 = vld [vmem:[#allocation3 + $0x8] sm:$0xfe]
        %v6193 = vld [vmem:[#allocation3 + $0x10] sm:$0xff]
        %v6194 = vld [vmem:[#allocation3 + $0x18] sm:$0xff]
        %v6195 = vld [vmem:[#allocation3 + $0x20] sm:$0xff]
        %v6196 = vld [vmem:[#allocation3 + $0x28] sm:$0xff]
        %v6197 = vld [vmem:[#allocation3 + $0x30] sm:$0xff]
        %v6198 = vld [vmem:[#allocation3 + $0x38] sm:$0xff]
        %v6199 = vld [vmem:[#allocation3 + $0x40] sm:$0xff]
        %v6200 = vld [vmem:[#allocation3 + $0x48] sm:$0xff]
        %v6201 = vld [vmem:[#allocation3 + $0x50] sm:$0xff]
        %v6202 = vld [vmem:[#allocation3 + $0x58] sm:$0xff]
        %v6203 = vld [vmem:[#allocation3 + $0x60] sm:$0xff]
        %v6204 = vld [vmem:[#allocation3 + $0x68] sm:$0xff]
        %v6205 = vld [vmem:[#allocation3 + $0x70] sm:$0xff]
        %v6206 = vld [vmem:[#allocation3 + $0x78] sm:$0xff]
        %v6207 = vld [vmem:[#allocation3 + $0x80] sm:$0xff]
        %v6208 = vld [vmem:[#allocation3 + $0x88] sm:$0xff]
        %v6209 = vld [vmem:[#allocation3 + $0x90] sm:$0xff]
        %v6210 = vld [vmem:[#allocation3 + $0x98] sm:$0xff]
        %v6211 = vld [vmem:[#allocation3 + $0xa0] sm:$0xff]
        %v6212 = vld [vmem:[#allocation3 + $0xa8] sm:$0xff]
        %v6213 = vld [vmem:[#allocation3 + $0xb0] sm:$0xff]
        %v6214 = vld [vmem:[#allocation3 + $0xb8] sm:$0xff]
        %v6215 = vld [vmem:[#allocation3 + $0xc0] sm:$0xff]
        %v6216 = vld [vmem:[#allocation3 + $0xc8] sm:$0xff]
        %v6217 = vld [vmem:[#allocation3 + $0xd0] sm:$0xff]
        %v6218 = vld [vmem:[#allocation3 + $0xd8] sm:$0xff]
        %v6219 = vld [vmem:[#allocation3 + $0xe0] sm:$0xff]
        %v6220 = vld [vmem:[#allocation3 + $0xe8] sm:$0xff]
        %v6221 = vld [vmem:[#allocation3 + $0xf0] sm:$0x7f]
        %v6222 = vld [vmem:[#allocation3 + $0xf8] sm:$0x7f]
        %s6223 = scalar_lea.vmem %s3, 216
        %v6224 = vld [vmem:[%s6223] sm:$0xff]
        %v6225 = vld [vmem:[%s6223 + $0x8] sm:$0xff]
        %v6226 = vld [vmem:[%s6223 + $0x10] sm:$0xff]
        %v6227 = vld [vmem:[%s6223 + $0x18] sm:$0xff]
        %v6228 = vld [vmem:[%s6223 + $0x20] sm:$0xff]
        %v6229 = vld [vmem:[%s6223 + $0x28] sm:$0xff]
        %v6230 = vld [vmem:[%s6223 + $0x30] sm:$0xff]
        %v6231 = vld [vmem:[%s6223 + $0x38] sm:$0xff]
        %v6232 = vld [vmem:[%s6223 + $0x40] sm:$0xff]
        %v6233 = vld [vmem:[%s6223 + $0x48] sm:$0xff]
        %v6234 = vld [vmem:[%s6223 + $0x50] sm:$0xff]
        %v6235 = vld [vmem:[%s6223 + $0x58] sm:$0xff]
        %v6236 = vld [vmem:[%s6223 + $0x60] sm:$0xff]
        %v6237 = vld [vmem:[%s6223 + $0x68] sm:$0xff]
        %v6238 = vld [vmem:[%s6223 + $0x70] sm:$0xff]
        %v6239 = vld [vmem:[%s6223 + $0x78] sm:$0xff]
        %v6240 = vld [vmem:[%s6223 + $0x80] sm:$0xff]
        %v6241 = vld [vmem:[%s6223 + $0x88] sm:$0xff]
        %v6242 = vld [vmem:[%s6223 + $0x90] sm:$0xff]
        %v6243 = vld [vmem:[%s6223 + $0x98] sm:$0xff]
        %v6244 = vld [vmem:[%s6223 + $0xa0] sm:$0xff]
        %v6245 = vld [vmem:[%s6223 + $0xa8] sm:$0xff]
        %v6246 = vld [vmem:[%s6223 + $0xb0] sm:$0xff]
        %v6247 = vld [vmem:[%s6223 + $0xb8] sm:$0xff]
        %v6248 = vld [vmem:[%s6223 + $0xc0] sm:$0xff]
        %v6249 = vld [vmem:[%s6223 + $0xc8] sm:$0xff]
        %v6250 = vld [vmem:[%s6223 + $0xd0] sm:$0xff]
        %vm6283 = vcmask 1046528
        %v6284 = vrot.slane %v6191, 1
        %v6285 = vrot.slane %v6193, 1
        %v6286 = vsel %vm6283, %v6284, %v6285
        %v6287 = vrot.slane %v6192, 1
        %v6288 = vrot.slane %v6194, 1
        %v6289 = vsel %vm6283, %v6287, %v6288
        %v6290 = vrot.slane %v6195, 1
        %v6291 = vsel %vm6283, %v6285, %v6290
        %v6292 = vrot.slane %v6196, 1
        %v6293 = vsel %vm6283, %v6288, %v6292
        %v6294 = vrot.slane %v6197, 1
        %v6295 = vsel %vm6283, %v6290, %v6294
        %v6296 = vrot.slane %v6198, 1
        %v6297 = vsel %vm6283, %v6292, %v6296
        %v6298 = vrot.slane %v6199, 1
        %v6299 = vsel %vm6283, %v6294, %v6298
        %v6300 = vrot.slane %v6200, 1
        %v6301 = vsel %vm6283, %v6296, %v6300
        %v6302 = vrot.slane %v6201, 1
        %v6303 = vsel %vm6283, %v6298, %v6302
        %v6304 = vrot.slane %v6202, 1
        %v6305 = vsel %vm6283, %v6300, %v6304
        %v6306 = vrot.slane %v6203, 1
        %v6307 = vsel %vm6283, %v6302, %v6306
        %v6308 = vrot.slane %v6204, 1
        %v6309 = vsel %vm6283, %v6304, %v6308
        %v6310 = vrot.slane %v6205, 1
        %v6311 = vsel %vm6283, %v6306, %v6310
        %v6312 = vrot.slane %v6206, 1
        %v6313 = vsel %vm6283, %v6308, %v6312
        %v6314 = vrot.slane %v6207, 1
        %v6315 = vsel %vm6283, %v6310, %v6314
        %v6316 = vrot.slane %v6208, 1
        %v6317 = vsel %vm6283, %v6312, %v6316
        %v6318 = vrot.slane %v6209, 1
        %v6319 = vsel %vm6283, %v6314, %v6318
        %v6320 = vrot.slane %v6210, 1
        %v6321 = vsel %vm6283, %v6316, %v6320
        %v6322 = vrot.slane %v6211, 1
        %v6323 = vsel %vm6283, %v6318, %v6322
        %v6324 = vrot.slane %v6212, 1
        %v6325 = vsel %vm6283, %v6320, %v6324
        %v6326 = vrot.slane %v6213, 1
        %v6327 = vsel %vm6283, %v6322, %v6326
        %v6328 = vrot.slane %v6214, 1
        %v6329 = vsel %vm6283, %v6324, %v6328
        %v6330 = vrot.slane %v6215, 1
        %v6331 = vsel %vm6283, %v6326, %v6330
        %v6332 = vrot.slane %v6216, 1
        %v6333 = vsel %vm6283, %v6328, %v6332
        %v6334 = vrot.slane %v6217, 1
        %v6335 = vsel %vm6283, %v6330, %v6334
        %v6336 = vrot.slane %v6218, 1
        %v6337 = vsel %vm6283, %v6332, %v6336
        %v6338 = vrot.slane %v6219, 1
        %v6339 = vsel %vm6283, %v6334, %v6338
        %v6340 = vrot.slane %v6220, 1
        %v6341 = vsel %vm6283, %v6336, %v6340
        %v6342 = vrot.slane %v6221, 1
        %v6343 = vsel %vm6283, %v6338, %v6342
        %v6344 = vrot.slane %v6222, 1
        %v6345 = vsel %vm6283, %v6340, %v6344
        %v6362 = vsel %vm5979, %v6289, 0
        %v6364 = vsel %vm5979, %v6293, 0
        %v6366 = vsel %vm5979, %v6297, 0
        %v6368 = vsel %vm5979, %v6301, 0
        %v6370 = vsel %vm5979, %v6305, 0
        %v6372 = vsel %vm5979, %v6309, 0
        %v6374 = vsel %vm5979, %v6313, 0
        %v6376 = vsel %vm5979, %v6317, 0
        %v6378 = vsel %vm5979, %v6321, 0
        %v6380 = vsel %vm5979, %v6325, 0
        %v6382 = vsel %vm5979, %v6329, 0
        %v6384 = vsel %vm5979, %v6333, 0
        %v6386 = vsel %vm5979, %v6337, 0
        %v6388 = vsel %vm5979, %v6341, 0
        %v6390 = vsel %vm5979, %v6345, 0
        %v6392 = vsel %vm5979, %v6344, 0
        %6394 = vmatpush.msra.mxu0 %v6239
        %6395 = vmatpush.msra.mxu0 %v6238
        %6396 = vmatpush.msra.mxu0 %v6237
        %6397 = vmatpush.msra.mxu0 %v6236
        %6398 = vmatpush.msra.mxu0 %v6235
        %6399 = vmatpush.msra.mxu0 %v6234
        %6400 = vmatpush.msra.mxu0 %v6233
        %6401 = vmatpush.msra.mxu0 %v6232
        %6402 = vmatpush.msra.mxu0 %v6231
        %6403 = vmatpush.msra.mxu0 %v6230
        %6404 = vmatpush.msra.mxu0 %v6229
        %6405 = vmatpush.msra.mxu0 %v6228
        %6406 = vmatpush.msra.mxu0 %v6227
        %6407 = vmatpush.msra.mxu0 %v6226
        %6408 = vmatpush.msra.mxu0 %v6225
        %6409 = vmatpush.msra.mxu0 %v6224
        %6410 = vmatmul.f32.gmra.mxu0 %v6286
        %v6411 = vpop.f32.mrf.mxu0
        %v6412 = vadd.f32 0.0, %v6411
        %6413 = vmatmul.f32.gmra.mxu0 %v6291
        %v6414 = vpop.f32.mrf.mxu0
        %v6415 = vadd.f32 0.0, %v6414
        %6416 = vmatmul.f32.gmra.mxu0 %v6295
        %v6417 = vpop.f32.mrf.mxu0
        %v6418 = vadd.f32 0.0, %v6417
        %6419 = vmatmul.f32.gmra.mxu0 %v6299
        %v6420 = vpop.f32.mrf.mxu0
        %v6421 = vadd.f32 0.0, %v6420
        %6422 = vmatmul.f32.gmra.mxu0 %v6303
        %v6423 = vpop.f32.mrf.mxu0
        %v6424 = vadd.f32 0.0, %v6423
        %6425 = vmatmul.f32.gmra.mxu0 %v6307
        %v6426 = vpop.f32.mrf.mxu0
        %v6427 = vadd.f32 0.0, %v6426
        %6428 = vmatmul.f32.gmra.mxu0 %v6311
        %v6429 = vpop.f32.mrf.mxu0
        %v6430 = vadd.f32 0.0, %v6429
        %6431 = vmatmul.f32.gmra.mxu0 %v6315
        %v6432 = vpop.f32.mrf.mxu0
        %v6433 = vadd.f32 0.0, %v6432
        %6434 = vmatmul.f32.gmra.mxu0 %v6319
        %v6435 = vpop.f32.mrf.mxu0
        %v6436 = vadd.f32 0.0, %v6435
        %6437 = vmatmul.f32.gmra.mxu0 %v6323
        %v6438 = vpop.f32.mrf.mxu0
        %v6439 = vadd.f32 0.0, %v6438
        %6440 = vmatmul.f32.gmra.mxu0 %v6327
        %v6441 = vpop.f32.mrf.mxu0
        %v6442 = vadd.f32 0.0, %v6441
        %6443 = vmatmul.f32.gmra.mxu0 %v6331
        %v6444 = vpop.f32.mrf.mxu0
        %v6445 = vadd.f32 0.0, %v6444
        %6446 = vmatmul.f32.gmra.mxu0 %v6335
        %v6447 = vpop.f32.mrf.mxu0
        %v6448 = vadd.f32 0.0, %v6447
        %6449 = vmatmul.f32.gmra.mxu0 %v6339
        %v6450 = vpop.f32.mrf.mxu0
        %v6451 = vadd.f32 0.0, %v6450
        %6452 = vmatmul.f32.gmra.mxu0 %v6343
        %v6453 = vpop.f32.mrf.mxu0
        %v6454 = vadd.f32 0.0, %v6453
        %6455 = vmatmul.f32.gmra.mxu0 %v6342
        %v6456 = vpop.f32.mrf.mxu0
        %v6457 = vadd.f32 0.0, %v6456
        %6458 = vdwg.mxu0
        %6459 = vmatpush.msra.mxu0 0.0
        %6460 = vmatpush.msra.mxu0 0.0
        %6461 = vmatpush.msra.mxu0 0.0
        %6462 = vmatpush.msra.mxu0 0.0
        %6463 = vmatpush.msra.mxu0 0.0
        %6464 = vmatpush.msra.mxu0 %v6250
        %6465 = vmatpush.msra.mxu0 %v6249
        %6466 = vmatpush.msra.mxu0 %v6248
        %6467 = vmatpush.msra.mxu0 %v6247
        %6468 = vmatpush.msra.mxu0 %v6246
        %6469 = vmatpush.msra.mxu0 %v6245
        %6470 = vmatpush.msra.mxu0 %v6244
        %6471 = vmatpush.msra.mxu0 %v6243
        %6472 = vmatpush.msra.mxu0 %v6242
        %6473 = vmatpush.msra.mxu0 %v6241
        %6474 = vmatpush.msra.mxu0 %v6240
        %6475 = vmatmul.f32.gmra.mxu0 %v6362
        %v6476 = vpop.f32.mrf.mxu0
        %v6477 = vadd.f32 %v6412, %v6476
        %6478 = vmatmul.f32.gmra.mxu0 %v6364
        %v6479 = vpop.f32.mrf.mxu0
        %v6480 = vadd.f32 %v6415, %v6479
        %6481 = vmatmul.f32.gmra.mxu0 %v6366
        %v6482 = vpop.f32.mrf.mxu0
        %v6483 = vadd.f32 %v6418, %v6482
        %6484 = vmatmul.f32.gmra.mxu0 %v6368
        %v6485 = vpop.f32.mrf.mxu0
        %v6486 = vadd.f32 %v6421, %v6485
        %6487 = vmatmul.f32.gmra.mxu0 %v6370
        %v6488 = vpop.f32.mrf.mxu0
        %v6489 = vadd.f32 %v6424, %v6488
        %6490 = vmatmul.f32.gmra.mxu0 %v6372
        %v6491 = vpop.f32.mrf.mxu0
        %v6492 = vadd.f32 %v6427, %v6491
        %6493 = vmatmul.f32.gmra.mxu0 %v6374
        %v6494 = vpop.f32.mrf.mxu0
        %v6495 = vadd.f32 %v6430, %v6494
        %6496 = vmatmul.f32.gmra.mxu0 %v6376
        %v6497 = vpop.f32.mrf.mxu0
        %v6498 = vadd.f32 %v6433, %v6497
        %6499 = vmatmul.f32.gmra.mxu0 %v6378
        %v6500 = vpop.f32.mrf.mxu0
        %v6501 = vadd.f32 %v6436, %v6500
        %6502 = vmatmul.f32.gmra.mxu0 %v6380
        %v6503 = vpop.f32.mrf.mxu0
        %v6504 = vadd.f32 %v6439, %v6503
        %6505 = vmatmul.f32.gmra.mxu0 %v6382
        %v6506 = vpop.f32.mrf.mxu0
        %v6507 = vadd.f32 %v6442, %v6506
        %6508 = vmatmul.f32.gmra.mxu0 %v6384
        %v6509 = vpop.f32.mrf.mxu0
        %v6510 = vadd.f32 %v6445, %v6509
        %6511 = vmatmul.f32.gmra.mxu0 %v6386
        %v6512 = vpop.f32.mrf.mxu0
        %v6513 = vadd.f32 %v6448, %v6512
        %6514 = vmatmul.f32.gmra.mxu0 %v6388
        %v6515 = vpop.f32.mrf.mxu0
        %v6516 = vadd.f32 %v6451, %v6515
        %6517 = vmatmul.f32.gmra.mxu0 %v6390
        %v6518 = vpop.f32.mrf.mxu0
        %v6519 = vadd.f32 %v6454, %v6518
        %6520 = vmatmul.f32.gmra.mxu0 %v6392
        %v6521 = vpop.f32.mrf.mxu0
        %v6522 = vadd.f32 %v6457, %v6521
        %6523 = vdwg.mxu0
        %v6524 = vadd.f32 %v6175, %v6477
        %v6525 = vadd.f32 %v6176, %v6480
        %v6526 = vadd.f32 %v6177, %v6483
        %v6527 = vadd.f32 %v6178, %v6486
        %v6528 = vadd.f32 %v6179, %v6489
        %v6529 = vadd.f32 %v6180, %v6492
        %v6530 = vadd.f32 %v6181, %v6495
        %v6531 = vadd.f32 %v6182, %v6498
        %v6532 = vadd.f32 %v6183, %v6501
        %v6533 = vadd.f32 %v6184, %v6504
        %v6534 = vadd.f32 %v6185, %v6507
        %v6535 = vadd.f32 %v6186, %v6510
        %v6536 = vadd.f32 %v6187, %v6513
        %v6537 = vadd.f32 %v6188, %v6516
        %v6538 = vadd.f32 %v6189, %v6519
        %v6539 = vadd.f32 %v6190, %v6522
        %6540 = vst.msk [vmem:[#allocation4] sm:$0xff] %vm337, %v6524
        %6541 = vst.msk [vmem:[#allocation4 + $0x8] sm:$0xff] %vm337, %v6525
        %6542 = vst.msk [vmem:[#allocation4 + $0x10] sm:$0xff] %vm337, %v6526
        %6543 = vst.msk [vmem:[#allocation4 + $0x18] sm:$0xff] %vm337, %v6527
        %6544 = vst.msk [vmem:[#allocation4 + $0x20] sm:$0xff] %vm337, %v6528
        %6545 = vst.msk [vmem:[#allocation4 + $0x28] sm:$0xff] %vm337, %v6529
        %6546 = vst.msk [vmem:[#allocation4 + $0x30] sm:$0xff] %vm337, %v6530
        %6547 = vst.msk [vmem:[#allocation4 + $0x38] sm:$0xff] %vm337, %v6531
        %6548 = vst.msk [vmem:[#allocation4 + $0x40] sm:$0xff] %vm337, %v6532
        %6549 = vst.msk [vmem:[#allocation4 + $0x48] sm:$0xff] %vm337, %v6533
        %6550 = vst.msk [vmem:[#allocation4 + $0x50] sm:$0xff] %vm337, %v6534
        %6551 = vst.msk [vmem:[#allocation4 + $0x58] sm:$0xff] %vm337, %v6535
        %6552 = vst.msk [vmem:[#allocation4 + $0x60] sm:$0xff] %vm337, %v6536
        %6553 = vst.msk [vmem:[#allocation4 + $0x68] sm:$0xff] %vm337, %v6537
        %6554 = vst.msk [vmem:[#allocation4 + $0x70] sm:$0xff] %vm337, %v6538
        %6555 = vst.msk [vmem:[#allocation4 + $0x78] sm:$0x3f] %vm6173, %v6539
        %v6556 = vld [vmem:[#allocation4] sm:$0xff]
        %v6557 = vld [vmem:[#allocation4 + $0x8] sm:$0xff]
        %v6558 = vld [vmem:[#allocation4 + $0x10] sm:$0xff]
        %v6559 = vld [vmem:[#allocation4 + $0x18] sm:$0xff]
        %v6560 = vld [vmem:[#allocation4 + $0x20] sm:$0xff]
        %v6561 = vld [vmem:[#allocation4 + $0x28] sm:$0xff]
        %v6562 = vld [vmem:[#allocation4 + $0x30] sm:$0xff]
        %v6563 = vld [vmem:[#allocation4 + $0x38] sm:$0xff]
        %v6564 = vld [vmem:[#allocation4 + $0x40] sm:$0xff]
        %v6565 = vld [vmem:[#allocation4 + $0x48] sm:$0xff]
        %v6566 = vld [vmem:[#allocation4 + $0x50] sm:$0xff]
        %v6567 = vld [vmem:[#allocation4 + $0x58] sm:$0xff]
        %v6568 = vld [vmem:[#allocation4 + $0x60] sm:$0xff]
        %v6569 = vld [vmem:[#allocation4 + $0x68] sm:$0xff]
        %v6570 = vld [vmem:[#allocation4 + $0x70] sm:$0xff]
        %v6571 = vld [vmem:[#allocation4 + $0x78] sm:$0x3f]
        %v6572 = vld [vmem:[#allocation3] sm:$0xfc]
        %v6573 = vld [vmem:[#allocation3 + $0x8] sm:$0xfc]
        %v6574 = vld [vmem:[#allocation3 + $0x10] sm:$0xff]
        %v6575 = vld [vmem:[#allocation3 + $0x18] sm:$0xff]
        %v6576 = vld [vmem:[#allocation3 + $0x20] sm:$0xff]
        %v6577 = vld [vmem:[#allocation3 + $0x28] sm:$0xff]
        %v6578 = vld [vmem:[#allocation3 + $0x30] sm:$0xff]
        %v6579 = vld [vmem:[#allocation3 + $0x38] sm:$0xff]
        %v6580 = vld [vmem:[#allocation3 + $0x40] sm:$0xff]
        %v6581 = vld [vmem:[#allocation3 + $0x48] sm:$0xff]
        %v6582 = vld [vmem:[#allocation3 + $0x50] sm:$0xff]
        %v6583 = vld [vmem:[#allocation3 + $0x58] sm:$0xff]
        %v6584 = vld [vmem:[#allocation3 + $0x60] sm:$0xff]
        %v6585 = vld [vmem:[#allocation3 + $0x68] sm:$0xff]
        %v6586 = vld [vmem:[#allocation3 + $0x70] sm:$0xff]
        %v6587 = vld [vmem:[#allocation3 + $0x78] sm:$0xff]
        %v6588 = vld [vmem:[#allocation3 + $0x80] sm:$0xff]
        %v6589 = vld [vmem:[#allocation3 + $0x88] sm:$0xff]
        %v6590 = vld [vmem:[#allocation3 + $0x90] sm:$0xff]
        %v6591 = vld [vmem:[#allocation3 + $0x98] sm:$0xff]
        %v6592 = vld [vmem:[#allocation3 + $0xa0] sm:$0xff]
        %v6593 = vld [vmem:[#allocation3 + $0xa8] sm:$0xff]
        %v6594 = vld [vmem:[#allocation3 + $0xb0] sm:$0xff]
        %v6595 = vld [vmem:[#allocation3 + $0xb8] sm:$0xff]
        %v6596 = vld [vmem:[#allocation3 + $0xc0] sm:$0xff]
        %v6597 = vld [vmem:[#allocation3 + $0xc8] sm:$0xff]
        %v6598 = vld [vmem:[#allocation3 + $0xd0] sm:$0xff]
        %v6599 = vld [vmem:[#allocation3 + $0xd8] sm:$0xff]
        %v6600 = vld [vmem:[#allocation3 + $0xe0] sm:$0xff]
        %v6601 = vld [vmem:[#allocation3 + $0xe8] sm:$0xff]
        %v6602 = vld [vmem:[#allocation3 + $0xf0] sm:$0xff]
        %v6603 = vld [vmem:[#allocation3 + $0xf8] sm:$0xff]
        %s6604 = scalar_lea.vmem %s3, 432
        %v6605 = vld [vmem:[%s6604] sm:$0xff]
        %v6606 = vld [vmem:[%s6604 + $0x8] sm:$0xff]
        %v6607 = vld [vmem:[%s6604 + $0x10] sm:$0xff]
        %v6608 = vld [vmem:[%s6604 + $0x18] sm:$0xff]
        %v6609 = vld [vmem:[%s6604 + $0x20] sm:$0xff]
        %v6610 = vld [vmem:[%s6604 + $0x28] sm:$0xff]
        %v6611 = vld [vmem:[%s6604 + $0x30] sm:$0xff]
        %v6612 = vld [vmem:[%s6604 + $0x38] sm:$0xff]
        %v6613 = vld [vmem:[%s6604 + $0x40] sm:$0xff]
        %v6614 = vld [vmem:[%s6604 + $0x48] sm:$0xff]
        %v6615 = vld [vmem:[%s6604 + $0x50] sm:$0xff]
        %v6616 = vld [vmem:[%s6604 + $0x58] sm:$0xff]
        %v6617 = vld [vmem:[%s6604 + $0x60] sm:$0xff]
        %v6618 = vld [vmem:[%s6604 + $0x68] sm:$0xff]
        %v6619 = vld [vmem:[%s6604 + $0x70] sm:$0xff]
        %v6620 = vld [vmem:[%s6604 + $0x78] sm:$0xff]
        %v6621 = vld [vmem:[%s6604 + $0x80] sm:$0xff]
        %v6622 = vld [vmem:[%s6604 + $0x88] sm:$0xff]
        %v6623 = vld [vmem:[%s6604 + $0x90] sm:$0xff]
        %v6624 = vld [vmem:[%s6604 + $0x98] sm:$0xff]
        %v6625 = vld [vmem:[%s6604 + $0xa0] sm:$0xff]
        %v6626 = vld [vmem:[%s6604 + $0xa8] sm:$0xff]
        %v6627 = vld [vmem:[%s6604 + $0xb0] sm:$0xff]
        %v6628 = vld [vmem:[%s6604 + $0xb8] sm:$0xff]
        %v6629 = vld [vmem:[%s6604 + $0xc0] sm:$0xff]
        %v6630 = vld [vmem:[%s6604 + $0xc8] sm:$0xff]
        %v6631 = vld [vmem:[%s6604 + $0xd0] sm:$0xff]
        %v6664 = vrot.slane %v6572, 2
        %v6665 = vrot.slane %v6574, 2
        %v6666 = vsel %vm1863, %v6664, %v6665
        %v6667 = vrot.slane %v6573, 2
        %v6668 = vrot.slane %v6575, 2
        %v6669 = vsel %vm1863, %v6667, %v6668
        %v6670 = vrot.slane %v6576, 2
        %v6671 = vsel %vm1863, %v6665, %v6670
        %v6672 = vrot.slane %v6577, 2
        %v6673 = vsel %vm1863, %v6668, %v6672
        %v6674 = vrot.slane %v6578, 2
        %v6675 = vsel %vm1863, %v6670, %v6674
        %v6676 = vrot.slane %v6579, 2
        %v6677 = vsel %vm1863, %v6672, %v6676
        %v6678 = vrot.slane %v6580, 2
        %v6679 = vsel %vm1863, %v6674, %v6678
        %v6680 = vrot.slane %v6581, 2
        %v6681 = vsel %vm1863, %v6676, %v6680
        %v6682 = vrot.slane %v6582, 2
        %v6683 = vsel %vm1863, %v6678, %v6682
        %v6684 = vrot.slane %v6583, 2
        %v6685 = vsel %vm1863, %v6680, %v6684
        %v6686 = vrot.slane %v6584, 2
        %v6687 = vsel %vm1863, %v6682, %v6686
        %v6688 = vrot.slane %v6585, 2
        %v6689 = vsel %vm1863, %v6684, %v6688
        %v6690 = vrot.slane %v6586, 2
        %v6691 = vsel %vm1863, %v6686, %v6690
        %v6692 = vrot.slane %v6587, 2
        %v6693 = vsel %vm1863, %v6688, %v6692
        %v6694 = vrot.slane %v6588, 2
        %v6695 = vsel %vm1863, %v6690, %v6694
        %v6696 = vrot.slane %v6589, 2
        %v6697 = vsel %vm1863, %v6692, %v6696
        %v6698 = vrot.slane %v6590, 2
        %v6699 = vsel %vm1863, %v6694, %v6698
        %v6700 = vrot.slane %v6591, 2
        %v6701 = vsel %vm1863, %v6696, %v6700
        %v6702 = vrot.slane %v6592, 2
        %v6703 = vsel %vm1863, %v6698, %v6702
        %v6704 = vrot.slane %v6593, 2
        %v6705 = vsel %vm1863, %v6700, %v6704
        %v6706 = vrot.slane %v6594, 2
        %v6707 = vsel %vm1863, %v6702, %v6706
        %v6708 = vrot.slane %v6595, 2
        %v6709 = vsel %vm1863, %v6704, %v6708
        %v6710 = vrot.slane %v6596, 2
        %v6711 = vsel %vm1863, %v6706, %v6710
        %v6712 = vrot.slane %v6597, 2
        %v6713 = vsel %vm1863, %v6708, %v6712
        %v6714 = vrot.slane %v6598, 2
        %v6715 = vsel %vm1863, %v6710, %v6714
        %v6716 = vrot.slane %v6599, 2
        %v6717 = vsel %vm1863, %v6712, %v6716
        %v6718 = vrot.slane %v6600, 2
        %v6719 = vsel %vm1863, %v6714, %v6718
        %v6720 = vrot.slane %v6601, 2
        %v6721 = vsel %vm1863, %v6716, %v6720
        %v6722 = vrot.slane %v6602, 2
        %v6723 = vsel %vm1863, %v6718, %v6722
        %v6724 = vrot.slane %v6603, 2
        %v6725 = vsel %vm1863, %v6720, %v6724
        %v6742 = vsel %vm5979, %v6669, 0
        %v6744 = vsel %vm5979, %v6673, 0
        %v6746 = vsel %vm5979, %v6677, 0
        %v6748 = vsel %vm5979, %v6681, 0
        %v6750 = vsel %vm5979, %v6685, 0
        %v6752 = vsel %vm5979, %v6689, 0
        %v6754 = vsel %vm5979, %v6693, 0
        %v6756 = vsel %vm5979, %v6697, 0
        %v6758 = vsel %vm5979, %v6701, 0
        %v6760 = vsel %vm5979, %v6705, 0
        %v6762 = vsel %vm5979, %v6709, 0
        %v6764 = vsel %vm5979, %v6713, 0
        %v6766 = vsel %vm5979, %v6717, 0
        %v6768 = vsel %vm5979, %v6721, 0
        %v6770 = vsel %vm5979, %v6725, 0
        %v6772 = vsel %vm5979, %v6724, 0
        %6774 = vmatpush.msra.mxu0 %v6620
        %6775 = vmatpush.msra.mxu0 %v6619
        %6776 = vmatpush.msra.mxu0 %v6618
        %6777 = vmatpush.msra.mxu0 %v6617
        %6778 = vmatpush.msra.mxu0 %v6616
        %6779 = vmatpush.msra.mxu0 %v6615
        %6780 = vmatpush.msra.mxu0 %v6614
        %6781 = vmatpush.msra.mxu0 %v6613
        %6782 = vmatpush.msra.mxu0 %v6612
        %6783 = vmatpush.msra.mxu0 %v6611
        %6784 = vmatpush.msra.mxu0 %v6610
        %6785 = vmatpush.msra.mxu0 %v6609
        %6786 = vmatpush.msra.mxu0 %v6608
        %6787 = vmatpush.msra.mxu0 %v6607
        %6788 = vmatpush.msra.mxu0 %v6606
        %6789 = vmatpush.msra.mxu0 %v6605
        %6790 = vmatmul.f32.gmra.mxu0 %v6666
        %v6791 = vpop.f32.mrf.mxu0
        %v6792 = vadd.f32 0.0, %v6791
        %6793 = vmatmul.f32.gmra.mxu0 %v6671
        %v6794 = vpop.f32.mrf.mxu0
        %v6795 = vadd.f32 0.0, %v6794
        %6796 = vmatmul.f32.gmra.mxu0 %v6675
        %v6797 = vpop.f32.mrf.mxu0
        %v6798 = vadd.f32 0.0, %v6797
        %6799 = vmatmul.f32.gmra.mxu0 %v6679
        %v6800 = vpop.f32.mrf.mxu0
        %v6801 = vadd.f32 0.0, %v6800
        %6802 = vmatmul.f32.gmra.mxu0 %v6683
        %v6803 = vpop.f32.mrf.mxu0
        %v6804 = vadd.f32 0.0, %v6803
        %6805 = vmatmul.f32.gmra.mxu0 %v6687
        %v6806 = vpop.f32.mrf.mxu0
        %v6807 = vadd.f32 0.0, %v6806
        %6808 = vmatmul.f32.gmra.mxu0 %v6691
        %v6809 = vpop.f32.mrf.mxu0
        %v6810 = vadd.f32 0.0, %v6809
        %6811 = vmatmul.f32.gmra.mxu0 %v6695
        %v6812 = vpop.f32.mrf.mxu0
        %v6813 = vadd.f32 0.0, %v6812
        %6814 = vmatmul.f32.gmra.mxu0 %v6699
        %v6815 = vpop.f32.mrf.mxu0
        %v6816 = vadd.f32 0.0, %v6815
        %6817 = vmatmul.f32.gmra.mxu0 %v6703
        %v6818 = vpop.f32.mrf.mxu0
        %v6819 = vadd.f32 0.0, %v6818
        %6820 = vmatmul.f32.gmra.mxu0 %v6707
        %v6821 = vpop.f32.mrf.mxu0
        %v6822 = vadd.f32 0.0, %v6821
        %6823 = vmatmul.f32.gmra.mxu0 %v6711
        %v6824 = vpop.f32.mrf.mxu0
        %v6825 = vadd.f32 0.0, %v6824
        %6826 = vmatmul.f32.gmra.mxu0 %v6715
        %v6827 = vpop.f32.mrf.mxu0
        %v6828 = vadd.f32 0.0, %v6827
        %6829 = vmatmul.f32.gmra.mxu0 %v6719
        %v6830 = vpop.f32.mrf.mxu0
        %v6831 = vadd.f32 0.0, %v6830
        %6832 = vmatmul.f32.gmra.mxu0 %v6723
        %v6833 = vpop.f32.mrf.mxu0
        %v6834 = vadd.f32 0.0, %v6833
        %6835 = vmatmul.f32.gmra.mxu0 %v6722
        %v6836 = vpop.f32.mrf.mxu0
        %v6837 = vadd.f32 0.0, %v6836
        %6838 = vdwg.mxu0
        %6839 = vmatpush.msra.mxu0 0.0
        %6840 = vmatpush.msra.mxu0 0.0
        %6841 = vmatpush.msra.mxu0 0.0
        %6842 = vmatpush.msra.mxu0 0.0
        %6843 = vmatpush.msra.mxu0 0.0
        %6844 = vmatpush.msra.mxu0 %v6631
        %6845 = vmatpush.msra.mxu0 %v6630
        %6846 = vmatpush.msra.mxu0 %v6629
        %6847 = vmatpush.msra.mxu0 %v6628
        %6848 = vmatpush.msra.mxu0 %v6627
        %6849 = vmatpush.msra.mxu0 %v6626
        %6850 = vmatpush.msra.mxu0 %v6625
        %6851 = vmatpush.msra.mxu0 %v6624
        %6852 = vmatpush.msra.mxu0 %v6623
        %6853 = vmatpush.msra.mxu0 %v6622
        %6854 = vmatpush.msra.mxu0 %v6621
        %6855 = vmatmul.f32.gmra.mxu0 %v6742
        %v6856 = vpop.f32.mrf.mxu0
        %v6857 = vadd.f32 %v6792, %v6856
        %6858 = vmatmul.f32.gmra.mxu0 %v6744
        %v6859 = vpop.f32.mrf.mxu0
        %v6860 = vadd.f32 %v6795, %v6859
        %6861 = vmatmul.f32.gmra.mxu0 %v6746
        %v6862 = vpop.f32.mrf.mxu0
        %v6863 = vadd.f32 %v6798, %v6862
        %6864 = vmatmul.f32.gmra.mxu0 %v6748
        %v6865 = vpop.f32.mrf.mxu0
        %v6866 = vadd.f32 %v6801, %v6865
        %6867 = vmatmul.f32.gmra.mxu0 %v6750
        %v6868 = vpop.f32.mrf.mxu0
        %v6869 = vadd.f32 %v6804, %v6868
        %6870 = vmatmul.f32.gmra.mxu0 %v6752
        %v6871 = vpop.f32.mrf.mxu0
        %v6872 = vadd.f32 %v6807, %v6871
        %6873 = vmatmul.f32.gmra.mxu0 %v6754
        %v6874 = vpop.f32.mrf.mxu0
        %v6875 = vadd.f32 %v6810, %v6874
        %6876 = vmatmul.f32.gmra.mxu0 %v6756
        %v6877 = vpop.f32.mrf.mxu0
        %v6878 = vadd.f32 %v6813, %v6877
        %6879 = vmatmul.f32.gmra.mxu0 %v6758
        %v6880 = vpop.f32.mrf.mxu0
        %v6881 = vadd.f32 %v6816, %v6880
        %6882 = vmatmul.f32.gmra.mxu0 %v6760
        %v6883 = vpop.f32.mrf.mxu0
        %v6884 = vadd.f32 %v6819, %v6883
        %6885 = vmatmul.f32.gmra.mxu0 %v6762
        %v6886 = vpop.f32.mrf.mxu0
        %v6887 = vadd.f32 %v6822, %v6886
        %6888 = vmatmul.f32.gmra.mxu0 %v6764
        %v6889 = vpop.f32.mrf.mxu0
        %v6890 = vadd.f32 %v6825, %v6889
        %6891 = vmatmul.f32.gmra.mxu0 %v6766
        %v6892 = vpop.f32.mrf.mxu0
        %v6893 = vadd.f32 %v6828, %v6892
        %6894 = vmatmul.f32.gmra.mxu0 %v6768
        %v6895 = vpop.f32.mrf.mxu0
        %v6896 = vadd.f32 %v6831, %v6895
        %6897 = vmatmul.f32.gmra.mxu0 %v6770
        %v6898 = vpop.f32.mrf.mxu0
        %v6899 = vadd.f32 %v6834, %v6898
        %6900 = vmatmul.f32.gmra.mxu0 %v6772
        %v6901 = vpop.f32.mrf.mxu0
        %v6902 = vadd.f32 %v6837, %v6901
        %6903 = vdwg.mxu0
        %v6904 = vadd.f32 %v6556, %v6857
        %v6905 = vadd.f32 %v6557, %v6860
        %v6906 = vadd.f32 %v6558, %v6863
        %v6907 = vadd.f32 %v6559, %v6866
        %v6908 = vadd.f32 %v6560, %v6869
        %v6909 = vadd.f32 %v6561, %v6872
        %v6910 = vadd.f32 %v6562, %v6875
        %v6911 = vadd.f32 %v6563, %v6878
        %v6912 = vadd.f32 %v6564, %v6881
        %v6913 = vadd.f32 %v6565, %v6884
        %v6914 = vadd.f32 %v6566, %v6887
        %v6915 = vadd.f32 %v6567, %v6890
        %v6916 = vadd.f32 %v6568, %v6893
        %v6917 = vadd.f32 %v6569, %v6896
        %v6918 = vadd.f32 %v6570, %v6899
        %v6919 = vadd.f32 %v6571, %v6902
        %6920 = vst.msk [vmem:[#allocation4] sm:$0xff] %vm337, %v6904
        %6921 = vst.msk [vmem:[#allocation4 + $0x8] sm:$0xff] %vm337, %v6905
        %6922 = vst.msk [vmem:[#allocation4 + $0x10] sm:$0xff] %vm337, %v6906
        %6923 = vst.msk [vmem:[#allocation4 + $0x18] sm:$0xff] %vm337, %v6907
        %6924 = vst.msk [vmem:[#allocation4 + $0x20] sm:$0xff] %vm337, %v6908
        %6925 = vst.msk [vmem:[#allocation4 + $0x28] sm:$0xff] %vm337, %v6909
        %6926 = vst.msk [vmem:[#allocation4 + $0x30] sm:$0xff] %vm337, %v6910
        %6927 = vst.msk [vmem:[#allocation4 + $0x38] sm:$0xff] %vm337, %v6911
        %6928 = vst.msk [vmem:[#allocation4 + $0x40] sm:$0xff] %vm337, %v6912
        %6929 = vst.msk [vmem:[#allocation4 + $0x48] sm:$0xff] %vm337, %v6913
        %6930 = vst.msk [vmem:[#allocation4 + $0x50] sm:$0xff] %vm337, %v6914
        %6931 = vst.msk [vmem:[#allocation4 + $0x58] sm:$0xff] %vm337, %v6915
        %6932 = vst.msk [vmem:[#allocation4 + $0x60] sm:$0xff] %vm337, %v6916
        %6933 = vst.msk [vmem:[#allocation4 + $0x68] sm:$0xff] %vm337, %v6917
        %6934 = vst.msk [vmem:[#allocation4 + $0x70] sm:$0xff] %vm337, %v6918
        %6935 = vst.msk [vmem:[#allocation4 + $0x78] sm:$0x3f] %vm6173, %v6919
        %v6936 = vld [vmem:[#allocation4] sm:$0xff]
        %v6937 = vld [vmem:[#allocation4 + $0x8] sm:$0x3f]
        %6940 = vrot.lane.b32.xlu0 %v6936, 120
        %v6941 = vpop.permute.xlu0 %6940
        %6942 = vrot.lane.b32.xlu0 %v6937, 120
        %v6943 = vpop.permute.xlu0 %6942
        %v6946 = vmax.f32 %v6936, %v6941
        %v6947 = vmax.f32 %v6937, %v6943
        %v6950 = vrot.slane %v6946, 2
        %v6951 = vrot.slane %v6946, 4
        %v6952 = vrot.slane %v6946, 6
        %v6953 = vrot.slane %v6947, 2
        %v6954 = vrot.slane %v6947, 4
        %vm6960 = vcmask 844800
        %v6961 = vsel %vm6960, %v6946, -inf
        %v6962 = vrot.slane %v6961, 4
        %v6963 = vmax.f32 %v6961, %v6962
        %v6964 = vrot.slane %v6963, 2
        %v6965 = vmax.f32 %v6963, %v6964
        %v6966 = vrot.slane %v6965, 1
        %v6967 = vmax.f32 %v6965, %v6966
        %v6968 = vsel %vm6960, %v6950, -inf
        %v6969 = vrot.slane %v6968, 4
        %v6970 = vmax.f32 %v6968, %v6969
        %v6971 = vrot.slane %v6970, 2
        %v6972 = vmax.f32 %v6970, %v6971
        %v6973 = vrot.slane %v6972, 1
        %v6974 = vmax.f32 %v6972, %v6973
        %v6975 = vsel %vm6960, %v6951, -inf
        %v6976 = vrot.slane %v6975, 4
        %v6977 = vmax.f32 %v6975, %v6976
        %v6978 = vrot.slane %v6977, 2
        %v6979 = vmax.f32 %v6977, %v6978
        %v6980 = vrot.slane %v6979, 1
        %v6981 = vmax.f32 %v6979, %v6980
        %v6982 = vsel %vm6960, %v6952, -inf
        %v6983 = vrot.slane %v6982, 4
        %v6984 = vmax.f32 %v6982, %v6983
        %v6985 = vrot.slane %v6984, 2
        %v6986 = vmax.f32 %v6984, %v6985
        %v6987 = vrot.slane %v6986, 1
        %v6988 = vmax.f32 %v6986, %v6987
        %v6989 = vsel %vm6960, %v6947, -inf
        %v6990 = vrot.slane %v6989, 4
        %v6991 = vmax.f32 %v6989, %v6990
        %v6992 = vrot.slane %v6991, 2
        %v6993 = vmax.f32 %v6991, %v6992
        %v6994 = vrot.slane %v6993, 1
        %v6995 = vmax.f32 %v6993, %v6994
        %v6996 = vsel %vm6960, %v6953, -inf
        %v6997 = vrot.slane %v6996, 4
        %v6998 = vmax.f32 %v6996, %v6997
        %v6999 = vrot.slane %v6998, 2
        %v7000 = vmax.f32 %v6998, %v6999
        %v7001 = vrot.slane %v7000, 1
        %v7002 = vmax.f32 %v7000, %v7001
        %v7003 = vsel %vm6960, %v6954, -inf
        %v7004 = vrot.slane %v7003, 4
        %v7005 = vmax.f32 %v7003, %v7004
        %v7006 = vrot.slane %v7005, 2
        %v7007 = vmax.f32 %v7005, %v7006
        %v7008 = vrot.slane %v7007, 1
        %v7009 = vmax.f32 %v7007, %v7008
        %v7010 = vld [vmem:[%s4] sm:$0x1]
        %v7012 = vperm.slane %v7010, 0
        %v7014 = vadd.f32 %v6967, %v7012
        %v7015 = vadd.f32 %v6974, %v7012
        %v7016 = vadd.f32 %v6981, %v7012
        %v7017 = vadd.f32 %v6988, %v7012
        %v7018 = vadd.f32 %v6995, %v7012
        %v7019 = vadd.f32 %v7002, %v7012
        %v7020 = vadd.f32 %v7009, %v7012
        %v7021 = vmax.f32 %v7014, 0.0
        %v7022 = vmax.f32 %v7015, 0.0
        %v7023 = vmax.f32 %v7016, 0.0
        %v7024 = vmax.f32 %v7017, 0.0
        %v7025 = vmax.f32 %v7018, 0.0
        %v7026 = vmax.f32 %v7019, 0.0
        %v7027 = vmax.f32 %v7020, 0.0
        %vm7028 = vcmask 843776
        %7029 = vst.msk [vmem:[#allocation5] sm:$0x1] %vm7028, %v7021
        %7031 = vrot.lane.b32.xlu0 %v7022, 104
        %v7032 = vpop.permute.xlu0 %7031
        %vm7034 = vcmask 1041216
        %7035 = vst.msk [vmem:[#allocation5] sm:$0x1] %vm7034, %v7032
        %vm7036 = vcmask 647168
        %7037 = vst.msk [vmem:[#allocation5 + $0x8] sm:$0x1] %vm7036, %v7032
        %7039 = vrot.lane.b32.xlu0 %v7023, 80
        %v7040 = vpop.permute.xlu0 %7039
        %vm7042 = vcmask 1041024
        %7043 = vst.msk [vmem:[#allocation5 + $0x8] sm:$0x1] %vm7042, %v7040
        %vm7044 = vcmask 450560
        %7045 = vst.msk [vmem:[#allocation5 + $0x10] sm:$0x1] %vm7044, %v7040
        %7047 = vrot.lane.b32.xlu0 %v7024, 56
        %v7048 = vpop.permute.xlu0 %7047
        %vm7050 = vcmask 1040832
        %7051 = vst.msk [vmem:[#allocation5 + $0x10] sm:$0x1] %vm7050, %v7048
        %vm7052 = vcmask 253952
        %7053 = vst.msk [vmem:[#allocation5 + $0x18] sm:$0x1] %vm7052, %v7048
        %7055 = vrot.lane.b32.xlu0 %v7025, 32
        %v7056 = vpop.permute.xlu0 %7055
        %vm7058 = vcmask 1040640
        %7059 = vst.msk [vmem:[#allocation5 + $0x18] sm:$0x1] %vm7058, %v7056
        %vm7060 = vcmask 57344
        %7061 = vst.msk [vmem:[#allocation5 + $0x20] sm:$0x1] %vm7060, %v7056
        %7063 = vrot.lane.b32.xlu0 %v7026, 8
        %v7064 = vpop.permute.xlu0 %7063
        %vm7066 = vcmask 909376
        %7067 = vst.msk [vmem:[#allocation5 + $0x20] sm:$0x1] %vm7066, %v7064
        %7069 = vrot.lane.b32.xlu0 %v7027, 112
        %v7070 = vpop.permute.xlu0 %7069
        %vm7072 = vcmask 1041280
        %7073 = vst.msk [vmem:[#allocation5 + $0x20] sm:$0x1] %vm7072, %v7070
        %vm7074 = vcmask 712704
        %7075 = vst.msk [vmem:[#allocation5 + $0x28] sm:$0x1] %vm7074, %v7070
        %v7076 = vld [vmem:[#allocation4 + $0x10] sm:$0xff]
        %v7077 = vld [vmem:[#allocation4 + $0x18] sm:$0x3f]
        %7080 = vrot.lane.b32.xlu0 %v7076, 120
        %v7081 = vpop.permute.xlu0 %7080
        %7082 = vrot.lane.b32.xlu0 %v7077, 120
        %v7083 = vpop.permute.xlu0 %7082
        %v7086 = vmax.f32 %v7076, %v7081
        %v7087 = vmax.f32 %v7077, %v7083
        %v7090 = vrot.slane %v7086, 2
        %v7091 = vrot.slane %v7086, 4
        %v7092 = vrot.slane %v7086, 6
        %v7093 = vrot.slane %v7087, 2
        %v7094 = vrot.slane %v7087, 4
        %v7100 = vsel %vm6960, %v7086, -inf
        %v7101 = vrot.slane %v7100, 4
        %v7102 = vmax.f32 %v7100, %v7101
        %v7103 = vrot.slane %v7102, 2
        %v7104 = vmax.f32 %v7102, %v7103
        %v7105 = vrot.slane %v7104, 1
        %v7106 = vmax.f32 %v7104, %v7105
        %v7107 = vsel %vm6960, %v7090, -inf
        %v7108 = vrot.slane %v7107, 4
        %v7109 = vmax.f32 %v7107, %v7108
        %v7110 = vrot.slane %v7109, 2
        %v7111 = vmax.f32 %v7109, %v7110
        %v7112 = vrot.slane %v7111, 1
        %v7113 = vmax.f32 %v7111, %v7112
        %v7114 = vsel %vm6960, %v7091, -inf
        %v7115 = vrot.slane %v7114, 4
        %v7116 = vmax.f32 %v7114, %v7115
        %v7117 = vrot.slane %v7116, 2
        %v7118 = vmax.f32 %v7116, %v7117
        %v7119 = vrot.slane %v7118, 1
        %v7120 = vmax.f32 %v7118, %v7119
        %v7121 = vsel %vm6960, %v7092, -inf
        %v7122 = vrot.slane %v7121, 4
        %v7123 = vmax.f32 %v7121, %v7122
        %v7124 = vrot.slane %v7123, 2
        %v7125 = vmax.f32 %v7123, %v7124
        %v7126 = vrot.slane %v7125, 1
        %v7127 = vmax.f32 %v7125, %v7126
        %v7128 = vsel %vm6960, %v7087, -inf
        %v7129 = vrot.slane %v7128, 4
        %v7130 = vmax.f32 %v7128, %v7129
        %v7131 = vrot.slane %v7130, 2
        %v7132 = vmax.f32 %v7130, %v7131
        %v7133 = vrot.slane %v7132, 1
        %v7134 = vmax.f32 %v7132, %v7133
        %v7135 = vsel %vm6960, %v7093, -inf
        %v7136 = vrot.slane %v7135, 4
        %v7137 = vmax.f32 %v7135, %v7136
        %v7138 = vrot.slane %v7137, 2
        %v7139 = vmax.f32 %v7137, %v7138
        %v7140 = vrot.slane %v7139, 1
        %v7141 = vmax.f32 %v7139, %v7140
        %v7142 = vsel %vm6960, %v7094, -inf
        %v7143 = vrot.slane %v7142, 4
        %v7144 = vmax.f32 %v7142, %v7143
        %v7145 = vrot.slane %v7144, 2
        %v7146 = vmax.f32 %v7144, %v7145
        %v7147 = vrot.slane %v7146, 1
        %v7148 = vmax.f32 %v7146, %v7147
        %v7149 = vld [vmem:[%s4] sm:$0x1]
        %v7151 = vperm.slane %v7149, 0
        %v7153 = vadd.f32 %v7106, %v7151
        %v7154 = vadd.f32 %v7113, %v7151
        %v7155 = vadd.f32 %v7120, %v7151
        %v7156 = vadd.f32 %v7127, %v7151
        %v7157 = vadd.f32 %v7134, %v7151
        %v7158 = vadd.f32 %v7141, %v7151
        %v7159 = vadd.f32 %v7148, %v7151
        %v7160 = vmax.f32 %v7153, 0.0
        %v7161 = vmax.f32 %v7154, 0.0
        %v7162 = vmax.f32 %v7155, 0.0
        %v7163 = vmax.f32 %v7156, 0.0
        %v7164 = vmax.f32 %v7157, 0.0
        %v7165 = vmax.f32 %v7158, 0.0
        %v7166 = vmax.f32 %v7159, 0.0
        %7167 = vst.msk [vmem:[#allocation5 + $0x1] sm:$0x1] %vm7028, %v7160
        %7169 = vrot.lane.b32.xlu0 %v7161, 104
        %v7170 = vpop.permute.xlu0 %7169
        %7172 = vst.msk [vmem:[#allocation5 + $0x1] sm:$0x1] %vm7034, %v7170
        %7173 = vst.msk [vmem:[#allocation5 + $0x9] sm:$0x1] %vm7036, %v7170
        %7175 = vrot.lane.b32.xlu0 %v7162, 80
        %v7176 = vpop.permute.xlu0 %7175
        %7178 = vst.msk [vmem:[#allocation5 + $0x9] sm:$0x1] %vm7042, %v7176
        %7179 = vst.msk [vmem:[#allocation5 + $0x11] sm:$0x1] %vm7044, %v7176
        %7181 = vrot.lane.b32.xlu0 %v7163, 56
        %v7182 = vpop.permute.xlu0 %7181
        %7184 = vst.msk [vmem:[#allocation5 + $0x11] sm:$0x1] %vm7050, %v7182
        %7185 = vst.msk [vmem:[#allocation5 + $0x19] sm:$0x1] %vm7052, %v7182
        %7187 = vrot.lane.b32.xlu0 %v7164, 32
        %v7188 = vpop.permute.xlu0 %7187
        %7190 = vst.msk [vmem:[#allocation5 + $0x19] sm:$0x1] %vm7058, %v7188
        %7191 = vst.msk [vmem:[#allocation5 + $0x21] sm:$0x1] %vm7060, %v7188
        %7193 = vrot.lane.b32.xlu0 %v7165, 8
        %v7194 = vpop.permute.xlu0 %7193
        %7196 = vst.msk [vmem:[#allocation5 + $0x21] sm:$0x1] %vm7066, %v7194
        %7198 = vrot.lane.b32.xlu0 %v7166, 112
        %v7199 = vpop.permute.xlu0 %7198
        %7201 = vst.msk [vmem:[#allocation5 + $0x21] sm:$0x1] %vm7072, %v7199
        %7202 = vst.msk [vmem:[#allocation5 + $0x29] sm:$0x1] %vm7074, %v7199
        %v7203 = vld [vmem:[#allocation4 + $0x20] sm:$0xff]
        %v7204 = vld [vmem:[#allocation4 + $0x28] sm:$0x3f]
        %7207 = vrot.lane.b32.xlu0 %v7203, 120
        %v7208 = vpop.permute.xlu0 %7207
        %7209 = vrot.lane.b32.xlu0 %v7204, 120
        %v7210 = vpop.permute.xlu0 %7209
        %v7213 = vmax.f32 %v7203, %v7208
        %v7214 = vmax.f32 %v7204, %v7210
        %v7217 = vrot.slane %v7213, 2
        %v7218 = vrot.slane %v7213, 4
        %v7219 = vrot.slane %v7213, 6
        %v7220 = vrot.slane %v7214, 2
        %v7221 = vrot.slane %v7214, 4
        %v7227 = vsel %vm6960, %v7213, -inf
        %v7228 = vrot.slane %v7227, 4
        %v7229 = vmax.f32 %v7227, %v7228
        %v7230 = vrot.slane %v7229, 2
        %v7231 = vmax.f32 %v7229, %v7230
        %v7232 = vrot.slane %v7231, 1
        %v7233 = vmax.f32 %v7231, %v7232
        %v7234 = vsel %vm6960, %v7217, -inf
        %v7235 = vrot.slane %v7234, 4
        %v7236 = vmax.f32 %v7234, %v7235
        %v7237 = vrot.slane %v7236, 2
        %v7238 = vmax.f32 %v7236, %v7237
        %v7239 = vrot.slane %v7238, 1
        %v7240 = vmax.f32 %v7238, %v7239
        %v7241 = vsel %vm6960, %v7218, -inf
        %v7242 = vrot.slane %v7241, 4
        %v7243 = vmax.f32 %v7241, %v7242
        %v7244 = vrot.slane %v7243, 2
        %v7245 = vmax.f32 %v7243, %v7244
        %v7246 = vrot.slane %v7245, 1
        %v7247 = vmax.f32 %v7245, %v7246
        %v7248 = vsel %vm6960, %v7219, -inf
        %v7249 = vrot.slane %v7248, 4
        %v7250 = vmax.f32 %v7248, %v7249
        %v7251 = vrot.slane %v7250, 2
        %v7252 = vmax.f32 %v7250, %v7251
        %v7253 = vrot.slane %v7252, 1
        %v7254 = vmax.f32 %v7252, %v7253
        %v7255 = vsel %vm6960, %v7214, -inf
        %v7256 = vrot.slane %v7255, 4
        %v7257 = vmax.f32 %v7255, %v7256
        %v7258 = vrot.slane %v7257, 2
        %v7259 = vmax.f32 %v7257, %v7258
        %v7260 = vrot.slane %v7259, 1
        %v7261 = vmax.f32 %v7259, %v7260
        %v7262 = vsel %vm6960, %v7220, -inf
        %v7263 = vrot.slane %v7262, 4
        %v7264 = vmax.f32 %v7262, %v7263
        %v7265 = vrot.slane %v7264, 2
        %v7266 = vmax.f32 %v7264, %v7265
        %v7267 = vrot.slane %v7266, 1
        %v7268 = vmax.f32 %v7266, %v7267
        %v7269 = vsel %vm6960, %v7221, -inf
        %v7270 = vrot.slane %v7269, 4
        %v7271 = vmax.f32 %v7269, %v7270
        %v7272 = vrot.slane %v7271, 2
        %v7273 = vmax.f32 %v7271, %v7272
        %v7274 = vrot.slane %v7273, 1
        %v7275 = vmax.f32 %v7273, %v7274
        %v7276 = vld [vmem:[%s4] sm:$0x1]
        %v7278 = vperm.slane %v7276, 0
        %v7280 = vadd.f32 %v7233, %v7278
        %v7281 = vadd.f32 %v7240, %v7278
        %v7282 = vadd.f32 %v7247, %v7278
        %v7283 = vadd.f32 %v7254, %v7278
        %v7284 = vadd.f32 %v7261, %v7278
        %v7285 = vadd.f32 %v7268, %v7278
        %v7286 = vadd.f32 %v7275, %v7278
        %v7287 = vmax.f32 %v7280, 0.0
        %v7288 = vmax.f32 %v7281, 0.0
        %v7289 = vmax.f32 %v7282, 0.0
        %v7290 = vmax.f32 %v7283, 0.0
        %v7291 = vmax.f32 %v7284, 0.0
        %v7292 = vmax.f32 %v7285, 0.0
        %v7293 = vmax.f32 %v7286, 0.0
        %7294 = vst.msk [vmem:[#allocation5 + $0x2] sm:$0x1] %vm7028, %v7287
        %7296 = vrot.lane.b32.xlu0 %v7288, 104
        %v7297 = vpop.permute.xlu0 %7296
        %7299 = vst.msk [vmem:[#allocation5 + $0x2] sm:$0x1] %vm7034, %v7297
        %7300 = vst.msk [vmem:[#allocation5 + $0xa] sm:$0x1] %vm7036, %v7297
        %7302 = vrot.lane.b32.xlu0 %v7289, 80
        %v7303 = vpop.permute.xlu0 %7302
        %7305 = vst.msk [vmem:[#allocation5 + $0xa] sm:$0x1] %vm7042, %v7303
        %7306 = vst.msk [vmem:[#allocation5 + $0x12] sm:$0x1] %vm7044, %v7303
        %7308 = vrot.lane.b32.xlu0 %v7290, 56
        %v7309 = vpop.permute.xlu0 %7308
        %7311 = vst.msk [vmem:[#allocation5 + $0x12] sm:$0x1] %vm7050, %v7309
        %7312 = vst.msk [vmem:[#allocation5 + $0x1a] sm:$0x1] %vm7052, %v7309
        %7314 = vrot.lane.b32.xlu0 %v7291, 32
        %v7315 = vpop.permute.xlu0 %7314
        %7317 = vst.msk [vmem:[#allocation5 + $0x1a] sm:$0x1] %vm7058, %v7315
        %7318 = vst.msk [vmem:[#allocation5 + $0x22] sm:$0x1] %vm7060, %v7315
        %7320 = vrot.lane.b32.xlu0 %v7292, 8
        %v7321 = vpop.permute.xlu0 %7320
        %7323 = vst.msk [vmem:[#allocation5 + $0x22] sm:$0x1] %vm7066, %v7321
        %7325 = vrot.lane.b32.xlu0 %v7293, 112
        %v7326 = vpop.permute.xlu0 %7325
        %7328 = vst.msk [vmem:[#allocation5 + $0x22] sm:$0x1] %vm7072, %v7326
        %7329 = vst.msk [vmem:[#allocation5 + $0x2a] sm:$0x1] %vm7074, %v7326
        %v7330 = vld [vmem:[#allocation4 + $0x30] sm:$0xff]
        %v7331 = vld [vmem:[#allocation4 + $0x38] sm:$0x3f]
        %7334 = vrot.lane.b32.xlu0 %v7330, 120
        %v7335 = vpop.permute.xlu0 %7334
        %7336 = vrot.lane.b32.xlu0 %v7331, 120
        %v7337 = vpop.permute.xlu0 %7336
        %v7340 = vmax.f32 %v7330, %v7335
        %v7341 = vmax.f32 %v7331, %v7337
        %v7344 = vrot.slane %v7340, 2
        %v7345 = vrot.slane %v7340, 4
        %v7346 = vrot.slane %v7340, 6
        %v7347 = vrot.slane %v7341, 2
        %v7348 = vrot.slane %v7341, 4
        %v7354 = vsel %vm6960, %v7340, -inf
        %v7355 = vrot.slane %v7354, 4
        %v7356 = vmax.f32 %v7354, %v7355
        %v7357 = vrot.slane %v7356, 2
        %v7358 = vmax.f32 %v7356, %v7357
        %v7359 = vrot.slane %v7358, 1
        %v7360 = vmax.f32 %v7358, %v7359
        %v7361 = vsel %vm6960, %v7344, -inf
        %v7362 = vrot.slane %v7361, 4
        %v7363 = vmax.f32 %v7361, %v7362
        %v7364 = vrot.slane %v7363, 2
        %v7365 = vmax.f32 %v7363, %v7364
        %v7366 = vrot.slane %v7365, 1
        %v7367 = vmax.f32 %v7365, %v7366
        %v7368 = vsel %vm6960, %v7345, -inf
        %v7369 = vrot.slane %v7368, 4
        %v7370 = vmax.f32 %v7368, %v7369
        %v7371 = vrot.slane %v7370, 2
        %v7372 = vmax.f32 %v7370, %v7371
        %v7373 = vrot.slane %v7372, 1
        %v7374 = vmax.f32 %v7372, %v7373
        %v7375 = vsel %vm6960, %v7346, -inf
        %v7376 = vrot.slane %v7375, 4
        %v7377 = vmax.f32 %v7375, %v7376
        %v7378 = vrot.slane %v7377, 2
        %v7379 = vmax.f32 %v7377, %v7378
        %v7380 = vrot.slane %v7379, 1
        %v7381 = vmax.f32 %v7379, %v7380
        %v7382 = vsel %vm6960, %v7341, -inf
        %v7383 = vrot.slane %v7382, 4
        %v7384 = vmax.f32 %v7382, %v7383
        %v7385 = vrot.slane %v7384, 2
        %v7386 = vmax.f32 %v7384, %v7385
        %v7387 = vrot.slane %v7386, 1
        %v7388 = vmax.f32 %v7386, %v7387
        %v7389 = vsel %vm6960, %v7347, -inf
        %v7390 = vrot.slane %v7389, 4
        %v7391 = vmax.f32 %v7389, %v7390
        %v7392 = vrot.slane %v7391, 2
        %v7393 = vmax.f32 %v7391, %v7392
        %v7394 = vrot.slane %v7393, 1
        %v7395 = vmax.f32 %v7393, %v7394
        %v7396 = vsel %vm6960, %v7348, -inf
        %v7397 = vrot.slane %v7396, 4
        %v7398 = vmax.f32 %v7396, %v7397
        %v7399 = vrot.slane %v7398, 2
        %v7400 = vmax.f32 %v7398, %v7399
        %v7401 = vrot.slane %v7400, 1
        %v7402 = vmax.f32 %v7400, %v7401
        %v7403 = vld [vmem:[%s4] sm:$0x1]
        %v7405 = vperm.slane %v7403, 0
        %v7407 = vadd.f32 %v7360, %v7405
        %v7408 = vadd.f32 %v7367, %v7405
        %v7409 = vadd.f32 %v7374, %v7405
        %v7410 = vadd.f32 %v7381, %v7405
        %v7411 = vadd.f32 %v7388, %v7405
        %v7412 = vadd.f32 %v7395, %v7405
        %v7413 = vadd.f32 %v7402, %v7405
        %v7414 = vmax.f32 %v7407, 0.0
        %v7415 = vmax.f32 %v7408, 0.0
        %v7416 = vmax.f32 %v7409, 0.0
        %v7417 = vmax.f32 %v7410, 0.0
        %v7418 = vmax.f32 %v7411, 0.0
        %v7419 = vmax.f32 %v7412, 0.0
        %v7420 = vmax.f32 %v7413, 0.0
        %7421 = vst.msk [vmem:[#allocation5 + $0x3] sm:$0x1] %vm7028, %v7414
        %7423 = vrot.lane.b32.xlu0 %v7415, 104
        %v7424 = vpop.permute.xlu0 %7423
        %7426 = vst.msk [vmem:[#allocation5 + $0x3] sm:$0x1] %vm7034, %v7424
        %7427 = vst.msk [vmem:[#allocation5 + $0xb] sm:$0x1] %vm7036, %v7424
        %7429 = vrot.lane.b32.xlu0 %v7416, 80
        %v7430 = vpop.permute.xlu0 %7429
        %7432 = vst.msk [vmem:[#allocation5 + $0xb] sm:$0x1] %vm7042, %v7430
        %7433 = vst.msk [vmem:[#allocation5 + $0x13] sm:$0x1] %vm7044, %v7430
        %7435 = vrot.lane.b32.xlu0 %v7417, 56
        %v7436 = vpop.permute.xlu0 %7435
        %7438 = vst.msk [vmem:[#allocation5 + $0x13] sm:$0x1] %vm7050, %v7436
        %7439 = vst.msk [vmem:[#allocation5 + $0x1b] sm:$0x1] %vm7052, %v7436
        %7441 = vrot.lane.b32.xlu0 %v7418, 32
        %v7442 = vpop.permute.xlu0 %7441
        %7444 = vst.msk [vmem:[#allocation5 + $0x1b] sm:$0x1] %vm7058, %v7442
        %7445 = vst.msk [vmem:[#allocation5 + $0x23] sm:$0x1] %vm7060, %v7442
        %7447 = vrot.lane.b32.xlu0 %v7419, 8
        %v7448 = vpop.permute.xlu0 %7447
        %7450 = vst.msk [vmem:[#allocation5 + $0x23] sm:$0x1] %vm7066, %v7448
        %7452 = vrot.lane.b32.xlu0 %v7420, 112
        %v7453 = vpop.permute.xlu0 %7452
        %7455 = vst.msk [vmem:[#allocation5 + $0x23] sm:$0x1] %vm7072, %v7453
        %7456 = vst.msk [vmem:[#allocation5 + $0x2b] sm:$0x1] %vm7074, %v7453
        %v7457 = vld [vmem:[#allocation4 + $0x40] sm:$0xff]
        %v7458 = vld [vmem:[#allocation4 + $0x48] sm:$0x3f]
        %7461 = vrot.lane.b32.xlu0 %v7457, 120
        %v7462 = vpop.permute.xlu0 %7461
        %7463 = vrot.lane.b32.xlu0 %v7458, 120
        %v7464 = vpop.permute.xlu0 %7463
        %v7467 = vmax.f32 %v7457, %v7462
        %v7468 = vmax.f32 %v7458, %v7464
        %v7471 = vrot.slane %v7467, 2
        %v7472 = vrot.slane %v7467, 4
        %v7473 = vrot.slane %v7467, 6
        %v7474 = vrot.slane %v7468, 2
        %v7475 = vrot.slane %v7468, 4
        %v7481 = vsel %vm6960, %v7467, -inf
        %v7482 = vrot.slane %v7481, 4
        %v7483 = vmax.f32 %v7481, %v7482
        %v7484 = vrot.slane %v7483, 2
        %v7485 = vmax.f32 %v7483, %v7484
        %v7486 = vrot.slane %v7485, 1
        %v7487 = vmax.f32 %v7485, %v7486
        %v7488 = vsel %vm6960, %v7471, -inf
        %v7489 = vrot.slane %v7488, 4
        %v7490 = vmax.f32 %v7488, %v7489
        %v7491 = vrot.slane %v7490, 2
        %v7492 = vmax.f32 %v7490, %v7491
        %v7493 = vrot.slane %v7492, 1
        %v7494 = vmax.f32 %v7492, %v7493
        %v7495 = vsel %vm6960, %v7472, -inf
        %v7496 = vrot.slane %v7495, 4
        %v7497 = vmax.f32 %v7495, %v7496
        %v7498 = vrot.slane %v7497, 2
        %v7499 = vmax.f32 %v7497, %v7498
        %v7500 = vrot.slane %v7499, 1
        %v7501 = vmax.f32 %v7499, %v7500
        %v7502 = vsel %vm6960, %v7473, -inf
        %v7503 = vrot.slane %v7502, 4
        %v7504 = vmax.f32 %v7502, %v7503
        %v7505 = vrot.slane %v7504, 2
        %v7506 = vmax.f32 %v7504, %v7505
        %v7507 = vrot.slane %v7506, 1
        %v7508 = vmax.f32 %v7506, %v7507
        %v7509 = vsel %vm6960, %v7468, -inf
        %v7510 = vrot.slane %v7509, 4
        %v7511 = vmax.f32 %v7509, %v7510
        %v7512 = vrot.slane %v7511, 2
        %v7513 = vmax.f32 %v7511, %v7512
        %v7514 = vrot.slane %v7513, 1
        %v7515 = vmax.f32 %v7513, %v7514
        %v7516 = vsel %vm6960, %v7474, -inf
        %v7517 = vrot.slane %v7516, 4
        %v7518 = vmax.f32 %v7516, %v7517
        %v7519 = vrot.slane %v7518, 2
        %v7520 = vmax.f32 %v7518, %v7519
        %v7521 = vrot.slane %v7520, 1
        %v7522 = vmax.f32 %v7520, %v7521
        %v7523 = vsel %vm6960, %v7475, -inf
        %v7524 = vrot.slane %v7523, 4
        %v7525 = vmax.f32 %v7523, %v7524
        %v7526 = vrot.slane %v7525, 2
        %v7527 = vmax.f32 %v7525, %v7526
        %v7528 = vrot.slane %v7527, 1
        %v7529 = vmax.f32 %v7527, %v7528
        %v7530 = vld [vmem:[%s4] sm:$0x1]
        %v7532 = vperm.slane %v7530, 0
        %v7534 = vadd.f32 %v7487, %v7532
        %v7535 = vadd.f32 %v7494, %v7532
        %v7536 = vadd.f32 %v7501, %v7532
        %v7537 = vadd.f32 %v7508, %v7532
        %v7538 = vadd.f32 %v7515, %v7532
        %v7539 = vadd.f32 %v7522, %v7532
        %v7540 = vadd.f32 %v7529, %v7532
        %v7541 = vmax.f32 %v7534, 0.0
        %v7542 = vmax.f32 %v7535, 0.0
        %v7543 = vmax.f32 %v7536, 0.0
        %v7544 = vmax.f32 %v7537, 0.0
        %v7545 = vmax.f32 %v7538, 0.0
        %v7546 = vmax.f32 %v7539, 0.0
        %v7547 = vmax.f32 %v7540, 0.0
        %7548 = vst.msk [vmem:[#allocation5 + $0x4] sm:$0x1] %vm7028, %v7541
        %7550 = vrot.lane.b32.xlu0 %v7542, 104
        %v7551 = vpop.permute.xlu0 %7550
        %7553 = vst.msk [vmem:[#allocation5 + $0x4] sm:$0x1] %vm7034, %v7551
        %7554 = vst.msk [vmem:[#allocation5 + $0xc] sm:$0x1] %vm7036, %v7551
        %7556 = vrot.lane.b32.xlu0 %v7543, 80
        %v7557 = vpop.permute.xlu0 %7556
        %7559 = vst.msk [vmem:[#allocation5 + $0xc] sm:$0x1] %vm7042, %v7557
        %7560 = vst.msk [vmem:[#allocation5 + $0x14] sm:$0x1] %vm7044, %v7557
        %7562 = vrot.lane.b32.xlu0 %v7544, 56
        %v7563 = vpop.permute.xlu0 %7562
        %7565 = vst.msk [vmem:[#allocation5 + $0x14] sm:$0x1] %vm7050, %v7563
        %7566 = vst.msk [vmem:[#allocation5 + $0x1c] sm:$0x1] %vm7052, %v7563
        %7568 = vrot.lane.b32.xlu0 %v7545, 32
        %v7569 = vpop.permute.xlu0 %7568
        %7571 = vst.msk [vmem:[#allocation5 + $0x1c] sm:$0x1] %vm7058, %v7569
        %7572 = vst.msk [vmem:[#allocation5 + $0x24] sm:$0x1] %vm7060, %v7569
        %7574 = vrot.lane.b32.xlu0 %v7546, 8
        %v7575 = vpop.permute.xlu0 %7574
        %7577 = vst.msk [vmem:[#allocation5 + $0x24] sm:$0x1] %vm7066, %v7575
        %7579 = vrot.lane.b32.xlu0 %v7547, 112
        %v7580 = vpop.permute.xlu0 %7579
        %7582 = vst.msk [vmem:[#allocation5 + $0x24] sm:$0x1] %vm7072, %v7580
        %7583 = vst.msk [vmem:[#allocation5 + $0x2c] sm:$0x1] %vm7074, %v7580
        %v7584 = vld [vmem:[#allocation4 + $0x50] sm:$0xff]
        %v7585 = vld [vmem:[#allocation4 + $0x58] sm:$0x3f]
        %7588 = vrot.lane.b32.xlu0 %v7584, 120
        %v7589 = vpop.permute.xlu0 %7588
        %7590 = vrot.lane.b32.xlu0 %v7585, 120
        %v7591 = vpop.permute.xlu0 %7590
        %v7594 = vmax.f32 %v7584, %v7589
        %v7595 = vmax.f32 %v7585, %v7591
        %v7598 = vrot.slane %v7594, 2
        %v7599 = vrot.slane %v7594, 4
        %v7600 = vrot.slane %v7594, 6
        %v7601 = vrot.slane %v7595, 2
        %v7602 = vrot.slane %v7595, 4
        %v7608 = vsel %vm6960, %v7594, -inf
        %v7609 = vrot.slane %v7608, 4
        %v7610 = vmax.f32 %v7608, %v7609
        %v7611 = vrot.slane %v7610, 2
        %v7612 = vmax.f32 %v7610, %v7611
        %v7613 = vrot.slane %v7612, 1
        %v7614 = vmax.f32 %v7612, %v7613
        %v7615 = vsel %vm6960, %v7598, -inf
        %v7616 = vrot.slane %v7615, 4
        %v7617 = vmax.f32 %v7615, %v7616
        %v7618 = vrot.slane %v7617, 2
        %v7619 = vmax.f32 %v7617, %v7618
        %v7620 = vrot.slane %v7619, 1
        %v7621 = vmax.f32 %v7619, %v7620
        %v7622 = vsel %vm6960, %v7599, -inf
        %v7623 = vrot.slane %v7622, 4
        %v7624 = vmax.f32 %v7622, %v7623
        %v7625 = vrot.slane %v7624, 2
        %v7626 = vmax.f32 %v7624, %v7625
        %v7627 = vrot.slane %v7626, 1
        %v7628 = vmax.f32 %v7626, %v7627
        %v7629 = vsel %vm6960, %v7600, -inf
        %v7630 = vrot.slane %v7629, 4
        %v7631 = vmax.f32 %v7629, %v7630
        %v7632 = vrot.slane %v7631, 2
        %v7633 = vmax.f32 %v7631, %v7632
        %v7634 = vrot.slane %v7633, 1
        %v7635 = vmax.f32 %v7633, %v7634
        %v7636 = vsel %vm6960, %v7595, -inf
        %v7637 = vrot.slane %v7636, 4
        %v7638 = vmax.f32 %v7636, %v7637
        %v7639 = vrot.slane %v7638, 2
        %v7640 = vmax.f32 %v7638, %v7639
        %v7641 = vrot.slane %v7640, 1
        %v7642 = vmax.f32 %v7640, %v7641
        %v7643 = vsel %vm6960, %v7601, -inf
        %v7644 = vrot.slane %v7643, 4
        %v7645 = vmax.f32 %v7643, %v7644
        %v7646 = vrot.slane %v7645, 2
        %v7647 = vmax.f32 %v7645, %v7646
        %v7648 = vrot.slane %v7647, 1
        %v7649 = vmax.f32 %v7647, %v7648
        %v7650 = vsel %vm6960, %v7602, -inf
        %v7651 = vrot.slane %v7650, 4
        %v7652 = vmax.f32 %v7650, %v7651
        %v7653 = vrot.slane %v7652, 2
        %v7654 = vmax.f32 %v7652, %v7653
        %v7655 = vrot.slane %v7654, 1
        %v7656 = vmax.f32 %v7654, %v7655
        %v7657 = vld [vmem:[%s4] sm:$0x1]
        %v7659 = vperm.slane %v7657, 0
        %v7661 = vadd.f32 %v7614, %v7659
        %v7662 = vadd.f32 %v7621, %v7659
        %v7663 = vadd.f32 %v7628, %v7659
        %v7664 = vadd.f32 %v7635, %v7659
        %v7665 = vadd.f32 %v7642, %v7659
        %v7666 = vadd.f32 %v7649, %v7659
        %v7667 = vadd.f32 %v7656, %v7659
        %v7668 = vmax.f32 %v7661, 0.0
        %v7669 = vmax.f32 %v7662, 0.0
        %v7670 = vmax.f32 %v7663, 0.0
        %v7671 = vmax.f32 %v7664, 0.0
        %v7672 = vmax.f32 %v7665, 0.0
        %v7673 = vmax.f32 %v7666, 0.0
        %v7674 = vmax.f32 %v7667, 0.0
        %7675 = vst.msk [vmem:[#allocation5 + $0x5] sm:$0x1] %vm7028, %v7668
        %7677 = vrot.lane.b32.xlu0 %v7669, 104
        %v7678 = vpop.permute.xlu0 %7677
        %7680 = vst.msk [vmem:[#allocation5 + $0x5] sm:$0x1] %vm7034, %v7678
        %7681 = vst.msk [vmem:[#allocation5 + $0xd] sm:$0x1] %vm7036, %v7678
        %7683 = vrot.lane.b32.xlu0 %v7670, 80
        %v7684 = vpop.permute.xlu0 %7683
        %7686 = vst.msk [vmem:[#allocation5 + $0xd] sm:$0x1] %vm7042, %v7684
        %7687 = vst.msk [vmem:[#allocation5 + $0x15] sm:$0x1] %vm7044, %v7684
        %7689 = vrot.lane.b32.xlu0 %v7671, 56
        %v7690 = vpop.permute.xlu0 %7689
        %7692 = vst.msk [vmem:[#allocation5 + $0x15] sm:$0x1] %vm7050, %v7690
        %7693 = vst.msk [vmem:[#allocation5 + $0x1d] sm:$0x1] %vm7052, %v7690
        %7695 = vrot.lane.b32.xlu0 %v7672, 32
        %v7696 = vpop.permute.xlu0 %7695
        %7698 = vst.msk [vmem:[#allocation5 + $0x1d] sm:$0x1] %vm7058, %v7696
        %7699 = vst.msk [vmem:[#allocation5 + $0x25] sm:$0x1] %vm7060, %v7696
        %7701 = vrot.lane.b32.xlu0 %v7673, 8
        %v7702 = vpop.permute.xlu0 %7701
        %7704 = vst.msk [vmem:[#allocation5 + $0x25] sm:$0x1] %vm7066, %v7702
        %7706 = vrot.lane.b32.xlu0 %v7674, 112
        %v7707 = vpop.permute.xlu0 %7706
        %7709 = vst.msk [vmem:[#allocation5 + $0x25] sm:$0x1] %vm7072, %v7707
        %7710 = vst.msk [vmem:[#allocation5 + $0x2d] sm:$0x1] %vm7074, %v7707
        %v7711 = vld [vmem:[#allocation4 + $0x60] sm:$0xff]
        %v7712 = vld [vmem:[#allocation4 + $0x68] sm:$0x3f]
        %7715 = vrot.lane.b32.xlu0 %v7711, 120
        %v7716 = vpop.permute.xlu0 %7715
        %7717 = vrot.lane.b32.xlu0 %v7712, 120
        %v7718 = vpop.permute.xlu0 %7717
        %v7721 = vmax.f32 %v7711, %v7716
        %v7722 = vmax.f32 %v7712, %v7718
        %v7725 = vrot.slane %v7721, 2
        %v7726 = vrot.slane %v7721, 4
        %v7727 = vrot.slane %v7721, 6
        %v7728 = vrot.slane %v7722, 2
        %v7729 = vrot.slane %v7722, 4
        %v7735 = vsel %vm6960, %v7721, -inf
        %v7736 = vrot.slane %v7735, 4
        %v7737 = vmax.f32 %v7735, %v7736
        %v7738 = vrot.slane %v7737, 2
        %v7739 = vmax.f32 %v7737, %v7738
        %v7740 = vrot.slane %v7739, 1
        %v7741 = vmax.f32 %v7739, %v7740
        %v7742 = vsel %vm6960, %v7725, -inf
        %v7743 = vrot.slane %v7742, 4
        %v7744 = vmax.f32 %v7742, %v7743
        %v7745 = vrot.slane %v7744, 2
        %v7746 = vmax.f32 %v7744, %v7745
        %v7747 = vrot.slane %v7746, 1
        %v7748 = vmax.f32 %v7746, %v7747
        %v7749 = vsel %vm6960, %v7726, -inf
        %v7750 = vrot.slane %v7749, 4
        %v7751 = vmax.f32 %v7749, %v7750
        %v7752 = vrot.slane %v7751, 2
        %v7753 = vmax.f32 %v7751, %v7752
        %v7754 = vrot.slane %v7753, 1
        %v7755 = vmax.f32 %v7753, %v7754
        %v7756 = vsel %vm6960, %v7727, -inf
        %v7757 = vrot.slane %v7756, 4
        %v7758 = vmax.f32 %v7756, %v7757
        %v7759 = vrot.slane %v7758, 2
        %v7760 = vmax.f32 %v7758, %v7759
        %v7761 = vrot.slane %v7760, 1
        %v7762 = vmax.f32 %v7760, %v7761
        %v7763 = vsel %vm6960, %v7722, -inf
        %v7764 = vrot.slane %v7763, 4
        %v7765 = vmax.f32 %v7763, %v7764
        %v7766 = vrot.slane %v7765, 2
        %v7767 = vmax.f32 %v7765, %v7766
        %v7768 = vrot.slane %v7767, 1
        %v7769 = vmax.f32 %v7767, %v7768
        %v7770 = vsel %vm6960, %v7728, -inf
        %v7771 = vrot.slane %v7770, 4
        %v7772 = vmax.f32 %v7770, %v7771
        %v7773 = vrot.slane %v7772, 2
        %v7774 = vmax.f32 %v7772, %v7773
        %v7775 = vrot.slane %v7774, 1
        %v7776 = vmax.f32 %v7774, %v7775
        %v7777 = vsel %vm6960, %v7729, -inf
        %v7778 = vrot.slane %v7777, 4
        %v7779 = vmax.f32 %v7777, %v7778
        %v7780 = vrot.slane %v7779, 2
        %v7781 = vmax.f32 %v7779, %v7780
        %v7782 = vrot.slane %v7781, 1
        %v7783 = vmax.f32 %v7781, %v7782
        %v7784 = vld [vmem:[%s4] sm:$0x1]
        %v7786 = vperm.slane %v7784, 0
        %v7788 = vadd.f32 %v7741, %v7786
        %v7789 = vadd.f32 %v7748, %v7786
        %v7790 = vadd.f32 %v7755, %v7786
        %v7791 = vadd.f32 %v7762, %v7786
        %v7792 = vadd.f32 %v7769, %v7786
        %v7793 = vadd.f32 %v7776, %v7786
        %v7794 = vadd.f32 %v7783, %v7786
        %v7795 = vmax.f32 %v7788, 0.0
        %v7796 = vmax.f32 %v7789, 0.0
        %v7797 = vmax.f32 %v7790, 0.0
        %v7798 = vmax.f32 %v7791, 0.0
        %v7799 = vmax.f32 %v7792, 0.0
        %v7800 = vmax.f32 %v7793, 0.0
        %v7801 = vmax.f32 %v7794, 0.0
        %7802 = vst.msk [vmem:[#allocation5 + $0x6] sm:$0x1] %vm7028, %v7795
        %7804 = vrot.lane.b32.xlu0 %v7796, 104
        %v7805 = vpop.permute.xlu0 %7804
        %7807 = vst.msk [vmem:[#allocation5 + $0x6] sm:$0x1] %vm7034, %v7805
        %7808 = vst.msk [vmem:[#allocation5 + $0xe] sm:$0x1] %vm7036, %v7805
        %7810 = vrot.lane.b32.xlu0 %v7797, 80
        %v7811 = vpop.permute.xlu0 %7810
        %7813 = vst.msk [vmem:[#allocation5 + $0xe] sm:$0x1] %vm7042, %v7811
        %7814 = vst.msk [vmem:[#allocation5 + $0x16] sm:$0x1] %vm7044, %v7811
        %7816 = vrot.lane.b32.xlu0 %v7798, 56
        %v7817 = vpop.permute.xlu0 %7816
        %7819 = vst.msk [vmem:[#allocation5 + $0x16] sm:$0x1] %vm7050, %v7817
        %7820 = vst.msk [vmem:[#allocation5 + $0x1e] sm:$0x1] %vm7052, %v7817
        %7822 = vrot.lane.b32.xlu0 %v7799, 32
        %v7823 = vpop.permute.xlu0 %7822
        %7825 = vst.msk [vmem:[#allocation5 + $0x1e] sm:$0x1] %vm7058, %v7823
        %7826 = vst.msk [vmem:[#allocation5 + $0x26] sm:$0x1] %vm7060, %v7823
        %7828 = vrot.lane.b32.xlu0 %v7800, 8
        %v7829 = vpop.permute.xlu0 %7828
        %7831 = vst.msk [vmem:[#allocation5 + $0x26] sm:$0x1] %vm7066, %v7829
        %7833 = vrot.lane.b32.xlu0 %v7801, 112
        %v7834 = vpop.permute.xlu0 %7833
        %7836 = vst.msk [vmem:[#allocation5 + $0x26] sm:$0x1] %vm7072, %v7834
        %7837 = vst.msk [vmem:[#allocation5 + $0x2e] sm:$0x1] %vm7074, %v7834
        %v7838 = vld [vmem:[#allocation4 + $0x70] sm:$0xff]
        %v7839 = vld [vmem:[#allocation4 + $0x78] sm:$0x3f]
        %7842 = vrot.lane.b32.xlu0 %v7838, 120
        %v7843 = vpop.permute.xlu0 %7842
        %7844 = vrot.lane.b32.xlu0 %v7839, 120
        %v7845 = vpop.permute.xlu0 %7844
        %v7848 = vmax.f32 %v7838, %v7843
        %v7849 = vmax.f32 %v7839, %v7845
        %v7852 = vrot.slane %v7848, 2
        %v7853 = vrot.slane %v7848, 4
        %v7854 = vrot.slane %v7848, 6
        %v7855 = vrot.slane %v7849, 2
        %v7856 = vrot.slane %v7849, 4
        %v7862 = vsel %vm6960, %v7848, -inf
        %v7863 = vrot.slane %v7862, 4
        %v7864 = vmax.f32 %v7862, %v7863
        %v7865 = vrot.slane %v7864, 2
        %v7866 = vmax.f32 %v7864, %v7865
        %v7867 = vrot.slane %v7866, 1
        %v7868 = vmax.f32 %v7866, %v7867
        %v7869 = vsel %vm6960, %v7852, -inf
        %v7870 = vrot.slane %v7869, 4
        %v7871 = vmax.f32 %v7869, %v7870
        %v7872 = vrot.slane %v7871, 2
        %v7873 = vmax.f32 %v7871, %v7872
        %v7874 = vrot.slane %v7873, 1
        %v7875 = vmax.f32 %v7873, %v7874
        %v7876 = vsel %vm6960, %v7853, -inf
        %v7877 = vrot.slane %v7876, 4
        %v7878 = vmax.f32 %v7876, %v7877
        %v7879 = vrot.slane %v7878, 2
        %v7880 = vmax.f32 %v7878, %v7879
        %v7881 = vrot.slane %v7880, 1
        %v7882 = vmax.f32 %v7880, %v7881
        %v7883 = vsel %vm6960, %v7854, -inf
        %v7884 = vrot.slane %v7883, 4
        %v7885 = vmax.f32 %v7883, %v7884
        %v7886 = vrot.slane %v7885, 2
        %v7887 = vmax.f32 %v7885, %v7886
        %v7888 = vrot.slane %v7887, 1
        %v7889 = vmax.f32 %v7887, %v7888
        %v7890 = vsel %vm6960, %v7849, -inf
        %v7891 = vrot.slane %v7890, 4
        %v7892 = vmax.f32 %v7890, %v7891
        %v7893 = vrot.slane %v7892, 2
        %v7894 = vmax.f32 %v7892, %v7893
        %v7895 = vrot.slane %v7894, 1
        %v7896 = vmax.f32 %v7894, %v7895
        %v7897 = vsel %vm6960, %v7855, -inf
        %v7898 = vrot.slane %v7897, 4
        %v7899 = vmax.f32 %v7897, %v7898
        %v7900 = vrot.slane %v7899, 2
        %v7901 = vmax.f32 %v7899, %v7900
        %v7902 = vrot.slane %v7901, 1
        %v7903 = vmax.f32 %v7901, %v7902
        %v7904 = vsel %vm6960, %v7856, -inf
        %v7905 = vrot.slane %v7904, 4
        %v7906 = vmax.f32 %v7904, %v7905
        %v7907 = vrot.slane %v7906, 2
        %v7908 = vmax.f32 %v7906, %v7907
        %v7909 = vrot.slane %v7908, 1
        %v7910 = vmax.f32 %v7908, %v7909
        %v7911 = vld [vmem:[%s4] sm:$0x1]
        %v7913 = vperm.slane %v7911, 0
        %v7915 = vadd.f32 %v7868, %v7913
        %v7916 = vadd.f32 %v7875, %v7913
        %v7917 = vadd.f32 %v7882, %v7913
        %v7918 = vadd.f32 %v7889, %v7913
        %v7919 = vadd.f32 %v7896, %v7913
        %v7920 = vadd.f32 %v7903, %v7913
        %v7921 = vadd.f32 %v7910, %v7913
        %v7922 = vmax.f32 %v7915, 0.0
        %v7923 = vmax.f32 %v7916, 0.0
        %v7924 = vmax.f32 %v7917, 0.0
        %v7925 = vmax.f32 %v7918, 0.0
        %v7926 = vmax.f32 %v7919, 0.0
        %v7927 = vmax.f32 %v7920, 0.0
        %v7928 = vmax.f32 %v7921, 0.0
        %7929 = vst.msk [vmem:[#allocation5 + $0x7] sm:$0x1] %vm7028, %v7922
        %7931 = vrot.lane.b32.xlu0 %v7923, 104
        %v7932 = vpop.permute.xlu0 %7931
        %7934 = vst.msk [vmem:[#allocation5 + $0x7] sm:$0x1] %vm7034, %v7932
        %7935 = vst.msk [vmem:[#allocation5 + $0xf] sm:$0x1] %vm7036, %v7932
        %7937 = vrot.lane.b32.xlu0 %v7924, 80
        %v7938 = vpop.permute.xlu0 %7937
        %7940 = vst.msk [vmem:[#allocation5 + $0xf] sm:$0x1] %vm7042, %v7938
        %7941 = vst.msk [vmem:[#allocation5 + $0x17] sm:$0x1] %vm7044, %v7938
        %7943 = vrot.lane.b32.xlu0 %v7925, 56
        %v7944 = vpop.permute.xlu0 %7943
        %7946 = vst.msk [vmem:[#allocation5 + $0x17] sm:$0x1] %vm7050, %v7944
        %7947 = vst.msk [vmem:[#allocation5 + $0x1f] sm:$0x1] %vm7052, %v7944
        %7949 = vrot.lane.b32.xlu0 %v7926, 32
        %v7950 = vpop.permute.xlu0 %7949
        %7952 = vst.msk [vmem:[#allocation5 + $0x1f] sm:$0x1] %vm7058, %v7950
        %7953 = vst.msk [vmem:[#allocation5 + $0x27] sm:$0x1] %vm7060, %v7950
        %7955 = vrot.lane.b32.xlu0 %v7927, 8
        %v7956 = vpop.permute.xlu0 %7955
        %7958 = vst.msk [vmem:[#allocation5 + $0x27] sm:$0x1] %vm7066, %v7956
        %7960 = vrot.lane.b32.xlu0 %v7928, 112
        %v7961 = vpop.permute.xlu0 %7960
        %7963 = vst.msk [vmem:[#allocation5 + $0x27] sm:$0x1] %vm7072, %v7961
        %7964 = vst.msk [vmem:[#allocation5 + $0x2f] sm:$0x1] %vm7074, %v7961
        %v7965 = vld [vmem:[#allocation5] sm:$0xff]
        %v7966 = vld [vmem:[#allocation5 + $0x8] sm:$0xff]
        %v7967 = vld [vmem:[#allocation5 + $0x10] sm:$0xff]
        %v7968 = vld [vmem:[#allocation5 + $0x18] sm:$0xff]
        %v7969 = vld [vmem:[#allocation5 + $0x20] sm:$0xff]
        %v7970 = vld [vmem:[#allocation5 + $0x28] sm:$0xff]
        %v7971 = vld [vmem:[%s5] sm:$0xff]
        %v7972 = vld [vmem:[%s5 + $0x8] sm:$0xff]
        %v7973 = vld [vmem:[%s5 + $0x10] sm:$0xff]
        %v7974 = vld [vmem:[%s5 + $0x18] sm:$0xff]
        %v7975 = vld [vmem:[%s5 + $0x20] sm:$0xff]
        %v7976 = vld [vmem:[%s5 + $0x28] sm:$0xff]
        %v7977 = vld [vmem:[%s5 + $0x30] sm:$0xff]
        %v7978 = vld [vmem:[%s5 + $0x38] sm:$0xff]
        %v7979 = vld [vmem:[%s5 + $0x40] sm:$0xff]
        %v7980 = vld [vmem:[%s5 + $0x48] sm:$0xff]
        %v7981 = vld [vmem:[%s5 + $0x50] sm:$0xff]
        %v7982 = vld [vmem:[%s5 + $0x58] sm:$0xff]
        %v7983 = vld [vmem:[%s5 + $0x60] sm:$0xff]
        %v7984 = vld [vmem:[%s5 + $0x68] sm:$0xff]
        %v7985 = vld [vmem:[%s5 + $0x70] sm:$0xff]
        %v7986 = vld [vmem:[%s5 + $0x78] sm:$0xff]
        %v7987 = vld [vmem:[%s5 + $0x80] sm:$0xff]
        %v7988 = vld [vmem:[%s5 + $0x88] sm:$0xff]
        %v7989 = vld [vmem:[%s5 + $0x90] sm:$0xff]
        %v7990 = vld [vmem:[%s5 + $0x98] sm:$0xff]
        %v7991 = vld [vmem:[%s5 + $0xa0] sm:$0xff]
        %v7992 = vld [vmem:[%s5 + $0xa8] sm:$0xff]
        %v7993 = vld [vmem:[%s5 + $0xb0] sm:$0xff]
        %v7994 = vld [vmem:[%s5 + $0xb8] sm:$0xff]
        %v7995 = vld [vmem:[%s5 + $0xc0] sm:$0xff]
        %v7996 = vld [vmem:[%s5 + $0xc8] sm:$0xff]
        %v7997 = vld [vmem:[%s5 + $0xd0] sm:$0xff]
        %v7998 = vld [vmem:[%s5 + $0xd8] sm:$0xff]
        %v7999 = vld [vmem:[%s5 + $0xe0] sm:$0xff]
        %v8000 = vld [vmem:[%s5 + $0xe8] sm:$0xff]
        %v8001 = vld [vmem:[%s5 + $0xf0] sm:$0xff]
        %v8002 = vld [vmem:[%s5 + $0xf8] sm:$0xff]
        %v8003 = vld [vmem:[%s5 + $0x100] sm:$0xff]
        %v8004 = vld [vmem:[%s5 + $0x108] sm:$0xff]
        %v8005 = vld [vmem:[%s5 + $0x110] sm:$0xff]
        %v8006 = vld [vmem:[%s5 + $0x118] sm:$0xff]
        %v8007 = vld [vmem:[%s5 + $0x120] sm:$0xff]
        %v8008 = vld [vmem:[%s5 + $0x128] sm:$0xff]
        %v8009 = vld [vmem:[%s5 + $0x130] sm:$0xff]
        %v8010 = vld [vmem:[%s5 + $0x138] sm:$0xff]
        %v8011 = vld [vmem:[%s5 + $0x140] sm:$0xff]
        %v8012 = vld [vmem:[%s5 + $0x148] sm:$0xff]
        %v8013 = vld [vmem:[%s5 + $0x150] sm:$0xff]
        %v8014 = vld [vmem:[%s5 + $0x158] sm:$0xff]
        %v8015 = vld [vmem:[%s5 + $0x160] sm:$0xff]
        %v8016 = vld [vmem:[%s5 + $0x168] sm:$0xff]
        %v8017 = vld [vmem:[%s5 + $0x170] sm:$0xff]
        %v8018 = vld [vmem:[%s5 + $0x178] sm:$0xff]
        %v8019 = vld [vmem:[%s5 + $0x180] sm:$0xff]
        %v8020 = vld [vmem:[%s5 + $0x188] sm:$0xff]
        %v8021 = vld [vmem:[%s5 + $0x190] sm:$0xff]
        %v8022 = vld [vmem:[%s5 + $0x198] sm:$0xff]
        %v8023 = vld [vmem:[%s5 + $0x1a0] sm:$0xff]
        %v8024 = vld [vmem:[%s5 + $0x1a8] sm:$0xff]
        %v8025 = vld [vmem:[%s5 + $0x1b0] sm:$0xff]
        %v8026 = vld [vmem:[%s5 + $0x1b8] sm:$0xff]
        %v8027 = vld [vmem:[%s5 + $0x1c0] sm:$0xff]
        %v8028 = vld [vmem:[%s5 + $0x1c8] sm:$0xff]
        %v8029 = vld [vmem:[%s5 + $0x1d0] sm:$0xff]
        %v8030 = vld [vmem:[%s5 + $0x1d8] sm:$0xff]
        %v8031 = vld [vmem:[%s5 + $0x1e0] sm:$0xff]
        %v8032 = vld [vmem:[%s5 + $0x1e8] sm:$0xff]
        %v8033 = vld [vmem:[%s5 + $0x1f0] sm:$0xff]
        %v8034 = vld [vmem:[%s5 + $0x1f8] sm:$0xff]
        %v8035 = vld [vmem:[%s5 + $0x200] sm:$0xff]
        %v8036 = vld [vmem:[%s5 + $0x208] sm:$0xff]
        %v8037 = vld [vmem:[%s5 + $0x210] sm:$0xff]
        %v8038 = vld [vmem:[%s5 + $0x218] sm:$0xff]
        %v8039 = vld [vmem:[%s5 + $0x220] sm:$0xff]
        %v8040 = vld [vmem:[%s5 + $0x228] sm:$0xff]
        %v8041 = vld [vmem:[%s5 + $0x230] sm:$0xff]
        %v8042 = vld [vmem:[%s5 + $0x238] sm:$0xff]
        %v8043 = vld [vmem:[%s5 + $0x240] sm:$0xff]
        %v8044 = vld [vmem:[%s5 + $0x248] sm:$0xff]
        %v8045 = vld [vmem:[%s5 + $0x250] sm:$0xff]
        %v8046 = vld [vmem:[%s5 + $0x258] sm:$0xff]
        %v8047 = vld [vmem:[%s5 + $0x260] sm:$0xff]
        %v8048 = vld [vmem:[%s5 + $0x268] sm:$0xff]
        %v8049 = vld [vmem:[%s5 + $0x270] sm:$0xff]
        %v8050 = vld [vmem:[%s5 + $0x278] sm:$0xff]
        %v8051 = vld [vmem:[%s5 + $0x280] sm:$0xff]
        %v8052 = vld [vmem:[%s5 + $0x288] sm:$0xff]
        %v8053 = vld [vmem:[%s5 + $0x290] sm:$0xff]
        %v8054 = vld [vmem:[%s5 + $0x298] sm:$0xff]
        %v8055 = vld [vmem:[%s5 + $0x2a0] sm:$0xff]
        %v8056 = vld [vmem:[%s5 + $0x2a8] sm:$0xff]
        %v8057 = vld [vmem:[%s5 + $0x2b0] sm:$0xff]
        %v8058 = vld [vmem:[%s5 + $0x2b8] sm:$0xff]
        %v8059 = vld [vmem:[%s5 + $0x2c0] sm:$0xff]
        %v8060 = vld [vmem:[%s5 + $0x2c8] sm:$0xff]
        %v8061 = vld [vmem:[%s5 + $0x2d0] sm:$0xff]
        %v8062 = vld [vmem:[%s6] sm:$0x1]
        %v8064 = vperm.slane %v8062, 0
        %v8067 = vsel %vm5979, %v7970, 0
        %8069 = vmatpush.msra.mxu0 %v7986
        %8070 = vmatpush.msra.mxu0 %v7985
        %8071 = vmatpush.msra.mxu0 %v7984
        %8072 = vmatpush.msra.mxu0 %v7983
        %8073 = vmatpush.msra.mxu0 %v7982
        %8074 = vmatpush.msra.mxu0 %v7981
        %8075 = vmatpush.msra.mxu0 %v7980
        %8076 = vmatpush.msra.mxu0 %v7979
        %8077 = vmatpush.msra.mxu0 %v7978
        %8078 = vmatpush.msra.mxu0 %v7977
        %8079 = vmatpush.msra.mxu0 %v7976
        %8080 = vmatpush.msra.mxu0 %v7975
        %8081 = vmatpush.msra.mxu0 %v7974
        %8082 = vmatpush.msra.mxu0 %v7973
        %8083 = vmatpush.msra.mxu0 %v7972
        %8084 = vmatpush.msra.mxu0 %v7971
        %8085 = vmatmul.f32.gmra.mxu0 %v7965
        %v8086 = vpop.f32.mrf.mxu0
        %v8087 = vadd.f32 %v8064, %v8086
        %8088 = vdwg.mxu0
        %8089 = vmatpush.msra.mxu0 %v8002
        %8090 = vmatpush.msra.mxu0 %v8001
        %8091 = vmatpush.msra.mxu0 %v8000
        %8092 = vmatpush.msra.mxu0 %v7999
        %8093 = vmatpush.msra.mxu0 %v7998
        %8094 = vmatpush.msra.mxu0 %v7997
        %8095 = vmatpush.msra.mxu0 %v7996
        %8096 = vmatpush.msra.mxu0 %v7995
        %8097 = vmatpush.msra.mxu0 %v7994
        %8098 = vmatpush.msra.mxu0 %v7993
        %8099 = vmatpush.msra.mxu0 %v7992
        %8100 = vmatpush.msra.mxu0 %v7991
        %8101 = vmatpush.msra.mxu0 %v7990
        %8102 = vmatpush.msra.mxu0 %v7989
        %8103 = vmatpush.msra.mxu0 %v7988
        %8104 = vmatpush.msra.mxu0 %v7987
        %8105 = vmatmul.f32.gmra.mxu0 %v7966
        %v8106 = vpop.f32.mrf.mxu0
        %v8107 = vadd.f32 %v8087, %v8106
        %8108 = vdwg.mxu0
        %8109 = vmatpush.msra.mxu0 %v8018
        %8110 = vmatpush.msra.mxu0 %v8017
        %8111 = vmatpush.msra.mxu0 %v8016
        %8112 = vmatpush.msra.mxu0 %v8015
        %8113 = vmatpush.msra.mxu0 %v8014
        %8114 = vmatpush.msra.mxu0 %v8013
        %8115 = vmatpush.msra.mxu0 %v8012
        %8116 = vmatpush.msra.mxu0 %v8011
        %8117 = vmatpush.msra.mxu0 %v8010
        %8118 = vmatpush.msra.mxu0 %v8009
        %8119 = vmatpush.msra.mxu0 %v8008
        %8120 = vmatpush.msra.mxu0 %v8007
        %8121 = vmatpush.msra.mxu0 %v8006
        %8122 = vmatpush.msra.mxu0 %v8005
        %8123 = vmatpush.msra.mxu0 %v8004
        %8124 = vmatpush.msra.mxu0 %v8003
        %8125 = vmatmul.f32.gmra.mxu0 %v7967
        %v8126 = vpop.f32.mrf.mxu0
        %v8127 = vadd.f32 %v8107, %v8126
        %8128 = vdwg.mxu0
        %8129 = vmatpush.msra.mxu0 %v8034
        %8130 = vmatpush.msra.mxu0 %v8033
        %8131 = vmatpush.msra.mxu0 %v8032
        %8132 = vmatpush.msra.mxu0 %v8031
        %8133 = vmatpush.msra.mxu0 %v8030
        %8134 = vmatpush.msra.mxu0 %v8029
        %8135 = vmatpush.msra.mxu0 %v8028
        %8136 = vmatpush.msra.mxu0 %v8027
        %8137 = vmatpush.msra.mxu0 %v8026
        %8138 = vmatpush.msra.mxu0 %v8025
        %8139 = vmatpush.msra.mxu0 %v8024
        %8140 = vmatpush.msra.mxu0 %v8023
        %8141 = vmatpush.msra.mxu0 %v8022
        %8142 = vmatpush.msra.mxu0 %v8021
        %8143 = vmatpush.msra.mxu0 %v8020
        %8144 = vmatpush.msra.mxu0 %v8019
        %8145 = vmatmul.f32.gmra.mxu0 %v7968
        %v8146 = vpop.f32.mrf.mxu0
        %v8147 = vadd.f32 %v8127, %v8146
        %8148 = vdwg.mxu0
        %8149 = vmatpush.msra.mxu0 %v8050
        %8150 = vmatpush.msra.mxu0 %v8049
        %8151 = vmatpush.msra.mxu0 %v8048
        %8152 = vmatpush.msra.mxu0 %v8047
        %8153 = vmatpush.msra.mxu0 %v8046
        %8154 = vmatpush.msra.mxu0 %v8045
        %8155 = vmatpush.msra.mxu0 %v8044
        %8156 = vmatpush.msra.mxu0 %v8043
        %8157 = vmatpush.msra.mxu0 %v8042
        %8158 = vmatpush.msra.mxu0 %v8041
        %8159 = vmatpush.msra.mxu0 %v8040
        %8160 = vmatpush.msra.mxu0 %v8039
        %8161 = vmatpush.msra.mxu0 %v8038
        %8162 = vmatpush.msra.mxu0 %v8037
        %8163 = vmatpush.msra.mxu0 %v8036
        %8164 = vmatpush.msra.mxu0 %v8035
        %8165 = vmatmul.f32.gmra.mxu0 %v7969
        %v8166 = vpop.f32.mrf.mxu0
        %v8167 = vadd.f32 %v8147, %v8166
        %8168 = vdwg.mxu0
        %8169 = vmatpush.msra.mxu0 0.0
        %8170 = vmatpush.msra.mxu0 0.0
        %8171 = vmatpush.msra.mxu0 0.0
        %8172 = vmatpush.msra.mxu0 0.0
        %8173 = vmatpush.msra.mxu0 0.0
        %8174 = vmatpush.msra.mxu0 %v8061
        %8175 = vmatpush.msra.mxu0 %v8060
        %8176 = vmatpush.msra.mxu0 %v8059
        %8177 = vmatpush.msra.mxu0 %v8058
        %8178 = vmatpush.msra.mxu0 %v8057
        %8179 = vmatpush.msra.mxu0 %v8056
        %8180 = vmatpush.msra.mxu0 %v8055
        %8181 = vmatpush.msra.mxu0 %v8054
        %8182 = vmatpush.msra.mxu0 %v8053
        %8183 = vmatpush.msra.mxu0 %v8052
        %8184 = vmatpush.msra.mxu0 %v8051
        %8185 = vmatmul.f32.gmra.mxu0 %v8067
        %v8186 = vpop.f32.mrf.mxu0
        %v8187 = vadd.f32 %v8167, %v8186
        %8188 = vdwg.mxu0
        %8189 = vst [vmem:[%s272] sm:$0xff] %v8187
        %s8190 = sand.u32 %s181, 1
        %s8191 = scalar_lea.sflag [#allocation7], %s8190
        %s8192 = sand.u32 %s181, 1
        %s8193 = smul.addr %s8192, 8
        %s8194 = scalar_lea.vmem [#allocation6], %s8193
        // Predicated region
        $region49: #{forward.3} parent=47 // pred_check
          %p8195 = pneg %p191
        $region50: #{forward.3} parent=47 // pred_check_branch
          %8197 = sbr.rel (%p8195) target = $region52
        $region51: #{forward.3} parent=47 // pred_region
          %8199 = vsyncadd %s8191, 0
          %s8200 = smul.addr %s21, 8
          %s8201 = scalar_lea.hbm %s7, %s8200
          %s8203 = sshll.u32 %s8194, 4
          %s8204 = int_to_ptr.vmem [resolvable:$true] %s8203
          %s8205 = sshll.u32 %s8201, 4
          %s8206 = int_to_ptr.hbm [resolvable:$true] %s8205
          %8208 = dma.vmem_to_hbm [thread:$0]  %s8204, 128, %s8206, %s8191
        $region52: #{forward.3} parent=47 // pred_fallthru
          _
      $region48: #{forward.3} parent=5 // pred_fallthru
        _
      %p8209 = scmp.le.s32.totalorder 2, %s16
      // Predicated region
      $region53: #{forward.3} parent=5 // pred_check
        %p8210 = pneg %p8209
      $region54: #{forward.3} parent=5 // pred_check_branch
        %8212 = sbr.rel (%p8210) target = $region56
      $region55: #{forward.3} parent=5 // pred_region
        %s8213 = ssub.s32 %s16, 2
        // Predicated region
        $region57: #{forward.3} parent=55 // pred_check
          %p8214 = pneg %p197
        $region58: #{forward.3} parent=55 // pred_check_branch
          %8216 = sbr.rel (%p8214) target = $region60
        $region59: #{forward.3} parent=55 // pred_region
          %s8217 = sand.u32 %s182, 1
          %s8218 = scalar_lea.sflag [#allocation7], %s8217
          %s8219 = sand.u32 %s182, 1
          %s8220 = smul.addr %s8219, 8
          %s8221 = scalar_lea.vmem [#allocation6], %s8220
          %8223 = dma.done %s8218, 128
        $region60: #{forward.3} parent=55 // pred_fallthru
          _
      $region56: #{forward.3} parent=5 // pred_fallthru
        _
    $region6: #{forward.3} parent=1 // loop_footer
      %s20 = sadd.s32 1, %s16
    $region7: #{forward.3} parent=1 // loop_footer_branch
      %15 = sbr.rel target = $region3
    $region8: #{forward.3} parent=1 // loop_exit
      _
    %8224 = vsyncpa [#allocation7], 1
    %s8225 = scalar_lea.sflag [#allocation7], 1
    %8226 = vsyncpa %s8225, 1

</llo_original>
